<compile_context>
chip_gen: v6e
topology: v6e:2x2x1
jax: 0.10.0
libtpu: 0.0.40
codegen_flags: <defaults>
</compile_context>

<pallas_src>
import jax
import jax.numpy as jnp
from jax.experimental import pallas as pl
from jax.experimental.pallas import tpu as pltpu


# ----------------------------------------------------------------------------
# Wrapper-side parameter preparation (pure JAX, runs once per layer).
# ----------------------------------------------------------------------------

def _toeplitz_weight(w_oihw, W, pad):
    """Fold the kw taps of a conv weight into a banded matmul slab.

    w_oihw: (Cout, Cin, kh, kw) PyTorch-layout weight.  Returns T of shape
    (kh, W*Cin, W*Cout) (no column halo: out-of-range columns simply get no
    contribution, equivalent to zero padding) such that
        out[h, wo*Cout + co] = sum_dy  xrow_pad[h + dy, :] @ T[dy]
    where xrow_pad has an H halo only (two zero rows) and rows flattened to
    (W*Cin,) with w-major / c-minor lane layout.
    """
    Cout, Cin, kh, kw = w_oihw.shape
    w_hwio = jnp.transpose(w_oihw, (2, 3, 1, 0)).astype(jnp.float32)  # (kh,kw,Ci,Co)
    wi = jnp.arange(W)
    wo = jnp.arange(W)
    dx = jnp.arange(kw)
    # input col wi feeds output col wo at tap dx iff wi == wo + dx - pad
    ind = (wi[:, None, None] == (wo[None, None, :] + dx[None, :, None] - pad)
           ).astype(jnp.float32)                                      # (W, kw, W)
    t = jnp.einsum('idw,ydco->yicwo', ind, w_hwio)                    # (kh,W,Ci,W,Co)
    return t.reshape(kh, W * Cin, W * Cout)


def _fold_bn_tiled(p, W, eps):
    """Fold conv bias + eval-mode BN into (scale, bias), tiled over W lanes."""
    scale = p['gamma'] / jnp.sqrt(p['var'] + eps)
    bias = (p['b'] - p['mean']) * scale + p['beta']
    cout = scale.shape[0]
    scale_t = jnp.tile(scale, W).reshape(1, W * cout).astype(jnp.float32)
    bias_t = jnp.tile(bias, W).reshape(1, W * cout).astype(jnp.float32)
    return scale_t, bias_t


def _prep_cba(p, W, pad, eps):
    t = _toeplitz_weight(p['w'], W, pad).astype(jnp.bfloat16)
    scale_t, bias_t = _fold_bn_tiled(p, W, eps)
    return t, scale_t, bias_t


def _interp_matrix(n_out, n_in):
    """1-D bilinear (align_corners=True) interpolation matrix (n_out, n_in)."""
    step = 0.0 if n_out <= 1 else (n_in - 1) / (n_out - 1)
    src = jnp.arange(n_out, dtype=jnp.float32) * step
    lo = jnp.clip(jnp.floor(src).astype(jnp.int32), 0, n_in - 1)
    hi = jnp.clip(lo + 1, 0, n_in - 1)
    w_hi = src - lo.astype(jnp.float32)
    cols = jnp.arange(n_in)
    m = ((cols[None, :] == lo[:, None]) * (1.0 - w_hi)[:, None]
         + (cols[None, :] == hi[:, None]) * w_hi[:, None])
    return m.astype(jnp.float32)


def _lane_interp_matrix(ux, C):
    """Expand a (Wo, W) column-interp matrix to lane space: (W*C, Wo*C)."""
    Wo, W = ux.shape
    eye = jnp.eye(C, dtype=jnp.float32)
    m = jnp.einsum('pw,cd->wcpd', ux, eye)      # m[w,c,p,d] = ux[p,w] * I[c,d]
    return m.reshape(W * C, Wo * C)


def _maxpool2x2(x_nhwc):
    n, h, w, c = x_nhwc.shape
    return x_nhwc.reshape(n, h // 2, 2, w // 2, 2, c).max(axis=(2, 4))


# ----------------------------------------------------------------------------
# The fused kernel.
# ----------------------------------------------------------------------------

def _make_fused_kernel(Hx, Wx, C0, H, W, C1, C2):
    WC1 = W * C1
    bf16 = jnp.bfloat16

    def kernel(x_ref, l_ref, vl_ref,
               t_o_ref, s_o_ref, b_o_ref, mx_ref, uy_ref,
               t_l_ref, s_l_ref, b_l_ref,
               t_v_ref, s_v_ref, b_v_ref,
               t_c_ref, s_c_ref, b_c_ref,
               t_1_ref, s_1_ref, b_1_ref,
               o_ref,
               xpad_ref, lpad_ref, vpad_ref, cpad_ref):
        # Zero only the H-halo rows; the interiors are fully overwritten below.
        # Done every step (a few KB of stores) so it stays correct when the
        # batch grid axis is sharded across TensorCores.
        xpad_ref[0:1, :] = jnp.zeros((1, Wx * C0), bf16)
        xpad_ref[Hx + 1:Hx + 2, :] = jnp.zeros((1, Wx * C0), bf16)
        lpad_ref[0:1, :] = jnp.zeros((1, WC1), bf16)
        lpad_ref[H + 1:H + 2, :] = jnp.zeros((1, WC1), bf16)
        vpad_ref[0:1, :] = jnp.zeros((1, W * C2), bf16)
        vpad_ref[H + 1:H + 2, :] = jnp.zeros((1, W * C2), bf16)
        cpad_ref[0:1, :] = jnp.zeros((1, 3 * WC1), bf16)
        cpad_ref[H + 1:H + 2, :] = jnp.zeros((1, 3 * WC1), bf16)

        def conv3(pad_ref, rows, t_ref, s_ref, b_ref):
            n_out = t_ref.shape[2]
            acc = jnp.zeros((rows, n_out), jnp.float32)
            for dy in range(3):          # static unroll: 3 MXU matmuls, big K
                acc += jnp.dot(pad_ref[dy:dy + rows, :], t_ref[dy],
                               preferred_element_type=jnp.float32)
            return jnp.maximum(acc * s_ref[...] + b_ref[...], 0.0)

        # ---- origin: CBA3x3(C0->C1) + fused bilinear x2 (align_corners) ----
        xpad_ref[1:Hx + 1, :] = x_ref[0]
        y_o = conv3(xpad_ref, Hx, t_o_ref, s_o_ref, b_o_ref)     # (Hx, Wx*C1)
        # lane (column) interp first, then row interp (fewer MACs, lane-dense N)
        up = jnp.dot(y_o.astype(bf16), mx_ref[...],
                     preferred_element_type=jnp.float32)          # (Hx, W*C1)
        xo = jnp.dot(uy_ref[...], up.astype(bf16),
                     preferred_element_type=jnp.float32)          # (H, W*C1)

        # ---- large: CBA3x3(C1->C1) ------------------------------------------
        lpad_ref[1:H + 1, :] = l_ref[0]
        lo = conv3(lpad_ref, H, t_l_ref, s_l_ref, b_l_ref)        # (H, W*C1)

        # ---- verylarge: fused 2x2 maxpool + CBA3x3(C2->C1) ------------------
        v = jnp.maximum(jnp.maximum(vl_ref[0, 0], vl_ref[0, 1]),
                        jnp.maximum(vl_ref[0, 2], vl_ref[0, 3]))  # (H, W*C2)
        vpad_ref[1:H + 1, :] = v
        vo = conv3(vpad_ref, H, t_v_ref, s_v_ref, b_v_ref)        # (H, W*C1)

        # ---- cat -> CBA3x3(3*C1->C1) -> +res -> CBA1x1(C1->C1) --------------
        # Branches side by side on the lane axis (128-aligned bases 0/256/512);
        # the concatenated tensor never exists in HBM.
        cpad_ref[1:H + 1, 0:WC1] = xo.astype(bf16)
        cpad_ref[1:H + 1, WC1:2 * WC1] = lo.astype(bf16)
        cpad_ref[1:H + 1, 2 * WC1:3 * WC1] = vo.astype(bf16)
        y = conv3(cpad_ref, H, t_c_ref, s_c_ref, b_c_ref)         # (H, W*C1)
        y = y + l_ref[0].astype(jnp.float32)                      # residual = l
        z = jnp.dot(y.astype(bf16), t_1_ref[...],
                    preferred_element_type=jnp.float32)
        o_ref[0] = jnp.maximum(z * s_1_ref[...] + b_1_ref[...], 0.0
                               ).astype(o_ref.dtype)

    return kernel


# ----------------------------------------------------------------------------
# Module forward (matches Feature_Aggreation_Module.forward, eval-mode BN).
# ----------------------------------------------------------------------------

def feature_aggregation_forward(x_nchw, l_nchw, vl_nchw, params, eps=1e-5):
    N, C0, Hx, Wx = x_nchw.shape
    _, C1, H, W = l_nchw.shape
    _, C2, Hv, Wv = vl_nchw.shape
    assert (2 * Hx, 2 * Wx) == (H, W) and (Hv, Wv) == (2 * H, 2 * W)

    bf16 = jnp.bfloat16
    # NCHW -> NHWC once at the module boundary; everything else stays
    # lane-flattened NHWC inside one fused kernel.
    x_nhwc = jnp.transpose(x_nchw, (0, 2, 3, 1))
    l_nhwc = jnp.transpose(l_nchw, (0, 2, 3, 1))
    vl_nhwc = jnp.transpose(vl_nchw, (0, 2, 3, 1))

    x_flat = x_nhwc.reshape(N, Hx, Wx * C0).astype(bf16)
    l_flat = l_nhwc.reshape(N, H, W * C1).astype(bf16)
    # Pre-split the 4 candidates of the 2x2 maxpool onto a leading axis so the
    # pool is a pure VPU max inside the kernel (single XLA copy, fuses with the
    # NCHW->NHWC transpose; the pooled map never makes an HBM round trip).
    vl_split = (vl_nhwc.reshape(N, H, 2, W, 2, C2)
                .transpose(0, 2, 4, 1, 3, 5)
                .reshape(N, 4, H, W * C2).astype(bf16))

    # Weights / folded BN (column-halo-free Toeplitz slabs, bf16).
    t_o, s_o, b_o = _prep_cba(params['origin'], Wx, 1, eps)
    t_l, s_l, b_l = _prep_cba(params['large'], W, 1, eps)
    t_v, s_v, b_v = _prep_cba(params['verylarge'], W, 1, eps)
    w_cat = params['cat']['w']
    t_c = jnp.concatenate(
        [_toeplitz_weight(w_cat[:, b * C1:(b + 1) * C1], W, 1) for b in range(3)],
        axis=1).astype(bf16)                                 # (3, 3*W*C1, W*C1)
    s_c, b_c = _fold_bn_tiled(params['cat'], W, eps)
    t_1 = _toeplitz_weight(params['conv']['w'], W, 0)[0].astype(bf16)
    s_1, b_1 = _fold_bn_tiled(params['conv'], W, eps)

    # Bilinear x2 (align_corners=True) interpolation matrices, bf16.
    uy = _interp_matrix(H, Hx).astype(bf16)                  # (H, Hx)
    mx = _lane_interp_matrix(_interp_matrix(W, Wx), C1).astype(bf16)  # (Wx*C1, W*C1)

    consts = (t_o, s_o, b_o, mx, uy, t_l, s_l, b_l, t_v, s_v, b_v,
              t_c, s_c, b_c, t_1, s_1, b_1)

    # VMEM budget: double-buffered per-step operands + scratch + margin,
    # capped at 48 MiB so the configuration is safe on v7x (64 MiB VMEM).
    # TODO(synk): raise toward 64-100 MiB on v5e/v6e when tiling realistic maps.
    def _nbytes(a):
        return a.size * a.dtype.itemsize
    act_block = (_nbytes(x_flat) + _nbytes(l_flat) + _nbytes(vl_split)) // N
    out_block = H * W * C1 * 4
    weight_bytes = sum(_nbytes(a) for a in consts)
    scratch_bytes = 2 * ((Hx + 2) * Wx * C0 + (H + 2) * W * C1
                         + (H + 2) * W * C2 + (H + 2) * 3 * W * C1)
    vmem_bytes = int(min(48 << 20,
                         max(32 << 20,
                             2 * (act_block + out_block + weight_bytes)
                             + scratch_bytes + (4 << 20))))

    const2 = lambda n: (0, 0)
    const3 = lambda n: (0, 0, 0)
    in_specs = [
        pl.BlockSpec((1, Hx, Wx * C0), lambda n: (n, 0, 0)),          # x
        pl.BlockSpec((1, H, W * C1), lambda n: (n, 0, 0)),            # l (conv + res)
        pl.BlockSpec((1, 4, H, W * C2), lambda n: (n, 0, 0, 0)),      # vl (pool split)
        pl.BlockSpec((3, Wx * C0, Wx * C1), const3),                  # t_o
        pl.BlockSpec((1, Wx * C1), const2),                           # s_o
        pl.BlockSpec((1, Wx * C1), const2),                           # b_o
        pl.BlockSpec((Wx * C1, W * C1), const2),                      # mx
        pl.BlockSpec((H, Hx), const2),                                # uy
        pl.BlockSpec((3, W * C1, W * C1), const3),                    # t_l
        pl.BlockSpec((1, W * C1), const2),                            # s_l
        pl.BlockSpec((1, W * C1), const2),                            # b_l
        pl.BlockSpec((3, W * C2, W * C1), const3),                    # t_v
        pl.BlockSpec((1, W * C1), const2),                            # s_v
        pl.BlockSpec((1, W * C1), const2),                            # b_v
        pl.BlockSpec((3, 3 * W * C1, W * C1), const3),                # t_c
        pl.BlockSpec((1, W * C1), const2),                            # s_c
        pl.BlockSpec((1, W * C1), const2),                            # b_c
        pl.BlockSpec((W * C1, W * C1), const2),                       # t_1
        pl.BlockSpec((1, W * C1), const2),                            # s_1
        pl.BlockSpec((1, W * C1), const2),                            # b_1
    ]
    scratch_shapes = [
        pltpu.VMEM((Hx + 2, Wx * C0), bf16),      # origin padded rows (H halo)
        pltpu.VMEM((H + 2, W * C1), bf16),        # large padded rows
        pltpu.VMEM((H + 2, W * C2), bf16),        # verylarge padded rows
        pltpu.VMEM((H + 2, 3 * W * C1), bf16),    # concat padded rows
    ]

    out_flat = pl.pallas_call(
        _make_fused_kernel(Hx, Wx, C0, H, W, C1, C2),
        out_shape=jax.ShapeDtypeStruct((N, H, W * C1), jnp.float32),
        grid_spec=pltpu.PrefetchScalarGridSpec(
            num_scalar_prefetch=0,
            grid=(N,),
            in_specs=in_specs,
            out_specs=pl.BlockSpec((1, H, W * C1), lambda n: (n, 0, 0)),
            scratch_shapes=scratch_shapes,
        ),
        compiler_params=pltpu.CompilerParams(
            dimension_semantics=("parallel",),
            vmem_limit_bytes=vmem_bytes),
    )(x_flat, l_flat, vl_split, *consts)

    return jnp.transpose(out_flat.reshape(N, H, W, C1), (0, 3, 1, 2))


# ----------------------------------------------------------------------------
# Pure-JAX f32 reference (numerical sanity check).
# ----------------------------------------------------------------------------

def _ref_cba(x_nhwc, p, pad, eps=1e-5):
    w_hwio = jnp.transpose(p['w'], (2, 3, 1, 0))
    y = jax.lax.conv_general_dilated(
        x_nhwc, w_hwio, window_strides=(1, 1),
        padding=((pad, pad), (pad, pad)),
        dimension_numbers=('NHWC', 'HWIO', 'NHWC'))
    y = y + p['b']
    y = (y - p['mean']) / jnp.sqrt(p['var'] + eps) * p['gamma'] + p['beta']
    return jnp.maximum(y, 0.0)


def ref_forward(x_nchw, l_nchw, vl_nchw, params):
    x = jnp.transpose(x_nchw, (0, 2, 3, 1))
    l = jnp.transpose(l_nchw, (0, 2, 3, 1))
    vl = jnp.transpose(vl_nchw, (0, 2, 3, 1))
    xo = _ref_cba(x, params['origin'], 1)
    uy = _interp_matrix(2 * xo.shape[1], xo.shape[1])
    ux = _interp_matrix(2 * xo.shape[2], xo.shape[2])
    xo = jnp.einsum('oh,nhwc->nowc', uy, xo)
    xo = jnp.einsum('pw,nowc->nopc', ux, xo)
    res = l
    lo = _ref_cba(l, params['large'], 1)
    vo = _ref_cba(_maxpool2x2(vl), params['verylarge'], 1)
    y = _ref_cba(jnp.concatenate([xo, lo, vo], axis=-1), params['cat'], 1)
    y = y + res
    y = _ref_cba(y, params['conv'], 0)
    return jnp.transpose(y, (0, 3, 1, 2))


def _make_cba_params(key, cin, cout, k):
    ks = jax.random.split(key, 6)
    fan_in = cin * k * k
    return dict(
        w=jax.random.normal(ks[0], (cout, cin, k, k), jnp.float32) / jnp.sqrt(fan_in),
        b=0.1 * jax.random.normal(ks[1], (cout,), jnp.float32),
        gamma=1.0 + 0.1 * jax.random.normal(ks[2], (cout,), jnp.float32),
        beta=0.1 * jax.random.normal(ks[3], (cout,), jnp.float32),
        mean=0.1 * jax.random.normal(ks[4], (cout,), jnp.float32),
        var=jnp.abs(1.0 + 0.1 * jax.random.normal(ks[5], (cout,), jnp.float32)),
    )


if __name__ == "__main__":
    key = jax.random.PRNGKey(0)
    keys = jax.random.split(key, 8)

    channel = (4, 16, 32)        # (channel[0], channel[1], channel[2])
    N = 2
    Hx = Wx = 8                  # x spatial (upsampled x2 -> 16)
    H = W = 16                   # l spatial
    Hv = Wv = 32                 # vl spatial (maxpooled /2 -> 16)

    x = jax.random.normal(keys[0], (N, channel[0], Hx, Wx), jnp.float32)
    l = jax.random.normal(keys[1], (N, channel[1], H, W), jnp.float32)
    vl = jax.random.normal(keys[2], (N, channel[2], Hv, Wv), jnp.float32)

    params = {
        'origin':    _make_cba_params(keys[3], channel[0], channel[1], 3),
        'large':     _make_cba_params(keys[4], channel[1], channel[1], 3),
        'verylarge': _make_cba_params(keys[5], channel[2], channel[1], 3),
        'cat':       _make_cba_params(keys[6], 3 * channel[1], channel[1], 3),
        'conv':      _make_cba_params(keys[7], channel[1], channel[1], 1),
    }

    out = feature_aggregation_forward(x, l, vl, params)
    out = jax.block_until_ready(out)
    assert out.shape == (N, channel[1], H, W)

    ref = ref_forward(x, l, vl, params)
    max_err = float(jnp.max(jnp.abs(out - ref)))
    # bf16 activations/weights/interp inside the kernel -> loose tolerance
    assert max_err < 0.35, f"max abs error vs f32 reference: {max_err}"

    print("KERNEL_OK")
</pallas_src>

<mosaic_0001>
module attributes {stable_mosaic.version = 11 : i64} {
  func.func @kernel(%arg0: i32, %arg1: memref<1x8x32xbf16, #tpu.memory_space<vmem>>, %arg2: memref<1x16x256xbf16, #tpu.memory_space<vmem>>, %arg3: memref<1x4x16x512xbf16, #tpu.memory_space<vmem>>, %arg4: memref<3x32x128xbf16, #tpu.memory_space<vmem>>, %arg5: memref<1x128xf32, #tpu.memory_space<vmem>>, %arg6: memref<1x128xf32, #tpu.memory_space<vmem>>, %arg7: memref<128x256xbf16, #tpu.memory_space<vmem>>, %arg8: memref<16x8xbf16, #tpu.memory_space<vmem>>, %arg9: memref<3x256x256xbf16, #tpu.memory_space<vmem>>, %arg10: memref<1x256xf32, #tpu.memory_space<vmem>>, %arg11: memref<1x256xf32, #tpu.memory_space<vmem>>, %arg12: memref<3x512x256xbf16, #tpu.memory_space<vmem>>, %arg13: memref<1x256xf32, #tpu.memory_space<vmem>>, %arg14: memref<1x256xf32, #tpu.memory_space<vmem>>, %arg15: memref<3x768x256xbf16, #tpu.memory_space<vmem>>, %arg16: memref<1x256xf32, #tpu.memory_space<vmem>>, %arg17: memref<1x256xf32, #tpu.memory_space<vmem>>, %arg18: memref<256x256xbf16, #tpu.memory_space<vmem>>, %arg19: memref<1x256xf32, #tpu.memory_space<vmem>>, %arg20: memref<1x256xf32, #tpu.memory_space<vmem>>, %arg21: memref<1x16x256xf32, #tpu.memory_space<vmem>>, %arg22: memref<10x32xbf16, #tpu.memory_space<vmem>>, %arg23: memref<18x256xbf16, #tpu.memory_space<vmem>>, %arg24: memref<18x512xbf16, #tpu.memory_space<vmem>>, %arg25: memref<18x768xbf16, #tpu.memory_space<vmem>>) attributes {dimension_semantics = [#tpu.dimension_semantics<parallel>], iteration_bounds = array<i64: 2>, scalar_prefetch = 0 : i64, scratch_operands = 4 : i64, tpu.core_type = #tpu.core_type<tc>, window_params = [{transform_indices = @transform_0, window_bounds = array<i64: 1, 8, 32>}, {transform_indices = @transform_1, window_bounds = array<i64: 1, 16, 256>}, {transform_indices = @transform_2, window_bounds = array<i64: 1, 4, 16, 512>}, {pipeline_mode = #tpu.pipeline_mode<synchronous>, transform_indices = @transform_3, window_bounds = array<i64: 3, 32, 128>}, {pipeline_mode = #tpu.pipeline_mode<synchronous>, transform_indices = @transform_4, window_bounds = array<i64: 1, 128>}, {pipeline_mode = #tpu.pipeline_mode<synchronous>, transform_indices = @transform_5, window_bounds = array<i64: 1, 128>}, {pipeline_mode = #tpu.pipeline_mode<synchronous>, transform_indices = @transform_6, window_bounds = array<i64: 128, 256>}, {pipeline_mode = #tpu.pipeline_mode<synchronous>, transform_indices = @transform_7, window_bounds = array<i64: 16, 8>}, {pipeline_mode = #tpu.pipeline_mode<synchronous>, transform_indices = @transform_8, window_bounds = array<i64: 3, 256, 256>}, {pipeline_mode = #tpu.pipeline_mode<synchronous>, transform_indices = @transform_9, window_bounds = array<i64: 1, 256>}, {pipeline_mode = #tpu.pipeline_mode<synchronous>, transform_indices = @transform_10, window_bounds = array<i64: 1, 256>}, {pipeline_mode = #tpu.pipeline_mode<synchronous>, transform_indices = @transform_11, window_bounds = array<i64: 3, 512, 256>}, {pipeline_mode = #tpu.pipeline_mode<synchronous>, transform_indices = @transform_12, window_bounds = array<i64: 1, 256>}, {pipeline_mode = #tpu.pipeline_mode<synchronous>, transform_indices = @transform_13, window_bounds = array<i64: 1, 256>}, {pipeline_mode = #tpu.pipeline_mode<synchronous>, transform_indices = @transform_14, window_bounds = array<i64: 3, 768, 256>}, {pipeline_mode = #tpu.pipeline_mode<synchronous>, transform_indices = @transform_15, window_bounds = array<i64: 1, 256>}, {pipeline_mode = #tpu.pipeline_mode<synchronous>, transform_indices = @transform_16, window_bounds = array<i64: 1, 256>}, {pipeline_mode = #tpu.pipeline_mode<synchronous>, transform_indices = @transform_17, window_bounds = array<i64: 256, 256>}, {pipeline_mode = #tpu.pipeline_mode<synchronous>, transform_indices = @transform_18, window_bounds = array<i64: 1, 256>}, {pipeline_mode = #tpu.pipeline_mode<synchronous>, transform_indices = @transform_19, window_bounds = array<i64: 1, 256>}, {transform_indices = @transform_20, window_bounds = array<i64: 1, 16, 256>}]} {
    %cst = arith.constant 0.000000e+00 : bf16
    %0 = vector.broadcast %cst : bf16 to vector<1x32xbf16>
    %c0 = arith.constant 0 : index
    %c0_0 = arith.constant 0 : index
    %1 = vector.load %arg22[%c0, %c0_0] : memref<10x32xbf16, #tpu.memory_space<vmem>>, vector<1x32xbf16>
    tpu.vector_store %arg22[%c0, %c0_0], %0 {strides = array<i32>} : memref<10x32xbf16, #tpu.memory_space<vmem>>, vector<1x32xbf16>,
    %cst_1 = arith.constant 0.000000e+00 : bf16
    %2 = vector.broadcast %cst_1 : bf16 to vector<1x32xbf16>
    %c9 = arith.constant 9 : index
    %c0_2 = arith.constant 0 : index
    %3 = vector.load %arg22[%c9, %c0_2] : memref<10x32xbf16, #tpu.memory_space<vmem>>, vector<1x32xbf16>
    tpu.vector_store %arg22[%c9, %c0_2], %2 {strides = array<i32>} : memref<10x32xbf16, #tpu.memory_space<vmem>>, vector<1x32xbf16>,
    %cst_3 = arith.constant 0.000000e+00 : bf16
    %4 = vector.broadcast %cst_3 : bf16 to vector<1x256xbf16>
    %c0_4 = arith.constant 0 : index
    %c0_5 = arith.constant 0 : index
    %5 = vector.load %arg23[%c0_4, %c0_5] : memref<18x256xbf16, #tpu.memory_space<vmem>>, vector<1x256xbf16>
    tpu.vector_store %arg23[%c0_4, %c0_5], %4 {strides = array<i32>} : memref<18x256xbf16, #tpu.memory_space<vmem>>, vector<1x256xbf16>,
    %cst_6 = arith.constant 0.000000e+00 : bf16
    %6 = vector.broadcast %cst_6 : bf16 to vector<1x256xbf16>
    %c17 = arith.constant 17 : index
    %c0_7 = arith.constant 0 : index
    %7 = vector.load %arg23[%c17, %c0_7] : memref<18x256xbf16, #tpu.memory_space<vmem>>, vector<1x256xbf16>
    tpu.vector_store %arg23[%c17, %c0_7], %6 {strides = array<i32>} : memref<18x256xbf16, #tpu.memory_space<vmem>>, vector<1x256xbf16>,
    %cst_8 = arith.constant 0.000000e+00 : bf16
    %8 = vector.broadcast %cst_8 : bf16 to vector<1x512xbf16>
    %c0_9 = arith.constant 0 : index
    %c0_10 = arith.constant 0 : index
    %9 = vector.load %arg24[%c0_9, %c0_10] : memref<18x512xbf16, #tpu.memory_space<vmem>>, vector<1x512xbf16>
    tpu.vector_store %arg24[%c0_9, %c0_10], %8 {strides = array<i32>} : memref<18x512xbf16, #tpu.memory_space<vmem>>, vector<1x512xbf16>,
    %cst_11 = arith.constant 0.000000e+00 : bf16
    %10 = vector.broadcast %cst_11 : bf16 to vector<1x512xbf16>
    %c17_12 = arith.constant 17 : index
    %c0_13 = arith.constant 0 : index
    %11 = vector.load %arg24[%c17_12, %c0_13] : memref<18x512xbf16, #tpu.memory_space<vmem>>, vector<1x512xbf16>
    tpu.vector_store %arg24[%c17_12, %c0_13], %10 {strides = array<i32>} : memref<18x512xbf16, #tpu.memory_space<vmem>>, vector<1x512xbf16>,
    %cst_14 = arith.constant 0.000000e+00 : bf16
    %12 = vector.broadcast %cst_14 : bf16 to vector<1x768xbf16>
    %c0_15 = arith.constant 0 : index
    %c0_16 = arith.constant 0 : index
    %13 = vector.load %arg25[%c0_15, %c0_16] : memref<18x768xbf16, #tpu.memory_space<vmem>>, vector<1x768xbf16>
    tpu.vector_store %arg25[%c0_15, %c0_16], %12 {strides = array<i32>} : memref<18x768xbf16, #tpu.memory_space<vmem>>, vector<1x768xbf16>,
    %cst_17 = arith.constant 0.000000e+00 : bf16
    %14 = vector.broadcast %cst_17 : bf16 to vector<1x768xbf16>
    %c17_18 = arith.constant 17 : index
    %c0_19 = arith.constant 0 : index
    %15 = vector.load %arg25[%c17_18, %c0_19] : memref<18x768xbf16, #tpu.memory_space<vmem>>, vector<1x768xbf16>
    tpu.vector_store %arg25[%c17_18, %c0_19], %14 {strides = array<i32>} : memref<18x768xbf16, #tpu.memory_space<vmem>>, vector<1x768xbf16>,
    %c0_20 = arith.constant 0 : index
    %c0_21 = arith.constant 0 : index
    %c0_22 = arith.constant 0 : index
    %16 = vector.load %arg1[%c0_20, %c0_21, %c0_22] : memref<1x8x32xbf16, #tpu.memory_space<vmem>>, vector<1x8x32xbf16>
    %17 = vector.shape_cast %16 : vector<1x8x32xbf16> to vector<8x32xbf16>
    %c1 = arith.constant 1 : index
    %c0_23 = arith.constant 0 : index
    %18 = vector.load %arg22[%c1, %c0_23] : memref<10x32xbf16, #tpu.memory_space<vmem>>, vector<8x32xbf16>
    tpu.vector_store %arg22[%c1, %c0_23], %17 {strides = array<i32>} : memref<10x32xbf16, #tpu.memory_space<vmem>>, vector<8x32xbf16>,
    %cst_24 = arith.constant 0.000000e+00 : f32
    %19 = vector.broadcast %cst_24 : f32 to vector<8x128xf32>
    %c0_25 = arith.constant 0 : index
    %c0_26 = arith.constant 0 : index
    %20 = vector.load %arg22[%c0_25, %c0_26] : memref<10x32xbf16, #tpu.memory_space<vmem>>, vector<8x32xbf16>
    %c0_27 = arith.constant 0 : index
    %c0_28 = arith.constant 0 : index
    %c0_29 = arith.constant 0 : index
    %21 = vector.load %arg4[%c0_27, %c0_28, %c0_29] : memref<3x32x128xbf16, #tpu.memory_space<vmem>>, vector<1x32x128xbf16>
    %22 = vector.shape_cast %21 : vector<1x32x128xbf16> to vector<32x128xbf16>
    %cst_30 = arith.constant dense<0.000000e+00> : vector<8x128xf32>
    %23 = tpu.matmul %20, %22, %cst_30 {dimension_numbers = #tpu.dot_dimension_numbers<[1], [0], [0], [1], [0, 0, 1, 1], [], []>} : vector<8x32xbf16>, vector<32x128xbf16>, vector<8x128xf32> -> vector<8x128xf32>
    %24 = arith.addf %19, %23 : vector<8x128xf32>
    %c1_31 = arith.constant 1 : index
    %c0_32 = arith.constant 0 : index
    %25 = vector.load %arg22[%c1_31, %c0_32] : memref<10x32xbf16, #tpu.memory_space<vmem>>, vector<8x32xbf16>
    %c1_33 = arith.constant 1 : index
    %c0_34 = arith.constant 0 : index
    %c0_35 = arith.constant 0 : index
    %26 = vector.load %arg4[%c1_33, %c0_34, %c0_35] : memref<3x32x128xbf16, #tpu.memory_space<vmem>>, vector<1x32x128xbf16>
    %27 = vector.shape_cast %26 : vector<1x32x128xbf16> to vector<32x128xbf16>
    %cst_36 = arith.constant dense<0.000000e+00> : vector<8x128xf32>
    %28 = tpu.matmul %25, %27, %cst_36 {dimension_numbers = #tpu.dot_dimension_numbers<[1], [0], [0], [1], [0, 0, 1, 1], [], []>} : vector<8x32xbf16>, vector<32x128xbf16>, vector<8x128xf32> -> vector<8x128xf32>
    %29 = arith.addf %24, %28 : vector<8x128xf32>
    %c2 = arith.constant 2 : index
    %c0_37 = arith.constant 0 : index
    %30 = vector.load %arg22[%c2, %c0_37] : memref<10x32xbf16, #tpu.memory_space<vmem>>, vector<8x32xbf16>
    %c2_38 = arith.constant 2 : index
    %c0_39 = arith.constant 0 : index
    %c0_40 = arith.constant 0 : index
    %31 = vector.load %arg4[%c2_38, %c0_39, %c0_40] : memref<3x32x128xbf16, #tpu.memory_space<vmem>>, vector<1x32x128xbf16>
    %32 = vector.shape_cast %31 : vector<1x32x128xbf16> to vector<32x128xbf16>
    %cst_41 = arith.constant dense<0.000000e+00> : vector<8x128xf32>
    %33 = tpu.matmul %30, %32, %cst_41 {dimension_numbers = #tpu.dot_dimension_numbers<[1], [0], [0], [1], [0, 0, 1, 1], [], []>} : vector<8x32xbf16>, vector<32x128xbf16>, vector<8x128xf32> -> vector<8x128xf32>
    %34 = arith.addf %29, %33 : vector<8x128xf32>
    %c0_42 = arith.constant 0 : index
    %c0_43 = arith.constant 0 : index
    %35 = vector.load %arg5[%c0_42, %c0_43] : memref<1x128xf32, #tpu.memory_space<vmem>>, vector<1x128xf32>
    %36 = vector.broadcast %35 : vector<1x128xf32> to vector<8x128xf32>
    %37 = arith.mulf %34, %36 : vector<8x128xf32>
    %c0_44 = arith.constant 0 : index
    %c0_45 = arith.constant 0 : index
    %38 = vector.load %arg6[%c0_44, %c0_45] : memref<1x128xf32, #tpu.memory_space<vmem>>, vector<1x128xf32>
    %39 = vector.broadcast %38 : vector<1x128xf32> to vector<8x128xf32>
    %40 = arith.addf %37, %39 : vector<8x128xf32>
    %cst_46 = arith.constant 0.000000e+00 : f32
    %41 = vector.broadcast %cst_46 : f32 to vector<8x128xf32>
    %42 = arith.maximumf %40, %41 : vector<8x128xf32>
    %43 = arith.truncf %42 : vector<8x128xf32> to vector<8x128xbf16>
    %c0_47 = arith.constant 0 : index
    %c0_48 = arith.constant 0 : index
    %44 = vector.load %arg7[%c0_47, %c0_48] : memref<128x256xbf16, #tpu.memory_space<vmem>>, vector<128x256xbf16>
    %cst_49 = arith.constant dense<0.000000e+00> : vector<8x256xf32>
    %45 = tpu.matmul %43, %44, %cst_49 {dimension_numbers = #tpu.dot_dimension_numbers<[1], [0], [0], [1], [0, 0, 1, 1], [], []>} : vector<8x128xbf16>, vector<128x256xbf16>, vector<8x256xf32> -> vector<8x256xf32>
    %c0_50 = arith.constant 0 : index
    %c0_51 = arith.constant 0 : index
    %46 = vector.load %arg8[%c0_50, %c0_51] : memref<16x8xbf16, #tpu.memory_space<vmem>>, vector<16x8xbf16>
    %47 = arith.truncf %45 : vector<8x256xf32> to vector<8x256xbf16>
    %cst_52 = arith.constant dense<0.000000e+00> : vector<16x256xf32>
    %48 = tpu.matmul %46, %47, %cst_52 {dimension_numbers = #tpu.dot_dimension_numbers<[1], [0], [0], [1], [0, 0, 1, 1], [], []>} : vector<16x8xbf16>, vector<8x256xbf16>, vector<16x256xf32> -> vector<16x256xf32>
    %c0_53 = arith.constant 0 : index
    %c0_54 = arith.constant 0 : index
    %c0_55 = arith.constant 0 : index
    %49 = vector.load %arg2[%c0_53, %c0_54, %c0_55] : memref<1x16x256xbf16, #tpu.memory_space<vmem>>, vector<1x16x256xbf16>
    %50 = vector.shape_cast %49 : vector<1x16x256xbf16> to vector<16x256xbf16>
    %c1_56 = arith.constant 1 : index
    %c0_57 = arith.constant 0 : index
    %51 = vector.load %arg23[%c1_56, %c0_57] : memref<18x256xbf16, #tpu.memory_space<vmem>>, vector<16x256xbf16>
    tpu.vector_store %arg23[%c1_56, %c0_57], %50 {strides = array<i32>} : memref<18x256xbf16, #tpu.memory_space<vmem>>, vector<16x256xbf16>,
    %cst_58 = arith.constant 0.000000e+00 : f32
    %52 = vector.broadcast %cst_58 : f32 to vector<16x256xf32>
    %c0_59 = arith.constant 0 : index
    %c0_60 = arith.constant 0 : index
    %53 = vector.load %arg23[%c0_59, %c0_60] : memref<18x256xbf16, #tpu.memory_space<vmem>>, vector<16x256xbf16>
    %c0_61 = arith.constant 0 : index
    %c0_62 = arith.constant 0 : index
    %c0_63 = arith.constant 0 : index
    %54 = vector.load %arg9[%c0_61, %c0_62, %c0_63] : memref<3x256x256xbf16, #tpu.memory_space<vmem>>, vector<1x256x256xbf16>
    %55 = vector.shape_cast %54 : vector<1x256x256xbf16> to vector<256x256xbf16>
    %cst_64 = arith.constant dense<0.000000e+00> : vector<16x256xf32>
    %56 = tpu.matmul %53, %55, %cst_64 {dimension_numbers = #tpu.dot_dimension_numbers<[1], [0], [0], [1], [0, 0, 1, 1], [], []>} : vector<16x256xbf16>, vector<256x256xbf16>, vector<16x256xf32> -> vector<16x256xf32>
    %57 = arith.addf %52, %56 : vector<16x256xf32>
    %c1_65 = arith.constant 1 : index
    %c0_66 = arith.constant 0 : index
    %58 = vector.load %arg23[%c1_65, %c0_66] : memref<18x256xbf16, #tpu.memory_space<vmem>>, vector<16x256xbf16>
    %c1_67 = arith.constant 1 : index
    %c0_68 = arith.constant 0 : index
    %c0_69 = arith.constant 0 : index
    %59 = vector.load %arg9[%c1_67, %c0_68, %c0_69] : memref<3x256x256xbf16, #tpu.memory_space<vmem>>, vector<1x256x256xbf16>
    %60 = vector.shape_cast %59 : vector<1x256x256xbf16> to vector<256x256xbf16>
    %cst_70 = arith.constant dense<0.000000e+00> : vector<16x256xf32>
    %61 = tpu.matmul %58, %60, %cst_70 {dimension_numbers = #tpu.dot_dimension_numbers<[1], [0], [0], [1], [0, 0, 1, 1], [], []>} : vector<16x256xbf16>, vector<256x256xbf16>, vector<16x256xf32> -> vector<16x256xf32>
    %62 = arith.addf %57, %61 : vector<16x256xf32>
    %c2_71 = arith.constant 2 : index
    %c0_72 = arith.constant 0 : index
    %63 = vector.load %arg23[%c2_71, %c0_72] : memref<18x256xbf16, #tpu.memory_space<vmem>>, vector<16x256xbf16>
    %c2_73 = arith.constant 2 : index
    %c0_74 = arith.constant 0 : index
    %c0_75 = arith.constant 0 : index
    %64 = vector.load %arg9[%c2_73, %c0_74, %c0_75] : memref<3x256x256xbf16, #tpu.memory_space<vmem>>, vector<1x256x256xbf16>
    %65 = vector.shape_cast %64 : vector<1x256x256xbf16> to vector<256x256xbf16>
    %cst_76 = arith.constant dense<0.000000e+00> : vector<16x256xf32>
    %66 = tpu.matmul %63, %65, %cst_76 {dimension_numbers = #tpu.dot_dimension_numbers<[1], [0], [0], [1], [0, 0, 1, 1], [], []>} : vector<16x256xbf16>, vector<256x256xbf16>, vector<16x256xf32> -> vector<16x256xf32>
    %67 = arith.addf %62, %66 : vector<16x256xf32>
    %c0_77 = arith.constant 0 : index
    %c0_78 = arith.constant 0 : index
    %68 = vector.load %arg10[%c0_77, %c0_78] : memref<1x256xf32, #tpu.memory_space<vmem>>, vector<1x256xf32>
    %69 = vector.broadcast %68 : vector<1x256xf32> to vector<16x256xf32>
    %70 = arith.mulf %67, %69 : vector<16x256xf32>
    %c0_79 = arith.constant 0 : index
    %c0_80 = arith.constant 0 : index
    %71 = vector.load %arg11[%c0_79, %c0_80] : memref<1x256xf32, #tpu.memory_space<vmem>>, vector<1x256xf32>
    %72 = vector.broadcast %71 : vector<1x256xf32> to vector<16x256xf32>
    %73 = arith.addf %70, %72 : vector<16x256xf32>
    %cst_81 = arith.constant 0.000000e+00 : f32
    %74 = vector.broadcast %cst_81 : f32 to vector<16x256xf32>
    %75 = arith.maximumf %73, %74 : vector<16x256xf32>
    %c0_82 = arith.constant 0 : index
    %c0_83 = arith.constant 0 : index
    %c0_84 = arith.constant 0 : index
    %c0_85 = arith.constant 0 : index
    %76 = vector.load %arg3[%c0_82, %c0_83, %c0_84, %c0_85] : memref<1x4x16x512xbf16, #tpu.memory_space<vmem>>, vector<1x1x16x512xbf16>
    %77 = vector.shape_cast %76 : vector<1x1x16x512xbf16> to vector<16x512xbf16>
    %c0_86 = arith.constant 0 : index
    %c1_87 = arith.constant 1 : index
    %c0_88 = arith.constant 0 : index
    %c0_89 = arith.constant 0 : index
    %78 = vector.load %arg3[%c0_86, %c1_87, %c0_88, %c0_89] : memref<1x4x16x512xbf16, #tpu.memory_space<vmem>>, vector<1x1x16x512xbf16>
    %79 = vector.shape_cast %78 : vector<1x1x16x512xbf16> to vector<16x512xbf16>
    %80 = arith.maximumf %77, %79 : vector<16x512xbf16>
    %c0_90 = arith.constant 0 : index
    %c2_91 = arith.constant 2 : index
    %c0_92 = arith.constant 0 : index
    %c0_93 = arith.constant 0 : index
    %81 = vector.load %arg3[%c0_90, %c2_91, %c0_92, %c0_93] : memref<1x4x16x512xbf16, #tpu.memory_space<vmem>>, vector<1x1x16x512xbf16>
    %82 = vector.shape_cast %81 : vector<1x1x16x512xbf16> to vector<16x512xbf16>
    %c0_94 = arith.constant 0 : index
    %c3 = arith.constant 3 : index
    %c0_95 = arith.constant 0 : index
    %c0_96 = arith.constant 0 : index
    %83 = vector.load %arg3[%c0_94, %c3, %c0_95, %c0_96] : memref<1x4x16x512xbf16, #tpu.memory_space<vmem>>, vector<1x1x16x512xbf16>
    %84 = vector.shape_cast %83 : vector<1x1x16x512xbf16> to vector<16x512xbf16>
    %85 = arith.maximumf %82, %84 : vector<16x512xbf16>
    %86 = arith.maximumf %80, %85 : vector<16x512xbf16>
    %c1_97 = arith.constant 1 : index
    %c0_98 = arith.constant 0 : index
    %87 = vector.load %arg24[%c1_97, %c0_98] : memref<18x512xbf16, #tpu.memory_space<vmem>>, vector<16x512xbf16>
    tpu.vector_store %arg24[%c1_97, %c0_98], %86 {strides = array<i32>} : memref<18x512xbf16, #tpu.memory_space<vmem>>, vector<16x512xbf16>,
    %cst_99 = arith.constant 0.000000e+00 : f32
    %88 = vector.broadcast %cst_99 : f32 to vector<16x256xf32>
    %c0_100 = arith.constant 0 : index
    %c0_101 = arith.constant 0 : index
    %89 = vector.load %arg24[%c0_100, %c0_101] : memref<18x512xbf16, #tpu.memory_space<vmem>>, vector<16x512xbf16>
    %c0_102 = arith.constant 0 : index
    %c0_103 = arith.constant 0 : index
    %c0_104 = arith.constant 0 : index
    %90 = vector.load %arg12[%c0_102, %c0_103, %c0_104] : memref<3x512x256xbf16, #tpu.memory_space<vmem>>, vector<1x512x256xbf16>
    %91 = vector.shape_cast %90 : vector<1x512x256xbf16> to vector<512x256xbf16>
    %cst_105 = arith.constant dense<0.000000e+00> : vector<16x256xf32>
    %92 = tpu.matmul %89, %91, %cst_105 {dimension_numbers = #tpu.dot_dimension_numbers<[1], [0], [0], [1], [0, 0, 1, 1], [], []>} : vector<16x512xbf16>, vector<512x256xbf16>, vector<16x256xf32> -> vector<16x256xf32>
    %93 = arith.addf %88, %92 : vector<16x256xf32>
    %c1_106 = arith.constant 1 : index
    %c0_107 = arith.constant 0 : index
    %94 = vector.load %arg24[%c1_106, %c0_107] : memref<18x512xbf16, #tpu.memory_space<vmem>>, vector<16x512xbf16>
    %c1_108 = arith.constant 1 : index
    %c0_109 = arith.constant 0 : index
    %c0_110 = arith.constant 0 : index
    %95 = vector.load %arg12[%c1_108, %c0_109, %c0_110] : memref<3x512x256xbf16, #tpu.memory_space<vmem>>, vector<1x512x256xbf16>
    %96 = vector.shape_cast %95 : vector<1x512x256xbf16> to vector<512x256xbf16>
    %cst_111 = arith.constant dense<0.000000e+00> : vector<16x256xf32>
    %97 = tpu.matmul %94, %96, %cst_111 {dimension_numbers = #tpu.dot_dimension_numbers<[1], [0], [0], [1], [0, 0, 1, 1], [], []>} : vector<16x512xbf16>, vector<512x256xbf16>, vector<16x256xf32> -> vector<16x256xf32>
    %98 = arith.addf %93, %97 : vector<16x256xf32>
    %c2_112 = arith.constant 2 : index
    %c0_113 = arith.constant 0 : index
    %99 = vector.load %arg24[%c2_112, %c0_113] : memref<18x512xbf16, #tpu.memory_space<vmem>>, vector<16x512xbf16>
    %c2_114 = arith.constant 2 : index
    %c0_115 = arith.constant 0 : index
    %c0_116 = arith.constant 0 : index
    %100 = vector.load %arg12[%c2_114, %c0_115, %c0_116] : memref<3x512x256xbf16, #tpu.memory_space<vmem>>, vector<1x512x256xbf16>
    %101 = vector.shape_cast %100 : vector<1x512x256xbf16> to vector<512x256xbf16>
    %cst_117 = arith.constant dense<0.000000e+00> : vector<16x256xf32>
    %102 = tpu.matmul %99, %101, %cst_117 {dimension_numbers = #tpu.dot_dimension_numbers<[1], [0], [0], [1], [0, 0, 1, 1], [], []>} : vector<16x512xbf16>, vector<512x256xbf16>, vector<16x256xf32> -> vector<16x256xf32>
    %103 = arith.addf %98, %102 : vector<16x256xf32>
    %c0_118 = arith.constant 0 : index
    %c0_119 = arith.constant 0 : index
    %104 = vector.load %arg13[%c0_118, %c0_119] : memref<1x256xf32, #tpu.memory_space<vmem>>, vector<1x256xf32>
    %105 = vector.broadcast %104 : vector<1x256xf32> to vector<16x256xf32>
    %106 = arith.mulf %103, %105 : vector<16x256xf32>
    %c0_120 = arith.constant 0 : index
    %c0_121 = arith.constant 0 : index
    %107 = vector.load %arg14[%c0_120, %c0_121] : memref<1x256xf32, #tpu.memory_space<vmem>>, vector<1x256xf32>
    %108 = vector.broadcast %107 : vector<1x256xf32> to vector<16x256xf32>
    %109 = arith.addf %106, %108 : vector<16x256xf32>
    %cst_122 = arith.constant 0.000000e+00 : f32
    %110 = vector.broadcast %cst_122 : f32 to vector<16x256xf32>
    %111 = arith.maximumf %109, %110 : vector<16x256xf32>
    %112 = arith.truncf %48 : vector<16x256xf32> to vector<16x256xbf16>
    %c1_123 = arith.constant 1 : index
    %c0_124 = arith.constant 0 : index
    %113 = vector.load %arg25[%c1_123, %c0_124] : memref<18x768xbf16, #tpu.memory_space<vmem>>, vector<16x256xbf16>
    tpu.vector_store %arg25[%c1_123, %c0_124], %112 {strides = array<i32>} : memref<18x768xbf16, #tpu.memory_space<vmem>>, vector<16x256xbf16>,
    %114 = arith.truncf %75 : vector<16x256xf32> to vector<16x256xbf16>
    %c1_125 = arith.constant 1 : index
    %c256 = arith.constant 256 : index
    %115 = vector.load %arg25[%c1_125, %c256] : memref<18x768xbf16, #tpu.memory_space<vmem>>, vector<16x256xbf16>
    tpu.vector_store %arg25[%c1_125, %c256], %114 {strides = array<i32>} : memref<18x768xbf16, #tpu.memory_space<vmem>>, vector<16x256xbf16>,
    %116 = arith.truncf %111 : vector<16x256xf32> to vector<16x256xbf16>
    %c1_126 = arith.constant 1 : index
    %c512 = arith.constant 512 : index
    %117 = vector.load %arg25[%c1_126, %c512] : memref<18x768xbf16, #tpu.memory_space<vmem>>, vector<16x256xbf16>
    tpu.vector_store %arg25[%c1_126, %c512], %116 {strides = array<i32>} : memref<18x768xbf16, #tpu.memory_space<vmem>>, vector<16x256xbf16>,
    %cst_127 = arith.constant 0.000000e+00 : f32
    %118 = vector.broadcast %cst_127 : f32 to vector<16x256xf32>
    %c0_128 = arith.constant 0 : index
    %c0_129 = arith.constant 0 : index
    %119 = vector.load %arg25[%c0_128, %c0_129] : memref<18x768xbf16, #tpu.memory_space<vmem>>, vector<16x768xbf16>
    %c0_130 = arith.constant 0 : index
    %c0_131 = arith.constant 0 : index
    %c0_132 = arith.constant 0 : index
    %120 = vector.load %arg15[%c0_130, %c0_131, %c0_132] : memref<3x768x256xbf16, #tpu.memory_space<vmem>>, vector<1x768x256xbf16>
    %121 = vector.shape_cast %120 : vector<1x768x256xbf16> to vector<768x256xbf16>
    %cst_133 = arith.constant dense<0.000000e+00> : vector<16x256xf32>
    %122 = tpu.matmul %119, %121, %cst_133 {dimension_numbers = #tpu.dot_dimension_numbers<[1], [0], [0], [1], [0, 0, 1, 1], [], []>} : vector<16x768xbf16>, vector<768x256xbf16>, vector<16x256xf32> -> vector<16x256xf32>
    %123 = arith.addf %118, %122 : vector<16x256xf32>
    %c1_134 = arith.constant 1 : index
    %c0_135 = arith.constant 0 : index
    %124 = vector.load %arg25[%c1_134, %c0_135] : memref<18x768xbf16, #tpu.memory_space<vmem>>, vector<16x768xbf16>
    %c1_136 = arith.constant 1 : index
    %c0_137 = arith.constant 0 : index
    %c0_138 = arith.constant 0 : index
    %125 = vector.load %arg15[%c1_136, %c0_137, %c0_138] : memref<3x768x256xbf16, #tpu.memory_space<vmem>>, vector<1x768x256xbf16>
    %126 = vector.shape_cast %125 : vector<1x768x256xbf16> to vector<768x256xbf16>
    %cst_139 = arith.constant dense<0.000000e+00> : vector<16x256xf32>
    %127 = tpu.matmul %124, %126, %cst_139 {dimension_numbers = #tpu.dot_dimension_numbers<[1], [0], [0], [1], [0, 0, 1, 1], [], []>} : vector<16x768xbf16>, vector<768x256xbf16>, vector<16x256xf32> -> vector<16x256xf32>
    %128 = arith.addf %123, %127 : vector<16x256xf32>
    %c2_140 = arith.constant 2 : index
    %c0_141 = arith.constant 0 : index
    %129 = vector.load %arg25[%c2_140, %c0_141] : memref<18x768xbf16, #tpu.memory_space<vmem>>, vector<16x768xbf16>
    %c2_142 = arith.constant 2 : index
    %c0_143 = arith.constant 0 : index
    %c0_144 = arith.constant 0 : index
    %130 = vector.load %arg15[%c2_142, %c0_143, %c0_144] : memref<3x768x256xbf16, #tpu.memory_space<vmem>>, vector<1x768x256xbf16>
    %131 = vector.shape_cast %130 : vector<1x768x256xbf16> to vector<768x256xbf16>
    %cst_145 = arith.constant dense<0.000000e+00> : vector<16x256xf32>
    %132 = tpu.matmul %129, %131, %cst_145 {dimension_numbers = #tpu.dot_dimension_numbers<[1], [0], [0], [1], [0, 0, 1, 1], [], []>} : vector<16x768xbf16>, vector<768x256xbf16>, vector<16x256xf32> -> vector<16x256xf32>
    %133 = arith.addf %128, %132 : vector<16x256xf32>
    %c0_146 = arith.constant 0 : index
    %c0_147 = arith.constant 0 : index
    %134 = vector.load %arg16[%c0_146, %c0_147] : memref<1x256xf32, #tpu.memory_space<vmem>>, vector<1x256xf32>
    %135 = vector.broadcast %134 : vector<1x256xf32> to vector<16x256xf32>
    %136 = arith.mulf %133, %135 : vector<16x256xf32>
    %c0_148 = arith.constant 0 : index
    %c0_149 = arith.constant 0 : index
    %137 = vector.load %arg17[%c0_148, %c0_149] : memref<1x256xf32, #tpu.memory_space<vmem>>, vector<1x256xf32>
    %138 = vector.broadcast %137 : vector<1x256xf32> to vector<16x256xf32>
    %139 = arith.addf %136, %138 : vector<16x256xf32>
    %cst_150 = arith.constant 0.000000e+00 : f32
    %140 = vector.broadcast %cst_150 : f32 to vector<16x256xf32>
    %141 = arith.maximumf %139, %140 : vector<16x256xf32>
    %c0_151 = arith.constant 0 : index
    %c0_152 = arith.constant 0 : index
    %c0_153 = arith.constant 0 : index
    %142 = vector.load %arg2[%c0_151, %c0_152, %c0_153] : memref<1x16x256xbf16, #tpu.memory_space<vmem>>, vector<1x16x256xbf16>
    %143 = vector.shape_cast %142 : vector<1x16x256xbf16> to vector<16x256xbf16>
    %144 = arith.extf %143 : vector<16x256xbf16> to vector<16x256xf32>
    %145 = arith.addf %141, %144 : vector<16x256xf32>
    %146 = arith.truncf %145 : vector<16x256xf32> to vector<16x256xbf16>
    %c0_154 = arith.constant 0 : index
    %c0_155 = arith.constant 0 : index
    %147 = vector.load %arg18[%c0_154, %c0_155] : memref<256x256xbf16, #tpu.memory_space<vmem>>, vector<256x256xbf16>
    %cst_156 = arith.constant dense<0.000000e+00> : vector<16x256xf32>
    %148 = tpu.matmul %146, %147, %cst_156 {dimension_numbers = #tpu.dot_dimension_numbers<[1], [0], [0], [1], [0, 0, 1, 1], [], []>} : vector<16x256xbf16>, vector<256x256xbf16>, vector<16x256xf32> -> vector<16x256xf32>
    %c0_157 = arith.constant 0 : index
    %c0_158 = arith.constant 0 : index
    %149 = vector.load %arg19[%c0_157, %c0_158] : memref<1x256xf32, #tpu.memory_space<vmem>>, vector<1x256xf32>
    %150 = vector.broadcast %149 : vector<1x256xf32> to vector<16x256xf32>
    %151 = arith.mulf %148, %150 : vector<16x256xf32>
    %c0_159 = arith.constant 0 : index
    %c0_160 = arith.constant 0 : index
    %152 = vector.load %arg20[%c0_159, %c0_160] : memref<1x256xf32, #tpu.memory_space<vmem>>, vector<1x256xf32>
    %153 = vector.broadcast %152 : vector<1x256xf32> to vector<16x256xf32>
    %154 = arith.addf %151, %153 : vector<16x256xf32>
    %cst_161 = arith.constant 0.000000e+00 : f32
    %155 = vector.broadcast %cst_161 : f32 to vector<16x256xf32>
    %156 = arith.maximumf %154, %155 : vector<16x256xf32>
    %c0_162 = arith.constant 0 : index
    %c0_163 = arith.constant 0 : index
    %c0_164 = arith.constant 0 : index
    %157 = vector.load %arg21[%c0_162, %c0_163, %c0_164] : memref<1x16x256xf32, #tpu.memory_space<vmem>>, vector<1x16x256xf32>
    %158 = vector.shape_cast %157 : vector<1x16x256xf32> to vector<16x256xf32>
    %159 = vector.shape_cast %156 : vector<16x256xf32> to vector<1x16x256xf32>
    tpu.vector_store %arg21[%c0_162, %c0_163, %c0_164], %159 {strides = array<i32>} : memref<1x16x256xf32, #tpu.memory_space<vmem>>, vector<1x16x256xf32>,
    return
  }
  func.func @transform_0(%arg0: i32) -> (i32, i32, i32) {
    %c0_i32 = arith.constant 0 : i32
    %c0_i32_0 = arith.constant 0 : i32
    %c0_i32_1 = arith.constant 0 : i32
    return %arg0, %c0_i32, %c0_i32_0 : i32, i32, i32
  }
  func.func @transform_1(%arg0: i32) -> (i32, i32, i32) {
    %c0_i32 = arith.constant 0 : i32
    %c0_i32_0 = arith.constant 0 : i32
    %c0_i32_1 = arith.constant 0 : i32
    return %arg0, %c0_i32, %c0_i32_0 : i32, i32, i32
  }
  func.func @transform_2(%arg0: i32) -> (i32, i32, i32, i32) {
    %c0_i32 = arith.constant 0 : i32
    %c0_i32_0 = arith.constant 0 : i32
    %c0_i32_1 = arith.constant 0 : i32
    %c0_i32_2 = arith.constant 0 : i32
    return %arg0, %c0_i32, %c0_i32_0, %c0_i32_1 : i32, i32, i32, i32
  }
  func.func @transform_3(%arg0: i32) -> (i32, i32, i32) {
    %c0_i32 = arith.constant 0 : i32
    %c0_i32_0 = arith.constant 0 : i32
    %c0_i32_1 = arith.constant 0 : i32
    %c0_i32_2 = arith.constant 0 : i32
    return %c0_i32, %c0_i32_0, %c0_i32_1 : i32, i32, i32
  }
  func.func @transform_4(%arg0: i32) -> (i32, i32) {
    %c0_i32 = arith.constant 0 : i32
    %c0_i32_0 = arith.constant 0 : i32
    %c0_i32_1 = arith.constant 0 : i32
    return %c0_i32, %c0_i32_0 : i32, i32
  }
  func.func @transform_5(%arg0: i32) -> (i32, i32) {
    %c0_i32 = arith.constant 0 : i32
    %c0_i32_0 = arith.constant 0 : i32
    %c0_i32_1 = arith.constant 0 : i32
    return %c0_i32, %c0_i32_0 : i32, i32
  }
  func.func @transform_6(%arg0: i32) -> (i32, i32) {
    %c0_i32 = arith.constant 0 : i32
    %c0_i32_0 = arith.constant 0 : i32
    %c0_i32_1 = arith.constant 0 : i32
    return %c0_i32, %c0_i32_0 : i32, i32
  }
  func.func @transform_7(%arg0: i32) -> (i32, i32) {
    %c0_i32 = arith.constant 0 : i32
    %c0_i32_0 = arith.constant 0 : i32
    %c0_i32_1 = arith.constant 0 : i32
    return %c0_i32, %c0_i32_0 : i32, i32
  }
  func.func @transform_8(%arg0: i32) -> (i32, i32, i32) {
    %c0_i32 = arith.constant 0 : i32
    %c0_i32_0 = arith.constant 0 : i32
    %c0_i32_1 = arith.constant 0 : i32
    %c0_i32_2 = arith.constant 0 : i32
    return %c0_i32, %c0_i32_0, %c0_i32_1 : i32, i32, i32
  }
  func.func @transform_9(%arg0: i32) -> (i32, i32) {
    %c0_i32 = arith.constant 0 : i32
    %c0_i32_0 = arith.constant 0 : i32
    %c0_i32_1 = arith.constant 0 : i32
    return %c0_i32, %c0_i32_0 : i32, i32
  }
  func.func @transform_10(%arg0: i32) -> (i32, i32) {
    %c0_i32 = arith.constant 0 : i32
    %c0_i32_0 = arith.constant 0 : i32
    %c0_i32_1 = arith.constant 0 : i32
    return %c0_i32, %c0_i32_0 : i32, i32
  }
  func.func @transform_11(%arg0: i32) -> (i32, i32, i32) {
    %c0_i32 = arith.constant 0 : i32
    %c0_i32_0 = arith.constant 0 : i32
    %c0_i32_1 = arith.constant 0 : i32
    %c0_i32_2 = arith.constant 0 : i32
    return %c0_i32, %c0_i32_0, %c0_i32_1 : i32, i32, i32
  }
  func.func @transform_12(%arg0: i32) -> (i32, i32) {
    %c0_i32 = arith.constant 0 : i32
    %c0_i32_0 = arith.constant 0 : i32
    %c0_i32_1 = arith.constant 0 : i32
    return %c0_i32, %c0_i32_0 : i32, i32
  }
  func.func @transform_13(%arg0: i32) -> (i32, i32) {
    %c0_i32 = arith.constant 0 : i32
    %c0_i32_0 = arith.constant 0 : i32
    %c0_i32_1 = arith.constant 0 : i32
    return %c0_i32, %c0_i32_0 : i32, i32
  }
  func.func @transform_14(%arg0: i32) -> (i32, i32, i32) {
    %c0_i32 = arith.constant 0 : i32
    %c0_i32_0 = arith.constant 0 : i32
    %c0_i32_1 = arith.constant 0 : i32
    %c0_i32_2 = arith.constant 0 : i32
    return %c0_i32, %c0_i32_0, %c0_i32_1 : i32, i32, i32
  }
  func.func @transform_15(%arg0: i32) -> (i32, i32) {
    %c0_i32 = arith.constant 0 : i32
    %c0_i32_0 = arith.constant 0 : i32
    %c0_i32_1 = arith.constant 0 : i32
    return %c0_i32, %c0_i32_0 : i32, i32
  }
  func.func @transform_16(%arg0: i32) -> (i32, i32) {
    %c0_i32 = arith.constant 0 : i32
    %c0_i32_0 = arith.constant 0 : i32
    %c0_i32_1 = arith.constant 0 : i32
    return %c0_i32, %c0_i32_0 : i32, i32
  }
  func.func @transform_17(%arg0: i32) -> (i32, i32) {
    %c0_i32 = arith.constant 0 : i32
    %c0_i32_0 = arith.constant 0 : i32
    %c0_i32_1 = arith.constant 0 : i32
    return %c0_i32, %c0_i32_0 : i32, i32
  }
  func.func @transform_18(%arg0: i32) -> (i32, i32) {
    %c0_i32 = arith.constant 0 : i32
    %c0_i32_0 = arith.constant 0 : i32
    %c0_i32_1 = arith.constant 0 : i32
    return %c0_i32, %c0_i32_0 : i32, i32
  }
  func.func @transform_19(%arg0: i32) -> (i32, i32) {
    %c0_i32 = arith.constant 0 : i32
    %c0_i32_0 = arith.constant 0 : i32
    %c0_i32_1 = arith.constant 0 : i32
    return %c0_i32, %c0_i32_0 : i32, i32
  }
  func.func @transform_20(%arg0: i32) -> (i32, i32, i32) {
    %c0_i32 = arith.constant 0 : i32
    %c0_i32_0 = arith.constant 0 : i32
    %c0_i32_1 = arith.constant 0 : i32
    return %arg0, %c0_i32, %c0_i32_0 : i32, i32, i32
  }
}

</mosaic_0001>

<llo_original>
// kernel: tpu_custom_call.1
$region0: #{tpu_custom_call.1}
  #allocation0 [shape = 'u32[]', space=smem, size = 0x4, offset = 0x4, fixed_abs, tag = 'smem constant byte address 0x4 - core index']
  #allocation1 [shape = 'u32[144,128]{1,0:T(1,128)}', space=vmem, size = 0x12000, scoped, tag = 'internal scratch']
  #allocation2 [shape = 'bf16[10,32]{1,0:T(8,128)(2,1)}', space=vmem, size = 0x1000, scoped, tag = 'scratch operand']
  #allocation3 [shape = 'bf16[18,256]{1,0:T(8,128)(2,1)}', space=vmem, size = 0x3000, scoped, tag = 'scratch operand']
  #allocation4 [shape = 'bf16[18,512]{1,0:T(8,128)(2,1)}', space=vmem, size = 0x6000, scoped, tag = 'scratch operand']
  #allocation5 [shape = 'bf16[18,768]{1,0:T(8,128)(2,1)}', space=vmem, size = 0x9000, scoped, tag = 'scratch operand']
  %s0 = inlined_call_operand.hbm [shape: bf16[2,8,32], index: 0, kind: input, shape index: {}]
  %s1 = inlined_call_operand.hbm [shape: bf16[2,16,256], index: 1, kind: input, shape index: {}]
  %s2 = inlined_call_operand.hbm [shape: bf16[2,4,16,512], index: 2, kind: input, shape index: {}]
  %s3 = inlined_call_operand.hbm [shape: bf16[3,32,128], index: 3, kind: input, shape index: {}]
  %s4 = inlined_call_operand.hbm [shape: f32[1,128], index: 4, kind: input, shape index: {}]
  %s5 = inlined_call_operand.hbm [shape: f32[1,128], index: 5, kind: input, shape index: {}]
  %s6 = inlined_call_operand.hbm [shape: bf16[128,256], index: 6, kind: input, shape index: {}]
  %s7 = inlined_call_operand.vmem [shape: bf16[16,8], index: 7, kind: input, shape index: {}]
  %s8 = inlined_call_operand.hbm [shape: bf16[3,256,256], index: 8, kind: input, shape index: {}]
  %s9 = inlined_call_operand.hbm [shape: f32[1,256], index: 9, kind: input, shape index: {}]
  %s10 = inlined_call_operand.hbm [shape: f32[1,256], index: 10, kind: input, shape index: {}]
  %s11 = inlined_call_operand.hbm [shape: bf16[3,512,256], index: 11, kind: input, shape index: {}]
  %s12 = inlined_call_operand.hbm [shape: f32[1,256], index: 12, kind: input, shape index: {}]
  %s13 = inlined_call_operand.hbm [shape: f32[1,256], index: 13, kind: input, shape index: {}]
  %s14 = inlined_call_operand.hbm [shape: bf16[3,768,256], index: 14, kind: input, shape index: {}]
  %s15 = inlined_call_operand.hbm [shape: f32[1,256], index: 15, kind: input, shape index: {}]
  %s16 = inlined_call_operand.hbm [shape: f32[1,256], index: 16, kind: input, shape index: {}]
  %s17 = inlined_call_operand.hbm [shape: bf16[256,256], index: 17, kind: input, shape index: {}]
  %s18 = inlined_call_operand.hbm [shape: f32[1,256], index: 18, kind: input, shape index: {}]
  %s19 = inlined_call_operand.hbm [shape: f32[1,256], index: 19, kind: input, shape index: {}]
  %s20 = inlined_call_operand.hbm [shape: f32[2,16,256], index: 20, kind: output, shape index: {}]
  %s21 = sld [smem:[#allocation0]]
  $region189: #{tpu_custom_call.1} parent=0
    _
  %s23 = ssub.s32 1, %s21
  %s24 = scalar_select 0, %s23, %s21
  $region1: #{tpu_custom_call.1} parent=0
    #allocation6 [shape = 'u8[4096]{0}', space=vmem, size = 0x1000, scoped, tag = 'input window, operand 0']
    #allocation7 [shape = 's32[2]{0}', space=sflag, size = 0x8, scoped, tag = 'scoped memory for tpu_custom_call.1']
    #allocation8 [shape = 's32[2]{0}', space=sflag, size = 0x8, scoped, tag = 'scoped memory for tpu_custom_call.1']
    #allocation9 [shape = 'u8[16384]{0}', space=vmem, size = 0x4000, scoped, tag = 'input window, operand 1']
    #allocation10 [shape = 's32[2]{0}', space=sflag, size = 0x8, scoped, tag = 'scoped memory for tpu_custom_call.1']
    #allocation11 [shape = 'u8[131072]{0}', space=vmem, size = 0x20000, scoped, tag = 'input window, operand 2']
    #allocation12 [shape = 'u8[24576]{0}', space=vmem, size = 0x6000, scoped, tag = 'input window, operand 3, single buffered']
    #allocation13 [shape = 's32[1]{0}', space=sflag, size = 0x4, scoped, tag = 'scoped memory for tpu_custom_call.1']
    #allocation14 [shape = 'u8[512]{0}', space=vmem, size = 0x400, scoped, tag = 'input window, operand 4, single buffered']
    #allocation15 [shape = 'u8[512]{0}', space=vmem, size = 0x400, scoped, tag = 'input window, operand 5, single buffered']
    #allocation16 [shape = 's32[1]{0}', space=sflag, size = 0x4, scoped, tag = 'scoped memory for tpu_custom_call.1']
    #allocation17 [shape = 'u8[65536]{0}', space=vmem, size = 0x10000, scoped, tag = 'input window, operand 6, single buffered']
    #allocation18 [shape = 'u8[393216]{0}', space=vmem, size = 0x60000, scoped, tag = 'input window, operand 8, single buffered']
    #allocation19 [shape = 's32[1]{0}', space=sflag, size = 0x4, scoped, tag = 'scoped memory for tpu_custom_call.1']
    #allocation20 [shape = 'u8[1024]{0}', space=vmem, size = 0x400, scoped, tag = 'input window, operand 9, single buffered']
    #allocation21 [shape = 'u8[1024]{0}', space=vmem, size = 0x400, scoped, tag = 'input window, operand 10, single buffered']
    #allocation22 [shape = 's32[1]{0}', space=sflag, size = 0x4, scoped, tag = 'scoped memory for tpu_custom_call.1']
    #allocation23 [shape = 'u8[786432]{0}', space=vmem, size = 0xc0000, scoped, tag = 'input window, operand 11, single buffered']
    #allocation24 [shape = 'u8[1024]{0}', space=vmem, size = 0x400, scoped, tag = 'input window, operand 12, single buffered']
    #allocation25 [shape = 's32[1]{0}', space=sflag, size = 0x4, scoped, tag = 'scoped memory for tpu_custom_call.1']
    #allocation26 [shape = 'u8[1024]{0}', space=vmem, size = 0x400, scoped, tag = 'input window, operand 13, single buffered']
    #allocation27 [shape = 'u8[1179648]{0}', space=vmem, size = 0x120000, scoped, tag = 'input window, operand 14, single buffered']
    #allocation28 [shape = 's32[1]{0}', space=sflag, size = 0x4, scoped, tag = 'scoped memory for tpu_custom_call.1']
    #allocation29 [shape = 'u8[1024]{0}', space=vmem, size = 0x400, scoped, tag = 'input window, operand 15, single buffered']
    #allocation30 [shape = 'u8[1024]{0}', space=vmem, size = 0x400, scoped, tag = 'input window, operand 16, single buffered']
    #allocation31 [shape = 's32[1]{0}', space=sflag, size = 0x4, scoped, tag = 'scoped memory for tpu_custom_call.1']
    #allocation32 [shape = 'u8[131072]{0}', space=vmem, size = 0x20000, scoped, tag = 'input window, operand 17, single buffered']
    #allocation33 [shape = 'u8[1024]{0}', space=vmem, size = 0x400, scoped, tag = 'input window, operand 18, single buffered']
    #allocation34 [shape = 's32[1]{0}', space=sflag, size = 0x4, scoped, tag = 'scoped memory for tpu_custom_call.1']
    #allocation35 [shape = 'u8[1024]{0}', space=vmem, size = 0x400, scoped, tag = 'input window, operand 19, single buffered']
    #allocation36 [shape = 'u8[32768]{0}', space=vmem, size = 0x8000, scoped, tag = 'output window, operand 0']
    %25 = vsyncpa [#allocation7], 0
    %s26 = scalar_lea.sflag [#allocation7], 1
    %27 = vsyncpa %s26, 0
    %28 = vsyncpa [#allocation10], 0
    %s29 = scalar_lea.sflag [#allocation10], 1
    %30 = vsyncpa %s29, 0
    %31 = vsyncpa [#allocation13], 0
    %32 = vsyncpa [#allocation16], 0
    %33 = vsyncpa [#allocation19], 0
    %34 = vsyncpa [#allocation22], 0
    %35 = vsyncpa [#allocation25], 0
    %36 = vsyncpa [#allocation28], 0
    %37 = vsyncpa [#allocation31], 0
    %38 = vsyncpa [#allocation34], 0
    %39 = vsyncpa [#allocation8], 0
    %s40 = scalar_lea.sflag [#allocation8], 1
    %41 = vsyncpa %s40, 0
    loop: start=0, step=1, limit=4
    $region2: #{tpu_custom_call.1} parent=1 // loop_pre_header
      _
    $region3: #{tpu_custom_call.1} parent=1 // loop_header
      %s43 = sphi 0, %s47
      %p44 = scmp.ge.s32.totalorder %s43, 4
      %s53 = sphi 0, %s55
      %s56 = sphi 0, %s53
      %s57 = sphi 0, %s56
      %s73 = sphi 0, %s57
      %s79 = sphi 0, %s81
      %s82 = sphi 0, %s79
      %s83 = sphi 0, %s82
      %s99 = sphi 0, %s83
      %s105 = sphi 0, %s107
      %s108 = sphi 0, %s105
      %s109 = sphi 0, %s108
      %s125 = sphi 0, %s109
      %s129 = sphi 0, %s129
      %s131 = sphi 0, %s129
      %s132 = sphi 0, %s131
      %s146 = sphi 0, %s132
      %s150 = sphi 0, %s150
      %s152 = sphi 0, %s150
      %s153 = sphi 0, %s152
      %s167 = sphi 0, %s153
      %s171 = sphi 0, %s171
      %s173 = sphi 0, %s171
      %s174 = sphi 0, %s173
      %s188 = sphi 0, %s174
      %s192 = sphi 0, %s192
      %s194 = sphi 0, %s192
      %s195 = sphi 0, %s194
      %s209 = sphi 0, %s195
      %s213 = sphi 0, %s213
      %s215 = sphi 0, %s213
      %s216 = sphi 0, %s215
      %s230 = sphi 0, %s216
      %s234 = sphi 0, %s234
      %s236 = sphi 0, %s234
      %s237 = sphi 0, %s236
      %s251 = sphi 0, %s237
      %s255 = sphi 0, %s255
      %s257 = sphi 0, %s255
      %s258 = sphi 0, %s257
      %s272 = sphi 0, %s258
      %s276 = sphi 0, %s276
      %s278 = sphi 0, %s276
      %s279 = sphi 0, %s278
      %s293 = sphi 0, %s279
      %s297 = sphi 0, %s297
      %s299 = sphi 0, %s297
      %s300 = sphi 0, %s299
      %s314 = sphi 0, %s300
      %s318 = sphi 0, %s318
      %s320 = sphi 0, %s318
      %s321 = sphi 0, %s320
      %s335 = sphi 0, %s321
      %s339 = sphi 0, %s339
      %s341 = sphi 0, %s339
      %s342 = sphi 0, %s341
      %s356 = sphi 0, %s342
      %s360 = sphi 0, %s360
      %s362 = sphi 0, %s360
      %s363 = sphi 0, %s362
      %s377 = sphi 0, %s363
      %s381 = sphi 0, %s381
      %s383 = sphi 0, %s381
      %s384 = sphi 0, %s383
      %s398 = sphi 0, %s384
      %s402 = sphi 0, %s402
      %s404 = sphi 0, %s402
      %s405 = sphi 0, %s404
      %s419 = sphi 0, %s405
      %s423 = sphi 0, %s423
      %s425 = sphi 0, %s423
      %s426 = sphi 0, %s425
      %s440 = sphi 0, %s426
      %s444 = sphi 0, %s444
      %s446 = sphi 0, %s444
      %s447 = sphi 0, %s446
      %s461 = sphi 0, %s447
      %s465 = sphi 0, %s465
      %s467 = sphi 0, %s465
      %s468 = sphi 0, %s467
      %s482 = sphi 0, %s468
      %s488 = sphi 0, %s490
      %s491 = sphi 0, %s488
      %s492 = sphi 0, %s491
      %s508 = sphi 0, %s492
    $region4: #{tpu_custom_call.1} parent=1 // loop_header_branch
      %46 = sbr.rel (%p44) target = $region8
    $region5: #{tpu_custom_call.1} parent=1 // loop_body
      %s48 = ssub.s32 %s43, 1
      %s49 = ssub.s32 %s43, 2
      %s50 = sadd.s32 %s43, 1
      %s51 = ssub.s32 %s43, %s50
      %p52 = scmp.eq.s32.totalorder %s51, 0
      %s54 = sadd.s32 %s53, 1
      %s55 = scalar_select %p52, %s53, %s54
      %p58 = pneg %p52
      %p59 = scmp.eq.s32.totalorder %s43, 1
      %p60 = por %p58, %p59
      %p61 = scmp.ne.s32.totalorder %s53, %s56
      %p62 = scmp.eq.s32.totalorder %s43, 0
      %p63 = por %p61, %p62
      %p64 = scmp.ne.s32.totalorder %s53, %s56
      %p65 = scmp.eq.s32.totalorder %s48, 1
      %p66 = por %p64, %p65
      %p67 = scmp.ne.s32.totalorder %s56, %s57
      %p68 = scmp.eq.s32.totalorder %s48, 0
      %p69 = por %p67, %p68
      %p70 = scmp.ne.s32.totalorder %s56, %s57
      %p71 = scmp.eq.s32.totalorder %s49, 1
      %p72 = por %p70, %p71
      %p74 = scmp.ne.s32.totalorder %s57, %s73
      %p75 = scmp.eq.s32.totalorder %s49, 0
      %p76 = por %p74, %p75
      %s77 = ssub.s32 %s43, %s50
      %p78 = scmp.eq.s32.totalorder %s77, 0
      %s80 = sadd.s32 %s79, 1
      %s81 = scalar_select %p78, %s79, %s80
      %p84 = pneg %p78
      %p85 = scmp.eq.s32.totalorder %s43, 1
      %p86 = por %p84, %p85
      %p87 = scmp.ne.s32.totalorder %s79, %s82
      %p88 = scmp.eq.s32.totalorder %s43, 0
      %p89 = por %p87, %p88
      %p90 = scmp.ne.s32.totalorder %s79, %s82
      %p91 = scmp.eq.s32.totalorder %s48, 1
      %p92 = por %p90, %p91
      %p93 = scmp.ne.s32.totalorder %s82, %s83
      %p94 = scmp.eq.s32.totalorder %s48, 0
      %p95 = por %p93, %p94
      %p96 = scmp.ne.s32.totalorder %s82, %s83
      %p97 = scmp.eq.s32.totalorder %s49, 1
      %p98 = por %p96, %p97
      %p100 = scmp.ne.s32.totalorder %s83, %s99
      %p101 = scmp.eq.s32.totalorder %s49, 0
      %p102 = por %p100, %p101
      %s103 = ssub.s32 %s43, %s50
      %p104 = scmp.eq.s32.totalorder %s103, 0
      %s106 = sadd.s32 %s105, 1
      %s107 = scalar_select %p104, %s105, %s106
      %p110 = pneg %p104
      %p111 = scmp.eq.s32.totalorder %s43, 1
      %p112 = por %p110, %p111
      %p113 = scmp.ne.s32.totalorder %s105, %s108
      %p114 = scmp.eq.s32.totalorder %s43, 0
      %p115 = por %p113, %p114
      %p116 = scmp.ne.s32.totalorder %s105, %s108
      %p117 = scmp.eq.s32.totalorder %s48, 1
      %p118 = por %p116, %p117
      %p119 = scmp.ne.s32.totalorder %s108, %s109
      %p120 = scmp.eq.s32.totalorder %s48, 0
      %p121 = por %p119, %p120
      %p122 = scmp.ne.s32.totalorder %s108, %s109
      %p123 = scmp.eq.s32.totalorder %s49, 1
      %p124 = por %p122, %p123
      %p126 = scmp.ne.s32.totalorder %s109, %s125
      %p127 = scmp.eq.s32.totalorder %s49, 0
      %p128 = por %p126, %p127
      %s130 = sadd.s32 %s129, 1
      %p133 = scmp.eq.s32.totalorder %s43, 1
      %p134 = scmp.ne.s32.totalorder %s129, %s131
      %p135 = scmp.eq.s32.totalorder %s43, 0
      %p136 = por %p134, %p135
      %p137 = scmp.ne.s32.totalorder %s129, %s131
      %p138 = scmp.eq.s32.totalorder %s48, 1
      %p139 = por %p137, %p138
      %p140 = scmp.ne.s32.totalorder %s131, %s132
      %p141 = scmp.eq.s32.totalorder %s48, 0
      %p142 = por %p140, %p141
      %p143 = scmp.ne.s32.totalorder %s131, %s132
      %p144 = scmp.eq.s32.totalorder %s49, 1
      %p145 = por %p143, %p144
      %p147 = scmp.ne.s32.totalorder %s132, %s146
      %p148 = scmp.eq.s32.totalorder %s49, 0
      %p149 = por %p147, %p148
      %s151 = sadd.s32 %s150, 1
      %p154 = scmp.eq.s32.totalorder %s43, 1
      %p155 = scmp.ne.s32.totalorder %s150, %s152
      %p156 = scmp.eq.s32.totalorder %s43, 0
      %p157 = por %p155, %p156
      %p158 = scmp.ne.s32.totalorder %s150, %s152
      %p159 = scmp.eq.s32.totalorder %s48, 1
      %p160 = por %p158, %p159
      %p161 = scmp.ne.s32.totalorder %s152, %s153
      %p162 = scmp.eq.s32.totalorder %s48, 0
      %p163 = por %p161, %p162
      %p164 = scmp.ne.s32.totalorder %s152, %s153
      %p165 = scmp.eq.s32.totalorder %s49, 1
      %p166 = por %p164, %p165
      %p168 = scmp.ne.s32.totalorder %s153, %s167
      %p169 = scmp.eq.s32.totalorder %s49, 0
      %p170 = por %p168, %p169
      %s172 = sadd.s32 %s171, 1
      %p175 = scmp.eq.s32.totalorder %s43, 1
      %p176 = scmp.ne.s32.totalorder %s171, %s173
      %p177 = scmp.eq.s32.totalorder %s43, 0
      %p178 = por %p176, %p177
      %p179 = scmp.ne.s32.totalorder %s171, %s173
      %p180 = scmp.eq.s32.totalorder %s48, 1
      %p181 = por %p179, %p180
      %p182 = scmp.ne.s32.totalorder %s173, %s174
      %p183 = scmp.eq.s32.totalorder %s48, 0
      %p184 = por %p182, %p183
      %p185 = scmp.ne.s32.totalorder %s173, %s174
      %p186 = scmp.eq.s32.totalorder %s49, 1
      %p187 = por %p185, %p186
      %p189 = scmp.ne.s32.totalorder %s174, %s188
      %p190 = scmp.eq.s32.totalorder %s49, 0
      %p191 = por %p189, %p190
      %s193 = sadd.s32 %s192, 1
      %p196 = scmp.eq.s32.totalorder %s43, 1
      %p197 = scmp.ne.s32.totalorder %s192, %s194
      %p198 = scmp.eq.s32.totalorder %s43, 0
      %p199 = por %p197, %p198
      %p200 = scmp.ne.s32.totalorder %s192, %s194
      %p201 = scmp.eq.s32.totalorder %s48, 1
      %p202 = por %p200, %p201
      %p203 = scmp.ne.s32.totalorder %s194, %s195
      %p204 = scmp.eq.s32.totalorder %s48, 0
      %p205 = por %p203, %p204
      %p206 = scmp.ne.s32.totalorder %s194, %s195
      %p207 = scmp.eq.s32.totalorder %s49, 1
      %p208 = por %p206, %p207
      %p210 = scmp.ne.s32.totalorder %s195, %s209
      %p211 = scmp.eq.s32.totalorder %s49, 0
      %p212 = por %p210, %p211
      %s214 = sadd.s32 %s213, 1
      %p217 = scmp.eq.s32.totalorder %s43, 1
      %p218 = scmp.ne.s32.totalorder %s213, %s215
      %p219 = scmp.eq.s32.totalorder %s43, 0
      %p220 = por %p218, %p219
      %p221 = scmp.ne.s32.totalorder %s213, %s215
      %p222 = scmp.eq.s32.totalorder %s48, 1
      %p223 = por %p221, %p222
      %p224 = scmp.ne.s32.totalorder %s215, %s216
      %p225 = scmp.eq.s32.totalorder %s48, 0
      %p226 = por %p224, %p225
      %p227 = scmp.ne.s32.totalorder %s215, %s216
      %p228 = scmp.eq.s32.totalorder %s49, 1
      %p229 = por %p227, %p228
      %p231 = scmp.ne.s32.totalorder %s216, %s230
      %p232 = scmp.eq.s32.totalorder %s49, 0
      %p233 = por %p231, %p232
      %s235 = sadd.s32 %s234, 1
      %p238 = scmp.eq.s32.totalorder %s43, 1
      %p239 = scmp.ne.s32.totalorder %s234, %s236
      %p240 = scmp.eq.s32.totalorder %s43, 0
      %p241 = por %p239, %p240
      %p242 = scmp.ne.s32.totalorder %s234, %s236
      %p243 = scmp.eq.s32.totalorder %s48, 1
      %p244 = por %p242, %p243
      %p245 = scmp.ne.s32.totalorder %s236, %s237
      %p246 = scmp.eq.s32.totalorder %s48, 0
      %p247 = por %p245, %p246
      %p248 = scmp.ne.s32.totalorder %s236, %s237
      %p249 = scmp.eq.s32.totalorder %s49, 1
      %p250 = por %p248, %p249
      %p252 = scmp.ne.s32.totalorder %s237, %s251
      %p253 = scmp.eq.s32.totalorder %s49, 0
      %p254 = por %p252, %p253
      %s256 = sadd.s32 %s255, 1
      %p259 = scmp.eq.s32.totalorder %s43, 1
      %p260 = scmp.ne.s32.totalorder %s255, %s257
      %p261 = scmp.eq.s32.totalorder %s43, 0
      %p262 = por %p260, %p261
      %p263 = scmp.ne.s32.totalorder %s255, %s257
      %p264 = scmp.eq.s32.totalorder %s48, 1
      %p265 = por %p263, %p264
      %p266 = scmp.ne.s32.totalorder %s257, %s258
      %p267 = scmp.eq.s32.totalorder %s48, 0
      %p268 = por %p266, %p267
      %p269 = scmp.ne.s32.totalorder %s257, %s258
      %p270 = scmp.eq.s32.totalorder %s49, 1
      %p271 = por %p269, %p270
      %p273 = scmp.ne.s32.totalorder %s258, %s272
      %p274 = scmp.eq.s32.totalorder %s49, 0
      %p275 = por %p273, %p274
      %s277 = sadd.s32 %s276, 1
      %p280 = scmp.eq.s32.totalorder %s43, 1
      %p281 = scmp.ne.s32.totalorder %s276, %s278
      %p282 = scmp.eq.s32.totalorder %s43, 0
      %p283 = por %p281, %p282
      %p284 = scmp.ne.s32.totalorder %s276, %s278
      %p285 = scmp.eq.s32.totalorder %s48, 1
      %p286 = por %p284, %p285
      %p287 = scmp.ne.s32.totalorder %s278, %s279
      %p288 = scmp.eq.s32.totalorder %s48, 0
      %p289 = por %p287, %p288
      %p290 = scmp.ne.s32.totalorder %s278, %s279
      %p291 = scmp.eq.s32.totalorder %s49, 1
      %p292 = por %p290, %p291
      %p294 = scmp.ne.s32.totalorder %s279, %s293
      %p295 = scmp.eq.s32.totalorder %s49, 0
      %p296 = por %p294, %p295
      %s298 = sadd.s32 %s297, 1
      %p301 = scmp.eq.s32.totalorder %s43, 1
      %p302 = scmp.ne.s32.totalorder %s297, %s299
      %p303 = scmp.eq.s32.totalorder %s43, 0
      %p304 = por %p302, %p303
      %p305 = scmp.ne.s32.totalorder %s297, %s299
      %p306 = scmp.eq.s32.totalorder %s48, 1
      %p307 = por %p305, %p306
      %p308 = scmp.ne.s32.totalorder %s299, %s300
      %p309 = scmp.eq.s32.totalorder %s48, 0
      %p310 = por %p308, %p309
      %p311 = scmp.ne.s32.totalorder %s299, %s300
      %p312 = scmp.eq.s32.totalorder %s49, 1
      %p313 = por %p311, %p312
      %p315 = scmp.ne.s32.totalorder %s300, %s314
      %p316 = scmp.eq.s32.totalorder %s49, 0
      %p317 = por %p315, %p316
      %s319 = sadd.s32 %s318, 1
      %p322 = scmp.eq.s32.totalorder %s43, 1
      %p323 = scmp.ne.s32.totalorder %s318, %s320
      %p324 = scmp.eq.s32.totalorder %s43, 0
      %p325 = por %p323, %p324
      %p326 = scmp.ne.s32.totalorder %s318, %s320
      %p327 = scmp.eq.s32.totalorder %s48, 1
      %p328 = por %p326, %p327
      %p329 = scmp.ne.s32.totalorder %s320, %s321
      %p330 = scmp.eq.s32.totalorder %s48, 0
      %p331 = por %p329, %p330
      %p332 = scmp.ne.s32.totalorder %s320, %s321
      %p333 = scmp.eq.s32.totalorder %s49, 1
      %p334 = por %p332, %p333
      %p336 = scmp.ne.s32.totalorder %s321, %s335
      %p337 = scmp.eq.s32.totalorder %s49, 0
      %p338 = por %p336, %p337
      %s340 = sadd.s32 %s339, 1
      %p343 = scmp.eq.s32.totalorder %s43, 1
      %p344 = scmp.ne.s32.totalorder %s339, %s341
      %p345 = scmp.eq.s32.totalorder %s43, 0
      %p346 = por %p344, %p345
      %p347 = scmp.ne.s32.totalorder %s339, %s341
      %p348 = scmp.eq.s32.totalorder %s48, 1
      %p349 = por %p347, %p348
      %p350 = scmp.ne.s32.totalorder %s341, %s342
      %p351 = scmp.eq.s32.totalorder %s48, 0
      %p352 = por %p350, %p351
      %p353 = scmp.ne.s32.totalorder %s341, %s342
      %p354 = scmp.eq.s32.totalorder %s49, 1
      %p355 = por %p353, %p354
      %p357 = scmp.ne.s32.totalorder %s342, %s356
      %p358 = scmp.eq.s32.totalorder %s49, 0
      %p359 = por %p357, %p358
      %s361 = sadd.s32 %s360, 1
      %p364 = scmp.eq.s32.totalorder %s43, 1
      %p365 = scmp.ne.s32.totalorder %s360, %s362
      %p366 = scmp.eq.s32.totalorder %s43, 0
      %p367 = por %p365, %p366
      %p368 = scmp.ne.s32.totalorder %s360, %s362
      %p369 = scmp.eq.s32.totalorder %s48, 1
      %p370 = por %p368, %p369
      %p371 = scmp.ne.s32.totalorder %s362, %s363
      %p372 = scmp.eq.s32.totalorder %s48, 0
      %p373 = por %p371, %p372
      %p374 = scmp.ne.s32.totalorder %s362, %s363
      %p375 = scmp.eq.s32.totalorder %s49, 1
      %p376 = por %p374, %p375
      %p378 = scmp.ne.s32.totalorder %s363, %s377
      %p379 = scmp.eq.s32.totalorder %s49, 0
      %p380 = por %p378, %p379
      %s382 = sadd.s32 %s381, 1
      %p385 = scmp.eq.s32.totalorder %s43, 1
      %p386 = scmp.ne.s32.totalorder %s381, %s383
      %p387 = scmp.eq.s32.totalorder %s43, 0
      %p388 = por %p386, %p387
      %p389 = scmp.ne.s32.totalorder %s381, %s383
      %p390 = scmp.eq.s32.totalorder %s48, 1
      %p391 = por %p389, %p390
      %p392 = scmp.ne.s32.totalorder %s383, %s384
      %p393 = scmp.eq.s32.totalorder %s48, 0
      %p394 = por %p392, %p393
      %p395 = scmp.ne.s32.totalorder %s383, %s384
      %p396 = scmp.eq.s32.totalorder %s49, 1
      %p397 = por %p395, %p396
      %p399 = scmp.ne.s32.totalorder %s384, %s398
      %p400 = scmp.eq.s32.totalorder %s49, 0
      %p401 = por %p399, %p400
      %s403 = sadd.s32 %s402, 1
      %p406 = scmp.eq.s32.totalorder %s43, 1
      %p407 = scmp.ne.s32.totalorder %s402, %s404
      %p408 = scmp.eq.s32.totalorder %s43, 0
      %p409 = por %p407, %p408
      %p410 = scmp.ne.s32.totalorder %s402, %s404
      %p411 = scmp.eq.s32.totalorder %s48, 1
      %p412 = por %p410, %p411
      %p413 = scmp.ne.s32.totalorder %s404, %s405
      %p414 = scmp.eq.s32.totalorder %s48, 0
      %p415 = por %p413, %p414
      %p416 = scmp.ne.s32.totalorder %s404, %s405
      %p417 = scmp.eq.s32.totalorder %s49, 1
      %p418 = por %p416, %p417
      %p420 = scmp.ne.s32.totalorder %s405, %s419
      %p421 = scmp.eq.s32.totalorder %s49, 0
      %p422 = por %p420, %p421
      %s424 = sadd.s32 %s423, 1
      %p427 = scmp.eq.s32.totalorder %s43, 1
      %p428 = scmp.ne.s32.totalorder %s423, %s425
      %p429 = scmp.eq.s32.totalorder %s43, 0
      %p430 = por %p428, %p429
      %p431 = scmp.ne.s32.totalorder %s423, %s425
      %p432 = scmp.eq.s32.totalorder %s48, 1
      %p433 = por %p431, %p432
      %p434 = scmp.ne.s32.totalorder %s425, %s426
      %p435 = scmp.eq.s32.totalorder %s48, 0
      %p436 = por %p434, %p435
      %p437 = scmp.ne.s32.totalorder %s425, %s426
      %p438 = scmp.eq.s32.totalorder %s49, 1
      %p439 = por %p437, %p438
      %p441 = scmp.ne.s32.totalorder %s426, %s440
      %p442 = scmp.eq.s32.totalorder %s49, 0
      %p443 = por %p441, %p442
      %s445 = sadd.s32 %s444, 1
      %p448 = scmp.eq.s32.totalorder %s43, 1
      %p449 = scmp.ne.s32.totalorder %s444, %s446
      %p450 = scmp.eq.s32.totalorder %s43, 0
      %p451 = por %p449, %p450
      %p452 = scmp.ne.s32.totalorder %s444, %s446
      %p453 = scmp.eq.s32.totalorder %s48, 1
      %p454 = por %p452, %p453
      %p455 = scmp.ne.s32.totalorder %s446, %s447
      %p456 = scmp.eq.s32.totalorder %s48, 0
      %p457 = por %p455, %p456
      %p458 = scmp.ne.s32.totalorder %s446, %s447
      %p459 = scmp.eq.s32.totalorder %s49, 1
      %p460 = por %p458, %p459
      %p462 = scmp.ne.s32.totalorder %s447, %s461
      %p463 = scmp.eq.s32.totalorder %s49, 0
      %p464 = por %p462, %p463
      %s466 = sadd.s32 %s465, 1
      %p469 = scmp.eq.s32.totalorder %s43, 1
      %p470 = scmp.ne.s32.totalorder %s465, %s467
      %p471 = scmp.eq.s32.totalorder %s43, 0
      %p472 = por %p470, %p471
      %p473 = scmp.ne.s32.totalorder %s465, %s467
      %p474 = scmp.eq.s32.totalorder %s48, 1
      %p475 = por %p473, %p474
      %p476 = scmp.ne.s32.totalorder %s467, %s468
      %p477 = scmp.eq.s32.totalorder %s48, 0
      %p478 = por %p476, %p477
      %p479 = scmp.ne.s32.totalorder %s467, %s468
      %p480 = scmp.eq.s32.totalorder %s49, 1
      %p481 = por %p479, %p480
      %p483 = scmp.ne.s32.totalorder %s468, %s482
      %p484 = scmp.eq.s32.totalorder %s49, 0
      %p485 = por %p483, %p484
      %s486 = ssub.s32 %s43, %s50
      %p487 = scmp.eq.s32.totalorder %s486, 0
      %s489 = sadd.s32 %s488, 1
      %s490 = scalar_select %p487, %s488, %s489
      %p493 = pneg %p487
      %p494 = scmp.eq.s32.totalorder %s43, 1
      %p495 = por %p493, %p494
      %p496 = scmp.ne.s32.totalorder %s488, %s491
      %p497 = scmp.eq.s32.totalorder %s43, 0
      %p498 = por %p496, %p497
      %p499 = scmp.ne.s32.totalorder %s488, %s491
      %p500 = scmp.eq.s32.totalorder %s48, 1
      %p501 = por %p499, %p500
      %p502 = scmp.ne.s32.totalorder %s491, %s492
      %p503 = scmp.eq.s32.totalorder %s48, 0
      %p504 = por %p502, %p503
      %p505 = scmp.ne.s32.totalorder %s491, %s492
      %p506 = scmp.eq.s32.totalorder %s49, 1
      %p507 = por %p505, %p506
      %p509 = scmp.ne.s32.totalorder %s492, %s508
      %p510 = scmp.eq.s32.totalorder %s49, 0
      %p511 = por %p509, %p510
      %p512 = scmp.le.s32.totalorder 1, %s43
      %p513 = scmp.lt.s32.totalorder %s43, 3
      %p514 = pnand %p512, %p513
      %p515 = pneg %p514
      // Predicated region
      $region9: #{tpu_custom_call.1} parent=5 // pred_check
        _
      $region10: #{tpu_custom_call.1} parent=5 // pred_check_branch
        %517 = sbr.rel (%p514) target = $region12
      $region11: #{tpu_custom_call.1} parent=5 // pred_region
        %s518 = ssub.s32 %s43, 1
        // Predicated region
        $region13: #{tpu_custom_call.1} parent=11 // pred_check
          %p519 = pneg %p142
        $region14: #{tpu_custom_call.1} parent=11 // pred_check_branch
          %521 = sbr.rel (%p519) target = $region16
        $region15: #{tpu_custom_call.1} parent=11 // pred_region
          %s523 = ssub.s32 768, 768
          %524 = vsyncadd [#allocation13], %s523
          %s525 = sshll.u32 [#allocation12], 4
          %s526 = int_to_ptr.vmem [resolvable:$true] %s525
          %531 = dma.hbm_to_vmem [thread:$0]  %s3, 768, %s526, [#allocation13], 64, 64, 4
        $region16: #{tpu_custom_call.1} parent=11 // pred_fallthru
          _
        // Predicated region
        $region17: #{tpu_custom_call.1} parent=11 // pred_check
          %p532 = pneg %p163
        $region18: #{tpu_custom_call.1} parent=11 // pred_check_branch
          %534 = sbr.rel (%p532) target = $region20
        $region19: #{tpu_custom_call.1} parent=11 // pred_region
          %s536 = ssub.s32 16, 16
          %537 = vsyncadd [#allocation13], %s536
          %s539 = sshll.u32 [#allocation14], 4
          %s540 = int_to_ptr.vmem [resolvable:$true] %s539
          %542 = dma.hbm_to_vmem [thread:$0]  %s4, 16, %s540, [#allocation13]
        $region20: #{tpu_custom_call.1} parent=11 // pred_fallthru
          _
        // Predicated region
        $region21: #{tpu_custom_call.1} parent=11 // pred_check
          %p543 = pneg %p184
        $region22: #{tpu_custom_call.1} parent=11 // pred_check_branch
          %545 = sbr.rel (%p543) target = $region24
        $region23: #{tpu_custom_call.1} parent=11 // pred_region
          %s547 = ssub.s32 16, 16
          %548 = vsyncadd [#allocation16], %s547
          %s550 = sshll.u32 [#allocation15], 4
          %s551 = int_to_ptr.vmem [resolvable:$true] %s550
          %553 = dma.hbm_to_vmem [thread:$0]  %s5, 16, %s551, [#allocation16]
        $region24: #{tpu_custom_call.1} parent=11 // pred_fallthru
          _
        // Predicated region
        $region25: #{tpu_custom_call.1} parent=11 // pred_check
          %p554 = pneg %p205
        $region26: #{tpu_custom_call.1} parent=11 // pred_check_branch
          %556 = sbr.rel (%p554) target = $region28
        $region27: #{tpu_custom_call.1} parent=11 // pred_region
          %s558 = ssub.s32 2048, 2048
          %559 = vsyncadd [#allocation16], %s558
          %s560 = sshll.u32 [#allocation17], 4
          %s561 = int_to_ptr.vmem [resolvable:$true] %s560
          %566 = dma.hbm_to_vmem [thread:$0]  %s6, 2048, %s561, [#allocation16], 128, 128, 8
        $region28: #{tpu_custom_call.1} parent=11 // pred_fallthru
          _
        // Predicated region
        $region29: #{tpu_custom_call.1} parent=11 // pred_check
          %p567 = pneg %p226
        $region30: #{tpu_custom_call.1} parent=11 // pred_check_branch
          %569 = sbr.rel (%p567) target = $region32
        $region31: #{tpu_custom_call.1} parent=11 // pred_region
          _
        $region32: #{tpu_custom_call.1} parent=11 // pred_fallthru
          _
        // Predicated region
        $region33: #{tpu_custom_call.1} parent=11 // pred_check
          %p570 = pneg %p247
        $region34: #{tpu_custom_call.1} parent=11 // pred_check_branch
          %572 = sbr.rel (%p570) target = $region36
        $region35: #{tpu_custom_call.1} parent=11 // pred_region
          %s574 = ssub.s32 12288, 12288
          %575 = vsyncadd [#allocation19], %s574
          %s576 = sshll.u32 [#allocation18], 4
          %s577 = int_to_ptr.vmem [resolvable:$true] %s576
          %582 = dma.hbm_to_vmem [thread:$0]  %s8, 12288, %s577, [#allocation19], 128, 128, 8
        $region36: #{tpu_custom_call.1} parent=11 // pred_fallthru
          _
        // Predicated region
        $region37: #{tpu_custom_call.1} parent=11 // pred_check
          %p583 = pneg %p268
        $region38: #{tpu_custom_call.1} parent=11 // pred_check_branch
          %585 = sbr.rel (%p583) target = $region40
        $region39: #{tpu_custom_call.1} parent=11 // pred_region
          %s587 = ssub.s32 32, 32
          %588 = vsyncadd [#allocation19], %s587
          %s590 = sshll.u32 [#allocation20], 4
          %s591 = int_to_ptr.vmem [resolvable:$true] %s590
          %593 = dma.hbm_to_vmem [thread:$0]  %s9, 32, %s591, [#allocation19]
        $region40: #{tpu_custom_call.1} parent=11 // pred_fallthru
          _
        // Predicated region
        $region41: #{tpu_custom_call.1} parent=11 // pred_check
          %p594 = pneg %p289
        $region42: #{tpu_custom_call.1} parent=11 // pred_check_branch
          %596 = sbr.rel (%p594) target = $region44
        $region43: #{tpu_custom_call.1} parent=11 // pred_region
          %s598 = ssub.s32 32, 32
          %599 = vsyncadd [#allocation22], %s598
          %s601 = sshll.u32 [#allocation21], 4
          %s602 = int_to_ptr.vmem [resolvable:$true] %s601
          %604 = dma.hbm_to_vmem [thread:$0]  %s10, 32, %s602, [#allocation22]
        $region44: #{tpu_custom_call.1} parent=11 // pred_fallthru
          _
        // Predicated region
        $region45: #{tpu_custom_call.1} parent=11 // pred_check
          %p605 = pneg %p310
        $region46: #{tpu_custom_call.1} parent=11 // pred_check_branch
          %607 = sbr.rel (%p605) target = $region48
        $region47: #{tpu_custom_call.1} parent=11 // pred_region
          %s609 = ssub.s32 24576, 24576
          %610 = vsyncadd [#allocation22], %s609
          %s611 = sshll.u32 [#allocation23], 4
          %s612 = int_to_ptr.vmem [resolvable:$true] %s611
          %617 = dma.hbm_to_vmem [thread:$0]  %s11, 24576, %s612, [#allocation22], 128, 128, 8
        $region48: #{tpu_custom_call.1} parent=11 // pred_fallthru
          _
        // Predicated region
        $region49: #{tpu_custom_call.1} parent=11 // pred_check
          %p618 = pneg %p331
        $region50: #{tpu_custom_call.1} parent=11 // pred_check_branch
          %620 = sbr.rel (%p618) target = $region52
        $region51: #{tpu_custom_call.1} parent=11 // pred_region
          %s622 = ssub.s32 32, 32
          %623 = vsyncadd [#allocation25], %s622
          %s625 = sshll.u32 [#allocation24], 4
          %s626 = int_to_ptr.vmem [resolvable:$true] %s625
          %628 = dma.hbm_to_vmem [thread:$0]  %s12, 32, %s626, [#allocation25]
        $region52: #{tpu_custom_call.1} parent=11 // pred_fallthru
          _
        // Predicated region
        $region53: #{tpu_custom_call.1} parent=11 // pred_check
          %p629 = pneg %p352
        $region54: #{tpu_custom_call.1} parent=11 // pred_check_branch
          %631 = sbr.rel (%p629) target = $region56
        $region55: #{tpu_custom_call.1} parent=11 // pred_region
          %s633 = ssub.s32 32, 32
          %634 = vsyncadd [#allocation25], %s633
          %s636 = sshll.u32 [#allocation26], 4
          %s637 = int_to_ptr.vmem [resolvable:$true] %s636
          %639 = dma.hbm_to_vmem [thread:$0]  %s13, 32, %s637, [#allocation25]
        $region56: #{tpu_custom_call.1} parent=11 // pred_fallthru
          _
        // Predicated region
        $region57: #{tpu_custom_call.1} parent=11 // pred_check
          %p640 = pneg %p373
        $region58: #{tpu_custom_call.1} parent=11 // pred_check_branch
          %642 = sbr.rel (%p640) target = $region60
        $region59: #{tpu_custom_call.1} parent=11 // pred_region
          %s644 = ssub.s32 36864, 36864
          %645 = vsyncadd [#allocation28], %s644
          %s646 = sshll.u32 [#allocation27], 4
          %s647 = int_to_ptr.vmem [resolvable:$true] %s646
          %652 = dma.hbm_to_vmem [thread:$0]  %s14, 36864, %s647, [#allocation28], 128, 128, 8
        $region60: #{tpu_custom_call.1} parent=11 // pred_fallthru
          _
        // Predicated region
        $region61: #{tpu_custom_call.1} parent=11 // pred_check
          %p653 = pneg %p394
        $region62: #{tpu_custom_call.1} parent=11 // pred_check_branch
          %655 = sbr.rel (%p653) target = $region64
        $region63: #{tpu_custom_call.1} parent=11 // pred_region
          %s657 = ssub.s32 32, 32
          %658 = vsyncadd [#allocation28], %s657
          %s660 = sshll.u32 [#allocation29], 4
          %s661 = int_to_ptr.vmem [resolvable:$true] %s660
          %663 = dma.hbm_to_vmem [thread:$0]  %s15, 32, %s661, [#allocation28]
        $region64: #{tpu_custom_call.1} parent=11 // pred_fallthru
          _
        // Predicated region
        $region65: #{tpu_custom_call.1} parent=11 // pred_check
          %p664 = pneg %p415
        $region66: #{tpu_custom_call.1} parent=11 // pred_check_branch
          %666 = sbr.rel (%p664) target = $region68
        $region67: #{tpu_custom_call.1} parent=11 // pred_region
          %s668 = ssub.s32 32, 32
          %669 = vsyncadd [#allocation31], %s668
          %s671 = sshll.u32 [#allocation30], 4
          %s672 = int_to_ptr.vmem [resolvable:$true] %s671
          %674 = dma.hbm_to_vmem [thread:$0]  %s16, 32, %s672, [#allocation31]
        $region68: #{tpu_custom_call.1} parent=11 // pred_fallthru
          _
        // Predicated region
        $region69: #{tpu_custom_call.1} parent=11 // pred_check
          %p675 = pneg %p436
        $region70: #{tpu_custom_call.1} parent=11 // pred_check_branch
          %677 = sbr.rel (%p675) target = $region72
        $region71: #{tpu_custom_call.1} parent=11 // pred_region
          %s679 = ssub.s32 4096, 4096
          %680 = vsyncadd [#allocation31], %s679
          %s681 = sshll.u32 [#allocation32], 4
          %s682 = int_to_ptr.vmem [resolvable:$true] %s681
          %687 = dma.hbm_to_vmem [thread:$0]  %s17, 4096, %s682, [#allocation31], 128, 128, 8
        $region72: #{tpu_custom_call.1} parent=11 // pred_fallthru
          _
        // Predicated region
        $region73: #{tpu_custom_call.1} parent=11 // pred_check
          %p688 = pneg %p457
        $region74: #{tpu_custom_call.1} parent=11 // pred_check_branch
          %690 = sbr.rel (%p688) target = $region76
        $region75: #{tpu_custom_call.1} parent=11 // pred_region
          %s692 = ssub.s32 32, 32
          %693 = vsyncadd [#allocation34], %s692
          %s695 = sshll.u32 [#allocation33], 4
          %s696 = int_to_ptr.vmem [resolvable:$true] %s695
          %698 = dma.hbm_to_vmem [thread:$0]  %s18, 32, %s696, [#allocation34]
        $region76: #{tpu_custom_call.1} parent=11 // pred_fallthru
          _
        // Predicated region
        $region77: #{tpu_custom_call.1} parent=11 // pred_check
          %p699 = pneg %p478
        $region78: #{tpu_custom_call.1} parent=11 // pred_check_branch
          %701 = sbr.rel (%p699) target = $region80
        $region79: #{tpu_custom_call.1} parent=11 // pred_region
          %s703 = ssub.s32 32, 32
          %704 = vsyncadd [#allocation34], %s703
          %s706 = sshll.u32 [#allocation35], 4
          %s707 = int_to_ptr.vmem [resolvable:$true] %s706
          %709 = dma.hbm_to_vmem [thread:$0]  %s19, 32, %s707, [#allocation34]
        $region80: #{tpu_custom_call.1} parent=11 // pred_fallthru
          _
      $region12: #{tpu_custom_call.1} parent=5 // pred_fallthru
        _
      %p710 = scmp.lt.s32.totalorder %s43, 2
      // Predicated region
      $region81: #{tpu_custom_call.1} parent=5 // pred_check
        %p711 = pneg %p710
      $region82: #{tpu_custom_call.1} parent=5 // pred_check_branch
        %713 = sbr.rel (%p711) target = $region84
      $region83: #{tpu_custom_call.1} parent=5 // pred_region
        // Predicated region
        $region85: #{tpu_custom_call.1} parent=83 // pred_check
          %p714 = pneg %p63
        $region86: #{tpu_custom_call.1} parent=83 // pred_check_branch
          %716 = sbr.rel (%p714) target = $region88
        $region87: #{tpu_custom_call.1} parent=83 // pred_region
          %s717 = sand.u32 %s53, 1
          %s718 = scalar_lea.sflag [#allocation7], %s717
          %s719 = sand.u32 %s53, 1
          %s720 = smul.addr %s719, 4
          %s721 = scalar_lea.vmem [#allocation6], %s720
          %s723 = ssub.s32 64, 64
          %724 = vsyncadd %s718, %s723
          %s725 = smul.addr %s43, 64
          %s726 = scalar_lea.hbm %s0, %s725
          %s728 = sshll.u32 %s721, 4
          %s729 = int_to_ptr.vmem [resolvable:$true] %s728
          %731 = dma.hbm_to_vmem [thread:$0]  %s726, 64, %s729, %s718
        $region88: #{tpu_custom_call.1} parent=83 // pred_fallthru
          _
        // Predicated region
        $region89: #{tpu_custom_call.1} parent=83 // pred_check
          %p732 = pneg %p89
        $region90: #{tpu_custom_call.1} parent=83 // pred_check_branch
          %734 = sbr.rel (%p732) target = $region92
        $region91: #{tpu_custom_call.1} parent=83 // pred_region
          %s735 = sand.u32 %s43, 1
          %s736 = scalar_lea.sflag [#allocation10], %s735
          %s737 = sand.u32 %s79, 1
          %s738 = smul.addr %s737, 16
          %s739 = scalar_lea.vmem [#allocation9], %s738
          %s741 = ssub.s32 256, 256
          %742 = vsyncadd %s736, %s741
          %s743 = smul.addr %s43, 4
          %s744 = smul.addr %s743, 64
          %s745 = scalar_lea.hbm %s1, %s744
          %s746 = sshll.u32 %s739, 4
          %s747 = int_to_ptr.vmem [resolvable:$true] %s746
          %752 = dma.hbm_to_vmem [thread:$0]  %s745, 256, %s747, %s736, 128, 128, 8
        $region92: #{tpu_custom_call.1} parent=83 // pred_fallthru
          _
        // Predicated region
        $region93: #{tpu_custom_call.1} parent=83 // pred_check
          %p753 = pneg %p115
        $region94: #{tpu_custom_call.1} parent=83 // pred_check_branch
          %755 = sbr.rel (%p753) target = $region96
        $region95: #{tpu_custom_call.1} parent=83 // pred_region
          %s756 = sand.u32 %s43, 1
          %s757 = scalar_lea.sflag [#allocation10], %s756
          %s758 = sand.u32 %s105, 1
          %s759 = smul.addr %s758, 128
          %s760 = scalar_lea.vmem [#allocation11], %s759
          %s762 = ssub.s32 2048, 2048
          %763 = vsyncadd %s757, %s762
          %s764 = smul.addr %s43, 32
          %s765 = smul.addr %s764, 64
          %s766 = scalar_lea.hbm %s2, %s765
          %s767 = sshll.u32 %s760, 4
          %s768 = int_to_ptr.vmem [resolvable:$true] %s767
          %773 = dma.hbm_to_vmem [thread:$0]  %s766, 2048, %s768, %s757, 256, 256, 16
        $region96: #{tpu_custom_call.1} parent=83 // pred_fallthru
          _
      $region84: #{tpu_custom_call.1} parent=5 // pred_fallthru
        _
      %p774 = scmp.le.s32.totalorder 1, %s43
      %p775 = scmp.lt.s32.totalorder %s43, 3
      %p776 = pnand %p774, %p775
      %p777 = pneg %p776
      // Predicated region
      $region97: #{tpu_custom_call.1} parent=5 // pred_check
        _
      $region98: #{tpu_custom_call.1} parent=5 // pred_check_branch
        %779 = sbr.rel (%p776) target = $region100
      $region99: #{tpu_custom_call.1} parent=5 // pred_region
        %s780 = ssub.s32 %s43, 1
        %s781 = sand.u32 %s56, 1
        %s782 = scalar_lea.sflag [#allocation7], %s781
        %s783 = sand.u32 %s56, 1
        %s784 = smul.addr %s783, 4
        %s785 = scalar_lea.vmem [#allocation6], %s784
        // Predicated region
        $region101: #{tpu_custom_call.1} parent=99 // pred_check
          %p786 = pneg %p69
        $region102: #{tpu_custom_call.1} parent=99 // pred_check_branch
          %788 = sbr.rel (%p786) target = $region104
        $region103: #{tpu_custom_call.1} parent=99 // pred_region
          %789 = dma.done %s782, 64
        $region104: #{tpu_custom_call.1} parent=99 // pred_fallthru
          _
        %s790 = sand.u32 %s48, 1
        %s791 = scalar_lea.sflag [#allocation10], %s790
        %s792 = sand.u32 %s82, 1
        %s793 = smul.addr %s792, 16
        %s794 = scalar_lea.vmem [#allocation9], %s793
        // Predicated region
        $region105: #{tpu_custom_call.1} parent=99 // pred_check
          %p795 = pneg %p95
        $region106: #{tpu_custom_call.1} parent=99 // pred_check_branch
          %797 = sbr.rel (%p795) target = $region108
        $region107: #{tpu_custom_call.1} parent=99 // pred_region
          %798 = dma.done %s791, 256
        $region108: #{tpu_custom_call.1} parent=99 // pred_fallthru
          _
        %s799 = sand.u32 %s48, 1
        %s800 = scalar_lea.sflag [#allocation10], %s799
        %s801 = sand.u32 %s108, 1
        %s802 = smul.addr %s801, 128
        %s803 = scalar_lea.vmem [#allocation11], %s802
        // Predicated region
        $region109: #{tpu_custom_call.1} parent=99 // pred_check
          %p804 = pneg %p121
        $region110: #{tpu_custom_call.1} parent=99 // pred_check_branch
          %806 = sbr.rel (%p804) target = $region112
        $region111: #{tpu_custom_call.1} parent=99 // pred_region
          %807 = dma.done %s800, 2048
        $region112: #{tpu_custom_call.1} parent=99 // pred_fallthru
          _
        // Predicated region
        $region113: #{tpu_custom_call.1} parent=99 // pred_check
          %p808 = pneg %p142
        $region114: #{tpu_custom_call.1} parent=99 // pred_check_branch
          %810 = sbr.rel (%p808) target = $region116
        $region115: #{tpu_custom_call.1} parent=99 // pred_region
          %811 = dma.done [#allocation13], 768
        $region116: #{tpu_custom_call.1} parent=99 // pred_fallthru
          _
        // Predicated region
        $region117: #{tpu_custom_call.1} parent=99 // pred_check
          %p812 = pneg %p163
        $region118: #{tpu_custom_call.1} parent=99 // pred_check_branch
          %814 = sbr.rel (%p812) target = $region120
        $region119: #{tpu_custom_call.1} parent=99 // pred_region
          %815 = dma.done [#allocation13], 16
        $region120: #{tpu_custom_call.1} parent=99 // pred_fallthru
          _
        // Predicated region
        $region121: #{tpu_custom_call.1} parent=99 // pred_check
          %p816 = pneg %p184
        $region122: #{tpu_custom_call.1} parent=99 // pred_check_branch
          %818 = sbr.rel (%p816) target = $region124
        $region123: #{tpu_custom_call.1} parent=99 // pred_region
          %819 = dma.done [#allocation16], 16
        $region124: #{tpu_custom_call.1} parent=99 // pred_fallthru
          _
        // Predicated region
        $region125: #{tpu_custom_call.1} parent=99 // pred_check
          %p820 = pneg %p205
        $region126: #{tpu_custom_call.1} parent=99 // pred_check_branch
          %822 = sbr.rel (%p820) target = $region128
        $region127: #{tpu_custom_call.1} parent=99 // pred_region
          %823 = dma.done [#allocation16], 2048
        $region128: #{tpu_custom_call.1} parent=99 // pred_fallthru
          _
        // Predicated region
        $region129: #{tpu_custom_call.1} parent=99 // pred_check
          %p824 = pneg %p247
        $region130: #{tpu_custom_call.1} parent=99 // pred_check_branch
          %826 = sbr.rel (%p824) target = $region132
        $region131: #{tpu_custom_call.1} parent=99 // pred_region
          %827 = dma.done [#allocation19], 12288
        $region132: #{tpu_custom_call.1} parent=99 // pred_fallthru
          _
        // Predicated region
        $region133: #{tpu_custom_call.1} parent=99 // pred_check
          %p828 = pneg %p268
        $region134: #{tpu_custom_call.1} parent=99 // pred_check_branch
          %830 = sbr.rel (%p828) target = $region136
        $region135: #{tpu_custom_call.1} parent=99 // pred_region
          %831 = dma.done [#allocation19], 32
        $region136: #{tpu_custom_call.1} parent=99 // pred_fallthru
          _
        // Predicated region
        $region137: #{tpu_custom_call.1} parent=99 // pred_check
          %p832 = pneg %p289
        $region138: #{tpu_custom_call.1} parent=99 // pred_check_branch
          %834 = sbr.rel (%p832) target = $region140
        $region139: #{tpu_custom_call.1} parent=99 // pred_region
          %835 = dma.done [#allocation22], 32
        $region140: #{tpu_custom_call.1} parent=99 // pred_fallthru
          _
        // Predicated region
        $region141: #{tpu_custom_call.1} parent=99 // pred_check
          %p836 = pneg %p310
        $region142: #{tpu_custom_call.1} parent=99 // pred_check_branch
          %838 = sbr.rel (%p836) target = $region144
        $region143: #{tpu_custom_call.1} parent=99 // pred_region
          %839 = dma.done [#allocation22], 24576
        $region144: #{tpu_custom_call.1} parent=99 // pred_fallthru
          _
        // Predicated region
        $region145: #{tpu_custom_call.1} parent=99 // pred_check
          %p840 = pneg %p331
        $region146: #{tpu_custom_call.1} parent=99 // pred_check_branch
          %842 = sbr.rel (%p840) target = $region148
        $region147: #{tpu_custom_call.1} parent=99 // pred_region
          %843 = dma.done [#allocation25], 32
        $region148: #{tpu_custom_call.1} parent=99 // pred_fallthru
          _
        // Predicated region
        $region149: #{tpu_custom_call.1} parent=99 // pred_check
          %p844 = pneg %p352
        $region150: #{tpu_custom_call.1} parent=99 // pred_check_branch
          %846 = sbr.rel (%p844) target = $region152
        $region151: #{tpu_custom_call.1} parent=99 // pred_region
          %847 = dma.done [#allocation25], 32
        $region152: #{tpu_custom_call.1} parent=99 // pred_fallthru
          _
        // Predicated region
        $region153: #{tpu_custom_call.1} parent=99 // pred_check
          %p848 = pneg %p373
        $region154: #{tpu_custom_call.1} parent=99 // pred_check_branch
          %850 = sbr.rel (%p848) target = $region156
        $region155: #{tpu_custom_call.1} parent=99 // pred_region
          %851 = dma.done [#allocation28], 36864
        $region156: #{tpu_custom_call.1} parent=99 // pred_fallthru
          _
        // Predicated region
        $region157: #{tpu_custom_call.1} parent=99 // pred_check
          %p852 = pneg %p394
        $region158: #{tpu_custom_call.1} parent=99 // pred_check_branch
          %854 = sbr.rel (%p852) target = $region160
        $region159: #{tpu_custom_call.1} parent=99 // pred_region
          %855 = dma.done [#allocation28], 32
        $region160: #{tpu_custom_call.1} parent=99 // pred_fallthru
          _
        // Predicated region
        $region161: #{tpu_custom_call.1} parent=99 // pred_check
          %p856 = pneg %p415
        $region162: #{tpu_custom_call.1} parent=99 // pred_check_branch
          %858 = sbr.rel (%p856) target = $region164
        $region163: #{tpu_custom_call.1} parent=99 // pred_region
          %859 = dma.done [#allocation31], 32
        $region164: #{tpu_custom_call.1} parent=99 // pred_fallthru
          _
        // Predicated region
        $region165: #{tpu_custom_call.1} parent=99 // pred_check
          %p860 = pneg %p436
        $region166: #{tpu_custom_call.1} parent=99 // pred_check_branch
          %862 = sbr.rel (%p860) target = $region168
        $region167: #{tpu_custom_call.1} parent=99 // pred_region
          %863 = dma.done [#allocation31], 4096
        $region168: #{tpu_custom_call.1} parent=99 // pred_fallthru
          _
        // Predicated region
        $region169: #{tpu_custom_call.1} parent=99 // pred_check
          %p864 = pneg %p457
        $region170: #{tpu_custom_call.1} parent=99 // pred_check_branch
          %866 = sbr.rel (%p864) target = $region172
        $region171: #{tpu_custom_call.1} parent=99 // pred_region
          %867 = dma.done [#allocation34], 32
        $region172: #{tpu_custom_call.1} parent=99 // pred_fallthru
          _
        // Predicated region
        $region173: #{tpu_custom_call.1} parent=99 // pred_check
          %p868 = pneg %p478
        $region174: #{tpu_custom_call.1} parent=99 // pred_check_branch
          %870 = sbr.rel (%p868) target = $region176
        $region175: #{tpu_custom_call.1} parent=99 // pred_region
          %871 = dma.done [#allocation34], 32
        $region176: #{tpu_custom_call.1} parent=99 // pred_fallthru
          _
        %s872 = sand.u32 %s56, 1
        %s873 = scalar_lea.sflag [#allocation7], %s872
        %s874 = sand.u32 %s56, 1
        %s875 = smul.addr %s874, 4
        %s876 = scalar_lea.vmem [#allocation6], %s875
        %p877 = pneg %p69
        %p878 = pneg %p66
        %s879 = sand.u32 %s48, 1
        %s880 = scalar_lea.sflag [#allocation10], %s879
        %s881 = sand.u32 %s82, 1
        %s882 = smul.addr %s881, 16
        %s883 = scalar_lea.vmem [#allocation9], %s882
        %p884 = pneg %p95
        %p885 = pneg %p92
        %s886 = sand.u32 %s48, 1
        %s887 = scalar_lea.sflag [#allocation10], %s886
        %s888 = sand.u32 %s108, 1
        %s889 = smul.addr %s888, 128
        %s890 = scalar_lea.vmem [#allocation11], %s889
        %p891 = pneg %p121
        %p892 = pneg %p118
        %p893 = pneg %p142
        %p894 = pneg %p139
        %p895 = pneg %p163
        %p896 = pneg %p160
        %p897 = pneg %p184
        %p898 = pneg %p181
        %p899 = pneg %p205
        %p900 = pneg %p202
        %p901 = pneg %p226
        %p902 = pneg %p223
        %p903 = pneg %p247
        %p904 = pneg %p244
        %p905 = pneg %p268
        %p906 = pneg %p265
        %p907 = pneg %p289
        %p908 = pneg %p286
        %p909 = pneg %p310
        %p910 = pneg %p307
        %p911 = pneg %p331
        %p912 = pneg %p328
        %p913 = pneg %p352
        %p914 = pneg %p349
        %p915 = pneg %p373
        %p916 = pneg %p370
        %p917 = pneg %p394
        %p918 = pneg %p391
        %p919 = pneg %p415
        %p920 = pneg %p412
        %p921 = pneg %p436
        %p922 = pneg %p433
        %p923 = pneg %p457
        %p924 = pneg %p454
        %p925 = pneg %p478
        %p926 = pneg %p475
        %p927 = pneg %p504
        %p928 = pneg %p501
        %s929 = sand.u32 %s491, 1
        %s930 = scalar_lea.sflag [#allocation8], %s929
        %s931 = sand.u32 %s491, 1
        %s932 = smul.addr %s931, 32
        %s933 = scalar_lea.vmem [#allocation36], %s932
        %vm935 = vcmask 253952
        %vm936 = vsmask.f32 256
        %vm937 = vmand %vm935, %vm936
        %v938 = vld [vmem:[#allocation2] sm:$0x1]
        %v939 = vsel %vm937, 0, %v938
        %940 = vst [vmem:[#allocation2] sm:$0x1] %v939
        %vm941 = vsmask.f32 7938
        %vm942 = vmand %vm935, %vm941
        %v943 = vld [vmem:[#allocation2 + $0x4] sm:$0x1]
        %v944 = vsel %vm942, 0, %v943
        %945 = vst [vmem:[#allocation2 + $0x4] sm:$0x1] %v944
        %vm946 = vcmask 1040384
        %vm947 = vmand %vm946, %vm936
        %vm948 = vcmask 1044484
        %vm949 = vsmask.f32 4352
        %vm950 = vmand %vm948, %vm949
        %vm951 = vmor %vm950, %vm947
        %v952 = vld [vmem:[#allocation3] sm:$0x11]
        %v953 = vsel %vm951, 0, %v952
        %954 = vst [vmem:[#allocation3] sm:$0x11] %v953
        %vm955 = vmand %vm946, %vm941
        %vm956 = vsmask.f32 7954
        %vm957 = vmand %vm948, %vm956
        %vm958 = vmor %vm957, %vm955
        %v959 = vld [vmem:[#allocation3 + $0x10] sm:$0x11]
        %v960 = vsel %vm958, 0, %v959
        %961 = vst [vmem:[#allocation3 + $0x10] sm:$0x11] %v960
        %v962 = vld [vmem:[#allocation4] sm:$0x11]
        %v963 = vsel %vm951, 0, %v962
        %964 = vst [vmem:[#allocation4] sm:$0x11] %v963
        %v965 = vld [vmem:[#allocation4 + $0x8] sm:$0x11]
        %v966 = vsel %vm951, 0, %v965
        %967 = vst [vmem:[#allocation4 + $0x8] sm:$0x11] %v966
        %v968 = vld [vmem:[#allocation4 + $0x20] sm:$0x11]
        %v969 = vsel %vm958, 0, %v968
        %970 = vst [vmem:[#allocation4 + $0x20] sm:$0x11] %v969
        %v971 = vld [vmem:[#allocation4 + $0x28] sm:$0x11]
        %v972 = vsel %vm958, 0, %v971
        %973 = vst [vmem:[#allocation4 + $0x28] sm:$0x11] %v972
        %v974 = vld [vmem:[#allocation5] sm:$0x11]
        %v975 = vsel %vm951, 0, %v974
        %976 = vst [vmem:[#allocation5] sm:$0x11] %v975
        %v977 = vld [vmem:[#allocation5 + $0x8] sm:$0x11]
        %v978 = vsel %vm951, 0, %v977
        %979 = vst [vmem:[#allocation5 + $0x8] sm:$0x11] %v978
        %v980 = vld [vmem:[#allocation5 + $0x10] sm:$0x11]
        %v981 = vsel %vm951, 0, %v980
        %982 = vst [vmem:[#allocation5 + $0x10] sm:$0x11] %v981
        %v983 = vld [vmem:[#allocation5 + $0x30] sm:$0x11]
        %v984 = vsel %vm958, 0, %v983
        %985 = vst [vmem:[#allocation5 + $0x30] sm:$0x11] %v984
        %v986 = vld [vmem:[#allocation5 + $0x38] sm:$0x11]
        %v987 = vsel %vm958, 0, %v986
        %988 = vst [vmem:[#allocation5 + $0x38] sm:$0x11] %v987
        %v989 = vld [vmem:[#allocation5 + $0x40] sm:$0x11]
        %v990 = vsel %vm958, 0, %v989
        %991 = vst [vmem:[#allocation5 + $0x40] sm:$0x11] %v990
        %v992 = vld [vmem:[%s785] sm:$0xf]
        %v994 = vshrl.u32 %v992, 16
        %v996 = vrot.slane %v994, 7
        %v997 = vshll.u32 %v992, 16
        %v999 = vor.u32 %v996, %v997
        %v1000 = vrot.slane %v996, 4
        %vm1003 = vcmask 257024
        %vm1004 = vmand %vm1003, %vm941
        %v1005 = vld [vmem:[#allocation2] sm:$0xf]
        %v1006 = vsel %vm1004, %v999, %v1005
        %1007 = vst [vmem:[#allocation2] sm:$0xf] %v1006
        %v1008 = vld [vmem:[#allocation2 + $0x4] sm:$0x1]
        %v1009 = vsel %vm937, %v1000, %v1008
        %1010 = vst [vmem:[#allocation2 + $0x4] sm:$0x1] %v1009
        %v1011 = vld [vmem:[#allocation2] sm:$0xf]
        %v1012 = vld [vmem:[#allocation12] sm:$0xf]
        %v1013 = vld [vmem:[#allocation12 + $0x4] sm:$0xf]
        %v1014 = vld [vmem:[#allocation12 + $0x8] sm:$0xf]
        %v1015 = vld [vmem:[#allocation12 + $0xc] sm:$0xf]
        %v1016 = vld [vmem:[#allocation2 + $0x4] sm:$0x1]
        %s1017 = scalar_lea.vmem [#allocation12], 16
        %v1018 = vld [vmem:[%s1017] sm:$0xf]
        %v1019 = vld [vmem:[%s1017 + $0x4] sm:$0xf]
        %v1020 = vld [vmem:[%s1017 + $0x8] sm:$0xf]
        %v1021 = vld [vmem:[%s1017 + $0xc] sm:$0xf]
        %v1024 = vunpack.c.l.b16 %v1011
        %v1025 = vunpack.c.l.b16 %v1016
        %v1026 = vpack.c.b16 %v1025, %v1024
        %v1028 = vshrl.u32 %v1026, 16
        %v1030 = vshll.u32 %v1026, 16
        %v1032 = vrot.slane %v1030, 1
        %v1033 = vor.u32 %v1028, %v1032
        %v1038 = vunpack.c.l.b16 %v1018
        %v1039 = vunpack.c.l.b16 %v1019
        %v1040 = vunpack.c.l.b16 %v1020
        %v1041 = vunpack.c.l.b16 %v1021
        %v1042 = vpack.c.b16 %v1039, %v1038
        %v1043 = vpack.c.b16 %v1041, %v1040
        %vm1046 = vcmask 261120
        %v1048 = vsel %vm1046, %v1033, 0
        %1050 = vmatprep.subr.bf16.mxu0 0
        %1051 = vmatpush1.bf16.msra.mxu0 0
        %1052 = vmatprep.subr.bf16.mxu0 0
        %1053 = vmatpush1.bf16.msra.mxu0 0
        %1054 = vmatprep.subr.bf16.mxu0 0
        %1055 = vmatpush1.bf16.msra.mxu0 0
        %1056 = vmatprep.subr.bf16.mxu0 0
        %1057 = vmatpush1.bf16.msra.mxu0 0
        %1058 = vmatprep.subr.bf16.mxu0 0
        %1059 = vmatpush1.bf16.msra.mxu0 0
        %1060 = vmatprep.subr.bf16.mxu0 0
        %1061 = vmatpush1.bf16.msra.mxu0 0
        %1062 = vmatprep.subr.bf16.mxu0 0
        %1063 = vmatpush1.bf16.msra.mxu0 %v1043
        %1064 = vmatprep.subr.bf16.mxu0 0
        %1065 = vmatpush1.bf16.msra.mxu0 %v1042
        %1066 = vmatprep.subr.bf16.mxu0 0
        %1067 = vmatpush2.bf16.msra.mxu0 0
        %1068 = vmatprep.subr.bf16.mxu0 0
        %1069 = vmatpush2.bf16.msra.mxu0 0
        %1070 = vmatprep.subr.bf16.mxu0 0
        %1071 = vmatpush2.bf16.msra.mxu0 0
        %1072 = vmatprep.subr.bf16.mxu0 0
        %1073 = vmatpush2.bf16.msra.mxu0 0
        %1074 = vmatprep.subr.bf16.mxu0 0
        %1075 = vmatpush2.bf16.msra.mxu0 0
        %1076 = vmatprep.subr.bf16.mxu0 0
        %1077 = vmatpush2.bf16.msra.mxu0 0
        %1078 = vmatprep.subr.bf16.mxu0 0
        %1079 = vmatpush2.bf16.msra.mxu0 0
        %1080 = vmatprep.subr.bf16.mxu0 0
        %1081 = vmatpush2.bf16.msra.mxu0 0
        %1082 = vmatprep.mubr.bf16.mxu0 0
        %1083 = vmatmul.mubr.bf16.gmra.mxu0 %v1048
        %v1084 = vpop.f32.mrf.mxu0
        %v1085 = vadd.f32 0.0, %v1084
        %v1086 = vpop.f32.mrf.mxu0
        %v1087 = vpop.f32.mrf.mxu0
        %v1088 = vpop.f32.mrf.mxu0
        %1089 = vdwg.mxu0
        %v1094 = vunpack.c.l.b16 %v1012
        %v1095 = vunpack.c.l.b16 %v1013
        %v1096 = vunpack.c.l.b16 %v1014
        %v1097 = vunpack.c.l.b16 %v1015
        %v1098 = vpack.c.b16 %v1095, %v1094
        %v1099 = vpack.c.b16 %v1097, %v1096
        %v1103 = vsel %vm1046, %v1011, 0
        %1105 = vmatprep.subr.bf16.mxu0 0
        %1106 = vmatpush1.bf16.msra.mxu0 0
        %1107 = vmatprep.subr.bf16.mxu0 0
        %1108 = vmatpush1.bf16.msra.mxu0 0
        %1109 = vmatprep.subr.bf16.mxu0 0
        %1110 = vmatpush1.bf16.msra.mxu0 0
        %1111 = vmatprep.subr.bf16.mxu0 0
        %1112 = vmatpush1.bf16.msra.mxu0 0
        %1113 = vmatprep.subr.bf16.mxu0 0
        %1114 = vmatpush1.bf16.msra.mxu0 0
        %1115 = vmatprep.subr.bf16.mxu0 0
        %1116 = vmatpush1.bf16.msra.mxu0 0
        %1117 = vmatprep.subr.bf16.mxu0 0
        %1118 = vmatpush1.bf16.msra.mxu0 %v1099
        %1119 = vmatprep.subr.bf16.mxu0 0
        %1120 = vmatpush1.bf16.msra.mxu0 %v1098
        %1121 = vmatprep.subr.bf16.mxu0 0
        %1122 = vmatpush2.bf16.msra.mxu0 0
        %1123 = vmatprep.subr.bf16.mxu0 0
        %1124 = vmatpush2.bf16.msra.mxu0 0
        %1125 = vmatprep.subr.bf16.mxu0 0
        %1126 = vmatpush2.bf16.msra.mxu0 0
        %1127 = vmatprep.subr.bf16.mxu0 0
        %1128 = vmatpush2.bf16.msra.mxu0 0
        %1129 = vmatprep.subr.bf16.mxu0 0
        %1130 = vmatpush2.bf16.msra.mxu0 0
        %1131 = vmatprep.subr.bf16.mxu0 0
        %1132 = vmatpush2.bf16.msra.mxu0 0
        %1133 = vmatprep.subr.bf16.mxu0 0
        %1134 = vmatpush2.bf16.msra.mxu0 0
        %1135 = vmatprep.subr.bf16.mxu0 0
        %1136 = vmatpush2.bf16.msra.mxu0 0
        %1137 = vmatprep.mubr.bf16.mxu0 0
        %1138 = vmatmul.mubr.bf16.gmra.mxu0 %v1103
        %v1139 = vpop.f32.mrf.mxu0
        %v1140 = vadd.f32 %v1085, %v1139
        %v1141 = vpop.f32.mrf.mxu0
        %v1142 = vpop.f32.mrf.mxu0
        %v1143 = vpop.f32.mrf.mxu0
        %1144 = vdwg.mxu0
        %v1145 = vld [vmem:[#allocation2] sm:$0xe]
        %s1146 = scalar_lea.vmem [#allocation12], 32
        %v1147 = vld [vmem:[%s1146] sm:$0xf]
        %v1148 = vld [vmem:[%s1146 + $0x4] sm:$0xf]
        %v1149 = vld [vmem:[%s1146 + $0x8] sm:$0xf]
        %v1150 = vld [vmem:[%s1146 + $0xc] sm:$0xf]
        %v1152 = vunpack.c.l.b16 %v1145
        %v1153 = vpack.c.b16 %v1025, %v1152
        %v1154 = vrot.slane %v1153, 1
        %v1159 = vunpack.c.l.b16 %v1147
        %v1160 = vunpack.c.l.b16 %v1148
        %v1161 = vunpack.c.l.b16 %v1149
        %v1162 = vunpack.c.l.b16 %v1150
        %v1163 = vpack.c.b16 %v1160, %v1159
        %v1164 = vpack.c.b16 %v1162, %v1161
        %v1168 = vsel %vm1046, %v1154, 0
        %1170 = vmatprep.subr.bf16.mxu0 0
        %1171 = vmatpush1.bf16.msra.mxu0 0
        %1172 = vmatprep.subr.bf16.mxu0 0
        %1173 = vmatpush1.bf16.msra.mxu0 0
        %1174 = vmatprep.subr.bf16.mxu0 0
        %1175 = vmatpush1.bf16.msra.mxu0 0
        %1176 = vmatprep.subr.bf16.mxu0 0
        %1177 = vmatpush1.bf16.msra.mxu0 0
        %1178 = vmatprep.subr.bf16.mxu0 0
        %1179 = vmatpush1.bf16.msra.mxu0 0
        %1180 = vmatprep.subr.bf16.mxu0 0
        %1181 = vmatpush1.bf16.msra.mxu0 0
        %1182 = vmatprep.subr.bf16.mxu0 0
        %1183 = vmatpush1.bf16.msra.mxu0 %v1164
        %1184 = vmatprep.subr.bf16.mxu0 0
        %1185 = vmatpush1.bf16.msra.mxu0 %v1163
        %1186 = vmatprep.subr.bf16.mxu0 0
        %1187 = vmatpush2.bf16.msra.mxu0 0
        %1188 = vmatprep.subr.bf16.mxu0 0
        %1189 = vmatpush2.bf16.msra.mxu0 0
        %1190 = vmatprep.subr.bf16.mxu0 0
        %1191 = vmatpush2.bf16.msra.mxu0 0
        %1192 = vmatprep.subr.bf16.mxu0 0
        %1193 = vmatpush2.bf16.msra.mxu0 0
        %1194 = vmatprep.subr.bf16.mxu0 0
        %1195 = vmatpush2.bf16.msra.mxu0 0
        %1196 = vmatprep.subr.bf16.mxu0 0
        %1197 = vmatpush2.bf16.msra.mxu0 0
        %1198 = vmatprep.subr.bf16.mxu0 0
        %1199 = vmatpush2.bf16.msra.mxu0 0
        %1200 = vmatprep.subr.bf16.mxu0 0
        %1201 = vmatpush2.bf16.msra.mxu0 0
        %1202 = vmatprep.mubr.bf16.mxu0 0
        %1203 = vmatmul.mubr.bf16.gmra.mxu0 %v1168
        %v1204 = vpop.f32.mrf.mxu0
        %v1205 = vadd.f32 0.0, %v1204
        %v1206 = vpop.f32.mrf.mxu0
        %v1207 = vpop.f32.mrf.mxu0
        %v1208 = vpop.f32.mrf.mxu0
        %1209 = vdwg.mxu0
        %v1210 = vadd.f32 %v1140, %v1205
        %v1211 = vld [vmem:[#allocation14] sm:$0x1]
        %v1213 = vlaneseq
        %v1214 = vshrl.u32 %v1213, 7
        %v1215 = vsub.s32 0, %v1214
        %v1216 = vrot.slane %v1211, %v1215
        %v1218 = vmul.f32 %v1210, %v1216
        %v1219 = vld [vmem:[#allocation15] sm:$0x1]
        %v1221 = vlaneseq
        %v1222 = vshrl.u32 %v1221, 7
        %v1223 = vsub.s32 0, %v1222
        %v1224 = vrot.slane %v1219, %v1223
        %v1226 = vadd.f32 %v1218, %v1224
        %v1227 = vmax.f32 %v1226, 0.0
        %v1228 = vpack.c.bf16 %v1227, %v1227
        %v1229 = vld [vmem:[#allocation17] sm:$0xff]
        %v1230 = vld [vmem:[#allocation17 + $0x8] sm:$0xff]
        %v1231 = vld [vmem:[#allocation17 + $0x10] sm:$0xff]
        %v1232 = vld [vmem:[#allocation17 + $0x18] sm:$0xff]
        %v1233 = vld [vmem:[#allocation17 + $0x20] sm:$0xff]
        %v1234 = vld [vmem:[#allocation17 + $0x28] sm:$0xff]
        %v1235 = vld [vmem:[#allocation17 + $0x30] sm:$0xff]
        %v1236 = vld [vmem:[#allocation17 + $0x38] sm:$0xff]
        %v1237 = vld [vmem:[#allocation17 + $0x40] sm:$0xff]
        %v1238 = vld [vmem:[#allocation17 + $0x48] sm:$0xff]
        %v1239 = vld [vmem:[#allocation17 + $0x50] sm:$0xff]
        %v1240 = vld [vmem:[#allocation17 + $0x58] sm:$0xff]
        %v1241 = vld [vmem:[#allocation17 + $0x60] sm:$0xff]
        %v1242 = vld [vmem:[#allocation17 + $0x68] sm:$0xff]
        %v1243 = vld [vmem:[#allocation17 + $0x70] sm:$0xff]
        %v1244 = vld [vmem:[#allocation17 + $0x78] sm:$0xff]
        %v1261 = vunpack.c.l.b16 %v1229
        %v1262 = vunpack.c.h.b16 %v1229
        %v1263 = vunpack.c.l.b16 %v1230
        %v1264 = vunpack.c.h.b16 %v1230
        %v1265 = vunpack.c.l.b16 %v1231
        %v1266 = vunpack.c.h.b16 %v1231
        %v1267 = vunpack.c.l.b16 %v1232
        %v1268 = vunpack.c.h.b16 %v1232
        %v1269 = vunpack.c.l.b16 %v1233
        %v1270 = vunpack.c.h.b16 %v1233
        %v1271 = vunpack.c.l.b16 %v1234
        %v1272 = vunpack.c.h.b16 %v1234
        %v1273 = vunpack.c.l.b16 %v1235
        %v1274 = vunpack.c.h.b16 %v1235
        %v1275 = vunpack.c.l.b16 %v1236
        %v1276 = vunpack.c.h.b16 %v1236
        %v1277 = vunpack.c.l.b16 %v1237
        %v1278 = vunpack.c.h.b16 %v1237
        %v1279 = vunpack.c.l.b16 %v1238
        %v1280 = vunpack.c.h.b16 %v1238
        %v1281 = vunpack.c.l.b16 %v1239
        %v1282 = vunpack.c.h.b16 %v1239
        %v1283 = vunpack.c.l.b16 %v1240
        %v1284 = vunpack.c.h.b16 %v1240
        %v1285 = vunpack.c.l.b16 %v1241
        %v1286 = vunpack.c.h.b16 %v1241
        %v1287 = vunpack.c.l.b16 %v1242
        %v1288 = vunpack.c.h.b16 %v1242
        %v1289 = vunpack.c.l.b16 %v1243
        %v1290 = vunpack.c.h.b16 %v1243
        %v1291 = vunpack.c.l.b16 %v1244
        %v1292 = vunpack.c.h.b16 %v1244
        %v1293 = vpack.c.b16 %v1263, %v1261
        %v1294 = vpack.c.b16 %v1264, %v1262
        %v1295 = vpack.c.b16 %v1267, %v1265
        %v1296 = vpack.c.b16 %v1268, %v1266
        %v1297 = vpack.c.b16 %v1271, %v1269
        %v1298 = vpack.c.b16 %v1272, %v1270
        %v1299 = vpack.c.b16 %v1275, %v1273
        %v1300 = vpack.c.b16 %v1276, %v1274
        %v1301 = vpack.c.b16 %v1279, %v1277
        %v1302 = vpack.c.b16 %v1280, %v1278
        %v1303 = vpack.c.b16 %v1283, %v1281
        %v1304 = vpack.c.b16 %v1284, %v1282
        %v1305 = vpack.c.b16 %v1287, %v1285
        %v1306 = vpack.c.b16 %v1288, %v1286
        %v1307 = vpack.c.b16 %v1291, %v1289
        %v1308 = vpack.c.b16 %v1292, %v1290
        %1325 = vmatprep.subr.bf16.mxu0 %v1308
        %1326 = vmatpush1.bf16.msra.mxu0 %v1307
        %1327 = vmatprep.subr.bf16.mxu0 %v1306
        %1328 = vmatpush1.bf16.msra.mxu0 %v1305
        %1329 = vmatprep.subr.bf16.mxu0 %v1304
        %1330 = vmatpush1.bf16.msra.mxu0 %v1303
        %1331 = vmatprep.subr.bf16.mxu0 %v1302
        %1332 = vmatpush1.bf16.msra.mxu0 %v1301
        %1333 = vmatprep.subr.bf16.mxu0 %v1300
        %1334 = vmatpush1.bf16.msra.mxu0 %v1299
        %1335 = vmatprep.subr.bf16.mxu0 %v1298
        %1336 = vmatpush1.bf16.msra.mxu0 %v1297
        %1337 = vmatprep.subr.bf16.mxu0 %v1296
        %1338 = vmatpush1.bf16.msra.mxu0 %v1295
        %1339 = vmatprep.subr.bf16.mxu0 %v1294
        %1340 = vmatpush1.bf16.msra.mxu0 %v1293
        %1341 = vmatprep.subr.bf16.mxu0 0
        %1342 = vmatpush2.bf16.msra.mxu0 0
        %1343 = vmatprep.subr.bf16.mxu0 0
        %1344 = vmatpush2.bf16.msra.mxu0 0
        %1345 = vmatprep.subr.bf16.mxu0 0
        %1346 = vmatpush2.bf16.msra.mxu0 0
        %1347 = vmatprep.subr.bf16.mxu0 0
        %1348 = vmatpush2.bf16.msra.mxu0 0
        %1349 = vmatprep.subr.bf16.mxu0 0
        %1350 = vmatpush2.bf16.msra.mxu0 0
        %1351 = vmatprep.subr.bf16.mxu0 0
        %1352 = vmatpush2.bf16.msra.mxu0 0
        %1353 = vmatprep.subr.bf16.mxu0 0
        %1354 = vmatpush2.bf16.msra.mxu0 0
        %1355 = vmatprep.subr.bf16.mxu0 0
        %1356 = vmatpush2.bf16.msra.mxu0 0
        %1357 = vmatprep.mubr.bf16.mxu0 0
        %1358 = vmatmul.mubr.bf16.gmra.mxu0 %v1228
        %v1359 = vpop.f32.mrf.mxu0
        %v1360 = vadd.f32 0.0, %v1359
        %v1361 = vpop.f32.mrf.mxu0
        %v1362 = vadd.f32 0.0, %v1361
        %v1363 = vpop.f32.mrf.mxu0
        %v1364 = vpop.f32.mrf.mxu0
        %1365 = vdwg.mxu0
        %v1366 = vld [vmem:[%s7] sm:$0xf]
        %v1367 = vld [vmem:[%s7 + $0x4] sm:$0xf]
        %v1368 = vpack.c.bf16 %v1360, %v1360
        %v1369 = vpack.c.bf16 %v1362, %v1362
        %v1372 = vunpack.c.l.b16 %v1366
        %v1373 = vunpack.c.l.b16 %v1367
        %v1374 = vpack.c.b16 %v1373, %v1372
        %vm1375 = vcmask 64512
        %v1377 = vsel %vm1375, %v1374, 0
        %vm1379 = vcmask 1043456
        %v1381 = vsel %vm1379, %v1368, 0
        %v1384 = vsel %vm1379, %v1369, 0
        %1386 = vmatprep.subr.bf16.mxu0 0
        %1387 = vmatpush1.bf16.msra.mxu0 0
        %1388 = vmatprep.subr.bf16.mxu0 0
        %1389 = vmatpush1.bf16.msra.mxu0 0
        %1390 = vmatprep.subr.bf16.mxu0 0
        %1391 = vmatpush1.bf16.msra.mxu0 0
        %1392 = vmatprep.subr.bf16.mxu0 0
        %1393 = vmatpush1.bf16.msra.mxu0 0
        %1394 = vmatprep.subr.bf16.mxu0 0
        %1395 = vmatpush1.bf16.msra.mxu0 0
        %1396 = vmatprep.subr.bf16.mxu0 0
        %1397 = vmatpush1.bf16.msra.mxu0 0
        %1398 = vmatprep.subr.bf16.mxu0 0
        %1399 = vmatpush1.bf16.msra.mxu0 0
        %1400 = vmatprep.subr.bf16.mxu0 %v1384
        %1401 = vmatpush1.bf16.msra.mxu0 %v1381
        %1402 = vmatprep.subr.bf16.mxu0 0
        %1403 = vmatpush2.bf16.msra.mxu0 0
        %1404 = vmatprep.subr.bf16.mxu0 0
        %1405 = vmatpush2.bf16.msra.mxu0 0
        %1406 = vmatprep.subr.bf16.mxu0 0
        %1407 = vmatpush2.bf16.msra.mxu0 0
        %1408 = vmatprep.subr.bf16.mxu0 0
        %1409 = vmatpush2.bf16.msra.mxu0 0
        %1410 = vmatprep.subr.bf16.mxu0 0
        %1411 = vmatpush2.bf16.msra.mxu0 0
        %1412 = vmatprep.subr.bf16.mxu0 0
        %1413 = vmatpush2.bf16.msra.mxu0 0
        %1414 = vmatprep.subr.bf16.mxu0 0
        %1415 = vmatpush2.bf16.msra.mxu0 0
        %1416 = vmatprep.subr.bf16.mxu0 0
        %1417 = vmatpush2.bf16.msra.mxu0 0
        %1418 = vmatprep.mubr.bf16.mxu0 0
        %1419 = vmatmul.mubr.bf16.gmra.mxu0 %v1377
        %v1420 = vpop.f32.mrf.mxu0
        %v1421 = vadd.f32 0.0, %v1420
        %v1422 = vpop.f32.mrf.mxu0
        %v1423 = vadd.f32 0.0, %v1422
        %v1424 = vpop.f32.mrf.mxu0
        %v1425 = vadd.f32 0.0, %v1424
        %v1426 = vpop.f32.mrf.mxu0
        %v1427 = vadd.f32 0.0, %v1426
        %1428 = vdwg.mxu0
        %v1429 = vld [vmem:[%s794] sm:$0xff]
        %v1430 = vld [vmem:[%s794 + $0x8] sm:$0xff]
        %vm1431 = vsmask.f32 4368
        %vm1432 = vmor %vm936, %vm1431
        %v1434 = vshrl.u32 %v1429, 16
        %v1436 = vrot.slane %v1434, 7
        %v1437 = vshll.u32 %v1429, 16
        %v1439 = vor.u32 %v1436, %v1437
        %v1440 = vrot.slane %v1436, 4
        %v1442 = vshrl.u32 %v1430, 16
        %v1444 = vrot.slane %v1442, 7
        %v1445 = vshll.u32 %v1430, 16
        %v1447 = vor.u32 %v1444, %v1445
        %v1448 = vsel %vm1432, %v1440, %v1447
        %v1449 = vrot.slane %v1444, 4
        %vm1453 = vcmask 1043456
        %vm1454 = vmand %vm1453, %vm941
        %vm1455 = vcmask 1047556
        %vm1456 = vmand %vm1455, %vm956
        %vm1457 = vmor %vm1456, %vm1454
        %v1458 = vld [vmem:[#allocation3] sm:$0xff]
        %v1459 = vsel %vm1457, %v1439, %v1458
        %1460 = vst [vmem:[#allocation3] sm:$0xff] %v1459
        %1461 = vst [vmem:[#allocation3 + $0x8] sm:$0xff] %v1448
        %v1462 = vld [vmem:[#allocation3 + $0x10] sm:$0x11]
        %v1463 = vsel %vm951, %v1449, %v1462
        %1464 = vst [vmem:[#allocation3 + $0x10] sm:$0x11] %v1463
        %v1465 = vld [vmem:[#allocation3] sm:$0xff]
        %v1466 = vld [vmem:[#allocation3 + $0x8] sm:$0xff]
        %v1467 = vld [vmem:[#allocation18] sm:$0xff]
        %v1468 = vld [vmem:[#allocation18 + $0x8] sm:$0xff]
        %v1469 = vld [vmem:[#allocation18 + $0x10] sm:$0xff]
        %v1470 = vld [vmem:[#allocation18 + $0x18] sm:$0xff]
        %v1471 = vld [vmem:[#allocation18 + $0x20] sm:$0xff]
        %v1472 = vld [vmem:[#allocation18 + $0x28] sm:$0xff]
        %v1473 = vld [vmem:[#allocation18 + $0x30] sm:$0xff]
        %v1474 = vld [vmem:[#allocation18 + $0x38] sm:$0xff]
        %v1475 = vld [vmem:[#allocation18 + $0x40] sm:$0xff]
        %v1476 = vld [vmem:[#allocation18 + $0x48] sm:$0xff]
        %v1477 = vld [vmem:[#allocation18 + $0x50] sm:$0xff]
        %v1478 = vld [vmem:[#allocation18 + $0x58] sm:$0xff]
        %v1479 = vld [vmem:[#allocation18 + $0x60] sm:$0xff]
        %v1480 = vld [vmem:[#allocation18 + $0x68] sm:$0xff]
        %v1481 = vld [vmem:[#allocation18 + $0x70] sm:$0xff]
        %v1482 = vld [vmem:[#allocation18 + $0x78] sm:$0xff]
        %v1483 = vld [vmem:[#allocation18 + $0x80] sm:$0xff]
        %v1484 = vld [vmem:[#allocation18 + $0x88] sm:$0xff]
        %v1485 = vld [vmem:[#allocation18 + $0x90] sm:$0xff]
        %v1486 = vld [vmem:[#allocation18 + $0x98] sm:$0xff]
        %v1487 = vld [vmem:[#allocation18 + $0xa0] sm:$0xff]
        %v1488 = vld [vmem:[#allocation18 + $0xa8] sm:$0xff]
        %v1489 = vld [vmem:[#allocation18 + $0xb0] sm:$0xff]
        %v1490 = vld [vmem:[#allocation18 + $0xb8] sm:$0xff]
        %v1491 = vld [vmem:[#allocation18 + $0xc0] sm:$0xff]
        %v1492 = vld [vmem:[#allocation18 + $0xc8] sm:$0xff]
        %v1493 = vld [vmem:[#allocation18 + $0xd0] sm:$0xff]
        %v1494 = vld [vmem:[#allocation18 + $0xd8] sm:$0xff]
        %v1495 = vld [vmem:[#allocation18 + $0xe0] sm:$0xff]
        %v1496 = vld [vmem:[#allocation18 + $0xe8] sm:$0xff]
        %v1497 = vld [vmem:[#allocation18 + $0xf0] sm:$0xff]
        %v1498 = vld [vmem:[#allocation18 + $0xf8] sm:$0xff]
        %v1499 = vld [vmem:[#allocation3 + $0x10] sm:$0x11]
        %s1500 = scalar_lea.vmem [#allocation18], 256
        %v1501 = vld [vmem:[%s1500] sm:$0xff]
        %v1502 = vld [vmem:[%s1500 + $0x8] sm:$0xff]
        %v1503 = vld [vmem:[%s1500 + $0x10] sm:$0xff]
        %v1504 = vld [vmem:[%s1500 + $0x18] sm:$0xff]
        %v1505 = vld [vmem:[%s1500 + $0x20] sm:$0xff]
        %v1506 = vld [vmem:[%s1500 + $0x28] sm:$0xff]
        %v1507 = vld [vmem:[%s1500 + $0x30] sm:$0xff]
        %v1508 = vld [vmem:[%s1500 + $0x38] sm:$0xff]
        %v1509 = vld [vmem:[%s1500 + $0x40] sm:$0xff]
        %v1510 = vld [vmem:[%s1500 + $0x48] sm:$0xff]
        %v1511 = vld [vmem:[%s1500 + $0x50] sm:$0xff]
        %v1512 = vld [vmem:[%s1500 + $0x58] sm:$0xff]
        %v1513 = vld [vmem:[%s1500 + $0x60] sm:$0xff]
        %v1514 = vld [vmem:[%s1500 + $0x68] sm:$0xff]
        %v1515 = vld [vmem:[%s1500 + $0x70] sm:$0xff]
        %v1516 = vld [vmem:[%s1500 + $0x78] sm:$0xff]
        %v1517 = vld [vmem:[%s1500 + $0x80] sm:$0xff]
        %v1518 = vld [vmem:[%s1500 + $0x88] sm:$0xff]
        %v1519 = vld [vmem:[%s1500 + $0x90] sm:$0xff]
        %v1520 = vld [vmem:[%s1500 + $0x98] sm:$0xff]
        %v1521 = vld [vmem:[%s1500 + $0xa0] sm:$0xff]
        %v1522 = vld [vmem:[%s1500 + $0xa8] sm:$0xff]
        %v1523 = vld [vmem:[%s1500 + $0xb0] sm:$0xff]
        %v1524 = vld [vmem:[%s1500 + $0xb8] sm:$0xff]
        %v1525 = vld [vmem:[%s1500 + $0xc0] sm:$0xff]
        %v1526 = vld [vmem:[%s1500 + $0xc8] sm:$0xff]
        %v1527 = vld [vmem:[%s1500 + $0xd0] sm:$0xff]
        %v1528 = vld [vmem:[%s1500 + $0xd8] sm:$0xff]
        %v1529 = vld [vmem:[%s1500 + $0xe0] sm:$0xff]
        %v1530 = vld [vmem:[%s1500 + $0xe8] sm:$0xff]
        %v1531 = vld [vmem:[%s1500 + $0xf0] sm:$0xff]
        %v1532 = vld [vmem:[%s1500 + $0xf8] sm:$0xff]
        %v1536 = vunpack.c.l.b16 %v1465
        %v1537 = vunpack.c.h.b16 %v1465
        %v1538 = vunpack.c.l.b16 %v1466
        %v1539 = vunpack.c.h.b16 %v1466
        %v1540 = vunpack.c.l.b16 %v1499
        %v1541 = vunpack.c.h.b16 %v1499
        %v1542 = vpack.c.b16 %v1538, %v1536
        %v1543 = vpack.c.b16 %v1539, %v1537
        %v1544 = vpack.c.b16 %v1540, %v1540
        %v1545 = vpack.c.b16 %v1541, %v1541
        %vm1546 = vsmask.f32 7424
        %v1548 = vshrl.u32 %v1542, 16
        %v1550 = vshll.u32 %v1542, 16
        %v1552 = vrot.slane %v1550, 1
        %v1553 = vor.u32 %v1548, %v1552
        %v1555 = vshll.u32 %v1544, 16
        %v1557 = vrot.slane %v1555, 1
        %v1558 = vsel %vm1546, %v1553, %v1557
        %v1560 = vshrl.u32 %v1543, 16
        %v1562 = vshll.u32 %v1543, 16
        %v1564 = vrot.slane %v1562, 1
        %v1565 = vor.u32 %v1560, %v1564
        %v1567 = vshll.u32 %v1545, 16
        %v1569 = vrot.slane %v1567, 1
        %v1570 = vsel %vm1546, %v1565, %v1569
        %v1605 = vunpack.c.l.b16 %v1501
        %v1606 = vunpack.c.h.b16 %v1501
        %v1607 = vunpack.c.l.b16 %v1502
        %v1608 = vunpack.c.h.b16 %v1502
        %v1609 = vunpack.c.l.b16 %v1503
        %v1610 = vunpack.c.h.b16 %v1503
        %v1611 = vunpack.c.l.b16 %v1504
        %v1612 = vunpack.c.h.b16 %v1504
        %v1613 = vunpack.c.l.b16 %v1505
        %v1614 = vunpack.c.h.b16 %v1505
        %v1615 = vunpack.c.l.b16 %v1506
        %v1616 = vunpack.c.h.b16 %v1506
        %v1617 = vunpack.c.l.b16 %v1507
        %v1618 = vunpack.c.h.b16 %v1507
        %v1619 = vunpack.c.l.b16 %v1508
        %v1620 = vunpack.c.h.b16 %v1508
        %v1621 = vunpack.c.l.b16 %v1509
        %v1622 = vunpack.c.h.b16 %v1509
        %v1623 = vunpack.c.l.b16 %v1510
        %v1624 = vunpack.c.h.b16 %v1510
        %v1625 = vunpack.c.l.b16 %v1511
        %v1626 = vunpack.c.h.b16 %v1511
        %v1627 = vunpack.c.l.b16 %v1512
        %v1628 = vunpack.c.h.b16 %v1512
        %v1629 = vunpack.c.l.b16 %v1513
        %v1630 = vunpack.c.h.b16 %v1513
        %v1631 = vunpack.c.l.b16 %v1514
        %v1632 = vunpack.c.h.b16 %v1514
        %v1633 = vunpack.c.l.b16 %v1515
        %v1634 = vunpack.c.h.b16 %v1515
        %v1635 = vunpack.c.l.b16 %v1516
        %v1636 = vunpack.c.h.b16 %v1516
        %v1637 = vunpack.c.l.b16 %v1517
        %v1638 = vunpack.c.h.b16 %v1517
        %v1639 = vunpack.c.l.b16 %v1518
        %v1640 = vunpack.c.h.b16 %v1518
        %v1641 = vunpack.c.l.b16 %v1519
        %v1642 = vunpack.c.h.b16 %v1519
        %v1643 = vunpack.c.l.b16 %v1520
        %v1644 = vunpack.c.h.b16 %v1520
        %v1645 = vunpack.c.l.b16 %v1521
        %v1646 = vunpack.c.h.b16 %v1521
        %v1647 = vunpack.c.l.b16 %v1522
        %v1648 = vunpack.c.h.b16 %v1522
        %v1649 = vunpack.c.l.b16 %v1523
        %v1650 = vunpack.c.h.b16 %v1523
        %v1651 = vunpack.c.l.b16 %v1524
        %v1652 = vunpack.c.h.b16 %v1524
        %v1653 = vunpack.c.l.b16 %v1525
        %v1654 = vunpack.c.h.b16 %v1525
        %v1655 = vunpack.c.l.b16 %v1526
        %v1656 = vunpack.c.h.b16 %v1526
        %v1657 = vunpack.c.l.b16 %v1527
        %v1658 = vunpack.c.h.b16 %v1527
        %v1659 = vunpack.c.l.b16 %v1528
        %v1660 = vunpack.c.h.b16 %v1528
        %v1661 = vunpack.c.l.b16 %v1529
        %v1662 = vunpack.c.h.b16 %v1529
        %v1663 = vunpack.c.l.b16 %v1530
        %v1664 = vunpack.c.h.b16 %v1530
        %v1665 = vunpack.c.l.b16 %v1531
        %v1666 = vunpack.c.h.b16 %v1531
        %v1667 = vunpack.c.l.b16 %v1532
        %v1668 = vunpack.c.h.b16 %v1532
        %v1669 = vpack.c.b16 %v1607, %v1605
        %v1670 = vpack.c.b16 %v1608, %v1606
        %v1671 = vpack.c.b16 %v1611, %v1609
        %v1672 = vpack.c.b16 %v1612, %v1610
        %v1673 = vpack.c.b16 %v1615, %v1613
        %v1674 = vpack.c.b16 %v1616, %v1614
        %v1675 = vpack.c.b16 %v1619, %v1617
        %v1676 = vpack.c.b16 %v1620, %v1618
        %v1677 = vpack.c.b16 %v1623, %v1621
        %v1678 = vpack.c.b16 %v1624, %v1622
        %v1679 = vpack.c.b16 %v1627, %v1625
        %v1680 = vpack.c.b16 %v1628, %v1626
        %v1681 = vpack.c.b16 %v1631, %v1629
        %v1682 = vpack.c.b16 %v1632, %v1630
        %v1683 = vpack.c.b16 %v1635, %v1633
        %v1684 = vpack.c.b16 %v1636, %v1634
        %v1685 = vpack.c.b16 %v1639, %v1637
        %v1686 = vpack.c.b16 %v1640, %v1638
        %v1687 = vpack.c.b16 %v1643, %v1641
        %v1688 = vpack.c.b16 %v1644, %v1642
        %v1689 = vpack.c.b16 %v1647, %v1645
        %v1690 = vpack.c.b16 %v1648, %v1646
        %v1691 = vpack.c.b16 %v1651, %v1649
        %v1692 = vpack.c.b16 %v1652, %v1650
        %v1693 = vpack.c.b16 %v1655, %v1653
        %v1694 = vpack.c.b16 %v1656, %v1654
        %v1695 = vpack.c.b16 %v1659, %v1657
        %v1696 = vpack.c.b16 %v1660, %v1658
        %v1697 = vpack.c.b16 %v1663, %v1661
        %v1698 = vpack.c.b16 %v1664, %v1662
        %v1699 = vpack.c.b16 %v1667, %v1665
        %v1700 = vpack.c.b16 %v1668, %v1666
        %1733 = vmatprep.subr.bf16.mxu0 %v1684
        %1734 = vmatpush1.bf16.msra.mxu0 %v1683
        %1735 = vmatprep.subr.bf16.mxu0 %v1682
        %1736 = vmatpush1.bf16.msra.mxu0 %v1681
        %1737 = vmatprep.subr.bf16.mxu0 %v1680
        %1738 = vmatpush1.bf16.msra.mxu0 %v1679
        %1739 = vmatprep.subr.bf16.mxu0 %v1678
        %1740 = vmatpush1.bf16.msra.mxu0 %v1677
        %1741 = vmatprep.subr.bf16.mxu0 %v1676
        %1742 = vmatpush1.bf16.msra.mxu0 %v1675
        %1743 = vmatprep.subr.bf16.mxu0 %v1674
        %1744 = vmatpush1.bf16.msra.mxu0 %v1673
        %1745 = vmatprep.subr.bf16.mxu0 %v1672
        %1746 = vmatpush1.bf16.msra.mxu0 %v1671
        %1747 = vmatprep.subr.bf16.mxu0 %v1670
        %1748 = vmatpush1.bf16.msra.mxu0 %v1669
        %1749 = vmatprep.subr.bf16.mxu0 %v1700
        %1750 = vmatpush2.bf16.msra.mxu0 %v1699
        %1751 = vmatprep.subr.bf16.mxu0 %v1698
        %1752 = vmatpush2.bf16.msra.mxu0 %v1697
        %1753 = vmatprep.subr.bf16.mxu0 %v1696
        %1754 = vmatpush2.bf16.msra.mxu0 %v1695
        %1755 = vmatprep.subr.bf16.mxu0 %v1694
        %1756 = vmatpush2.bf16.msra.mxu0 %v1693
        %1757 = vmatprep.subr.bf16.mxu0 %v1692
        %1758 = vmatpush2.bf16.msra.mxu0 %v1691
        %1759 = vmatprep.subr.bf16.mxu0 %v1690
        %1760 = vmatpush2.bf16.msra.mxu0 %v1689
        %1761 = vmatprep.subr.bf16.mxu0 %v1688
        %1762 = vmatpush2.bf16.msra.mxu0 %v1687
        %1763 = vmatprep.subr.bf16.mxu0 %v1686
        %1764 = vmatpush2.bf16.msra.mxu0 %v1685
        %1765 = vmatprep.mubr.bf16.mxu0 %v1570
        %1766 = vmatmul.mubr.bf16.gmra.mxu0 %v1558
        %v1767 = vpop.f32.mrf.mxu0
        %v1768 = vadd.f32 0.0, %v1767
        %v1769 = vpop.f32.mrf.mxu0
        %v1770 = vadd.f32 0.0, %v1769
        %v1771 = vpop.f32.mrf.mxu0
        %v1772 = vadd.f32 0.0, %v1771
        %v1773 = vpop.f32.mrf.mxu0
        %v1774 = vadd.f32 0.0, %v1773
        %1775 = vdwg.mxu0
        %v1810 = vunpack.c.l.b16 %v1467
        %v1811 = vunpack.c.h.b16 %v1467
        %v1812 = vunpack.c.l.b16 %v1468
        %v1813 = vunpack.c.h.b16 %v1468
        %v1814 = vunpack.c.l.b16 %v1469
        %v1815 = vunpack.c.h.b16 %v1469
        %v1816 = vunpack.c.l.b16 %v1470
        %v1817 = vunpack.c.h.b16 %v1470
        %v1818 = vunpack.c.l.b16 %v1471
        %v1819 = vunpack.c.h.b16 %v1471
        %v1820 = vunpack.c.l.b16 %v1472
        %v1821 = vunpack.c.h.b16 %v1472
        %v1822 = vunpack.c.l.b16 %v1473
        %v1823 = vunpack.c.h.b16 %v1473
        %v1824 = vunpack.c.l.b16 %v1474
        %v1825 = vunpack.c.h.b16 %v1474
        %v1826 = vunpack.c.l.b16 %v1475
        %v1827 = vunpack.c.h.b16 %v1475
        %v1828 = vunpack.c.l.b16 %v1476
        %v1829 = vunpack.c.h.b16 %v1476
        %v1830 = vunpack.c.l.b16 %v1477
        %v1831 = vunpack.c.h.b16 %v1477
        %v1832 = vunpack.c.l.b16 %v1478
        %v1833 = vunpack.c.h.b16 %v1478
        %v1834 = vunpack.c.l.b16 %v1479
        %v1835 = vunpack.c.h.b16 %v1479
        %v1836 = vunpack.c.l.b16 %v1480
        %v1837 = vunpack.c.h.b16 %v1480
        %v1838 = vunpack.c.l.b16 %v1481
        %v1839 = vunpack.c.h.b16 %v1481
        %v1840 = vunpack.c.l.b16 %v1482
        %v1841 = vunpack.c.h.b16 %v1482
        %v1842 = vunpack.c.l.b16 %v1483
        %v1843 = vunpack.c.h.b16 %v1483
        %v1844 = vunpack.c.l.b16 %v1484
        %v1845 = vunpack.c.h.b16 %v1484
        %v1846 = vunpack.c.l.b16 %v1485
        %v1847 = vunpack.c.h.b16 %v1485
        %v1848 = vunpack.c.l.b16 %v1486
        %v1849 = vunpack.c.h.b16 %v1486
        %v1850 = vunpack.c.l.b16 %v1487
        %v1851 = vunpack.c.h.b16 %v1487
        %v1852 = vunpack.c.l.b16 %v1488
        %v1853 = vunpack.c.h.b16 %v1488
        %v1854 = vunpack.c.l.b16 %v1489
        %v1855 = vunpack.c.h.b16 %v1489
        %v1856 = vunpack.c.l.b16 %v1490
        %v1857 = vunpack.c.h.b16 %v1490
        %v1858 = vunpack.c.l.b16 %v1491
        %v1859 = vunpack.c.h.b16 %v1491
        %v1860 = vunpack.c.l.b16 %v1492
        %v1861 = vunpack.c.h.b16 %v1492
        %v1862 = vunpack.c.l.b16 %v1493
        %v1863 = vunpack.c.h.b16 %v1493
        %v1864 = vunpack.c.l.b16 %v1494
        %v1865 = vunpack.c.h.b16 %v1494
        %v1866 = vunpack.c.l.b16 %v1495
        %v1867 = vunpack.c.h.b16 %v1495
        %v1868 = vunpack.c.l.b16 %v1496
        %v1869 = vunpack.c.h.b16 %v1496
        %v1870 = vunpack.c.l.b16 %v1497
        %v1871 = vunpack.c.h.b16 %v1497
        %v1872 = vunpack.c.l.b16 %v1498
        %v1873 = vunpack.c.h.b16 %v1498
        %v1874 = vpack.c.b16 %v1812, %v1810
        %v1875 = vpack.c.b16 %v1813, %v1811
        %v1876 = vpack.c.b16 %v1816, %v1814
        %v1877 = vpack.c.b16 %v1817, %v1815
        %v1878 = vpack.c.b16 %v1820, %v1818
        %v1879 = vpack.c.b16 %v1821, %v1819
        %v1880 = vpack.c.b16 %v1824, %v1822
        %v1881 = vpack.c.b16 %v1825, %v1823
        %v1882 = vpack.c.b16 %v1828, %v1826
        %v1883 = vpack.c.b16 %v1829, %v1827
        %v1884 = vpack.c.b16 %v1832, %v1830
        %v1885 = vpack.c.b16 %v1833, %v1831
        %v1886 = vpack.c.b16 %v1836, %v1834
        %v1887 = vpack.c.b16 %v1837, %v1835
        %v1888 = vpack.c.b16 %v1840, %v1838
        %v1889 = vpack.c.b16 %v1841, %v1839
        %v1890 = vpack.c.b16 %v1844, %v1842
        %v1891 = vpack.c.b16 %v1845, %v1843
        %v1892 = vpack.c.b16 %v1848, %v1846
        %v1893 = vpack.c.b16 %v1849, %v1847
        %v1894 = vpack.c.b16 %v1852, %v1850
        %v1895 = vpack.c.b16 %v1853, %v1851
        %v1896 = vpack.c.b16 %v1856, %v1854
        %v1897 = vpack.c.b16 %v1857, %v1855
        %v1898 = vpack.c.b16 %v1860, %v1858
        %v1899 = vpack.c.b16 %v1861, %v1859
        %v1900 = vpack.c.b16 %v1864, %v1862
        %v1901 = vpack.c.b16 %v1865, %v1863
        %v1902 = vpack.c.b16 %v1868, %v1866
        %v1903 = vpack.c.b16 %v1869, %v1867
        %v1904 = vpack.c.b16 %v1872, %v1870
        %v1905 = vpack.c.b16 %v1873, %v1871
        %1938 = vmatprep.subr.bf16.mxu0 %v1889
        %1939 = vmatpush1.bf16.msra.mxu0 %v1888
        %1940 = vmatprep.subr.bf16.mxu0 %v1887
        %1941 = vmatpush1.bf16.msra.mxu0 %v1886
        %1942 = vmatprep.subr.bf16.mxu0 %v1885
        %1943 = vmatpush1.bf16.msra.mxu0 %v1884
        %1944 = vmatprep.subr.bf16.mxu0 %v1883
        %1945 = vmatpush1.bf16.msra.mxu0 %v1882
        %1946 = vmatprep.subr.bf16.mxu0 %v1881
        %1947 = vmatpush1.bf16.msra.mxu0 %v1880
        %1948 = vmatprep.subr.bf16.mxu0 %v1879
        %1949 = vmatpush1.bf16.msra.mxu0 %v1878
        %1950 = vmatprep.subr.bf16.mxu0 %v1877
        %1951 = vmatpush1.bf16.msra.mxu0 %v1876
        %1952 = vmatprep.subr.bf16.mxu0 %v1875
        %1953 = vmatpush1.bf16.msra.mxu0 %v1874
        %1954 = vmatprep.subr.bf16.mxu0 %v1905
        %1955 = vmatpush2.bf16.msra.mxu0 %v1904
        %1956 = vmatprep.subr.bf16.mxu0 %v1903
        %1957 = vmatpush2.bf16.msra.mxu0 %v1902
        %1958 = vmatprep.subr.bf16.mxu0 %v1901
        %1959 = vmatpush2.bf16.msra.mxu0 %v1900
        %1960 = vmatprep.subr.bf16.mxu0 %v1899
        %1961 = vmatpush2.bf16.msra.mxu0 %v1898
        %1962 = vmatprep.subr.bf16.mxu0 %v1897
        %1963 = vmatpush2.bf16.msra.mxu0 %v1896
        %1964 = vmatprep.subr.bf16.mxu0 %v1895
        %1965 = vmatpush2.bf16.msra.mxu0 %v1894
        %1966 = vmatprep.subr.bf16.mxu0 %v1893
        %1967 = vmatpush2.bf16.msra.mxu0 %v1892
        %1968 = vmatprep.subr.bf16.mxu0 %v1891
        %1969 = vmatpush2.bf16.msra.mxu0 %v1890
        %1970 = vmatprep.mubr.bf16.mxu0 %v1543
        %1971 = vmatmul.mubr.bf16.gmra.mxu0 %v1542
        %v1972 = vpop.f32.mrf.mxu0
        %v1973 = vadd.f32 %v1768, %v1972
        %v1974 = vpop.f32.mrf.mxu0
        %v1975 = vadd.f32 %v1770, %v1974
        %v1976 = vpop.f32.mrf.mxu0
        %v1977 = vadd.f32 %v1772, %v1976
        %v1978 = vpop.f32.mrf.mxu0
        %v1979 = vadd.f32 %v1774, %v1978
        %1980 = vdwg.mxu0
        %v1981 = vld [vmem:[#allocation3] sm:$0xee]
        %s1982 = scalar_lea.vmem [#allocation18], 512
        %v1983 = vld [vmem:[%s1982] sm:$0xff]
        %v1984 = vld [vmem:[%s1982 + $0x8] sm:$0xff]
        %v1985 = vld [vmem:[%s1982 + $0x10] sm:$0xff]
        %v1986 = vld [vmem:[%s1982 + $0x18] sm:$0xff]
        %v1987 = vld [vmem:[%s1982 + $0x20] sm:$0xff]
        %v1988 = vld [vmem:[%s1982 + $0x28] sm:$0xff]
        %v1989 = vld [vmem:[%s1982 + $0x30] sm:$0xff]
        %v1990 = vld [vmem:[%s1982 + $0x38] sm:$0xff]
        %v1991 = vld [vmem:[%s1982 + $0x40] sm:$0xff]
        %v1992 = vld [vmem:[%s1982 + $0x48] sm:$0xff]
        %v1993 = vld [vmem:[%s1982 + $0x50] sm:$0xff]
        %v1994 = vld [vmem:[%s1982 + $0x58] sm:$0xff]
        %v1995 = vld [vmem:[%s1982 + $0x60] sm:$0xff]
        %v1996 = vld [vmem:[%s1982 + $0x68] sm:$0xff]
        %v1997 = vld [vmem:[%s1982 + $0x70] sm:$0xff]
        %v1998 = vld [vmem:[%s1982 + $0x78] sm:$0xff]
        %v1999 = vld [vmem:[%s1982 + $0x80] sm:$0xff]
        %v2000 = vld [vmem:[%s1982 + $0x88] sm:$0xff]
        %v2001 = vld [vmem:[%s1982 + $0x90] sm:$0xff]
        %v2002 = vld [vmem:[%s1982 + $0x98] sm:$0xff]
        %v2003 = vld [vmem:[%s1982 + $0xa0] sm:$0xff]
        %v2004 = vld [vmem:[%s1982 + $0xa8] sm:$0xff]
        %v2005 = vld [vmem:[%s1982 + $0xb0] sm:$0xff]
        %v2006 = vld [vmem:[%s1982 + $0xb8] sm:$0xff]
        %v2007 = vld [vmem:[%s1982 + $0xc0] sm:$0xff]
        %v2008 = vld [vmem:[%s1982 + $0xc8] sm:$0xff]
        %v2009 = vld [vmem:[%s1982 + $0xd0] sm:$0xff]
        %v2010 = vld [vmem:[%s1982 + $0xd8] sm:$0xff]
        %v2011 = vld [vmem:[%s1982 + $0xe0] sm:$0xff]
        %v2012 = vld [vmem:[%s1982 + $0xe8] sm:$0xff]
        %v2013 = vld [vmem:[%s1982 + $0xf0] sm:$0xff]
        %v2014 = vld [vmem:[%s1982 + $0xf8] sm:$0xff]
        %v2016 = vunpack.c.l.b16 %v1981
        %v2017 = vunpack.c.h.b16 %v1981
        %v2018 = vpack.c.b16 %v1538, %v2016
        %v2019 = vpack.c.b16 %v1539, %v2017
        %vm2020 = vcmask 1046528
        %v2021 = vrot.slane %v2018, 1
        %v2022 = vrot.slane %v1544, 1
        %v2023 = vsel %vm2020, %v2021, %v2022
        %v2024 = vrot.slane %v2019, 1
        %v2025 = vrot.slane %v1545, 1
        %v2026 = vsel %vm2020, %v2024, %v2025
        %v2061 = vunpack.c.l.b16 %v1983
        %v2062 = vunpack.c.h.b16 %v1983
        %v2063 = vunpack.c.l.b16 %v1984
        %v2064 = vunpack.c.h.b16 %v1984
        %v2065 = vunpack.c.l.b16 %v1985
        %v2066 = vunpack.c.h.b16 %v1985
        %v2067 = vunpack.c.l.b16 %v1986
        %v2068 = vunpack.c.h.b16 %v1986
        %v2069 = vunpack.c.l.b16 %v1987
        %v2070 = vunpack.c.h.b16 %v1987
        %v2071 = vunpack.c.l.b16 %v1988
        %v2072 = vunpack.c.h.b16 %v1988
        %v2073 = vunpack.c.l.b16 %v1989
        %v2074 = vunpack.c.h.b16 %v1989
        %v2075 = vunpack.c.l.b16 %v1990
        %v2076 = vunpack.c.h.b16 %v1990
        %v2077 = vunpack.c.l.b16 %v1991
        %v2078 = vunpack.c.h.b16 %v1991
        %v2079 = vunpack.c.l.b16 %v1992
        %v2080 = vunpack.c.h.b16 %v1992
        %v2081 = vunpack.c.l.b16 %v1993
        %v2082 = vunpack.c.h.b16 %v1993
        %v2083 = vunpack.c.l.b16 %v1994
        %v2084 = vunpack.c.h.b16 %v1994
        %v2085 = vunpack.c.l.b16 %v1995
        %v2086 = vunpack.c.h.b16 %v1995
        %v2087 = vunpack.c.l.b16 %v1996
        %v2088 = vunpack.c.h.b16 %v1996
        %v2089 = vunpack.c.l.b16 %v1997
        %v2090 = vunpack.c.h.b16 %v1997
        %v2091 = vunpack.c.l.b16 %v1998
        %v2092 = vunpack.c.h.b16 %v1998
        %v2093 = vunpack.c.l.b16 %v1999
        %v2094 = vunpack.c.h.b16 %v1999
        %v2095 = vunpack.c.l.b16 %v2000
        %v2096 = vunpack.c.h.b16 %v2000
        %v2097 = vunpack.c.l.b16 %v2001
        %v2098 = vunpack.c.h.b16 %v2001
        %v2099 = vunpack.c.l.b16 %v2002
        %v2100 = vunpack.c.h.b16 %v2002
        %v2101 = vunpack.c.l.b16 %v2003
        %v2102 = vunpack.c.h.b16 %v2003
        %v2103 = vunpack.c.l.b16 %v2004
        %v2104 = vunpack.c.h.b16 %v2004
        %v2105 = vunpack.c.l.b16 %v2005
        %v2106 = vunpack.c.h.b16 %v2005
        %v2107 = vunpack.c.l.b16 %v2006
        %v2108 = vunpack.c.h.b16 %v2006
        %v2109 = vunpack.c.l.b16 %v2007
        %v2110 = vunpack.c.h.b16 %v2007
        %v2111 = vunpack.c.l.b16 %v2008
        %v2112 = vunpack.c.h.b16 %v2008
        %v2113 = vunpack.c.l.b16 %v2009
        %v2114 = vunpack.c.h.b16 %v2009
        %v2115 = vunpack.c.l.b16 %v2010
        %v2116 = vunpack.c.h.b16 %v2010
        %v2117 = vunpack.c.l.b16 %v2011
        %v2118 = vunpack.c.h.b16 %v2011
        %v2119 = vunpack.c.l.b16 %v2012
        %v2120 = vunpack.c.h.b16 %v2012
        %v2121 = vunpack.c.l.b16 %v2013
        %v2122 = vunpack.c.h.b16 %v2013
        %v2123 = vunpack.c.l.b16 %v2014
        %v2124 = vunpack.c.h.b16 %v2014
        %v2125 = vpack.c.b16 %v2063, %v2061
        %v2126 = vpack.c.b16 %v2064, %v2062
        %v2127 = vpack.c.b16 %v2067, %v2065
        %v2128 = vpack.c.b16 %v2068, %v2066
        %v2129 = vpack.c.b16 %v2071, %v2069
        %v2130 = vpack.c.b16 %v2072, %v2070
        %v2131 = vpack.c.b16 %v2075, %v2073
        %v2132 = vpack.c.b16 %v2076, %v2074
        %v2133 = vpack.c.b16 %v2079, %v2077
        %v2134 = vpack.c.b16 %v2080, %v2078
        %v2135 = vpack.c.b16 %v2083, %v2081
        %v2136 = vpack.c.b16 %v2084, %v2082
        %v2137 = vpack.c.b16 %v2087, %v2085
        %v2138 = vpack.c.b16 %v2088, %v2086
        %v2139 = vpack.c.b16 %v2091, %v2089
        %v2140 = vpack.c.b16 %v2092, %v2090
        %v2141 = vpack.c.b16 %v2095, %v2093
        %v2142 = vpack.c.b16 %v2096, %v2094
        %v2143 = vpack.c.b16 %v2099, %v2097
        %v2144 = vpack.c.b16 %v2100, %v2098
        %v2145 = vpack.c.b16 %v2103, %v2101
        %v2146 = vpack.c.b16 %v2104, %v2102
        %v2147 = vpack.c.b16 %v2107, %v2105
        %v2148 = vpack.c.b16 %v2108, %v2106
        %v2149 = vpack.c.b16 %v2111, %v2109
        %v2150 = vpack.c.b16 %v2112, %v2110
        %v2151 = vpack.c.b16 %v2115, %v2113
        %v2152 = vpack.c.b16 %v2116, %v2114
        %v2153 = vpack.c.b16 %v2119, %v2117
        %v2154 = vpack.c.b16 %v2120, %v2118
        %v2155 = vpack.c.b16 %v2123, %v2121
        %v2156 = vpack.c.b16 %v2124, %v2122
        %2189 = vmatprep.subr.bf16.mxu0 %v2140
        %2190 = vmatpush1.bf16.msra.mxu0 %v2139
        %2191 = vmatprep.subr.bf16.mxu0 %v2138
        %2192 = vmatpush1.bf16.msra.mxu0 %v2137
        %2193 = vmatprep.subr.bf16.mxu0 %v2136
        %2194 = vmatpush1.bf16.msra.mxu0 %v2135
        %2195 = vmatprep.subr.bf16.mxu0 %v2134
        %2196 = vmatpush1.bf16.msra.mxu0 %v2133
        %2197 = vmatprep.subr.bf16.mxu0 %v2132
        %2198 = vmatpush1.bf16.msra.mxu0 %v2131
        %2199 = vmatprep.subr.bf16.mxu0 %v2130
        %2200 = vmatpush1.bf16.msra.mxu0 %v2129
        %2201 = vmatprep.subr.bf16.mxu0 %v2128
        %2202 = vmatpush1.bf16.msra.mxu0 %v2127
        %2203 = vmatprep.subr.bf16.mxu0 %v2126
        %2204 = vmatpush1.bf16.msra.mxu0 %v2125
        %2205 = vmatprep.subr.bf16.mxu0 %v2156
        %2206 = vmatpush2.bf16.msra.mxu0 %v2155
        %2207 = vmatprep.subr.bf16.mxu0 %v2154
        %2208 = vmatpush2.bf16.msra.mxu0 %v2153
        %2209 = vmatprep.subr.bf16.mxu0 %v2152
        %2210 = vmatpush2.bf16.msra.mxu0 %v2151
        %2211 = vmatprep.subr.bf16.mxu0 %v2150
        %2212 = vmatpush2.bf16.msra.mxu0 %v2149
        %2213 = vmatprep.subr.bf16.mxu0 %v2148
        %2214 = vmatpush2.bf16.msra.mxu0 %v2147
        %2215 = vmatprep.subr.bf16.mxu0 %v2146
        %2216 = vmatpush2.bf16.msra.mxu0 %v2145
        %2217 = vmatprep.subr.bf16.mxu0 %v2144
        %2218 = vmatpush2.bf16.msra.mxu0 %v2143
        %2219 = vmatprep.subr.bf16.mxu0 %v2142
        %2220 = vmatpush2.bf16.msra.mxu0 %v2141
        %2221 = vmatprep.mubr.bf16.mxu0 %v2026
        %2222 = vmatmul.mubr.bf16.gmra.mxu0 %v2023
        %v2223 = vpop.f32.mrf.mxu0
        %v2224 = vadd.f32 0.0, %v2223
        %v2225 = vpop.f32.mrf.mxu0
        %v2226 = vadd.f32 0.0, %v2225
        %v2227 = vpop.f32.mrf.mxu0
        %v2228 = vadd.f32 0.0, %v2227
        %v2229 = vpop.f32.mrf.mxu0
        %v2230 = vadd.f32 0.0, %v2229
        %2231 = vdwg.mxu0
        %v2232 = vadd.f32 %v1973, %v2224
        %v2233 = vadd.f32 %v1975, %v2226
        %v2234 = vadd.f32 %v1977, %v2228
        %v2235 = vadd.f32 %v1979, %v2230
        %v2236 = vld [vmem:[#allocation20] sm:$0x3]
        %v2238 = vlaneseq
        %v2239 = vshrl.u32 %v2238, 7
        %v2240 = vsub.s32 0, %v2239
        %v2241 = vrot.slane %v2236, %v2240
        %v2242 = vlaneseq
        %v2243 = vshrl.u32 %v2242, 7
        %v2244 = vsub.s32 1, %v2243
        %v2245 = vrot.slane %v2236, %v2244
        %v2248 = vmul.f32 %v2232, %v2241
        %v2249 = vmul.f32 %v2233, %v2245
        %v2250 = vmul.f32 %v2234, %v2241
        %v2251 = vmul.f32 %v2235, %v2245
        %v2252 = vld [vmem:[#allocation21] sm:$0x3]
        %v2254 = vlaneseq
        %v2255 = vshrl.u32 %v2254, 7
        %v2256 = vsub.s32 0, %v2255
        %v2257 = vrot.slane %v2252, %v2256
        %v2258 = vlaneseq
        %v2259 = vshrl.u32 %v2258, 7
        %v2260 = vsub.s32 1, %v2259
        %v2261 = vrot.slane %v2252, %v2260
        %v2264 = vadd.f32 %v2248, %v2257
        %v2265 = vadd.f32 %v2249, %v2261
        %v2266 = vadd.f32 %v2250, %v2257
        %v2267 = vadd.f32 %v2251, %v2261
        %v2268 = vmax.f32 %v2264, 0.0
        %v2269 = vmax.f32 %v2265, 0.0
        %v2270 = vmax.f32 %v2266, 0.0
        %v2271 = vmax.f32 %v2267, 0.0
        %v2272 = vld [vmem:[%s803] sm:$0xff]
        %v2273 = vld [vmem:[%s803 + $0x8] sm:$0xff]
        %v2274 = vld [vmem:[%s803 + $0x10] sm:$0xff]
        %v2275 = vld [vmem:[%s803 + $0x18] sm:$0xff]
        %s2276 = scalar_lea.vmem %s803, 32 [#allocation11]
        %v2277 = vld [vmem:[%s2276] sm:$0xff]
        %v2278 = vld [vmem:[%s2276 + $0x8] sm:$0xff]
        %v2279 = vld [vmem:[%s2276 + $0x10] sm:$0xff]
        %v2280 = vld [vmem:[%s2276 + $0x18] sm:$0xff]
        %v2281 = vmax.bf16 %v2272, %v2277
        %v2282 = vmax.bf16 %v2273, %v2278
        %v2283 = vmax.bf16 %v2274, %v2279
        %v2284 = vmax.bf16 %v2275, %v2280
        %s2285 = scalar_lea.vmem %s803, 64 [#allocation11]
        %v2286 = vld [vmem:[%s2285] sm:$0xff]
        %v2287 = vld [vmem:[%s2285 + $0x8] sm:$0xff]
        %v2288 = vld [vmem:[%s2285 + $0x10] sm:$0xff]
        %v2289 = vld [vmem:[%s2285 + $0x18] sm:$0xff]
        %s2290 = scalar_lea.vmem %s803, 96 [#allocation11]
        %v2291 = vld [vmem:[%s2290] sm:$0xff]
        %v2292 = vld [vmem:[%s2290 + $0x8] sm:$0xff]
        %v2293 = vld [vmem:[%s2290 + $0x10] sm:$0xff]
        %v2294 = vld [vmem:[%s2290 + $0x18] sm:$0xff]
        %v2295 = vmax.bf16 %v2286, %v2291
        %v2296 = vmax.bf16 %v2287, %v2292
        %v2297 = vmax.bf16 %v2288, %v2293
        %v2298 = vmax.bf16 %v2289, %v2294
        %v2299 = vmax.bf16 %v2281, %v2295
        %v2300 = vmax.bf16 %v2282, %v2296
        %v2301 = vmax.bf16 %v2283, %v2297
        %v2302 = vmax.bf16 %v2284, %v2298
        %v2304 = vshrl.u32 %v2299, 16
        %v2306 = vrot.slane %v2304, 7
        %v2307 = vshll.u32 %v2299, 16
        %v2309 = vor.u32 %v2306, %v2307
        %v2311 = vshrl.u32 %v2300, 16
        %v2313 = vrot.slane %v2311, 7
        %v2314 = vshll.u32 %v2300, 16
        %v2316 = vor.u32 %v2313, %v2314
        %v2317 = vrot.slane %v2306, 4
        %v2319 = vshrl.u32 %v2301, 16
        %v2321 = vrot.slane %v2319, 7
        %v2322 = vshll.u32 %v2301, 16
        %v2324 = vor.u32 %v2321, %v2322
        %v2325 = vsel %vm1432, %v2317, %v2324
        %v2326 = vrot.slane %v2313, 4
        %v2328 = vshrl.u32 %v2302, 16
        %v2330 = vrot.slane %v2328, 7
        %v2331 = vshll.u32 %v2302, 16
        %v2333 = vor.u32 %v2330, %v2331
        %v2334 = vsel %vm1432, %v2326, %v2333
        %v2335 = vrot.slane %v2321, 4
        %v2336 = vrot.slane %v2330, 4
        %v2343 = vld [vmem:[#allocation4] sm:$0xff]
        %v2344 = vsel %vm1457, %v2309, %v2343
        %2345 = vst [vmem:[#allocation4] sm:$0xff] %v2344
        %v2346 = vld [vmem:[#allocation4 + $0x8] sm:$0xff]
        %v2347 = vsel %vm1457, %v2316, %v2346
        %2348 = vst [vmem:[#allocation4 + $0x8] sm:$0xff] %v2347
        %2349 = vst [vmem:[#allocation4 + $0x10] sm:$0xff] %v2325
        %2350 = vst [vmem:[#allocation4 + $0x18] sm:$0xff] %v2334
        %v2351 = vld [vmem:[#allocation4 + $0x20] sm:$0x11]
        %v2352 = vsel %vm951, %v2335, %v2351
        %2353 = vst [vmem:[#allocation4 + $0x20] sm:$0x11] %v2352
        %v2354 = vld [vmem:[#allocation4 + $0x28] sm:$0x11]
        %v2355 = vsel %vm951, %v2336, %v2354
        %2356 = vst [vmem:[#allocation4 + $0x28] sm:$0x11] %v2355
        %v2357 = vld [vmem:[#allocation4] sm:$0xff]
        %v2358 = vld [vmem:[#allocation4 + $0x8] sm:$0xff]
        %v2359 = vld [vmem:[#allocation4 + $0x10] sm:$0xff]
        %v2360 = vld [vmem:[#allocation4 + $0x18] sm:$0xff]
        %v2361 = vld [vmem:[#allocation23] sm:$0xff]
        %v2362 = vld [vmem:[#allocation23 + $0x8] sm:$0xff]
        %v2363 = vld [vmem:[#allocation23 + $0x10] sm:$0xff]
        %v2364 = vld [vmem:[#allocation23 + $0x18] sm:$0xff]
        %v2365 = vld [vmem:[#allocation23 + $0x20] sm:$0xff]
        %v2366 = vld [vmem:[#allocation23 + $0x28] sm:$0xff]
        %v2367 = vld [vmem:[#allocation23 + $0x30] sm:$0xff]
        %v2368 = vld [vmem:[#allocation23 + $0x38] sm:$0xff]
        %v2369 = vld [vmem:[#allocation23 + $0x40] sm:$0xff]
        %v2370 = vld [vmem:[#allocation23 + $0x48] sm:$0xff]
        %v2371 = vld [vmem:[#allocation23 + $0x50] sm:$0xff]
        %v2372 = vld [vmem:[#allocation23 + $0x58] sm:$0xff]
        %v2373 = vld [vmem:[#allocation23 + $0x60] sm:$0xff]
        %v2374 = vld [vmem:[#allocation23 + $0x68] sm:$0xff]
        %v2375 = vld [vmem:[#allocation23 + $0x70] sm:$0xff]
        %v2376 = vld [vmem:[#allocation23 + $0x78] sm:$0xff]
        %v2377 = vld [vmem:[#allocation23 + $0x80] sm:$0xff]
        %v2378 = vld [vmem:[#allocation23 + $0x88] sm:$0xff]
        %v2379 = vld [vmem:[#allocation23 + $0x90] sm:$0xff]
        %v2380 = vld [vmem:[#allocation23 + $0x98] sm:$0xff]
        %v2381 = vld [vmem:[#allocation23 + $0xa0] sm:$0xff]
        %v2382 = vld [vmem:[#allocation23 + $0xa8] sm:$0xff]
        %v2383 = vld [vmem:[#allocation23 + $0xb0] sm:$0xff]
        %v2384 = vld [vmem:[#allocation23 + $0xb8] sm:$0xff]
        %v2385 = vld [vmem:[#allocation23 + $0xc0] sm:$0xff]
        %v2386 = vld [vmem:[#allocation23 + $0xc8] sm:$0xff]
        %v2387 = vld [vmem:[#allocation23 + $0xd0] sm:$0xff]
        %v2388 = vld [vmem:[#allocation23 + $0xd8] sm:$0xff]
        %v2389 = vld [vmem:[#allocation23 + $0xe0] sm:$0xff]
        %v2390 = vld [vmem:[#allocation23 + $0xe8] sm:$0xff]
        %v2391 = vld [vmem:[#allocation23 + $0xf0] sm:$0xff]
        %v2392 = vld [vmem:[#allocation23 + $0xf8] sm:$0xff]
        %v2393 = vld [vmem:[#allocation23 + $0x100] sm:$0xff]
        %v2394 = vld [vmem:[#allocation23 + $0x108] sm:$0xff]
        %v2395 = vld [vmem:[#allocation23 + $0x110] sm:$0xff]
        %v2396 = vld [vmem:[#allocation23 + $0x118] sm:$0xff]
        %v2397 = vld [vmem:[#allocation23 + $0x120] sm:$0xff]
        %v2398 = vld [vmem:[#allocation23 + $0x128] sm:$0xff]
        %v2399 = vld [vmem:[#allocation23 + $0x130] sm:$0xff]
        %v2400 = vld [vmem:[#allocation23 + $0x138] sm:$0xff]
        %v2401 = vld [vmem:[#allocation23 + $0x140] sm:$0xff]
        %v2402 = vld [vmem:[#allocation23 + $0x148] sm:$0xff]
        %v2403 = vld [vmem:[#allocation23 + $0x150] sm:$0xff]
        %v2404 = vld [vmem:[#allocation23 + $0x158] sm:$0xff]
        %v2405 = vld [vmem:[#allocation23 + $0x160] sm:$0xff]
        %v2406 = vld [vmem:[#allocation23 + $0x168] sm:$0xff]
        %v2407 = vld [vmem:[#allocation23 + $0x170] sm:$0xff]
        %v2408 = vld [vmem:[#allocation23 + $0x178] sm:$0xff]
        %v2409 = vld [vmem:[#allocation23 + $0x180] sm:$0xff]
        %v2410 = vld [vmem:[#allocation23 + $0x188] sm:$0xff]
        %v2411 = vld [vmem:[#allocation23 + $0x190] sm:$0xff]
        %v2412 = vld [vmem:[#allocation23 + $0x198] sm:$0xff]
        %v2413 = vld [vmem:[#allocation23 + $0x1a0] sm:$0xff]
        %v2414 = vld [vmem:[#allocation23 + $0x1a8] sm:$0xff]
        %v2415 = vld [vmem:[#allocation23 + $0x1b0] sm:$0xff]
        %v2416 = vld [vmem:[#allocation23 + $0x1b8] sm:$0xff]
        %v2417 = vld [vmem:[#allocation23 + $0x1c0] sm:$0xff]
        %v2418 = vld [vmem:[#allocation23 + $0x1c8] sm:$0xff]
        %v2419 = vld [vmem:[#allocation23 + $0x1d0] sm:$0xff]
        %v2420 = vld [vmem:[#allocation23 + $0x1d8] sm:$0xff]
        %v2421 = vld [vmem:[#allocation23 + $0x1e0] sm:$0xff]
        %v2422 = vld [vmem:[#allocation23 + $0x1e8] sm:$0xff]
        %v2423 = vld [vmem:[#allocation23 + $0x1f0] sm:$0xff]
        %v2424 = vld [vmem:[#allocation23 + $0x1f8] sm:$0xff]
        %v2425 = vld [vmem:[#allocation4 + $0x20] sm:$0x11]
        %v2426 = vld [vmem:[#allocation4 + $0x28] sm:$0x11]
        %s2427 = scalar_lea.vmem [#allocation23], 512
        %v2428 = vld [vmem:[%s2427] sm:$0xff]
        %v2429 = vld [vmem:[%s2427 + $0x8] sm:$0xff]
        %v2430 = vld [vmem:[%s2427 + $0x10] sm:$0xff]
        %v2431 = vld [vmem:[%s2427 + $0x18] sm:$0xff]
        %v2432 = vld [vmem:[%s2427 + $0x20] sm:$0xff]
        %v2433 = vld [vmem:[%s2427 + $0x28] sm:$0xff]
        %v2434 = vld [vmem:[%s2427 + $0x30] sm:$0xff]
        %v2435 = vld [vmem:[%s2427 + $0x38] sm:$0xff]
        %v2436 = vld [vmem:[%s2427 + $0x40] sm:$0xff]
        %v2437 = vld [vmem:[%s2427 + $0x48] sm:$0xff]
        %v2438 = vld [vmem:[%s2427 + $0x50] sm:$0xff]
        %v2439 = vld [vmem:[%s2427 + $0x58] sm:$0xff]
        %v2440 = vld [vmem:[%s2427 + $0x60] sm:$0xff]
        %v2441 = vld [vmem:[%s2427 + $0x68] sm:$0xff]
        %v2442 = vld [vmem:[%s2427 + $0x70] sm:$0xff]
        %v2443 = vld [vmem:[%s2427 + $0x78] sm:$0xff]
        %v2444 = vld [vmem:[%s2427 + $0x80] sm:$0xff]
        %v2445 = vld [vmem:[%s2427 + $0x88] sm:$0xff]
        %v2446 = vld [vmem:[%s2427 + $0x90] sm:$0xff]
        %v2447 = vld [vmem:[%s2427 + $0x98] sm:$0xff]
        %v2448 = vld [vmem:[%s2427 + $0xa0] sm:$0xff]
        %v2449 = vld [vmem:[%s2427 + $0xa8] sm:$0xff]
        %v2450 = vld [vmem:[%s2427 + $0xb0] sm:$0xff]
        %v2451 = vld [vmem:[%s2427 + $0xb8] sm:$0xff]
        %v2452 = vld [vmem:[%s2427 + $0xc0] sm:$0xff]
        %v2453 = vld [vmem:[%s2427 + $0xc8] sm:$0xff]
        %v2454 = vld [vmem:[%s2427 + $0xd0] sm:$0xff]
        %v2455 = vld [vmem:[%s2427 + $0xd8] sm:$0xff]
        %v2456 = vld [vmem:[%s2427 + $0xe0] sm:$0xff]
        %v2457 = vld [vmem:[%s2427 + $0xe8] sm:$0xff]
        %v2458 = vld [vmem:[%s2427 + $0xf0] sm:$0xff]
        %v2459 = vld [vmem:[%s2427 + $0xf8] sm:$0xff]
        %v2460 = vld [vmem:[%s2427 + $0x100] sm:$0xff]
        %v2461 = vld [vmem:[%s2427 + $0x108] sm:$0xff]
        %v2462 = vld [vmem:[%s2427 + $0x110] sm:$0xff]
        %v2463 = vld [vmem:[%s2427 + $0x118] sm:$0xff]
        %v2464 = vld [vmem:[%s2427 + $0x120] sm:$0xff]
        %v2465 = vld [vmem:[%s2427 + $0x128] sm:$0xff]
        %v2466 = vld [vmem:[%s2427 + $0x130] sm:$0xff]
        %v2467 = vld [vmem:[%s2427 + $0x138] sm:$0xff]
        %v2468 = vld [vmem:[%s2427 + $0x140] sm:$0xff]
        %v2469 = vld [vmem:[%s2427 + $0x148] sm:$0xff]
        %v2470 = vld [vmem:[%s2427 + $0x150] sm:$0xff]
        %v2471 = vld [vmem:[%s2427 + $0x158] sm:$0xff]
        %v2472 = vld [vmem:[%s2427 + $0x160] sm:$0xff]
        %v2473 = vld [vmem:[%s2427 + $0x168] sm:$0xff]
        %v2474 = vld [vmem:[%s2427 + $0x170] sm:$0xff]
        %v2475 = vld [vmem:[%s2427 + $0x178] sm:$0xff]
        %v2476 = vld [vmem:[%s2427 + $0x180] sm:$0xff]
        %v2477 = vld [vmem:[%s2427 + $0x188] sm:$0xff]
        %v2478 = vld [vmem:[%s2427 + $0x190] sm:$0xff]
        %v2479 = vld [vmem:[%s2427 + $0x198] sm:$0xff]
        %v2480 = vld [vmem:[%s2427 + $0x1a0] sm:$0xff]
        %v2481 = vld [vmem:[%s2427 + $0x1a8] sm:$0xff]
        %v2482 = vld [vmem:[%s2427 + $0x1b0] sm:$0xff]
        %v2483 = vld [vmem:[%s2427 + $0x1b8] sm:$0xff]
        %v2484 = vld [vmem:[%s2427 + $0x1c0] sm:$0xff]
        %v2485 = vld [vmem:[%s2427 + $0x1c8] sm:$0xff]
        %v2486 = vld [vmem:[%s2427 + $0x1d0] sm:$0xff]
        %v2487 = vld [vmem:[%s2427 + $0x1d8] sm:$0xff]
        %v2488 = vld [vmem:[%s2427 + $0x1e0] sm:$0xff]
        %v2489 = vld [vmem:[%s2427 + $0x1e8] sm:$0xff]
        %v2490 = vld [vmem:[%s2427 + $0x1f0] sm:$0xff]
        %v2491 = vld [vmem:[%s2427 + $0x1f8] sm:$0xff]
        %v2498 = vunpack.c.l.b16 %v2357
        %v2499 = vunpack.c.h.b16 %v2357
        %v2500 = vunpack.c.l.b16 %v2358
        %v2501 = vunpack.c.h.b16 %v2358
        %v2502 = vunpack.c.l.b16 %v2359
        %v2503 = vunpack.c.h.b16 %v2359
        %v2504 = vunpack.c.l.b16 %v2360
        %v2505 = vunpack.c.h.b16 %v2360
        %v2506 = vunpack.c.l.b16 %v2425
        %v2507 = vunpack.c.h.b16 %v2425
        %v2508 = vunpack.c.l.b16 %v2426
        %v2509 = vunpack.c.h.b16 %v2426
        %v2510 = vpack.c.b16 %v2502, %v2498
        %v2511 = vpack.c.b16 %v2503, %v2499
        %v2512 = vpack.c.b16 %v2504, %v2500
        %v2513 = vpack.c.b16 %v2505, %v2501
        %v2514 = vpack.c.b16 %v2506, %v2506
        %v2515 = vpack.c.b16 %v2507, %v2507
        %v2516 = vpack.c.b16 %v2508, %v2508
        %v2517 = vpack.c.b16 %v2509, %v2509
        %v2519 = vshrl.u32 %v2510, 16
        %v2521 = vshll.u32 %v2510, 16
        %v2523 = vrot.slane %v2521, 1
        %v2524 = vor.u32 %v2519, %v2523
        %v2526 = vshll.u32 %v2514, 16
        %v2528 = vrot.slane %v2526, 1
        %v2529 = vsel %vm1546, %v2524, %v2528
        %v2531 = vshrl.u32 %v2511, 16
        %v2533 = vshll.u32 %v2511, 16
        %v2535 = vrot.slane %v2533, 1
        %v2536 = vor.u32 %v2531, %v2535
        %v2538 = vshll.u32 %v2515, 16
        %v2540 = vrot.slane %v2538, 1
        %v2541 = vsel %vm1546, %v2536, %v2540
        %v2543 = vshrl.u32 %v2512, 16
        %v2545 = vshll.u32 %v2512, 16
        %v2547 = vrot.slane %v2545, 1
        %v2548 = vor.u32 %v2543, %v2547
        %v2550 = vshll.u32 %v2516, 16
        %v2552 = vrot.slane %v2550, 1
        %v2553 = vsel %vm1546, %v2548, %v2552
        %v2555 = vshrl.u32 %v2513, 16
        %v2557 = vshll.u32 %v2513, 16
        %v2559 = vrot.slane %v2557, 1
        %v2560 = vor.u32 %v2555, %v2559
        %v2562 = vshll.u32 %v2517, 16
        %v2564 = vrot.slane %v2562, 1
        %v2565 = vsel %vm1546, %v2560, %v2564
        %v2634 = vunpack.c.l.b16 %v2428
        %v2635 = vunpack.c.h.b16 %v2428
        %v2636 = vunpack.c.l.b16 %v2429
        %v2637 = vunpack.c.h.b16 %v2429
        %v2638 = vunpack.c.l.b16 %v2430
        %v2639 = vunpack.c.h.b16 %v2430
        %v2640 = vunpack.c.l.b16 %v2431
        %v2641 = vunpack.c.h.b16 %v2431
        %v2642 = vunpack.c.l.b16 %v2432
        %v2643 = vunpack.c.h.b16 %v2432
        %v2644 = vunpack.c.l.b16 %v2433
        %v2645 = vunpack.c.h.b16 %v2433
        %v2646 = vunpack.c.l.b16 %v2434
        %v2647 = vunpack.c.h.b16 %v2434
        %v2648 = vunpack.c.l.b16 %v2435
        %v2649 = vunpack.c.h.b16 %v2435
        %v2650 = vunpack.c.l.b16 %v2436
        %v2651 = vunpack.c.h.b16 %v2436
        %v2652 = vunpack.c.l.b16 %v2437
        %v2653 = vunpack.c.h.b16 %v2437
        %v2654 = vunpack.c.l.b16 %v2438
        %v2655 = vunpack.c.h.b16 %v2438
        %v2656 = vunpack.c.l.b16 %v2439
        %v2657 = vunpack.c.h.b16 %v2439
        %v2658 = vunpack.c.l.b16 %v2440
        %v2659 = vunpack.c.h.b16 %v2440
        %v2660 = vunpack.c.l.b16 %v2441
        %v2661 = vunpack.c.h.b16 %v2441
        %v2662 = vunpack.c.l.b16 %v2442
        %v2663 = vunpack.c.h.b16 %v2442
        %v2664 = vunpack.c.l.b16 %v2443
        %v2665 = vunpack.c.h.b16 %v2443
        %v2666 = vunpack.c.l.b16 %v2444
        %v2667 = vunpack.c.h.b16 %v2444
        %v2668 = vunpack.c.l.b16 %v2445
        %v2669 = vunpack.c.h.b16 %v2445
        %v2670 = vunpack.c.l.b16 %v2446
        %v2671 = vunpack.c.h.b16 %v2446
        %v2672 = vunpack.c.l.b16 %v2447
        %v2673 = vunpack.c.h.b16 %v2447
        %v2674 = vunpack.c.l.b16 %v2448
        %v2675 = vunpack.c.h.b16 %v2448
        %v2676 = vunpack.c.l.b16 %v2449
        %v2677 = vunpack.c.h.b16 %v2449
        %v2678 = vunpack.c.l.b16 %v2450
        %v2679 = vunpack.c.h.b16 %v2450
        %v2680 = vunpack.c.l.b16 %v2451
        %v2681 = vunpack.c.h.b16 %v2451
        %v2682 = vunpack.c.l.b16 %v2452
        %v2683 = vunpack.c.h.b16 %v2452
        %v2684 = vunpack.c.l.b16 %v2453
        %v2685 = vunpack.c.h.b16 %v2453
        %v2686 = vunpack.c.l.b16 %v2454
        %v2687 = vunpack.c.h.b16 %v2454
        %v2688 = vunpack.c.l.b16 %v2455
        %v2689 = vunpack.c.h.b16 %v2455
        %v2690 = vunpack.c.l.b16 %v2456
        %v2691 = vunpack.c.h.b16 %v2456
        %v2692 = vunpack.c.l.b16 %v2457
        %v2693 = vunpack.c.h.b16 %v2457
        %v2694 = vunpack.c.l.b16 %v2458
        %v2695 = vunpack.c.h.b16 %v2458
        %v2696 = vunpack.c.l.b16 %v2459
        %v2697 = vunpack.c.h.b16 %v2459
        %v2698 = vunpack.c.l.b16 %v2460
        %v2699 = vunpack.c.h.b16 %v2460
        %v2700 = vunpack.c.l.b16 %v2461
        %v2701 = vunpack.c.h.b16 %v2461
        %v2702 = vunpack.c.l.b16 %v2462
        %v2703 = vunpack.c.h.b16 %v2462
        %v2704 = vunpack.c.l.b16 %v2463
        %v2705 = vunpack.c.h.b16 %v2463
        %v2706 = vunpack.c.l.b16 %v2464
        %v2707 = vunpack.c.h.b16 %v2464
        %v2708 = vunpack.c.l.b16 %v2465
        %v2709 = vunpack.c.h.b16 %v2465
        %v2710 = vunpack.c.l.b16 %v2466
        %v2711 = vunpack.c.h.b16 %v2466
        %v2712 = vunpack.c.l.b16 %v2467
        %v2713 = vunpack.c.h.b16 %v2467
        %v2714 = vunpack.c.l.b16 %v2468
        %v2715 = vunpack.c.h.b16 %v2468
        %v2716 = vunpack.c.l.b16 %v2469
        %v2717 = vunpack.c.h.b16 %v2469
        %v2718 = vunpack.c.l.b16 %v2470
        %v2719 = vunpack.c.h.b16 %v2470
        %v2720 = vunpack.c.l.b16 %v2471
        %v2721 = vunpack.c.h.b16 %v2471
        %v2722 = vunpack.c.l.b16 %v2472
        %v2723 = vunpack.c.h.b16 %v2472
        %v2724 = vunpack.c.l.b16 %v2473
        %v2725 = vunpack.c.h.b16 %v2473
        %v2726 = vunpack.c.l.b16 %v2474
        %v2727 = vunpack.c.h.b16 %v2474
        %v2728 = vunpack.c.l.b16 %v2475
        %v2729 = vunpack.c.h.b16 %v2475
        %v2730 = vunpack.c.l.b16 %v2476
        %v2731 = vunpack.c.h.b16 %v2476
        %v2732 = vunpack.c.l.b16 %v2477
        %v2733 = vunpack.c.h.b16 %v2477
        %v2734 = vunpack.c.l.b16 %v2478
        %v2735 = vunpack.c.h.b16 %v2478
        %v2736 = vunpack.c.l.b16 %v2479
        %v2737 = vunpack.c.h.b16 %v2479
        %v2738 = vunpack.c.l.b16 %v2480
        %v2739 = vunpack.c.h.b16 %v2480
        %v2740 = vunpack.c.l.b16 %v2481
        %v2741 = vunpack.c.h.b16 %v2481
        %v2742 = vunpack.c.l.b16 %v2482
        %v2743 = vunpack.c.h.b16 %v2482
        %v2744 = vunpack.c.l.b16 %v2483
        %v2745 = vunpack.c.h.b16 %v2483
        %v2746 = vunpack.c.l.b16 %v2484
        %v2747 = vunpack.c.h.b16 %v2484
        %v2748 = vunpack.c.l.b16 %v2485
        %v2749 = vunpack.c.h.b16 %v2485
        %v2750 = vunpack.c.l.b16 %v2486
        %v2751 = vunpack.c.h.b16 %v2486
        %v2752 = vunpack.c.l.b16 %v2487
        %v2753 = vunpack.c.h.b16 %v2487
        %v2754 = vunpack.c.l.b16 %v2488
        %v2755 = vunpack.c.h.b16 %v2488
        %v2756 = vunpack.c.l.b16 %v2489
        %v2757 = vunpack.c.h.b16 %v2489
        %v2758 = vunpack.c.l.b16 %v2490
        %v2759 = vunpack.c.h.b16 %v2490
        %v2760 = vunpack.c.l.b16 %v2491
        %v2761 = vunpack.c.h.b16 %v2491
        %v2762 = vpack.c.b16 %v2636, %v2634
        %v2763 = vpack.c.b16 %v2637, %v2635
        %v2764 = vpack.c.b16 %v2640, %v2638
        %v2765 = vpack.c.b16 %v2641, %v2639
        %v2766 = vpack.c.b16 %v2644, %v2642
        %v2767 = vpack.c.b16 %v2645, %v2643
        %v2768 = vpack.c.b16 %v2648, %v2646
        %v2769 = vpack.c.b16 %v2649, %v2647
        %v2770 = vpack.c.b16 %v2652, %v2650
        %v2771 = vpack.c.b16 %v2653, %v2651
        %v2772 = vpack.c.b16 %v2656, %v2654
        %v2773 = vpack.c.b16 %v2657, %v2655
        %v2774 = vpack.c.b16 %v2660, %v2658
        %v2775 = vpack.c.b16 %v2661, %v2659
        %v2776 = vpack.c.b16 %v2664, %v2662
        %v2777 = vpack.c.b16 %v2665, %v2663
        %v2778 = vpack.c.b16 %v2668, %v2666
        %v2779 = vpack.c.b16 %v2669, %v2667
        %v2780 = vpack.c.b16 %v2672, %v2670
        %v2781 = vpack.c.b16 %v2673, %v2671
        %v2782 = vpack.c.b16 %v2676, %v2674
        %v2783 = vpack.c.b16 %v2677, %v2675
        %v2784 = vpack.c.b16 %v2680, %v2678
        %v2785 = vpack.c.b16 %v2681, %v2679
        %v2786 = vpack.c.b16 %v2684, %v2682
        %v2787 = vpack.c.b16 %v2685, %v2683
        %v2788 = vpack.c.b16 %v2688, %v2686
        %v2789 = vpack.c.b16 %v2689, %v2687
        %v2790 = vpack.c.b16 %v2692, %v2690
        %v2791 = vpack.c.b16 %v2693, %v2691
        %v2792 = vpack.c.b16 %v2696, %v2694
        %v2793 = vpack.c.b16 %v2697, %v2695
        %v2794 = vpack.c.b16 %v2700, %v2698
        %v2795 = vpack.c.b16 %v2701, %v2699
        %v2796 = vpack.c.b16 %v2704, %v2702
        %v2797 = vpack.c.b16 %v2705, %v2703
        %v2798 = vpack.c.b16 %v2708, %v2706
        %v2799 = vpack.c.b16 %v2709, %v2707
        %v2800 = vpack.c.b16 %v2712, %v2710
        %v2801 = vpack.c.b16 %v2713, %v2711
        %v2802 = vpack.c.b16 %v2716, %v2714
        %v2803 = vpack.c.b16 %v2717, %v2715
        %v2804 = vpack.c.b16 %v2720, %v2718
        %v2805 = vpack.c.b16 %v2721, %v2719
        %v2806 = vpack.c.b16 %v2724, %v2722
        %v2807 = vpack.c.b16 %v2725, %v2723
        %v2808 = vpack.c.b16 %v2728, %v2726
        %v2809 = vpack.c.b16 %v2729, %v2727
        %v2810 = vpack.c.b16 %v2732, %v2730
        %v2811 = vpack.c.b16 %v2733, %v2731
        %v2812 = vpack.c.b16 %v2736, %v2734
        %v2813 = vpack.c.b16 %v2737, %v2735
        %v2814 = vpack.c.b16 %v2740, %v2738
        %v2815 = vpack.c.b16 %v2741, %v2739
        %v2816 = vpack.c.b16 %v2744, %v2742
        %v2817 = vpack.c.b16 %v2745, %v2743
        %v2818 = vpack.c.b16 %v2748, %v2746
        %v2819 = vpack.c.b16 %v2749, %v2747
        %v2820 = vpack.c.b16 %v2752, %v2750
        %v2821 = vpack.c.b16 %v2753, %v2751
        %v2822 = vpack.c.b16 %v2756, %v2754
        %v2823 = vpack.c.b16 %v2757, %v2755
        %v2824 = vpack.c.b16 %v2760, %v2758
        %v2825 = vpack.c.b16 %v2761, %v2759
        %2890 = vmatprep.subr.bf16.mxu0 %v2777
        %2891 = vmatpush1.bf16.msra.mxu0 %v2776
        %2892 = vmatprep.subr.bf16.mxu0 %v2775
        %2893 = vmatpush1.bf16.msra.mxu0 %v2774
        %2894 = vmatprep.subr.bf16.mxu0 %v2773
        %2895 = vmatpush1.bf16.msra.mxu0 %v2772
        %2896 = vmatprep.subr.bf16.mxu0 %v2771
        %2897 = vmatpush1.bf16.msra.mxu0 %v2770
        %2898 = vmatprep.subr.bf16.mxu0 %v2769
        %2899 = vmatpush1.bf16.msra.mxu0 %v2768
        %2900 = vmatprep.subr.bf16.mxu0 %v2767
        %2901 = vmatpush1.bf16.msra.mxu0 %v2766
        %2902 = vmatprep.subr.bf16.mxu0 %v2765
        %2903 = vmatpush1.bf16.msra.mxu0 %v2764
        %2904 = vmatprep.subr.bf16.mxu0 %v2763
        %2905 = vmatpush1.bf16.msra.mxu0 %v2762
        %2906 = vmatprep.subr.bf16.mxu0 %v2793
        %2907 = vmatpush2.bf16.msra.mxu0 %v2792
        %2908 = vmatprep.subr.bf16.mxu0 %v2791
        %2909 = vmatpush2.bf16.msra.mxu0 %v2790
        %2910 = vmatprep.subr.bf16.mxu0 %v2789
        %2911 = vmatpush2.bf16.msra.mxu0 %v2788
        %2912 = vmatprep.subr.bf16.mxu0 %v2787
        %2913 = vmatpush2.bf16.msra.mxu0 %v2786
        %2914 = vmatprep.subr.bf16.mxu0 %v2785
        %2915 = vmatpush2.bf16.msra.mxu0 %v2784
        %2916 = vmatprep.subr.bf16.mxu0 %v2783
        %2917 = vmatpush2.bf16.msra.mxu0 %v2782
        %2918 = vmatprep.subr.bf16.mxu0 %v2781
        %2919 = vmatpush2.bf16.msra.mxu0 %v2780
        %2920 = vmatprep.subr.bf16.mxu0 %v2779
        %2921 = vmatpush2.bf16.msra.mxu0 %v2778
        %2922 = vmatprep.mubr.bf16.mxu0 %v2541
        %2923 = vmatmul.mubr.bf16.gmra.mxu0 %v2529
        %v2924 = vpop.f32.mrf.mxu0
        %v2925 = vadd.f32 0.0, %v2924
        %v2926 = vpop.f32.mrf.mxu0
        %v2927 = vadd.f32 0.0, %v2926
        %v2928 = vpop.f32.mrf.mxu0
        %v2929 = vadd.f32 0.0, %v2928
        %v2930 = vpop.f32.mrf.mxu0
        %v2931 = vadd.f32 0.0, %v2930
        %2932 = vdwg.mxu0
        %2933 = vmatprep.subr.bf16.mxu0 %v2809
        %2934 = vmatpush1.bf16.msra.mxu0 %v2808
        %2935 = vmatprep.subr.bf16.mxu0 %v2807
        %2936 = vmatpush1.bf16.msra.mxu0 %v2806
        %2937 = vmatprep.subr.bf16.mxu0 %v2805
        %2938 = vmatpush1.bf16.msra.mxu0 %v2804
        %2939 = vmatprep.subr.bf16.mxu0 %v2803
        %2940 = vmatpush1.bf16.msra.mxu0 %v2802
        %2941 = vmatprep.subr.bf16.mxu0 %v2801
        %2942 = vmatpush1.bf16.msra.mxu0 %v2800
        %2943 = vmatprep.subr.bf16.mxu0 %v2799
        %2944 = vmatpush1.bf16.msra.mxu0 %v2798
        %2945 = vmatprep.subr.bf16.mxu0 %v2797
        %2946 = vmatpush1.bf16.msra.mxu0 %v2796
        %2947 = vmatprep.subr.bf16.mxu0 %v2795
        %2948 = vmatpush1.bf16.msra.mxu0 %v2794
        %2949 = vmatprep.subr.bf16.mxu0 %v2825
        %2950 = vmatpush2.bf16.msra.mxu0 %v2824
        %2951 = vmatprep.subr.bf16.mxu0 %v2823
        %2952 = vmatpush2.bf16.msra.mxu0 %v2822
        %2953 = vmatprep.subr.bf16.mxu0 %v2821
        %2954 = vmatpush2.bf16.msra.mxu0 %v2820
        %2955 = vmatprep.subr.bf16.mxu0 %v2819
        %2956 = vmatpush2.bf16.msra.mxu0 %v2818
        %2957 = vmatprep.subr.bf16.mxu0 %v2817
        %2958 = vmatpush2.bf16.msra.mxu0 %v2816
        %2959 = vmatprep.subr.bf16.mxu0 %v2815
        %2960 = vmatpush2.bf16.msra.mxu0 %v2814
        %2961 = vmatprep.subr.bf16.mxu0 %v2813
        %2962 = vmatpush2.bf16.msra.mxu0 %v2812
        %2963 = vmatprep.subr.bf16.mxu0 %v2811
        %2964 = vmatpush2.bf16.msra.mxu0 %v2810
        %2965 = vmatprep.mubr.bf16.mxu0 %v2565
        %2966 = vmatmul.mubr.bf16.gmra.mxu0 %v2553
        %v2967 = vpop.f32.mrf.mxu0
        %v2968 = vadd.f32 %v2925, %v2967
        %v2969 = vpop.f32.mrf.mxu0
        %v2970 = vadd.f32 %v2927, %v2969
        %v2971 = vpop.f32.mrf.mxu0
        %v2972 = vadd.f32 %v2929, %v2971
        %v2973 = vpop.f32.mrf.mxu0
        %v2974 = vadd.f32 %v2931, %v2973
        %2975 = vdwg.mxu0
        %v3044 = vunpack.c.l.b16 %v2361
        %v3045 = vunpack.c.h.b16 %v2361
        %v3046 = vunpack.c.l.b16 %v2362
        %v3047 = vunpack.c.h.b16 %v2362
        %v3048 = vunpack.c.l.b16 %v2363
        %v3049 = vunpack.c.h.b16 %v2363
        %v3050 = vunpack.c.l.b16 %v2364
        %v3051 = vunpack.c.h.b16 %v2364
        %v3052 = vunpack.c.l.b16 %v2365
        %v3053 = vunpack.c.h.b16 %v2365
        %v3054 = vunpack.c.l.b16 %v2366
        %v3055 = vunpack.c.h.b16 %v2366
        %v3056 = vunpack.c.l.b16 %v2367
        %v3057 = vunpack.c.h.b16 %v2367
        %v3058 = vunpack.c.l.b16 %v2368
        %v3059 = vunpack.c.h.b16 %v2368
        %v3060 = vunpack.c.l.b16 %v2369
        %v3061 = vunpack.c.h.b16 %v2369
        %v3062 = vunpack.c.l.b16 %v2370
        %v3063 = vunpack.c.h.b16 %v2370
        %v3064 = vunpack.c.l.b16 %v2371
        %v3065 = vunpack.c.h.b16 %v2371
        %v3066 = vunpack.c.l.b16 %v2372
        %v3067 = vunpack.c.h.b16 %v2372
        %v3068 = vunpack.c.l.b16 %v2373
        %v3069 = vunpack.c.h.b16 %v2373
        %v3070 = vunpack.c.l.b16 %v2374
        %v3071 = vunpack.c.h.b16 %v2374
        %v3072 = vunpack.c.l.b16 %v2375
        %v3073 = vunpack.c.h.b16 %v2375
        %v3074 = vunpack.c.l.b16 %v2376
        %v3075 = vunpack.c.h.b16 %v2376
        %v3076 = vunpack.c.l.b16 %v2377
        %v3077 = vunpack.c.h.b16 %v2377
        %v3078 = vunpack.c.l.b16 %v2378
        %v3079 = vunpack.c.h.b16 %v2378
        %v3080 = vunpack.c.l.b16 %v2379
        %v3081 = vunpack.c.h.b16 %v2379
        %v3082 = vunpack.c.l.b16 %v2380
        %v3083 = vunpack.c.h.b16 %v2380
        %v3084 = vunpack.c.l.b16 %v2381
        %v3085 = vunpack.c.h.b16 %v2381
        %v3086 = vunpack.c.l.b16 %v2382
        %v3087 = vunpack.c.h.b16 %v2382
        %v3088 = vunpack.c.l.b16 %v2383
        %v3089 = vunpack.c.h.b16 %v2383
        %v3090 = vunpack.c.l.b16 %v2384
        %v3091 = vunpack.c.h.b16 %v2384
        %v3092 = vunpack.c.l.b16 %v2385
        %v3093 = vunpack.c.h.b16 %v2385
        %v3094 = vunpack.c.l.b16 %v2386
        %v3095 = vunpack.c.h.b16 %v2386
        %v3096 = vunpack.c.l.b16 %v2387
        %v3097 = vunpack.c.h.b16 %v2387
        %v3098 = vunpack.c.l.b16 %v2388
        %v3099 = vunpack.c.h.b16 %v2388
        %v3100 = vunpack.c.l.b16 %v2389
        %v3101 = vunpack.c.h.b16 %v2389
        %v3102 = vunpack.c.l.b16 %v2390
        %v3103 = vunpack.c.h.b16 %v2390
        %v3104 = vunpack.c.l.b16 %v2391
        %v3105 = vunpack.c.h.b16 %v2391
        %v3106 = vunpack.c.l.b16 %v2392
        %v3107 = vunpack.c.h.b16 %v2392
        %v3108 = vunpack.c.l.b16 %v2393
        %v3109 = vunpack.c.h.b16 %v2393
        %v3110 = vunpack.c.l.b16 %v2394
        %v3111 = vunpack.c.h.b16 %v2394
        %v3112 = vunpack.c.l.b16 %v2395
        %v3113 = vunpack.c.h.b16 %v2395
        %v3114 = vunpack.c.l.b16 %v2396
        %v3115 = vunpack.c.h.b16 %v2396
        %v3116 = vunpack.c.l.b16 %v2397
        %v3117 = vunpack.c.h.b16 %v2397
        %v3118 = vunpack.c.l.b16 %v2398
        %v3119 = vunpack.c.h.b16 %v2398
        %v3120 = vunpack.c.l.b16 %v2399
        %v3121 = vunpack.c.h.b16 %v2399
        %v3122 = vunpack.c.l.b16 %v2400
        %v3123 = vunpack.c.h.b16 %v2400
        %v3124 = vunpack.c.l.b16 %v2401
        %v3125 = vunpack.c.h.b16 %v2401
        %v3126 = vunpack.c.l.b16 %v2402
        %v3127 = vunpack.c.h.b16 %v2402
        %v3128 = vunpack.c.l.b16 %v2403
        %v3129 = vunpack.c.h.b16 %v2403
        %v3130 = vunpack.c.l.b16 %v2404
        %v3131 = vunpack.c.h.b16 %v2404
        %v3132 = vunpack.c.l.b16 %v2405
        %v3133 = vunpack.c.h.b16 %v2405
        %v3134 = vunpack.c.l.b16 %v2406
        %v3135 = vunpack.c.h.b16 %v2406
        %v3136 = vunpack.c.l.b16 %v2407
        %v3137 = vunpack.c.h.b16 %v2407
        %v3138 = vunpack.c.l.b16 %v2408
        %v3139 = vunpack.c.h.b16 %v2408
        %v3140 = vunpack.c.l.b16 %v2409
        %v3141 = vunpack.c.h.b16 %v2409
        %v3142 = vunpack.c.l.b16 %v2410
        %v3143 = vunpack.c.h.b16 %v2410
        %v3144 = vunpack.c.l.b16 %v2411
        %v3145 = vunpack.c.h.b16 %v2411
        %v3146 = vunpack.c.l.b16 %v2412
        %v3147 = vunpack.c.h.b16 %v2412
        %v3148 = vunpack.c.l.b16 %v2413
        %v3149 = vunpack.c.h.b16 %v2413
        %v3150 = vunpack.c.l.b16 %v2414
        %v3151 = vunpack.c.h.b16 %v2414
        %v3152 = vunpack.c.l.b16 %v2415
        %v3153 = vunpack.c.h.b16 %v2415
        %v3154 = vunpack.c.l.b16 %v2416
        %v3155 = vunpack.c.h.b16 %v2416
        %v3156 = vunpack.c.l.b16 %v2417
        %v3157 = vunpack.c.h.b16 %v2417
        %v3158 = vunpack.c.l.b16 %v2418
        %v3159 = vunpack.c.h.b16 %v2418
        %v3160 = vunpack.c.l.b16 %v2419
        %v3161 = vunpack.c.h.b16 %v2419
        %v3162 = vunpack.c.l.b16 %v2420
        %v3163 = vunpack.c.h.b16 %v2420
        %v3164 = vunpack.c.l.b16 %v2421
        %v3165 = vunpack.c.h.b16 %v2421
        %v3166 = vunpack.c.l.b16 %v2422
        %v3167 = vunpack.c.h.b16 %v2422
        %v3168 = vunpack.c.l.b16 %v2423
        %v3169 = vunpack.c.h.b16 %v2423
        %v3170 = vunpack.c.l.b16 %v2424
        %v3171 = vunpack.c.h.b16 %v2424
        %v3172 = vpack.c.b16 %v3046, %v3044
        %v3173 = vpack.c.b16 %v3047, %v3045
        %v3174 = vpack.c.b16 %v3050, %v3048
        %v3175 = vpack.c.b16 %v3051, %v3049
        %v3176 = vpack.c.b16 %v3054, %v3052
        %v3177 = vpack.c.b16 %v3055, %v3053
        %v3178 = vpack.c.b16 %v3058, %v3056
        %v3179 = vpack.c.b16 %v3059, %v3057
        %v3180 = vpack.c.b16 %v3062, %v3060
        %v3181 = vpack.c.b16 %v3063, %v3061
        %v3182 = vpack.c.b16 %v3066, %v3064
        %v3183 = vpack.c.b16 %v3067, %v3065
        %v3184 = vpack.c.b16 %v3070, %v3068
        %v3185 = vpack.c.b16 %v3071, %v3069
        %v3186 = vpack.c.b16 %v3074, %v3072
        %v3187 = vpack.c.b16 %v3075, %v3073
        %v3188 = vpack.c.b16 %v3078, %v3076
        %v3189 = vpack.c.b16 %v3079, %v3077
        %v3190 = vpack.c.b16 %v3082, %v3080
        %v3191 = vpack.c.b16 %v3083, %v3081
        %v3192 = vpack.c.b16 %v3086, %v3084
        %v3193 = vpack.c.b16 %v3087, %v3085
        %v3194 = vpack.c.b16 %v3090, %v3088
        %v3195 = vpack.c.b16 %v3091, %v3089
        %v3196 = vpack.c.b16 %v3094, %v3092
        %v3197 = vpack.c.b16 %v3095, %v3093
        %v3198 = vpack.c.b16 %v3098, %v3096
        %v3199 = vpack.c.b16 %v3099, %v3097
        %v3200 = vpack.c.b16 %v3102, %v3100
        %v3201 = vpack.c.b16 %v3103, %v3101
        %v3202 = vpack.c.b16 %v3106, %v3104
        %v3203 = vpack.c.b16 %v3107, %v3105
        %v3204 = vpack.c.b16 %v3110, %v3108
        %v3205 = vpack.c.b16 %v3111, %v3109
        %v3206 = vpack.c.b16 %v3114, %v3112
        %v3207 = vpack.c.b16 %v3115, %v3113
        %v3208 = vpack.c.b16 %v3118, %v3116
        %v3209 = vpack.c.b16 %v3119, %v3117
        %v3210 = vpack.c.b16 %v3122, %v3120
        %v3211 = vpack.c.b16 %v3123, %v3121
        %v3212 = vpack.c.b16 %v3126, %v3124
        %v3213 = vpack.c.b16 %v3127, %v3125
        %v3214 = vpack.c.b16 %v3130, %v3128
        %v3215 = vpack.c.b16 %v3131, %v3129
        %v3216 = vpack.c.b16 %v3134, %v3132
        %v3217 = vpack.c.b16 %v3135, %v3133
        %v3218 = vpack.c.b16 %v3138, %v3136
        %v3219 = vpack.c.b16 %v3139, %v3137
        %v3220 = vpack.c.b16 %v3142, %v3140
        %v3221 = vpack.c.b16 %v3143, %v3141
        %v3222 = vpack.c.b16 %v3146, %v3144
        %v3223 = vpack.c.b16 %v3147, %v3145
        %v3224 = vpack.c.b16 %v3150, %v3148
        %v3225 = vpack.c.b16 %v3151, %v3149
        %v3226 = vpack.c.b16 %v3154, %v3152
        %v3227 = vpack.c.b16 %v3155, %v3153
        %v3228 = vpack.c.b16 %v3158, %v3156
        %v3229 = vpack.c.b16 %v3159, %v3157
        %v3230 = vpack.c.b16 %v3162, %v3160
        %v3231 = vpack.c.b16 %v3163, %v3161
        %v3232 = vpack.c.b16 %v3166, %v3164
        %v3233 = vpack.c.b16 %v3167, %v3165
        %v3234 = vpack.c.b16 %v3170, %v3168
        %v3235 = vpack.c.b16 %v3171, %v3169
        %3300 = vmatprep.subr.bf16.mxu0 %v3187
        %3301 = vmatpush1.bf16.msra.mxu0 %v3186
        %3302 = vmatprep.subr.bf16.mxu0 %v3185
        %3303 = vmatpush1.bf16.msra.mxu0 %v3184
        %3304 = vmatprep.subr.bf16.mxu0 %v3183
        %3305 = vmatpush1.bf16.msra.mxu0 %v3182
        %3306 = vmatprep.subr.bf16.mxu0 %v3181
        %3307 = vmatpush1.bf16.msra.mxu0 %v3180
        %3308 = vmatprep.subr.bf16.mxu0 %v3179
        %3309 = vmatpush1.bf16.msra.mxu0 %v3178
        %3310 = vmatprep.subr.bf16.mxu0 %v3177
        %3311 = vmatpush1.bf16.msra.mxu0 %v3176
        %3312 = vmatprep.subr.bf16.mxu0 %v3175
        %3313 = vmatpush1.bf16.msra.mxu0 %v3174
        %3314 = vmatprep.subr.bf16.mxu0 %v3173
        %3315 = vmatpush1.bf16.msra.mxu0 %v3172
        %3316 = vmatprep.subr.bf16.mxu0 %v3203
        %3317 = vmatpush2.bf16.msra.mxu0 %v3202
        %3318 = vmatprep.subr.bf16.mxu0 %v3201
        %3319 = vmatpush2.bf16.msra.mxu0 %v3200
        %3320 = vmatprep.subr.bf16.mxu0 %v3199
        %3321 = vmatpush2.bf16.msra.mxu0 %v3198
        %3322 = vmatprep.subr.bf16.mxu0 %v3197
        %3323 = vmatpush2.bf16.msra.mxu0 %v3196
        %3324 = vmatprep.subr.bf16.mxu0 %v3195
        %3325 = vmatpush2.bf16.msra.mxu0 %v3194
        %3326 = vmatprep.subr.bf16.mxu0 %v3193
        %3327 = vmatpush2.bf16.msra.mxu0 %v3192
        %3328 = vmatprep.subr.bf16.mxu0 %v3191
        %3329 = vmatpush2.bf16.msra.mxu0 %v3190
        %3330 = vmatprep.subr.bf16.mxu0 %v3189
        %3331 = vmatpush2.bf16.msra.mxu0 %v3188
        %3332 = vmatprep.mubr.bf16.mxu0 %v2511
        %3333 = vmatmul.mubr.bf16.gmra.mxu0 %v2510
        %v3334 = vpop.f32.mrf.mxu0
        %v3335 = vadd.f32 %v2968, %v3334
        %v3336 = vpop.f32.mrf.mxu0
        %v3337 = vadd.f32 %v2970, %v3336
        %v3338 = vpop.f32.mrf.mxu0
        %v3339 = vadd.f32 %v2972, %v3338
        %v3340 = vpop.f32.mrf.mxu0
        %v3341 = vadd.f32 %v2974, %v3340
        %3342 = vdwg.mxu0
        %3343 = vmatprep.subr.bf16.mxu0 %v3219
        %3344 = vmatpush1.bf16.msra.mxu0 %v3218
        %3345 = vmatprep.subr.bf16.mxu0 %v3217
        %3346 = vmatpush1.bf16.msra.mxu0 %v3216
        %3347 = vmatprep.subr.bf16.mxu0 %v3215
        %3348 = vmatpush1.bf16.msra.mxu0 %v3214
        %3349 = vmatprep.subr.bf16.mxu0 %v3213
        %3350 = vmatpush1.bf16.msra.mxu0 %v3212
        %3351 = vmatprep.subr.bf16.mxu0 %v3211
        %3352 = vmatpush1.bf16.msra.mxu0 %v3210
        %3353 = vmatprep.subr.bf16.mxu0 %v3209
        %3354 = vmatpush1.bf16.msra.mxu0 %v3208
        %3355 = vmatprep.subr.bf16.mxu0 %v3207
        %3356 = vmatpush1.bf16.msra.mxu0 %v3206
        %3357 = vmatprep.subr.bf16.mxu0 %v3205
        %3358 = vmatpush1.bf16.msra.mxu0 %v3204
        %3359 = vmatprep.subr.bf16.mxu0 %v3235
        %3360 = vmatpush2.bf16.msra.mxu0 %v3234
        %3361 = vmatprep.subr.bf16.mxu0 %v3233
        %3362 = vmatpush2.bf16.msra.mxu0 %v3232
        %3363 = vmatprep.subr.bf16.mxu0 %v3231
        %3364 = vmatpush2.bf16.msra.mxu0 %v3230
        %3365 = vmatprep.subr.bf16.mxu0 %v3229
        %3366 = vmatpush2.bf16.msra.mxu0 %v3228
        %3367 = vmatprep.subr.bf16.mxu0 %v3227
        %3368 = vmatpush2.bf16.msra.mxu0 %v3226
        %3369 = vmatprep.subr.bf16.mxu0 %v3225
        %3370 = vmatpush2.bf16.msra.mxu0 %v3224
        %3371 = vmatprep.subr.bf16.mxu0 %v3223
        %3372 = vmatpush2.bf16.msra.mxu0 %v3222
        %3373 = vmatprep.subr.bf16.mxu0 %v3221
        %3374 = vmatpush2.bf16.msra.mxu0 %v3220
        %3375 = vmatprep.mubr.bf16.mxu0 %v2513
        %3376 = vmatmul.mubr.bf16.gmra.mxu0 %v2512
        %v3377 = vpop.f32.mrf.mxu0
        %v3378 = vadd.f32 %v3335, %v3377
        %v3379 = vpop.f32.mrf.mxu0
        %v3380 = vadd.f32 %v3337, %v3379
        %v3381 = vpop.f32.mrf.mxu0
        %v3382 = vadd.f32 %v3339, %v3381
        %v3383 = vpop.f32.mrf.mxu0
        %v3384 = vadd.f32 %v3341, %v3383
        %3385 = vdwg.mxu0
        %v3386 = vld [vmem:[#allocation4] sm:$0xee]
        %v3387 = vld [vmem:[#allocation4 + $0x8] sm:$0xee]
        %s3388 = scalar_lea.vmem [#allocation23], 1024
        %v3389 = vld [vmem:[%s3388] sm:$0xff]
        %v3390 = vld [vmem:[%s3388 + $0x8] sm:$0xff]
        %v3391 = vld [vmem:[%s3388 + $0x10] sm:$0xff]
        %v3392 = vld [vmem:[%s3388 + $0x18] sm:$0xff]
        %v3393 = vld [vmem:[%s3388 + $0x20] sm:$0xff]
        %v3394 = vld [vmem:[%s3388 + $0x28] sm:$0xff]
        %v3395 = vld [vmem:[%s3388 + $0x30] sm:$0xff]
        %v3396 = vld [vmem:[%s3388 + $0x38] sm:$0xff]
        %v3397 = vld [vmem:[%s3388 + $0x40] sm:$0xff]
        %v3398 = vld [vmem:[%s3388 + $0x48] sm:$0xff]
        %v3399 = vld [vmem:[%s3388 + $0x50] sm:$0xff]
        %v3400 = vld [vmem:[%s3388 + $0x58] sm:$0xff]
        %v3401 = vld [vmem:[%s3388 + $0x60] sm:$0xff]
        %v3402 = vld [vmem:[%s3388 + $0x68] sm:$0xff]
        %v3403 = vld [vmem:[%s3388 + $0x70] sm:$0xff]
        %v3404 = vld [vmem:[%s3388 + $0x78] sm:$0xff]
        %v3405 = vld [vmem:[%s3388 + $0x80] sm:$0xff]
        %v3406 = vld [vmem:[%s3388 + $0x88] sm:$0xff]
        %v3407 = vld [vmem:[%s3388 + $0x90] sm:$0xff]
        %v3408 = vld [vmem:[%s3388 + $0x98] sm:$0xff]
        %v3409 = vld [vmem:[%s3388 + $0xa0] sm:$0xff]
        %v3410 = vld [vmem:[%s3388 + $0xa8] sm:$0xff]
        %v3411 = vld [vmem:[%s3388 + $0xb0] sm:$0xff]
        %v3412 = vld [vmem:[%s3388 + $0xb8] sm:$0xff]
        %v3413 = vld [vmem:[%s3388 + $0xc0] sm:$0xff]
        %v3414 = vld [vmem:[%s3388 + $0xc8] sm:$0xff]
        %v3415 = vld [vmem:[%s3388 + $0xd0] sm:$0xff]
        %v3416 = vld [vmem:[%s3388 + $0xd8] sm:$0xff]
        %v3417 = vld [vmem:[%s3388 + $0xe0] sm:$0xff]
        %v3418 = vld [vmem:[%s3388 + $0xe8] sm:$0xff]
        %v3419 = vld [vmem:[%s3388 + $0xf0] sm:$0xff]
        %v3420 = vld [vmem:[%s3388 + $0xf8] sm:$0xff]
        %v3421 = vld [vmem:[%s3388 + $0x100] sm:$0xff]
        %v3422 = vld [vmem:[%s3388 + $0x108] sm:$0xff]
        %v3423 = vld [vmem:[%s3388 + $0x110] sm:$0xff]
        %v3424 = vld [vmem:[%s3388 + $0x118] sm:$0xff]
        %v3425 = vld [vmem:[%s3388 + $0x120] sm:$0xff]
        %v3426 = vld [vmem:[%s3388 + $0x128] sm:$0xff]
        %v3427 = vld [vmem:[%s3388 + $0x130] sm:$0xff]
        %v3428 = vld [vmem:[%s3388 + $0x138] sm:$0xff]
        %v3429 = vld [vmem:[%s3388 + $0x140] sm:$0xff]
        %v3430 = vld [vmem:[%s3388 + $0x148] sm:$0xff]
        %v3431 = vld [vmem:[%s3388 + $0x150] sm:$0xff]
        %v3432 = vld [vmem:[%s3388 + $0x158] sm:$0xff]
        %v3433 = vld [vmem:[%s3388 + $0x160] sm:$0xff]
        %v3434 = vld [vmem:[%s3388 + $0x168] sm:$0xff]
        %v3435 = vld [vmem:[%s3388 + $0x170] sm:$0xff]
        %v3436 = vld [vmem:[%s3388 + $0x178] sm:$0xff]
        %v3437 = vld [vmem:[%s3388 + $0x180] sm:$0xff]
        %v3438 = vld [vmem:[%s3388 + $0x188] sm:$0xff]
        %v3439 = vld [vmem:[%s3388 + $0x190] sm:$0xff]
        %v3440 = vld [vmem:[%s3388 + $0x198] sm:$0xff]
        %v3441 = vld [vmem:[%s3388 + $0x1a0] sm:$0xff]
        %v3442 = vld [vmem:[%s3388 + $0x1a8] sm:$0xff]
        %v3443 = vld [vmem:[%s3388 + $0x1b0] sm:$0xff]
        %v3444 = vld [vmem:[%s3388 + $0x1b8] sm:$0xff]
        %v3445 = vld [vmem:[%s3388 + $0x1c0] sm:$0xff]
        %v3446 = vld [vmem:[%s3388 + $0x1c8] sm:$0xff]
        %v3447 = vld [vmem:[%s3388 + $0x1d0] sm:$0xff]
        %v3448 = vld [vmem:[%s3388 + $0x1d8] sm:$0xff]
        %v3449 = vld [vmem:[%s3388 + $0x1e0] sm:$0xff]
        %v3450 = vld [vmem:[%s3388 + $0x1e8] sm:$0xff]
        %v3451 = vld [vmem:[%s3388 + $0x1f0] sm:$0xff]
        %v3452 = vld [vmem:[%s3388 + $0x1f8] sm:$0xff]
        %v3455 = vunpack.c.l.b16 %v3386
        %v3456 = vunpack.c.h.b16 %v3386
        %v3457 = vunpack.c.l.b16 %v3387
        %v3458 = vunpack.c.h.b16 %v3387
        %v3459 = vpack.c.b16 %v2502, %v3455
        %v3460 = vpack.c.b16 %v2503, %v3456
        %v3461 = vpack.c.b16 %v2504, %v3457
        %v3462 = vpack.c.b16 %v2505, %v3458
        %v3463 = vrot.slane %v3459, 1
        %v3464 = vrot.slane %v2514, 1
        %v3465 = vsel %vm2020, %v3463, %v3464
        %v3466 = vrot.slane %v3460, 1
        %v3467 = vrot.slane %v2515, 1
        %v3468 = vsel %vm2020, %v3466, %v3467
        %v3469 = vrot.slane %v3461, 1
        %v3470 = vrot.slane %v2516, 1
        %v3471 = vsel %vm2020, %v3469, %v3470
        %v3472 = vrot.slane %v3462, 1
        %v3473 = vrot.slane %v2517, 1
        %v3474 = vsel %vm2020, %v3472, %v3473
        %v3543 = vunpack.c.l.b16 %v3389
        %v3544 = vunpack.c.h.b16 %v3389
        %v3545 = vunpack.c.l.b16 %v3390
        %v3546 = vunpack.c.h.b16 %v3390
        %v3547 = vunpack.c.l.b16 %v3391
        %v3548 = vunpack.c.h.b16 %v3391
        %v3549 = vunpack.c.l.b16 %v3392
        %v3550 = vunpack.c.h.b16 %v3392
        %v3551 = vunpack.c.l.b16 %v3393
        %v3552 = vunpack.c.h.b16 %v3393
        %v3553 = vunpack.c.l.b16 %v3394
        %v3554 = vunpack.c.h.b16 %v3394
        %v3555 = vunpack.c.l.b16 %v3395
        %v3556 = vunpack.c.h.b16 %v3395
        %v3557 = vunpack.c.l.b16 %v3396
        %v3558 = vunpack.c.h.b16 %v3396
        %v3559 = vunpack.c.l.b16 %v3397
        %v3560 = vunpack.c.h.b16 %v3397
        %v3561 = vunpack.c.l.b16 %v3398
        %v3562 = vunpack.c.h.b16 %v3398
        %v3563 = vunpack.c.l.b16 %v3399
        %v3564 = vunpack.c.h.b16 %v3399
        %v3565 = vunpack.c.l.b16 %v3400
        %v3566 = vunpack.c.h.b16 %v3400
        %v3567 = vunpack.c.l.b16 %v3401
        %v3568 = vunpack.c.h.b16 %v3401
        %v3569 = vunpack.c.l.b16 %v3402
        %v3570 = vunpack.c.h.b16 %v3402
        %v3571 = vunpack.c.l.b16 %v3403
        %v3572 = vunpack.c.h.b16 %v3403
        %v3573 = vunpack.c.l.b16 %v3404
        %v3574 = vunpack.c.h.b16 %v3404
        %v3575 = vunpack.c.l.b16 %v3405
        %v3576 = vunpack.c.h.b16 %v3405
        %v3577 = vunpack.c.l.b16 %v3406
        %v3578 = vunpack.c.h.b16 %v3406
        %v3579 = vunpack.c.l.b16 %v3407
        %v3580 = vunpack.c.h.b16 %v3407
        %v3581 = vunpack.c.l.b16 %v3408
        %v3582 = vunpack.c.h.b16 %v3408
        %v3583 = vunpack.c.l.b16 %v3409
        %v3584 = vunpack.c.h.b16 %v3409
        %v3585 = vunpack.c.l.b16 %v3410
        %v3586 = vunpack.c.h.b16 %v3410
        %v3587 = vunpack.c.l.b16 %v3411
        %v3588 = vunpack.c.h.b16 %v3411
        %v3589 = vunpack.c.l.b16 %v3412
        %v3590 = vunpack.c.h.b16 %v3412
        %v3591 = vunpack.c.l.b16 %v3413
        %v3592 = vunpack.c.h.b16 %v3413
        %v3593 = vunpack.c.l.b16 %v3414
        %v3594 = vunpack.c.h.b16 %v3414
        %v3595 = vunpack.c.l.b16 %v3415
        %v3596 = vunpack.c.h.b16 %v3415
        %v3597 = vunpack.c.l.b16 %v3416
        %v3598 = vunpack.c.h.b16 %v3416
        %v3599 = vunpack.c.l.b16 %v3417
        %v3600 = vunpack.c.h.b16 %v3417
        %v3601 = vunpack.c.l.b16 %v3418
        %v3602 = vunpack.c.h.b16 %v3418
        %v3603 = vunpack.c.l.b16 %v3419
        %v3604 = vunpack.c.h.b16 %v3419
        %v3605 = vunpack.c.l.b16 %v3420
        %v3606 = vunpack.c.h.b16 %v3420
        %v3607 = vunpack.c.l.b16 %v3421
        %v3608 = vunpack.c.h.b16 %v3421
        %v3609 = vunpack.c.l.b16 %v3422
        %v3610 = vunpack.c.h.b16 %v3422
        %v3611 = vunpack.c.l.b16 %v3423
        %v3612 = vunpack.c.h.b16 %v3423
        %v3613 = vunpack.c.l.b16 %v3424
        %v3614 = vunpack.c.h.b16 %v3424
        %v3615 = vunpack.c.l.b16 %v3425
        %v3616 = vunpack.c.h.b16 %v3425
        %v3617 = vunpack.c.l.b16 %v3426
        %v3618 = vunpack.c.h.b16 %v3426
        %v3619 = vunpack.c.l.b16 %v3427
        %v3620 = vunpack.c.h.b16 %v3427
        %v3621 = vunpack.c.l.b16 %v3428
        %v3622 = vunpack.c.h.b16 %v3428
        %v3623 = vunpack.c.l.b16 %v3429
        %v3624 = vunpack.c.h.b16 %v3429
        %v3625 = vunpack.c.l.b16 %v3430
        %v3626 = vunpack.c.h.b16 %v3430
        %v3627 = vunpack.c.l.b16 %v3431
        %v3628 = vunpack.c.h.b16 %v3431
        %v3629 = vunpack.c.l.b16 %v3432
        %v3630 = vunpack.c.h.b16 %v3432
        %v3631 = vunpack.c.l.b16 %v3433
        %v3632 = vunpack.c.h.b16 %v3433
        %v3633 = vunpack.c.l.b16 %v3434
        %v3634 = vunpack.c.h.b16 %v3434
        %v3635 = vunpack.c.l.b16 %v3435
        %v3636 = vunpack.c.h.b16 %v3435
        %v3637 = vunpack.c.l.b16 %v3436
        %v3638 = vunpack.c.h.b16 %v3436
        %v3639 = vunpack.c.l.b16 %v3437
        %v3640 = vunpack.c.h.b16 %v3437
        %v3641 = vunpack.c.l.b16 %v3438
        %v3642 = vunpack.c.h.b16 %v3438
        %v3643 = vunpack.c.l.b16 %v3439
        %v3644 = vunpack.c.h.b16 %v3439
        %v3645 = vunpack.c.l.b16 %v3440
        %v3646 = vunpack.c.h.b16 %v3440
        %v3647 = vunpack.c.l.b16 %v3441
        %v3648 = vunpack.c.h.b16 %v3441
        %v3649 = vunpack.c.l.b16 %v3442
        %v3650 = vunpack.c.h.b16 %v3442
        %v3651 = vunpack.c.l.b16 %v3443
        %v3652 = vunpack.c.h.b16 %v3443
        %v3653 = vunpack.c.l.b16 %v3444
        %v3654 = vunpack.c.h.b16 %v3444
        %v3655 = vunpack.c.l.b16 %v3445
        %v3656 = vunpack.c.h.b16 %v3445
        %v3657 = vunpack.c.l.b16 %v3446
        %v3658 = vunpack.c.h.b16 %v3446
        %v3659 = vunpack.c.l.b16 %v3447
        %v3660 = vunpack.c.h.b16 %v3447
        %v3661 = vunpack.c.l.b16 %v3448
        %v3662 = vunpack.c.h.b16 %v3448
        %v3663 = vunpack.c.l.b16 %v3449
        %v3664 = vunpack.c.h.b16 %v3449
        %v3665 = vunpack.c.l.b16 %v3450
        %v3666 = vunpack.c.h.b16 %v3450
        %v3667 = vunpack.c.l.b16 %v3451
        %v3668 = vunpack.c.h.b16 %v3451
        %v3669 = vunpack.c.l.b16 %v3452
        %v3670 = vunpack.c.h.b16 %v3452
        %v3671 = vpack.c.b16 %v3545, %v3543
        %v3672 = vpack.c.b16 %v3546, %v3544
        %v3673 = vpack.c.b16 %v3549, %v3547
        %v3674 = vpack.c.b16 %v3550, %v3548
        %v3675 = vpack.c.b16 %v3553, %v3551
        %v3676 = vpack.c.b16 %v3554, %v3552
        %v3677 = vpack.c.b16 %v3557, %v3555
        %v3678 = vpack.c.b16 %v3558, %v3556
        %v3679 = vpack.c.b16 %v3561, %v3559
        %v3680 = vpack.c.b16 %v3562, %v3560
        %v3681 = vpack.c.b16 %v3565, %v3563
        %v3682 = vpack.c.b16 %v3566, %v3564
        %v3683 = vpack.c.b16 %v3569, %v3567
        %v3684 = vpack.c.b16 %v3570, %v3568
        %v3685 = vpack.c.b16 %v3573, %v3571
        %v3686 = vpack.c.b16 %v3574, %v3572
        %v3687 = vpack.c.b16 %v3577, %v3575
        %v3688 = vpack.c.b16 %v3578, %v3576
        %v3689 = vpack.c.b16 %v3581, %v3579
        %v3690 = vpack.c.b16 %v3582, %v3580
        %v3691 = vpack.c.b16 %v3585, %v3583
        %v3692 = vpack.c.b16 %v3586, %v3584
        %v3693 = vpack.c.b16 %v3589, %v3587
        %v3694 = vpack.c.b16 %v3590, %v3588
        %v3695 = vpack.c.b16 %v3593, %v3591
        %v3696 = vpack.c.b16 %v3594, %v3592
        %v3697 = vpack.c.b16 %v3597, %v3595
        %v3698 = vpack.c.b16 %v3598, %v3596
        %v3699 = vpack.c.b16 %v3601, %v3599
        %v3700 = vpack.c.b16 %v3602, %v3600
        %v3701 = vpack.c.b16 %v3605, %v3603
        %v3702 = vpack.c.b16 %v3606, %v3604
        %v3703 = vpack.c.b16 %v3609, %v3607
        %v3704 = vpack.c.b16 %v3610, %v3608
        %v3705 = vpack.c.b16 %v3613, %v3611
        %v3706 = vpack.c.b16 %v3614, %v3612
        %v3707 = vpack.c.b16 %v3617, %v3615
        %v3708 = vpack.c.b16 %v3618, %v3616
        %v3709 = vpack.c.b16 %v3621, %v3619
        %v3710 = vpack.c.b16 %v3622, %v3620
        %v3711 = vpack.c.b16 %v3625, %v3623
        %v3712 = vpack.c.b16 %v3626, %v3624
        %v3713 = vpack.c.b16 %v3629, %v3627
        %v3714 = vpack.c.b16 %v3630, %v3628
        %v3715 = vpack.c.b16 %v3633, %v3631
        %v3716 = vpack.c.b16 %v3634, %v3632
        %v3717 = vpack.c.b16 %v3637, %v3635
        %v3718 = vpack.c.b16 %v3638, %v3636
        %v3719 = vpack.c.b16 %v3641, %v3639
        %v3720 = vpack.c.b16 %v3642, %v3640
        %v3721 = vpack.c.b16 %v3645, %v3643
        %v3722 = vpack.c.b16 %v3646, %v3644
        %v3723 = vpack.c.b16 %v3649, %v3647
        %v3724 = vpack.c.b16 %v3650, %v3648
        %v3725 = vpack.c.b16 %v3653, %v3651
        %v3726 = vpack.c.b16 %v3654, %v3652
        %v3727 = vpack.c.b16 %v3657, %v3655
        %v3728 = vpack.c.b16 %v3658, %v3656
        %v3729 = vpack.c.b16 %v3661, %v3659
        %v3730 = vpack.c.b16 %v3662, %v3660
        %v3731 = vpack.c.b16 %v3665, %v3663
        %v3732 = vpack.c.b16 %v3666, %v3664
        %v3733 = vpack.c.b16 %v3669, %v3667
        %v3734 = vpack.c.b16 %v3670, %v3668
        %3799 = vmatprep.subr.bf16.mxu0 %v3686
        %3800 = vmatpush1.bf16.msra.mxu0 %v3685
        %3801 = vmatprep.subr.bf16.mxu0 %v3684
        %3802 = vmatpush1.bf16.msra.mxu0 %v3683
        %3803 = vmatprep.subr.bf16.mxu0 %v3682
        %3804 = vmatpush1.bf16.msra.mxu0 %v3681
        %3805 = vmatprep.subr.bf16.mxu0 %v3680
        %3806 = vmatpush1.bf16.msra.mxu0 %v3679
        %3807 = vmatprep.subr.bf16.mxu0 %v3678
        %3808 = vmatpush1.bf16.msra.mxu0 %v3677
        %3809 = vmatprep.subr.bf16.mxu0 %v3676
        %3810 = vmatpush1.bf16.msra.mxu0 %v3675
        %3811 = vmatprep.subr.bf16.mxu0 %v3674
        %3812 = vmatpush1.bf16.msra.mxu0 %v3673
        %3813 = vmatprep.subr.bf16.mxu0 %v3672
        %3814 = vmatpush1.bf16.msra.mxu0 %v3671
        %3815 = vmatprep.subr.bf16.mxu0 %v3702
        %3816 = vmatpush2.bf16.msra.mxu0 %v3701
        %3817 = vmatprep.subr.bf16.mxu0 %v3700
        %3818 = vmatpush2.bf16.msra.mxu0 %v3699
        %3819 = vmatprep.subr.bf16.mxu0 %v3698
        %3820 = vmatpush2.bf16.msra.mxu0 %v3697
        %3821 = vmatprep.subr.bf16.mxu0 %v3696
        %3822 = vmatpush2.bf16.msra.mxu0 %v3695
        %3823 = vmatprep.subr.bf16.mxu0 %v3694
        %3824 = vmatpush2.bf16.msra.mxu0 %v3693
        %3825 = vmatprep.subr.bf16.mxu0 %v3692
        %3826 = vmatpush2.bf16.msra.mxu0 %v3691
        %3827 = vmatprep.subr.bf16.mxu0 %v3690
        %3828 = vmatpush2.bf16.msra.mxu0 %v3689
        %3829 = vmatprep.subr.bf16.mxu0 %v3688
        %3830 = vmatpush2.bf16.msra.mxu0 %v3687
        %3831 = vmatprep.mubr.bf16.mxu0 %v3468
        %3832 = vmatmul.mubr.bf16.gmra.mxu0 %v3465
        %v3833 = vpop.f32.mrf.mxu0
        %v3834 = vadd.f32 0.0, %v3833
        %v3835 = vpop.f32.mrf.mxu0
        %v3836 = vadd.f32 0.0, %v3835
        %v3837 = vpop.f32.mrf.mxu0
        %v3838 = vadd.f32 0.0, %v3837
        %v3839 = vpop.f32.mrf.mxu0
        %v3840 = vadd.f32 0.0, %v3839
        %3841 = vdwg.mxu0
        %3842 = vmatprep.subr.bf16.mxu0 %v3718
        %3843 = vmatpush1.bf16.msra.mxu0 %v3717
        %3844 = vmatprep.subr.bf16.mxu0 %v3716
        %3845 = vmatpush1.bf16.msra.mxu0 %v3715
        %3846 = vmatprep.subr.bf16.mxu0 %v3714
        %3847 = vmatpush1.bf16.msra.mxu0 %v3713
        %3848 = vmatprep.subr.bf16.mxu0 %v3712
        %3849 = vmatpush1.bf16.msra.mxu0 %v3711
        %3850 = vmatprep.subr.bf16.mxu0 %v3710
        %3851 = vmatpush1.bf16.msra.mxu0 %v3709
        %3852 = vmatprep.subr.bf16.mxu0 %v3708
        %3853 = vmatpush1.bf16.msra.mxu0 %v3707
        %3854 = vmatprep.subr.bf16.mxu0 %v3706
        %3855 = vmatpush1.bf16.msra.mxu0 %v3705
        %3856 = vmatprep.subr.bf16.mxu0 %v3704
        %3857 = vmatpush1.bf16.msra.mxu0 %v3703
        %3858 = vmatprep.subr.bf16.mxu0 %v3734
        %3859 = vmatpush2.bf16.msra.mxu0 %v3733
        %3860 = vmatprep.subr.bf16.mxu0 %v3732
        %3861 = vmatpush2.bf16.msra.mxu0 %v3731
        %3862 = vmatprep.subr.bf16.mxu0 %v3730
        %3863 = vmatpush2.bf16.msra.mxu0 %v3729
        %3864 = vmatprep.subr.bf16.mxu0 %v3728
        %3865 = vmatpush2.bf16.msra.mxu0 %v3727
        %3866 = vmatprep.subr.bf16.mxu0 %v3726
        %3867 = vmatpush2.bf16.msra.mxu0 %v3725
        %3868 = vmatprep.subr.bf16.mxu0 %v3724
        %3869 = vmatpush2.bf16.msra.mxu0 %v3723
        %3870 = vmatprep.subr.bf16.mxu0 %v3722
        %3871 = vmatpush2.bf16.msra.mxu0 %v3721
        %3872 = vmatprep.subr.bf16.mxu0 %v3720
        %3873 = vmatpush2.bf16.msra.mxu0 %v3719
        %3874 = vmatprep.mubr.bf16.mxu0 %v3474
        %3875 = vmatmul.mubr.bf16.gmra.mxu0 %v3471
        %v3876 = vpop.f32.mrf.mxu0
        %v3877 = vadd.f32 %v3834, %v3876
        %v3878 = vpop.f32.mrf.mxu0
        %v3879 = vadd.f32 %v3836, %v3878
        %v3880 = vpop.f32.mrf.mxu0
        %v3881 = vadd.f32 %v3838, %v3880
        %v3882 = vpop.f32.mrf.mxu0
        %v3883 = vadd.f32 %v3840, %v3882
        %3884 = vdwg.mxu0
        %v3885 = vadd.f32 %v3378, %v3877
        %v3886 = vadd.f32 %v3380, %v3879
        %v3887 = vadd.f32 %v3382, %v3881
        %v3888 = vadd.f32 %v3384, %v3883
        %v3889 = vld [vmem:[#allocation24] sm:$0x3]
        %v3891 = vlaneseq
        %v3892 = vshrl.u32 %v3891, 7
        %v3893 = vsub.s32 0, %v3892
        %v3894 = vrot.slane %v3889, %v3893
        %v3895 = vlaneseq
        %v3896 = vshrl.u32 %v3895, 7
        %v3897 = vsub.s32 1, %v3896
        %v3898 = vrot.slane %v3889, %v3897
        %v3901 = vmul.f32 %v3885, %v3894
        %v3902 = vmul.f32 %v3886, %v3898
        %v3903 = vmul.f32 %v3887, %v3894
        %v3904 = vmul.f32 %v3888, %v3898
        %v3905 = vld [vmem:[#allocation26] sm:$0x3]
        %v3907 = vlaneseq
        %v3908 = vshrl.u32 %v3907, 7
        %v3909 = vsub.s32 0, %v3908
        %v3910 = vrot.slane %v3905, %v3909
        %v3911 = vlaneseq
        %v3912 = vshrl.u32 %v3911, 7
        %v3913 = vsub.s32 1, %v3912
        %v3914 = vrot.slane %v3905, %v3913
        %v3917 = vadd.f32 %v3901, %v3910
        %v3918 = vadd.f32 %v3902, %v3914
        %v3919 = vadd.f32 %v3903, %v3910
        %v3920 = vadd.f32 %v3904, %v3914
        %v3921 = vmax.f32 %v3917, 0.0
        %v3922 = vmax.f32 %v3918, 0.0
        %v3923 = vmax.f32 %v3919, 0.0
        %v3924 = vmax.f32 %v3920, 0.0
        %v3925 = vpack.c.bf16 %v1425, %v1421
        %v3926 = vpack.c.bf16 %v1427, %v1423
        %v3929 = vunpack.c.l.b16 %v3925
        %v3930 = vunpack.c.l.b16 %v3926
        %v3931 = vunpack.c.h.b16 %v3925
        %v3932 = vunpack.c.h.b16 %v3926
        %v3933 = vpack.c.b16 %v3930, %v3929
        %v3934 = vpack.c.b16 %v3932, %v3931
        %v3936 = vshrl.u32 %v3933, 16
        %v3938 = vrot.slane %v3936, 7
        %v3939 = vshll.u32 %v3933, 16
        %v3941 = vor.u32 %v3938, %v3939
        %v3942 = vrot.slane %v3938, 4
        %v3944 = vshrl.u32 %v3934, 16
        %v3946 = vrot.slane %v3944, 7
        %v3947 = vshll.u32 %v3934, 16
        %v3949 = vor.u32 %v3946, %v3947
        %v3950 = vsel %vm1432, %v3942, %v3949
        %v3951 = vrot.slane %v3946, 4
        %v3955 = vld [vmem:[#allocation5] sm:$0xff]
        %v3956 = vsel %vm1457, %v3941, %v3955
        %3957 = vst [vmem:[#allocation5] sm:$0xff] %v3956
        %3958 = vst [vmem:[#allocation5 + $0x18] sm:$0xff] %v3950
        %v3959 = vld [vmem:[#allocation5 + $0x30] sm:$0x11]
        %v3960 = vsel %vm951, %v3951, %v3959
        %3961 = vst [vmem:[#allocation5 + $0x30] sm:$0x11] %v3960
        %v3962 = vpack.c.bf16 %v2270, %v2268
        %v3963 = vpack.c.bf16 %v2271, %v2269
        %v3966 = vunpack.c.l.b16 %v3962
        %v3967 = vunpack.c.l.b16 %v3963
        %v3968 = vunpack.c.h.b16 %v3962
        %v3969 = vunpack.c.h.b16 %v3963
        %v3970 = vpack.c.b16 %v3967, %v3966
        %v3971 = vpack.c.b16 %v3969, %v3968
        %v3973 = vshrl.u32 %v3970, 16
        %v3975 = vrot.slane %v3973, 7
        %v3976 = vshll.u32 %v3970, 16
        %v3978 = vor.u32 %v3975, %v3976
        %v3979 = vrot.slane %v3975, 4
        %v3981 = vshrl.u32 %v3971, 16
        %v3983 = vrot.slane %v3981, 7
        %v3984 = vshll.u32 %v3971, 16
        %v3986 = vor.u32 %v3983, %v3984
        %v3987 = vsel %vm1432, %v3979, %v3986
        %v3988 = vrot.slane %v3983, 4
        %v3992 = vld [vmem:[#allocation5 + $0x8] sm:$0xff]
        %v3993 = vsel %vm1457, %v3978, %v3992
        %3994 = vst [vmem:[#allocation5 + $0x8] sm:$0xff] %v3993
        %3995 = vst [vmem:[#allocation5 + $0x20] sm:$0xff] %v3987
        %v3996 = vld [vmem:[#allocation5 + $0x38] sm:$0x11]
        %v3997 = vsel %vm951, %v3988, %v3996
        %3998 = vst [vmem:[#allocation5 + $0x38] sm:$0x11] %v3997
        %v3999 = vpack.c.bf16 %v3923, %v3921
        %v4000 = vpack.c.bf16 %v3924, %v3922
        %v4003 = vunpack.c.l.b16 %v3999
        %v4004 = vunpack.c.l.b16 %v4000
        %v4005 = vunpack.c.h.b16 %v3999
        %v4006 = vunpack.c.h.b16 %v4000
        %v4007 = vpack.c.b16 %v4004, %v4003
        %v4008 = vpack.c.b16 %v4006, %v4005
        %v4010 = vshrl.u32 %v4007, 16
        %v4012 = vrot.slane %v4010, 7
        %v4013 = vshll.u32 %v4007, 16
        %v4015 = vor.u32 %v4012, %v4013
        %v4016 = vrot.slane %v4012, 4
        %v4018 = vshrl.u32 %v4008, 16
        %v4020 = vrot.slane %v4018, 7
        %v4021 = vshll.u32 %v4008, 16
        %v4023 = vor.u32 %v4020, %v4021
        %v4024 = vsel %vm1432, %v4016, %v4023
        %v4025 = vrot.slane %v4020, 4
        %v4029 = vld [vmem:[#allocation5 + $0x10] sm:$0xff]
        %v4030 = vsel %vm1457, %v4015, %v4029
        %4031 = vst [vmem:[#allocation5 + $0x10] sm:$0xff] %v4030
        %4032 = vst [vmem:[#allocation5 + $0x28] sm:$0xff] %v4024
        %v4033 = vld [vmem:[#allocation5 + $0x40] sm:$0x11]
        %v4034 = vsel %vm951, %v4025, %v4033
        %4035 = vst [vmem:[#allocation5 + $0x40] sm:$0x11] %v4034
        %v4036 = vld [vmem:[#allocation5] sm:$0xff]
        %v4037 = vld [vmem:[#allocation5 + $0x8] sm:$0xff]
        %v4038 = vld [vmem:[#allocation5 + $0x10] sm:$0xff]
        %v4039 = vld [vmem:[#allocation5 + $0x18] sm:$0xff]
        %v4040 = vld [vmem:[#allocation5 + $0x20] sm:$0xff]
        %v4041 = vld [vmem:[#allocation5 + $0x28] sm:$0xff]
        %v4042 = vld [vmem:[#allocation27] sm:$0xff]
        %v4043 = vld [vmem:[#allocation27 + $0x8] sm:$0xff]
        %v4044 = vld [vmem:[#allocation27 + $0x10] sm:$0xff]
        %v4045 = vld [vmem:[#allocation27 + $0x18] sm:$0xff]
        %v4046 = vld [vmem:[#allocation27 + $0x20] sm:$0xff]
        %v4047 = vld [vmem:[#allocation27 + $0x28] sm:$0xff]
        %v4048 = vld [vmem:[#allocation27 + $0x30] sm:$0xff]
        %v4049 = vld [vmem:[#allocation27 + $0x38] sm:$0xff]
        %v4050 = vld [vmem:[#allocation27 + $0x40] sm:$0xff]
        %v4051 = vld [vmem:[#allocation27 + $0x48] sm:$0xff]
        %v4052 = vld [vmem:[#allocation27 + $0x50] sm:$0xff]
        %v4053 = vld [vmem:[#allocation27 + $0x58] sm:$0xff]
        %v4054 = vld [vmem:[#allocation27 + $0x60] sm:$0xff]
        %v4055 = vld [vmem:[#allocation27 + $0x68] sm:$0xff]
        %v4056 = vld [vmem:[#allocation27 + $0x70] sm:$0xff]
        %v4057 = vld [vmem:[#allocation27 + $0x78] sm:$0xff]
        %v4058 = vld [vmem:[#allocation27 + $0x80] sm:$0xff]
        %v4059 = vld [vmem:[#allocation27 + $0x88] sm:$0xff]
        %v4060 = vld [vmem:[#allocation27 + $0x90] sm:$0xff]
        %v4061 = vld [vmem:[#allocation27 + $0x98] sm:$0xff]
        %v4062 = vld [vmem:[#allocation27 + $0xa0] sm:$0xff]
        %v4063 = vld [vmem:[#allocation27 + $0xa8] sm:$0xff]
        %v4064 = vld [vmem:[#allocation27 + $0xb0] sm:$0xff]
        %v4065 = vld [vmem:[#allocation27 + $0xb8] sm:$0xff]
        %v4066 = vld [vmem:[#allocation27 + $0xc0] sm:$0xff]
        %v4067 = vld [vmem:[#allocation27 + $0xc8] sm:$0xff]
        %v4068 = vld [vmem:[#allocation27 + $0xd0] sm:$0xff]
        %v4069 = vld [vmem:[#allocation27 + $0xd8] sm:$0xff]
        %v4070 = vld [vmem:[#allocation27 + $0xe0] sm:$0xff]
        %v4071 = vld [vmem:[#allocation27 + $0xe8] sm:$0xff]
        %v4072 = vld [vmem:[#allocation27 + $0xf0] sm:$0xff]
        %v4073 = vld [vmem:[#allocation27 + $0xf8] sm:$0xff]
        %v4074 = vld [vmem:[#allocation27 + $0x100] sm:$0xff]
        %v4075 = vld [vmem:[#allocation27 + $0x108] sm:$0xff]
        %v4076 = vld [vmem:[#allocation27 + $0x110] sm:$0xff]
        %v4077 = vld [vmem:[#allocation27 + $0x118] sm:$0xff]
        %v4078 = vld [vmem:[#allocation27 + $0x120] sm:$0xff]
        %v4079 = vld [vmem:[#allocation27 + $0x128] sm:$0xff]
        %v4080 = vld [vmem:[#allocation27 + $0x130] sm:$0xff]
        %v4081 = vld [vmem:[#allocation27 + $0x138] sm:$0xff]
        %v4082 = vld [vmem:[#allocation27 + $0x140] sm:$0xff]
        %v4083 = vld [vmem:[#allocation27 + $0x148] sm:$0xff]
        %v4084 = vld [vmem:[#allocation27 + $0x150] sm:$0xff]
        %v4085 = vld [vmem:[#allocation27 + $0x158] sm:$0xff]
        %v4086 = vld [vmem:[#allocation27 + $0x160] sm:$0xff]
        %v4087 = vld [vmem:[#allocation27 + $0x168] sm:$0xff]
        %v4088 = vld [vmem:[#allocation27 + $0x170] sm:$0xff]
        %v4089 = vld [vmem:[#allocation27 + $0x178] sm:$0xff]
        %v4090 = vld [vmem:[#allocation27 + $0x180] sm:$0xff]
        %v4091 = vld [vmem:[#allocation27 + $0x188] sm:$0xff]
        %v4092 = vld [vmem:[#allocation27 + $0x190] sm:$0xff]
        %v4093 = vld [vmem:[#allocation27 + $0x198] sm:$0xff]
        %v4094 = vld [vmem:[#allocation27 + $0x1a0] sm:$0xff]
        %v4095 = vld [vmem:[#allocation27 + $0x1a8] sm:$0xff]
        %v4096 = vld [vmem:[#allocation27 + $0x1b0] sm:$0xff]
        %v4097 = vld [vmem:[#allocation27 + $0x1b8] sm:$0xff]
        %v4098 = vld [vmem:[#allocation27 + $0x1c0] sm:$0xff]
        %v4099 = vld [vmem:[#allocation27 + $0x1c8] sm:$0xff]
        %v4100 = vld [vmem:[#allocation27 + $0x1d0] sm:$0xff]
        %v4101 = vld [vmem:[#allocation27 + $0x1d8] sm:$0xff]
        %v4102 = vld [vmem:[#allocation27 + $0x1e0] sm:$0xff]
        %v4103 = vld [vmem:[#allocation27 + $0x1e8] sm:$0xff]
        %v4104 = vld [vmem:[#allocation27 + $0x1f0] sm:$0xff]
        %v4105 = vld [vmem:[#allocation27 + $0x1f8] sm:$0xff]
        %v4106 = vld [vmem:[#allocation27 + $0x200] sm:$0xff]
        %v4107 = vld [vmem:[#allocation27 + $0x208] sm:$0xff]
        %v4108 = vld [vmem:[#allocation27 + $0x210] sm:$0xff]
        %v4109 = vld [vmem:[#allocation27 + $0x218] sm:$0xff]
        %v4110 = vld [vmem:[#allocation27 + $0x220] sm:$0xff]
        %v4111 = vld [vmem:[#allocation27 + $0x228] sm:$0xff]
        %v4112 = vld [vmem:[#allocation27 + $0x230] sm:$0xff]
        %v4113 = vld [vmem:[#allocation27 + $0x238] sm:$0xff]
        %v4114 = vld [vmem:[#allocation27 + $0x240] sm:$0xff]
        %v4115 = vld [vmem:[#allocation27 + $0x248] sm:$0xff]
        %v4116 = vld [vmem:[#allocation27 + $0x250] sm:$0xff]
        %v4117 = vld [vmem:[#allocation27 + $0x258] sm:$0xff]
        %v4118 = vld [vmem:[#allocation27 + $0x260] sm:$0xff]
        %v4119 = vld [vmem:[#allocation27 + $0x268] sm:$0xff]
        %v4120 = vld [vmem:[#allocation27 + $0x270] sm:$0xff]
        %v4121 = vld [vmem:[#allocation27 + $0x278] sm:$0xff]
        %v4122 = vld [vmem:[#allocation27 + $0x280] sm:$0xff]
        %v4123 = vld [vmem:[#allocation27 + $0x288] sm:$0xff]
        %v4124 = vld [vmem:[#allocation27 + $0x290] sm:$0xff]
        %v4125 = vld [vmem:[#allocation27 + $0x298] sm:$0xff]
        %v4126 = vld [vmem:[#allocation27 + $0x2a0] sm:$0xff]
        %v4127 = vld [vmem:[#allocation27 + $0x2a8] sm:$0xff]
        %v4128 = vld [vmem:[#allocation27 + $0x2b0] sm:$0xff]
        %v4129 = vld [vmem:[#allocation27 + $0x2b8] sm:$0xff]
        %v4130 = vld [vmem:[#allocation27 + $0x2c0] sm:$0xff]
        %v4131 = vld [vmem:[#allocation27 + $0x2c8] sm:$0xff]
        %v4132 = vld [vmem:[#allocation27 + $0x2d0] sm:$0xff]
        %v4133 = vld [vmem:[#allocation27 + $0x2d8] sm:$0xff]
        %v4134 = vld [vmem:[#allocation27 + $0x2e0] sm:$0xff]
        %v4135 = vld [vmem:[#allocation27 + $0x2e8] sm:$0xff]
        %v4136 = vld [vmem:[#allocation27 + $0x2f0] sm:$0xff]
        %v4137 = vld [vmem:[#allocation27 + $0x2f8] sm:$0xff]
        %v4138 = vld [vmem:[#allocation5 + $0x30] sm:$0x11]
        %v4139 = vld [vmem:[#allocation5 + $0x38] sm:$0x11]
        %v4140 = vld [vmem:[#allocation5 + $0x40] sm:$0x11]
        %s4141 = scalar_lea.vmem [#allocation27], 768
        %v4142 = vld [vmem:[%s4141] sm:$0xff]
        %v4143 = vld [vmem:[%s4141 + $0x8] sm:$0xff]
        %v4144 = vld [vmem:[%s4141 + $0x10] sm:$0xff]
        %v4145 = vld [vmem:[%s4141 + $0x18] sm:$0xff]
        %v4146 = vld [vmem:[%s4141 + $0x20] sm:$0xff]
        %v4147 = vld [vmem:[%s4141 + $0x28] sm:$0xff]
        %v4148 = vld [vmem:[%s4141 + $0x30] sm:$0xff]
        %v4149 = vld [vmem:[%s4141 + $0x38] sm:$0xff]
        %v4150 = vld [vmem:[%s4141 + $0x40] sm:$0xff]
        %v4151 = vld [vmem:[%s4141 + $0x48] sm:$0xff]
        %v4152 = vld [vmem:[%s4141 + $0x50] sm:$0xff]
        %v4153 = vld [vmem:[%s4141 + $0x58] sm:$0xff]
        %v4154 = vld [vmem:[%s4141 + $0x60] sm:$0xff]
        %v4155 = vld [vmem:[%s4141 + $0x68] sm:$0xff]
        %v4156 = vld [vmem:[%s4141 + $0x70] sm:$0xff]
        %v4157 = vld [vmem:[%s4141 + $0x78] sm:$0xff]
        %v4158 = vld [vmem:[%s4141 + $0x80] sm:$0xff]
        %v4159 = vld [vmem:[%s4141 + $0x88] sm:$0xff]
        %v4160 = vld [vmem:[%s4141 + $0x90] sm:$0xff]
        %v4161 = vld [vmem:[%s4141 + $0x98] sm:$0xff]
        %v4162 = vld [vmem:[%s4141 + $0xa0] sm:$0xff]
        %v4163 = vld [vmem:[%s4141 + $0xa8] sm:$0xff]
        %v4164 = vld [vmem:[%s4141 + $0xb0] sm:$0xff]
        %v4165 = vld [vmem:[%s4141 + $0xb8] sm:$0xff]
        %v4166 = vld [vmem:[%s4141 + $0xc0] sm:$0xff]
        %v4167 = vld [vmem:[%s4141 + $0xc8] sm:$0xff]
        %v4168 = vld [vmem:[%s4141 + $0xd0] sm:$0xff]
        %v4169 = vld [vmem:[%s4141 + $0xd8] sm:$0xff]
        %v4170 = vld [vmem:[%s4141 + $0xe0] sm:$0xff]
        %v4171 = vld [vmem:[%s4141 + $0xe8] sm:$0xff]
        %v4172 = vld [vmem:[%s4141 + $0xf0] sm:$0xff]
        %v4173 = vld [vmem:[%s4141 + $0xf8] sm:$0xff]
        %v4174 = vld [vmem:[%s4141 + $0x100] sm:$0xff]
        %v4175 = vld [vmem:[%s4141 + $0x108] sm:$0xff]
        %v4176 = vld [vmem:[%s4141 + $0x110] sm:$0xff]
        %v4177 = vld [vmem:[%s4141 + $0x118] sm:$0xff]
        %v4178 = vld [vmem:[%s4141 + $0x120] sm:$0xff]
        %v4179 = vld [vmem:[%s4141 + $0x128] sm:$0xff]
        %v4180 = vld [vmem:[%s4141 + $0x130] sm:$0xff]
        %v4181 = vld [vmem:[%s4141 + $0x138] sm:$0xff]
        %v4182 = vld [vmem:[%s4141 + $0x140] sm:$0xff]
        %v4183 = vld [vmem:[%s4141 + $0x148] sm:$0xff]
        %v4184 = vld [vmem:[%s4141 + $0x150] sm:$0xff]
        %v4185 = vld [vmem:[%s4141 + $0x158] sm:$0xff]
        %v4186 = vld [vmem:[%s4141 + $0x160] sm:$0xff]
        %v4187 = vld [vmem:[%s4141 + $0x168] sm:$0xff]
        %v4188 = vld [vmem:[%s4141 + $0x170] sm:$0xff]
        %v4189 = vld [vmem:[%s4141 + $0x178] sm:$0xff]
        %v4190 = vld [vmem:[%s4141 + $0x180] sm:$0xff]
        %v4191 = vld [vmem:[%s4141 + $0x188] sm:$0xff]
        %v4192 = vld [vmem:[%s4141 + $0x190] sm:$0xff]
        %v4193 = vld [vmem:[%s4141 + $0x198] sm:$0xff]
        %v4194 = vld [vmem:[%s4141 + $0x1a0] sm:$0xff]
        %v4195 = vld [vmem:[%s4141 + $0x1a8] sm:$0xff]
        %v4196 = vld [vmem:[%s4141 + $0x1b0] sm:$0xff]
        %v4197 = vld [vmem:[%s4141 + $0x1b8] sm:$0xff]
        %v4198 = vld [vmem:[%s4141 + $0x1c0] sm:$0xff]
        %v4199 = vld [vmem:[%s4141 + $0x1c8] sm:$0xff]
        %v4200 = vld [vmem:[%s4141 + $0x1d0] sm:$0xff]
        %v4201 = vld [vmem:[%s4141 + $0x1d8] sm:$0xff]
        %v4202 = vld [vmem:[%s4141 + $0x1e0] sm:$0xff]
        %v4203 = vld [vmem:[%s4141 + $0x1e8] sm:$0xff]
        %v4204 = vld [vmem:[%s4141 + $0x1f0] sm:$0xff]
        %v4205 = vld [vmem:[%s4141 + $0x1f8] sm:$0xff]
        %v4206 = vld [vmem:[%s4141 + $0x200] sm:$0xff]
        %v4207 = vld [vmem:[%s4141 + $0x208] sm:$0xff]
        %v4208 = vld [vmem:[%s4141 + $0x210] sm:$0xff]
        %v4209 = vld [vmem:[%s4141 + $0x218] sm:$0xff]
        %v4210 = vld [vmem:[%s4141 + $0x220] sm:$0xff]
        %v4211 = vld [vmem:[%s4141 + $0x228] sm:$0xff]
        %v4212 = vld [vmem:[%s4141 + $0x230] sm:$0xff]
        %v4213 = vld [vmem:[%s4141 + $0x238] sm:$0xff]
        %v4214 = vld [vmem:[%s4141 + $0x240] sm:$0xff]
        %v4215 = vld [vmem:[%s4141 + $0x248] sm:$0xff]
        %v4216 = vld [vmem:[%s4141 + $0x250] sm:$0xff]
        %v4217 = vld [vmem:[%s4141 + $0x258] sm:$0xff]
        %v4218 = vld [vmem:[%s4141 + $0x260] sm:$0xff]
        %v4219 = vld [vmem:[%s4141 + $0x268] sm:$0xff]
        %v4220 = vld [vmem:[%s4141 + $0x270] sm:$0xff]
        %v4221 = vld [vmem:[%s4141 + $0x278] sm:$0xff]
        %v4222 = vld [vmem:[%s4141 + $0x280] sm:$0xff]
        %v4223 = vld [vmem:[%s4141 + $0x288] sm:$0xff]
        %v4224 = vld [vmem:[%s4141 + $0x290] sm:$0xff]
        %v4225 = vld [vmem:[%s4141 + $0x298] sm:$0xff]
        %v4226 = vld [vmem:[%s4141 + $0x2a0] sm:$0xff]
        %v4227 = vld [vmem:[%s4141 + $0x2a8] sm:$0xff]
        %v4228 = vld [vmem:[%s4141 + $0x2b0] sm:$0xff]
        %v4229 = vld [vmem:[%s4141 + $0x2b8] sm:$0xff]
        %v4230 = vld [vmem:[%s4141 + $0x2c0] sm:$0xff]
        %v4231 = vld [vmem:[%s4141 + $0x2c8] sm:$0xff]
        %v4232 = vld [vmem:[%s4141 + $0x2d0] sm:$0xff]
        %v4233 = vld [vmem:[%s4141 + $0x2d8] sm:$0xff]
        %v4234 = vld [vmem:[%s4141 + $0x2e0] sm:$0xff]
        %v4235 = vld [vmem:[%s4141 + $0x2e8] sm:$0xff]
        %v4236 = vld [vmem:[%s4141 + $0x2f0] sm:$0xff]
        %v4237 = vld [vmem:[%s4141 + $0x2f8] sm:$0xff]
        %v4247 = vunpack.c.l.b16 %v4036
        %v4248 = vunpack.c.h.b16 %v4036
        %v4249 = vunpack.c.l.b16 %v4037
        %v4250 = vunpack.c.h.b16 %v4037
        %v4251 = vunpack.c.l.b16 %v4038
        %v4252 = vunpack.c.h.b16 %v4038
        %v4253 = vunpack.c.l.b16 %v4039
        %v4254 = vunpack.c.h.b16 %v4039
        %v4255 = vunpack.c.l.b16 %v4040
        %v4256 = vunpack.c.h.b16 %v4040
        %v4257 = vunpack.c.l.b16 %v4041
        %v4258 = vunpack.c.h.b16 %v4041
        %v4259 = vunpack.c.l.b16 %v4138
        %v4260 = vunpack.c.h.b16 %v4138
        %v4261 = vunpack.c.l.b16 %v4139
        %v4262 = vunpack.c.h.b16 %v4139
        %v4263 = vunpack.c.l.b16 %v4140
        %v4264 = vunpack.c.h.b16 %v4140
        %v4265 = vpack.c.b16 %v4253, %v4247
        %v4266 = vpack.c.b16 %v4254, %v4248
        %v4267 = vpack.c.b16 %v4255, %v4249
        %v4268 = vpack.c.b16 %v4256, %v4250
        %v4269 = vpack.c.b16 %v4257, %v4251
        %v4270 = vpack.c.b16 %v4258, %v4252
        %v4271 = vpack.c.b16 %v4259, %v4259
        %v4272 = vpack.c.b16 %v4260, %v4260
        %v4273 = vpack.c.b16 %v4261, %v4261
        %v4274 = vpack.c.b16 %v4262, %v4262
        %v4275 = vpack.c.b16 %v4263, %v4263
        %v4276 = vpack.c.b16 %v4264, %v4264
        %v4278 = vshrl.u32 %v4265, 16
        %v4280 = vshll.u32 %v4265, 16
        %v4282 = vrot.slane %v4280, 1
        %v4283 = vor.u32 %v4278, %v4282
        %v4285 = vshll.u32 %v4271, 16
        %v4287 = vrot.slane %v4285, 1
        %v4288 = vsel %vm1546, %v4283, %v4287
        %v4290 = vshrl.u32 %v4266, 16
        %v4292 = vshll.u32 %v4266, 16
        %v4294 = vrot.slane %v4292, 1
        %v4295 = vor.u32 %v4290, %v4294
        %v4297 = vshll.u32 %v4272, 16
        %v4299 = vrot.slane %v4297, 1
        %v4300 = vsel %vm1546, %v4295, %v4299
        %v4302 = vshrl.u32 %v4267, 16
        %v4304 = vshll.u32 %v4267, 16
        %v4306 = vrot.slane %v4304, 1
        %v4307 = vor.u32 %v4302, %v4306
        %v4309 = vshll.u32 %v4273, 16
        %v4311 = vrot.slane %v4309, 1
        %v4312 = vsel %vm1546, %v4307, %v4311
        %v4314 = vshrl.u32 %v4268, 16
        %v4316 = vshll.u32 %v4268, 16
        %v4318 = vrot.slane %v4316, 1
        %v4319 = vor.u32 %v4314, %v4318
        %v4321 = vshll.u32 %v4274, 16
        %v4323 = vrot.slane %v4321, 1
        %v4324 = vsel %vm1546, %v4319, %v4323
        %v4326 = vshrl.u32 %v4269, 16
        %v4328 = vshll.u32 %v4269, 16
        %v4330 = vrot.slane %v4328, 1
        %v4331 = vor.u32 %v4326, %v4330
        %v4333 = vshll.u32 %v4275, 16
        %v4335 = vrot.slane %v4333, 1
        %v4336 = vsel %vm1546, %v4331, %v4335
        %v4338 = vshrl.u32 %v4270, 16
        %v4340 = vshll.u32 %v4270, 16
        %v4342 = vrot.slane %v4340, 1
        %v4343 = vor.u32 %v4338, %v4342
        %v4345 = vshll.u32 %v4276, 16
        %v4347 = vrot.slane %v4345, 1
        %v4348 = vsel %vm1546, %v4343, %v4347
        %v4451 = vunpack.c.l.b16 %v4142
        %v4452 = vunpack.c.h.b16 %v4142
        %v4453 = vunpack.c.l.b16 %v4143
        %v4454 = vunpack.c.h.b16 %v4143
        %v4455 = vunpack.c.l.b16 %v4144
        %v4456 = vunpack.c.h.b16 %v4144
        %v4457 = vunpack.c.l.b16 %v4145
        %v4458 = vunpack.c.h.b16 %v4145
        %v4459 = vunpack.c.l.b16 %v4146
        %v4460 = vunpack.c.h.b16 %v4146
        %v4461 = vunpack.c.l.b16 %v4147
        %v4462 = vunpack.c.h.b16 %v4147
        %v4463 = vunpack.c.l.b16 %v4148
        %v4464 = vunpack.c.h.b16 %v4148
        %v4465 = vunpack.c.l.b16 %v4149
        %v4466 = vunpack.c.h.b16 %v4149
        %v4467 = vunpack.c.l.b16 %v4150
        %v4468 = vunpack.c.h.b16 %v4150
        %v4469 = vunpack.c.l.b16 %v4151
        %v4470 = vunpack.c.h.b16 %v4151
        %v4471 = vunpack.c.l.b16 %v4152
        %v4472 = vunpack.c.h.b16 %v4152
        %v4473 = vunpack.c.l.b16 %v4153
        %v4474 = vunpack.c.h.b16 %v4153
        %v4475 = vunpack.c.l.b16 %v4154
        %v4476 = vunpack.c.h.b16 %v4154
        %v4477 = vunpack.c.l.b16 %v4155
        %v4478 = vunpack.c.h.b16 %v4155
        %v4479 = vunpack.c.l.b16 %v4156
        %v4480 = vunpack.c.h.b16 %v4156
        %v4481 = vunpack.c.l.b16 %v4157
        %v4482 = vunpack.c.h.b16 %v4157
        %v4483 = vunpack.c.l.b16 %v4158
        %v4484 = vunpack.c.h.b16 %v4158
        %v4485 = vunpack.c.l.b16 %v4159
        %v4486 = vunpack.c.h.b16 %v4159
        %v4487 = vunpack.c.l.b16 %v4160
        %v4488 = vunpack.c.h.b16 %v4160
        %v4489 = vunpack.c.l.b16 %v4161
        %v4490 = vunpack.c.h.b16 %v4161
        %v4491 = vunpack.c.l.b16 %v4162
        %v4492 = vunpack.c.h.b16 %v4162
        %v4493 = vunpack.c.l.b16 %v4163
        %v4494 = vunpack.c.h.b16 %v4163
        %v4495 = vunpack.c.l.b16 %v4164
        %v4496 = vunpack.c.h.b16 %v4164
        %v4497 = vunpack.c.l.b16 %v4165
        %v4498 = vunpack.c.h.b16 %v4165
        %v4499 = vunpack.c.l.b16 %v4166
        %v4500 = vunpack.c.h.b16 %v4166
        %v4501 = vunpack.c.l.b16 %v4167
        %v4502 = vunpack.c.h.b16 %v4167
        %v4503 = vunpack.c.l.b16 %v4168
        %v4504 = vunpack.c.h.b16 %v4168
        %v4505 = vunpack.c.l.b16 %v4169
        %v4506 = vunpack.c.h.b16 %v4169
        %v4507 = vunpack.c.l.b16 %v4170
        %v4508 = vunpack.c.h.b16 %v4170
        %v4509 = vunpack.c.l.b16 %v4171
        %v4510 = vunpack.c.h.b16 %v4171
        %v4511 = vunpack.c.l.b16 %v4172
        %v4512 = vunpack.c.h.b16 %v4172
        %v4513 = vunpack.c.l.b16 %v4173
        %v4514 = vunpack.c.h.b16 %v4173
        %v4515 = vunpack.c.l.b16 %v4174
        %v4516 = vunpack.c.h.b16 %v4174
        %v4517 = vunpack.c.l.b16 %v4175
        %v4518 = vunpack.c.h.b16 %v4175
        %v4519 = vunpack.c.l.b16 %v4176
        %v4520 = vunpack.c.h.b16 %v4176
        %v4521 = vunpack.c.l.b16 %v4177
        %v4522 = vunpack.c.h.b16 %v4177
        %v4523 = vunpack.c.l.b16 %v4178
        %v4524 = vunpack.c.h.b16 %v4178
        %v4525 = vunpack.c.l.b16 %v4179
        %v4526 = vunpack.c.h.b16 %v4179
        %v4527 = vunpack.c.l.b16 %v4180
        %v4528 = vunpack.c.h.b16 %v4180
        %v4529 = vunpack.c.l.b16 %v4181
        %v4530 = vunpack.c.h.b16 %v4181
        %v4531 = vunpack.c.l.b16 %v4182
        %v4532 = vunpack.c.h.b16 %v4182
        %v4533 = vunpack.c.l.b16 %v4183
        %v4534 = vunpack.c.h.b16 %v4183
        %v4535 = vunpack.c.l.b16 %v4184
        %v4536 = vunpack.c.h.b16 %v4184
        %v4537 = vunpack.c.l.b16 %v4185
        %v4538 = vunpack.c.h.b16 %v4185
        %v4539 = vunpack.c.l.b16 %v4186
        %v4540 = vunpack.c.h.b16 %v4186
        %v4541 = vunpack.c.l.b16 %v4187
        %v4542 = vunpack.c.h.b16 %v4187
        %v4543 = vunpack.c.l.b16 %v4188
        %v4544 = vunpack.c.h.b16 %v4188
        %v4545 = vunpack.c.l.b16 %v4189
        %v4546 = vunpack.c.h.b16 %v4189
        %v4547 = vunpack.c.l.b16 %v4190
        %v4548 = vunpack.c.h.b16 %v4190
        %v4549 = vunpack.c.l.b16 %v4191
        %v4550 = vunpack.c.h.b16 %v4191
        %v4551 = vunpack.c.l.b16 %v4192
        %v4552 = vunpack.c.h.b16 %v4192
        %v4553 = vunpack.c.l.b16 %v4193
        %v4554 = vunpack.c.h.b16 %v4193
        %v4555 = vunpack.c.l.b16 %v4194
        %v4556 = vunpack.c.h.b16 %v4194
        %v4557 = vunpack.c.l.b16 %v4195
        %v4558 = vunpack.c.h.b16 %v4195
        %v4559 = vunpack.c.l.b16 %v4196
        %v4560 = vunpack.c.h.b16 %v4196
        %v4561 = vunpack.c.l.b16 %v4197
        %v4562 = vunpack.c.h.b16 %v4197
        %v4563 = vunpack.c.l.b16 %v4198
        %v4564 = vunpack.c.h.b16 %v4198
        %v4565 = vunpack.c.l.b16 %v4199
        %v4566 = vunpack.c.h.b16 %v4199
        %v4567 = vunpack.c.l.b16 %v4200
        %v4568 = vunpack.c.h.b16 %v4200
        %v4569 = vunpack.c.l.b16 %v4201
        %v4570 = vunpack.c.h.b16 %v4201
        %v4571 = vunpack.c.l.b16 %v4202
        %v4572 = vunpack.c.h.b16 %v4202
        %v4573 = vunpack.c.l.b16 %v4203
        %v4574 = vunpack.c.h.b16 %v4203
        %v4575 = vunpack.c.l.b16 %v4204
        %v4576 = vunpack.c.h.b16 %v4204
        %v4577 = vunpack.c.l.b16 %v4205
        %v4578 = vunpack.c.h.b16 %v4205
        %v4579 = vunpack.c.l.b16 %v4206
        %v4580 = vunpack.c.h.b16 %v4206
        %v4581 = vunpack.c.l.b16 %v4207
        %v4582 = vunpack.c.h.b16 %v4207
        %v4583 = vunpack.c.l.b16 %v4208
        %v4584 = vunpack.c.h.b16 %v4208
        %v4585 = vunpack.c.l.b16 %v4209
        %v4586 = vunpack.c.h.b16 %v4209
        %v4587 = vunpack.c.l.b16 %v4210
        %v4588 = vunpack.c.h.b16 %v4210
        %v4589 = vunpack.c.l.b16 %v4211
        %v4590 = vunpack.c.h.b16 %v4211
        %v4591 = vunpack.c.l.b16 %v4212
        %v4592 = vunpack.c.h.b16 %v4212
        %v4593 = vunpack.c.l.b16 %v4213
        %v4594 = vunpack.c.h.b16 %v4213
        %v4595 = vunpack.c.l.b16 %v4214
        %v4596 = vunpack.c.h.b16 %v4214
        %v4597 = vunpack.c.l.b16 %v4215
        %v4598 = vunpack.c.h.b16 %v4215
        %v4599 = vunpack.c.l.b16 %v4216
        %v4600 = vunpack.c.h.b16 %v4216
        %v4601 = vunpack.c.l.b16 %v4217
        %v4602 = vunpack.c.h.b16 %v4217
        %v4603 = vunpack.c.l.b16 %v4218
        %v4604 = vunpack.c.h.b16 %v4218
        %v4605 = vunpack.c.l.b16 %v4219
        %v4606 = vunpack.c.h.b16 %v4219
        %v4607 = vunpack.c.l.b16 %v4220
        %v4608 = vunpack.c.h.b16 %v4220
        %v4609 = vunpack.c.l.b16 %v4221
        %v4610 = vunpack.c.h.b16 %v4221
        %v4611 = vunpack.c.l.b16 %v4222
        %v4612 = vunpack.c.h.b16 %v4222
        %v4613 = vunpack.c.l.b16 %v4223
        %v4614 = vunpack.c.h.b16 %v4223
        %v4615 = vunpack.c.l.b16 %v4224
        %v4616 = vunpack.c.h.b16 %v4224
        %v4617 = vunpack.c.l.b16 %v4225
        %v4618 = vunpack.c.h.b16 %v4225
        %v4619 = vunpack.c.l.b16 %v4226
        %v4620 = vunpack.c.h.b16 %v4226
        %v4621 = vunpack.c.l.b16 %v4227
        %v4622 = vunpack.c.h.b16 %v4227
        %v4623 = vunpack.c.l.b16 %v4228
        %v4624 = vunpack.c.h.b16 %v4228
        %v4625 = vunpack.c.l.b16 %v4229
        %v4626 = vunpack.c.h.b16 %v4229
        %v4627 = vunpack.c.l.b16 %v4230
        %v4628 = vunpack.c.h.b16 %v4230
        %v4629 = vunpack.c.l.b16 %v4231
        %v4630 = vunpack.c.h.b16 %v4231
        %v4631 = vunpack.c.l.b16 %v4232
        %v4632 = vunpack.c.h.b16 %v4232
        %v4633 = vunpack.c.l.b16 %v4233
        %v4634 = vunpack.c.h.b16 %v4233
        %v4635 = vunpack.c.l.b16 %v4234
        %v4636 = vunpack.c.h.b16 %v4234
        %v4637 = vunpack.c.l.b16 %v4235
        %v4638 = vunpack.c.h.b16 %v4235
        %v4639 = vunpack.c.l.b16 %v4236
        %v4640 = vunpack.c.h.b16 %v4236
        %v4641 = vunpack.c.l.b16 %v4237
        %v4642 = vunpack.c.h.b16 %v4237
        %v4643 = vpack.c.b16 %v4453, %v4451
        %v4644 = vpack.c.b16 %v4454, %v4452
        %v4645 = vpack.c.b16 %v4457, %v4455
        %v4646 = vpack.c.b16 %v4458, %v4456
        %v4647 = vpack.c.b16 %v4461, %v4459
        %v4648 = vpack.c.b16 %v4462, %v4460
        %v4649 = vpack.c.b16 %v4465, %v4463
        %v4650 = vpack.c.b16 %v4466, %v4464
        %v4651 = vpack.c.b16 %v4469, %v4467
        %v4652 = vpack.c.b16 %v4470, %v4468
        %v4653 = vpack.c.b16 %v4473, %v4471
        %v4654 = vpack.c.b16 %v4474, %v4472
        %v4655 = vpack.c.b16 %v4477, %v4475
        %v4656 = vpack.c.b16 %v4478, %v4476
        %v4657 = vpack.c.b16 %v4481, %v4479
        %v4658 = vpack.c.b16 %v4482, %v4480
        %v4659 = vpack.c.b16 %v4485, %v4483
        %v4660 = vpack.c.b16 %v4486, %v4484
        %v4661 = vpack.c.b16 %v4489, %v4487
        %v4662 = vpack.c.b16 %v4490, %v4488
        %v4663 = vpack.c.b16 %v4493, %v4491
        %v4664 = vpack.c.b16 %v4494, %v4492
        %v4665 = vpack.c.b16 %v4497, %v4495
        %v4666 = vpack.c.b16 %v4498, %v4496
        %v4667 = vpack.c.b16 %v4501, %v4499
        %v4668 = vpack.c.b16 %v4502, %v4500
        %v4669 = vpack.c.b16 %v4505, %v4503
        %v4670 = vpack.c.b16 %v4506, %v4504
        %v4671 = vpack.c.b16 %v4509, %v4507
        %v4672 = vpack.c.b16 %v4510, %v4508
        %v4673 = vpack.c.b16 %v4513, %v4511
        %v4674 = vpack.c.b16 %v4514, %v4512
        %v4675 = vpack.c.b16 %v4517, %v4515
        %v4676 = vpack.c.b16 %v4518, %v4516
        %v4677 = vpack.c.b16 %v4521, %v4519
        %v4678 = vpack.c.b16 %v4522, %v4520
        %v4679 = vpack.c.b16 %v4525, %v4523
        %v4680 = vpack.c.b16 %v4526, %v4524
        %v4681 = vpack.c.b16 %v4529, %v4527
        %v4682 = vpack.c.b16 %v4530, %v4528
        %v4683 = vpack.c.b16 %v4533, %v4531
        %v4684 = vpack.c.b16 %v4534, %v4532
        %v4685 = vpack.c.b16 %v4537, %v4535
        %v4686 = vpack.c.b16 %v4538, %v4536
        %v4687 = vpack.c.b16 %v4541, %v4539
        %v4688 = vpack.c.b16 %v4542, %v4540
        %v4689 = vpack.c.b16 %v4545, %v4543
        %v4690 = vpack.c.b16 %v4546, %v4544
        %v4691 = vpack.c.b16 %v4549, %v4547
        %v4692 = vpack.c.b16 %v4550, %v4548
        %v4693 = vpack.c.b16 %v4553, %v4551
        %v4694 = vpack.c.b16 %v4554, %v4552
        %v4695 = vpack.c.b16 %v4557, %v4555
        %v4696 = vpack.c.b16 %v4558, %v4556
        %v4697 = vpack.c.b16 %v4561, %v4559
        %v4698 = vpack.c.b16 %v4562, %v4560
        %v4699 = vpack.c.b16 %v4565, %v4563
        %v4700 = vpack.c.b16 %v4566, %v4564
        %v4701 = vpack.c.b16 %v4569, %v4567
        %v4702 = vpack.c.b16 %v4570, %v4568
        %v4703 = vpack.c.b16 %v4573, %v4571
        %v4704 = vpack.c.b16 %v4574, %v4572
        %v4705 = vpack.c.b16 %v4577, %v4575
        %v4706 = vpack.c.b16 %v4578, %v4576
        %v4707 = vpack.c.b16 %v4581, %v4579
        %v4708 = vpack.c.b16 %v4582, %v4580
        %v4709 = vpack.c.b16 %v4585, %v4583
        %v4710 = vpack.c.b16 %v4586, %v4584
        %v4711 = vpack.c.b16 %v4589, %v4587
        %v4712 = vpack.c.b16 %v4590, %v4588
        %v4713 = vpack.c.b16 %v4593, %v4591
        %v4714 = vpack.c.b16 %v4594, %v4592
        %v4715 = vpack.c.b16 %v4597, %v4595
        %v4716 = vpack.c.b16 %v4598, %v4596
        %v4717 = vpack.c.b16 %v4601, %v4599
        %v4718 = vpack.c.b16 %v4602, %v4600
        %v4719 = vpack.c.b16 %v4605, %v4603
        %v4720 = vpack.c.b16 %v4606, %v4604
        %v4721 = vpack.c.b16 %v4609, %v4607
        %v4722 = vpack.c.b16 %v4610, %v4608
        %v4723 = vpack.c.b16 %v4613, %v4611
        %v4724 = vpack.c.b16 %v4614, %v4612
        %v4725 = vpack.c.b16 %v4617, %v4615
        %v4726 = vpack.c.b16 %v4618, %v4616
        %v4727 = vpack.c.b16 %v4621, %v4619
        %v4728 = vpack.c.b16 %v4622, %v4620
        %v4729 = vpack.c.b16 %v4625, %v4623
        %v4730 = vpack.c.b16 %v4626, %v4624
        %v4731 = vpack.c.b16 %v4629, %v4627
        %v4732 = vpack.c.b16 %v4630, %v4628
        %v4733 = vpack.c.b16 %v4633, %v4631
        %v4734 = vpack.c.b16 %v4634, %v4632
        %v4735 = vpack.c.b16 %v4637, %v4635
        %v4736 = vpack.c.b16 %v4638, %v4636
        %v4737 = vpack.c.b16 %v4641, %v4639
        %v4738 = vpack.c.b16 %v4642, %v4640
        %4835 = vmatprep.subr.bf16.mxu0 %v4658
        %4836 = vmatpush1.bf16.msra.mxu0 %v4657
        %4837 = vmatprep.subr.bf16.mxu0 %v4656
        %4838 = vmatpush1.bf16.msra.mxu0 %v4655
        %4839 = vmatprep.subr.bf16.mxu0 %v4654
        %4840 = vmatpush1.bf16.msra.mxu0 %v4653
        %4841 = vmatprep.subr.bf16.mxu0 %v4652
        %4842 = vmatpush1.bf16.msra.mxu0 %v4651
        %4843 = vmatprep.subr.bf16.mxu0 %v4650
        %4844 = vmatpush1.bf16.msra.mxu0 %v4649
        %4845 = vmatprep.subr.bf16.mxu0 %v4648
        %4846 = vmatpush1.bf16.msra.mxu0 %v4647
        %4847 = vmatprep.subr.bf16.mxu0 %v4646
        %4848 = vmatpush1.bf16.msra.mxu0 %v4645
        %4849 = vmatprep.subr.bf16.mxu0 %v4644
        %4850 = vmatpush1.bf16.msra.mxu0 %v4643
        %4851 = vmatprep.subr.bf16.mxu0 %v4674
        %4852 = vmatpush2.bf16.msra.mxu0 %v4673
        %4853 = vmatprep.subr.bf16.mxu0 %v4672
        %4854 = vmatpush2.bf16.msra.mxu0 %v4671
        %4855 = vmatprep.subr.bf16.mxu0 %v4670
        %4856 = vmatpush2.bf16.msra.mxu0 %v4669
        %4857 = vmatprep.subr.bf16.mxu0 %v4668
        %4858 = vmatpush2.bf16.msra.mxu0 %v4667
        %4859 = vmatprep.subr.bf16.mxu0 %v4666
        %4860 = vmatpush2.bf16.msra.mxu0 %v4665
        %4861 = vmatprep.subr.bf16.mxu0 %v4664
        %4862 = vmatpush2.bf16.msra.mxu0 %v4663
        %4863 = vmatprep.subr.bf16.mxu0 %v4662
        %4864 = vmatpush2.bf16.msra.mxu0 %v4661
        %4865 = vmatprep.subr.bf16.mxu0 %v4660
        %4866 = vmatpush2.bf16.msra.mxu0 %v4659
        %4867 = vmatprep.mubr.bf16.mxu0 %v4300
        %4868 = vmatmul.mubr.bf16.gmra.mxu0 %v4288
        %v4869 = vpop.f32.mrf.mxu0
        %v4870 = vadd.f32 0.0, %v4869
        %v4871 = vpop.f32.mrf.mxu0
        %v4872 = vadd.f32 0.0, %v4871
        %v4873 = vpop.f32.mrf.mxu0
        %v4874 = vadd.f32 0.0, %v4873
        %v4875 = vpop.f32.mrf.mxu0
        %v4876 = vadd.f32 0.0, %v4875
        %4877 = vdwg.mxu0
        %4878 = vmatprep.subr.bf16.mxu0 %v4690
        %4879 = vmatpush1.bf16.msra.mxu0 %v4689
        %4880 = vmatprep.subr.bf16.mxu0 %v4688
        %4881 = vmatpush1.bf16.msra.mxu0 %v4687
        %4882 = vmatprep.subr.bf16.mxu0 %v4686
        %4883 = vmatpush1.bf16.msra.mxu0 %v4685
        %4884 = vmatprep.subr.bf16.mxu0 %v4684
        %4885 = vmatpush1.bf16.msra.mxu0 %v4683
        %4886 = vmatprep.subr.bf16.mxu0 %v4682
        %4887 = vmatpush1.bf16.msra.mxu0 %v4681
        %4888 = vmatprep.subr.bf16.mxu0 %v4680
        %4889 = vmatpush1.bf16.msra.mxu0 %v4679
        %4890 = vmatprep.subr.bf16.mxu0 %v4678
        %4891 = vmatpush1.bf16.msra.mxu0 %v4677
        %4892 = vmatprep.subr.bf16.mxu0 %v4676
        %4893 = vmatpush1.bf16.msra.mxu0 %v4675
        %4894 = vmatprep.subr.bf16.mxu0 %v4706
        %4895 = vmatpush2.bf16.msra.mxu0 %v4705
        %4896 = vmatprep.subr.bf16.mxu0 %v4704
        %4897 = vmatpush2.bf16.msra.mxu0 %v4703
        %4898 = vmatprep.subr.bf16.mxu0 %v4702
        %4899 = vmatpush2.bf16.msra.mxu0 %v4701
        %4900 = vmatprep.subr.bf16.mxu0 %v4700
        %4901 = vmatpush2.bf16.msra.mxu0 %v4699
        %4902 = vmatprep.subr.bf16.mxu0 %v4698
        %4903 = vmatpush2.bf16.msra.mxu0 %v4697
        %4904 = vmatprep.subr.bf16.mxu0 %v4696
        %4905 = vmatpush2.bf16.msra.mxu0 %v4695
        %4906 = vmatprep.subr.bf16.mxu0 %v4694
        %4907 = vmatpush2.bf16.msra.mxu0 %v4693
        %4908 = vmatprep.subr.bf16.mxu0 %v4692
        %4909 = vmatpush2.bf16.msra.mxu0 %v4691
        %4910 = vmatprep.mubr.bf16.mxu0 %v4324
        %4911 = vmatmul.mubr.bf16.gmra.mxu0 %v4312
        %v4912 = vpop.f32.mrf.mxu0
        %v4913 = vadd.f32 %v4870, %v4912
        %v4914 = vpop.f32.mrf.mxu0
        %v4915 = vadd.f32 %v4872, %v4914
        %v4916 = vpop.f32.mrf.mxu0
        %v4917 = vadd.f32 %v4874, %v4916
        %v4918 = vpop.f32.mrf.mxu0
        %v4919 = vadd.f32 %v4876, %v4918
        %4920 = vdwg.mxu0
        %4921 = vmatprep.subr.bf16.mxu0 %v4722
        %4922 = vmatpush1.bf16.msra.mxu0 %v4721
        %4923 = vmatprep.subr.bf16.mxu0 %v4720
        %4924 = vmatpush1.bf16.msra.mxu0 %v4719
        %4925 = vmatprep.subr.bf16.mxu0 %v4718
        %4926 = vmatpush1.bf16.msra.mxu0 %v4717
        %4927 = vmatprep.subr.bf16.mxu0 %v4716
        %4928 = vmatpush1.bf16.msra.mxu0 %v4715
        %4929 = vmatprep.subr.bf16.mxu0 %v4714
        %4930 = vmatpush1.bf16.msra.mxu0 %v4713
        %4931 = vmatprep.subr.bf16.mxu0 %v4712
        %4932 = vmatpush1.bf16.msra.mxu0 %v4711
        %4933 = vmatprep.subr.bf16.mxu0 %v4710
        %4934 = vmatpush1.bf16.msra.mxu0 %v4709
        %4935 = vmatprep.subr.bf16.mxu0 %v4708
        %4936 = vmatpush1.bf16.msra.mxu0 %v4707
        %4937 = vmatprep.subr.bf16.mxu0 %v4738
        %4938 = vmatpush2.bf16.msra.mxu0 %v4737
        %4939 = vmatprep.subr.bf16.mxu0 %v4736
        %4940 = vmatpush2.bf16.msra.mxu0 %v4735
        %4941 = vmatprep.subr.bf16.mxu0 %v4734
        %4942 = vmatpush2.bf16.msra.mxu0 %v4733
        %4943 = vmatprep.subr.bf16.mxu0 %v4732
        %4944 = vmatpush2.bf16.msra.mxu0 %v4731
        %4945 = vmatprep.subr.bf16.mxu0 %v4730
        %4946 = vmatpush2.bf16.msra.mxu0 %v4729
        %4947 = vmatprep.subr.bf16.mxu0 %v4728
        %4948 = vmatpush2.bf16.msra.mxu0 %v4727
        %4949 = vmatprep.subr.bf16.mxu0 %v4726
        %4950 = vmatpush2.bf16.msra.mxu0 %v4725
        %4951 = vmatprep.subr.bf16.mxu0 %v4724
        %4952 = vmatpush2.bf16.msra.mxu0 %v4723
        %4953 = vmatprep.mubr.bf16.mxu0 %v4348
        %4954 = vmatmul.mubr.bf16.gmra.mxu0 %v4336
        %v4955 = vpop.f32.mrf.mxu0
        %v4956 = vadd.f32 %v4913, %v4955
        %v4957 = vpop.f32.mrf.mxu0
        %v4958 = vadd.f32 %v4915, %v4957
        %v4959 = vpop.f32.mrf.mxu0
        %v4960 = vadd.f32 %v4917, %v4959
        %v4961 = vpop.f32.mrf.mxu0
        %v4962 = vadd.f32 %v4919, %v4961
        %4963 = vdwg.mxu0
        %v5066 = vunpack.c.l.b16 %v4042
        %v5067 = vunpack.c.h.b16 %v4042
        %v5068 = vunpack.c.l.b16 %v4043
        %v5069 = vunpack.c.h.b16 %v4043
        %v5070 = vunpack.c.l.b16 %v4044
        %v5071 = vunpack.c.h.b16 %v4044
        %v5072 = vunpack.c.l.b16 %v4045
        %v5073 = vunpack.c.h.b16 %v4045
        %v5074 = vunpack.c.l.b16 %v4046
        %v5075 = vunpack.c.h.b16 %v4046
        %v5076 = vunpack.c.l.b16 %v4047
        %v5077 = vunpack.c.h.b16 %v4047
        %v5078 = vunpack.c.l.b16 %v4048
        %v5079 = vunpack.c.h.b16 %v4048
        %v5080 = vunpack.c.l.b16 %v4049
        %v5081 = vunpack.c.h.b16 %v4049
        %v5082 = vunpack.c.l.b16 %v4050
        %v5083 = vunpack.c.h.b16 %v4050
        %v5084 = vunpack.c.l.b16 %v4051
        %v5085 = vunpack.c.h.b16 %v4051
        %v5086 = vunpack.c.l.b16 %v4052
        %v5087 = vunpack.c.h.b16 %v4052
        %v5088 = vunpack.c.l.b16 %v4053
        %v5089 = vunpack.c.h.b16 %v4053
        %v5090 = vunpack.c.l.b16 %v4054
        %v5091 = vunpack.c.h.b16 %v4054
        %v5092 = vunpack.c.l.b16 %v4055
        %v5093 = vunpack.c.h.b16 %v4055
        %v5094 = vunpack.c.l.b16 %v4056
        %v5095 = vunpack.c.h.b16 %v4056
        %v5096 = vunpack.c.l.b16 %v4057
        %v5097 = vunpack.c.h.b16 %v4057
        %v5098 = vunpack.c.l.b16 %v4058
        %v5099 = vunpack.c.h.b16 %v4058
        %v5100 = vunpack.c.l.b16 %v4059
        %v5101 = vunpack.c.h.b16 %v4059
        %v5102 = vunpack.c.l.b16 %v4060
        %v5103 = vunpack.c.h.b16 %v4060
        %v5104 = vunpack.c.l.b16 %v4061
        %v5105 = vunpack.c.h.b16 %v4061
        %v5106 = vunpack.c.l.b16 %v4062
        %v5107 = vunpack.c.h.b16 %v4062
        %v5108 = vunpack.c.l.b16 %v4063
        %v5109 = vunpack.c.h.b16 %v4063
        %v5110 = vunpack.c.l.b16 %v4064
        %v5111 = vunpack.c.h.b16 %v4064
        %v5112 = vunpack.c.l.b16 %v4065
        %v5113 = vunpack.c.h.b16 %v4065
        %v5114 = vunpack.c.l.b16 %v4066
        %v5115 = vunpack.c.h.b16 %v4066
        %v5116 = vunpack.c.l.b16 %v4067
        %v5117 = vunpack.c.h.b16 %v4067
        %v5118 = vunpack.c.l.b16 %v4068
        %v5119 = vunpack.c.h.b16 %v4068
        %v5120 = vunpack.c.l.b16 %v4069
        %v5121 = vunpack.c.h.b16 %v4069
        %v5122 = vunpack.c.l.b16 %v4070
        %v5123 = vunpack.c.h.b16 %v4070
        %v5124 = vunpack.c.l.b16 %v4071
        %v5125 = vunpack.c.h.b16 %v4071
        %v5126 = vunpack.c.l.b16 %v4072
        %v5127 = vunpack.c.h.b16 %v4072
        %v5128 = vunpack.c.l.b16 %v4073
        %v5129 = vunpack.c.h.b16 %v4073
        %v5130 = vunpack.c.l.b16 %v4074
        %v5131 = vunpack.c.h.b16 %v4074
        %v5132 = vunpack.c.l.b16 %v4075
        %v5133 = vunpack.c.h.b16 %v4075
        %v5134 = vunpack.c.l.b16 %v4076
        %v5135 = vunpack.c.h.b16 %v4076
        %v5136 = vunpack.c.l.b16 %v4077
        %v5137 = vunpack.c.h.b16 %v4077
        %v5138 = vunpack.c.l.b16 %v4078
        %v5139 = vunpack.c.h.b16 %v4078
        %v5140 = vunpack.c.l.b16 %v4079
        %v5141 = vunpack.c.h.b16 %v4079
        %v5142 = vunpack.c.l.b16 %v4080
        %v5143 = vunpack.c.h.b16 %v4080
        %v5144 = vunpack.c.l.b16 %v4081
        %v5145 = vunpack.c.h.b16 %v4081
        %v5146 = vunpack.c.l.b16 %v4082
        %v5147 = vunpack.c.h.b16 %v4082
        %v5148 = vunpack.c.l.b16 %v4083
        %v5149 = vunpack.c.h.b16 %v4083
        %v5150 = vunpack.c.l.b16 %v4084
        %v5151 = vunpack.c.h.b16 %v4084
        %v5152 = vunpack.c.l.b16 %v4085
        %v5153 = vunpack.c.h.b16 %v4085
        %v5154 = vunpack.c.l.b16 %v4086
        %v5155 = vunpack.c.h.b16 %v4086
        %v5156 = vunpack.c.l.b16 %v4087
        %v5157 = vunpack.c.h.b16 %v4087
        %v5158 = vunpack.c.l.b16 %v4088
        %v5159 = vunpack.c.h.b16 %v4088
        %v5160 = vunpack.c.l.b16 %v4089
        %v5161 = vunpack.c.h.b16 %v4089
        %v5162 = vunpack.c.l.b16 %v4090
        %v5163 = vunpack.c.h.b16 %v4090
        %v5164 = vunpack.c.l.b16 %v4091
        %v5165 = vunpack.c.h.b16 %v4091
        %v5166 = vunpack.c.l.b16 %v4092
        %v5167 = vunpack.c.h.b16 %v4092
        %v5168 = vunpack.c.l.b16 %v4093
        %v5169 = vunpack.c.h.b16 %v4093
        %v5170 = vunpack.c.l.b16 %v4094
        %v5171 = vunpack.c.h.b16 %v4094
        %v5172 = vunpack.c.l.b16 %v4095
        %v5173 = vunpack.c.h.b16 %v4095
        %v5174 = vunpack.c.l.b16 %v4096
        %v5175 = vunpack.c.h.b16 %v4096
        %v5176 = vunpack.c.l.b16 %v4097
        %v5177 = vunpack.c.h.b16 %v4097
        %v5178 = vunpack.c.l.b16 %v4098
        %v5179 = vunpack.c.h.b16 %v4098
        %v5180 = vunpack.c.l.b16 %v4099
        %v5181 = vunpack.c.h.b16 %v4099
        %v5182 = vunpack.c.l.b16 %v4100
        %v5183 = vunpack.c.h.b16 %v4100
        %v5184 = vunpack.c.l.b16 %v4101
        %v5185 = vunpack.c.h.b16 %v4101
        %v5186 = vunpack.c.l.b16 %v4102
        %v5187 = vunpack.c.h.b16 %v4102
        %v5188 = vunpack.c.l.b16 %v4103
        %v5189 = vunpack.c.h.b16 %v4103
        %v5190 = vunpack.c.l.b16 %v4104
        %v5191 = vunpack.c.h.b16 %v4104
        %v5192 = vunpack.c.l.b16 %v4105
        %v5193 = vunpack.c.h.b16 %v4105
        %v5194 = vunpack.c.l.b16 %v4106
        %v5195 = vunpack.c.h.b16 %v4106
        %v5196 = vunpack.c.l.b16 %v4107
        %v5197 = vunpack.c.h.b16 %v4107
        %v5198 = vunpack.c.l.b16 %v4108
        %v5199 = vunpack.c.h.b16 %v4108
        %v5200 = vunpack.c.l.b16 %v4109
        %v5201 = vunpack.c.h.b16 %v4109
        %v5202 = vunpack.c.l.b16 %v4110
        %v5203 = vunpack.c.h.b16 %v4110
        %v5204 = vunpack.c.l.b16 %v4111
        %v5205 = vunpack.c.h.b16 %v4111
        %v5206 = vunpack.c.l.b16 %v4112
        %v5207 = vunpack.c.h.b16 %v4112
        %v5208 = vunpack.c.l.b16 %v4113
        %v5209 = vunpack.c.h.b16 %v4113
        %v5210 = vunpack.c.l.b16 %v4114
        %v5211 = vunpack.c.h.b16 %v4114
        %v5212 = vunpack.c.l.b16 %v4115
        %v5213 = vunpack.c.h.b16 %v4115
        %v5214 = vunpack.c.l.b16 %v4116
        %v5215 = vunpack.c.h.b16 %v4116
        %v5216 = vunpack.c.l.b16 %v4117
        %v5217 = vunpack.c.h.b16 %v4117
        %v5218 = vunpack.c.l.b16 %v4118
        %v5219 = vunpack.c.h.b16 %v4118
        %v5220 = vunpack.c.l.b16 %v4119
        %v5221 = vunpack.c.h.b16 %v4119
        %v5222 = vunpack.c.l.b16 %v4120
        %v5223 = vunpack.c.h.b16 %v4120
        %v5224 = vunpack.c.l.b16 %v4121
        %v5225 = vunpack.c.h.b16 %v4121
        %v5226 = vunpack.c.l.b16 %v4122
        %v5227 = vunpack.c.h.b16 %v4122
        %v5228 = vunpack.c.l.b16 %v4123
        %v5229 = vunpack.c.h.b16 %v4123
        %v5230 = vunpack.c.l.b16 %v4124
        %v5231 = vunpack.c.h.b16 %v4124
        %v5232 = vunpack.c.l.b16 %v4125
        %v5233 = vunpack.c.h.b16 %v4125
        %v5234 = vunpack.c.l.b16 %v4126
        %v5235 = vunpack.c.h.b16 %v4126
        %v5236 = vunpack.c.l.b16 %v4127
        %v5237 = vunpack.c.h.b16 %v4127
        %v5238 = vunpack.c.l.b16 %v4128
        %v5239 = vunpack.c.h.b16 %v4128
        %v5240 = vunpack.c.l.b16 %v4129
        %v5241 = vunpack.c.h.b16 %v4129
        %v5242 = vunpack.c.l.b16 %v4130
        %v5243 = vunpack.c.h.b16 %v4130
        %v5244 = vunpack.c.l.b16 %v4131
        %v5245 = vunpack.c.h.b16 %v4131
        %v5246 = vunpack.c.l.b16 %v4132
        %v5247 = vunpack.c.h.b16 %v4132
        %v5248 = vunpack.c.l.b16 %v4133
        %v5249 = vunpack.c.h.b16 %v4133
        %v5250 = vunpack.c.l.b16 %v4134
        %v5251 = vunpack.c.h.b16 %v4134
        %v5252 = vunpack.c.l.b16 %v4135
        %v5253 = vunpack.c.h.b16 %v4135
        %v5254 = vunpack.c.l.b16 %v4136
        %v5255 = vunpack.c.h.b16 %v4136
        %v5256 = vunpack.c.l.b16 %v4137
        %v5257 = vunpack.c.h.b16 %v4137
        %v5258 = vpack.c.b16 %v5068, %v5066
        %v5259 = vpack.c.b16 %v5069, %v5067
        %v5260 = vpack.c.b16 %v5072, %v5070
        %v5261 = vpack.c.b16 %v5073, %v5071
        %v5262 = vpack.c.b16 %v5076, %v5074
        %v5263 = vpack.c.b16 %v5077, %v5075
        %v5264 = vpack.c.b16 %v5080, %v5078
        %v5265 = vpack.c.b16 %v5081, %v5079
        %v5266 = vpack.c.b16 %v5084, %v5082
        %v5267 = vpack.c.b16 %v5085, %v5083
        %v5268 = vpack.c.b16 %v5088, %v5086
        %v5269 = vpack.c.b16 %v5089, %v5087
        %v5270 = vpack.c.b16 %v5092, %v5090
        %v5271 = vpack.c.b16 %v5093, %v5091
        %v5272 = vpack.c.b16 %v5096, %v5094
        %v5273 = vpack.c.b16 %v5097, %v5095
        %v5274 = vpack.c.b16 %v5100, %v5098
        %v5275 = vpack.c.b16 %v5101, %v5099
        %v5276 = vpack.c.b16 %v5104, %v5102
        %v5277 = vpack.c.b16 %v5105, %v5103
        %v5278 = vpack.c.b16 %v5108, %v5106
        %v5279 = vpack.c.b16 %v5109, %v5107
        %v5280 = vpack.c.b16 %v5112, %v5110
        %v5281 = vpack.c.b16 %v5113, %v5111
        %v5282 = vpack.c.b16 %v5116, %v5114
        %v5283 = vpack.c.b16 %v5117, %v5115
        %v5284 = vpack.c.b16 %v5120, %v5118
        %v5285 = vpack.c.b16 %v5121, %v5119
        %v5286 = vpack.c.b16 %v5124, %v5122
        %v5287 = vpack.c.b16 %v5125, %v5123
        %v5288 = vpack.c.b16 %v5128, %v5126
        %v5289 = vpack.c.b16 %v5129, %v5127
        %v5290 = vpack.c.b16 %v5132, %v5130
        %v5291 = vpack.c.b16 %v5133, %v5131
        %v5292 = vpack.c.b16 %v5136, %v5134
        %v5293 = vpack.c.b16 %v5137, %v5135
        %v5294 = vpack.c.b16 %v5140, %v5138
        %v5295 = vpack.c.b16 %v5141, %v5139
        %v5296 = vpack.c.b16 %v5144, %v5142
        %v5297 = vpack.c.b16 %v5145, %v5143
        %v5298 = vpack.c.b16 %v5148, %v5146
        %v5299 = vpack.c.b16 %v5149, %v5147
        %v5300 = vpack.c.b16 %v5152, %v5150
        %v5301 = vpack.c.b16 %v5153, %v5151
        %v5302 = vpack.c.b16 %v5156, %v5154
        %v5303 = vpack.c.b16 %v5157, %v5155
        %v5304 = vpack.c.b16 %v5160, %v5158
        %v5305 = vpack.c.b16 %v5161, %v5159
        %v5306 = vpack.c.b16 %v5164, %v5162
        %v5307 = vpack.c.b16 %v5165, %v5163
        %v5308 = vpack.c.b16 %v5168, %v5166
        %v5309 = vpack.c.b16 %v5169, %v5167
        %v5310 = vpack.c.b16 %v5172, %v5170
        %v5311 = vpack.c.b16 %v5173, %v5171
        %v5312 = vpack.c.b16 %v5176, %v5174
        %v5313 = vpack.c.b16 %v5177, %v5175
        %v5314 = vpack.c.b16 %v5180, %v5178
        %v5315 = vpack.c.b16 %v5181, %v5179
        %v5316 = vpack.c.b16 %v5184, %v5182
        %v5317 = vpack.c.b16 %v5185, %v5183
        %v5318 = vpack.c.b16 %v5188, %v5186
        %v5319 = vpack.c.b16 %v5189, %v5187
        %v5320 = vpack.c.b16 %v5192, %v5190
        %v5321 = vpack.c.b16 %v5193, %v5191
        %v5322 = vpack.c.b16 %v5196, %v5194
        %v5323 = vpack.c.b16 %v5197, %v5195
        %v5324 = vpack.c.b16 %v5200, %v5198
        %v5325 = vpack.c.b16 %v5201, %v5199
        %v5326 = vpack.c.b16 %v5204, %v5202
        %v5327 = vpack.c.b16 %v5205, %v5203
        %v5328 = vpack.c.b16 %v5208, %v5206
        %v5329 = vpack.c.b16 %v5209, %v5207
        %v5330 = vpack.c.b16 %v5212, %v5210
        %v5331 = vpack.c.b16 %v5213, %v5211
        %v5332 = vpack.c.b16 %v5216, %v5214
        %v5333 = vpack.c.b16 %v5217, %v5215
        %v5334 = vpack.c.b16 %v5220, %v5218
        %v5335 = vpack.c.b16 %v5221, %v5219
        %v5336 = vpack.c.b16 %v5224, %v5222
        %v5337 = vpack.c.b16 %v5225, %v5223
        %v5338 = vpack.c.b16 %v5228, %v5226
        %v5339 = vpack.c.b16 %v5229, %v5227
        %v5340 = vpack.c.b16 %v5232, %v5230
        %v5341 = vpack.c.b16 %v5233, %v5231
        %v5342 = vpack.c.b16 %v5236, %v5234
        %v5343 = vpack.c.b16 %v5237, %v5235
        %v5344 = vpack.c.b16 %v5240, %v5238
        %v5345 = vpack.c.b16 %v5241, %v5239
        %v5346 = vpack.c.b16 %v5244, %v5242
        %v5347 = vpack.c.b16 %v5245, %v5243
        %v5348 = vpack.c.b16 %v5248, %v5246
        %v5349 = vpack.c.b16 %v5249, %v5247
        %v5350 = vpack.c.b16 %v5252, %v5250
        %v5351 = vpack.c.b16 %v5253, %v5251
        %v5352 = vpack.c.b16 %v5256, %v5254
        %v5353 = vpack.c.b16 %v5257, %v5255
        %5450 = vmatprep.subr.bf16.mxu0 %v5273
        %5451 = vmatpush1.bf16.msra.mxu0 %v5272
        %5452 = vmatprep.subr.bf16.mxu0 %v5271
        %5453 = vmatpush1.bf16.msra.mxu0 %v5270
        %5454 = vmatprep.subr.bf16.mxu0 %v5269
        %5455 = vmatpush1.bf16.msra.mxu0 %v5268
        %5456 = vmatprep.subr.bf16.mxu0 %v5267
        %5457 = vmatpush1.bf16.msra.mxu0 %v5266
        %5458 = vmatprep.subr.bf16.mxu0 %v5265
        %5459 = vmatpush1.bf16.msra.mxu0 %v5264
        %5460 = vmatprep.subr.bf16.mxu0 %v5263
        %5461 = vmatpush1.bf16.msra.mxu0 %v5262
        %5462 = vmatprep.subr.bf16.mxu0 %v5261
        %5463 = vmatpush1.bf16.msra.mxu0 %v5260
        %5464 = vmatprep.subr.bf16.mxu0 %v5259
        %5465 = vmatpush1.bf16.msra.mxu0 %v5258
        %5466 = vmatprep.subr.bf16.mxu0 %v5289
        %5467 = vmatpush2.bf16.msra.mxu0 %v5288
        %5468 = vmatprep.subr.bf16.mxu0 %v5287
        %5469 = vmatpush2.bf16.msra.mxu0 %v5286
        %5470 = vmatprep.subr.bf16.mxu0 %v5285
        %5471 = vmatpush2.bf16.msra.mxu0 %v5284
        %5472 = vmatprep.subr.bf16.mxu0 %v5283
        %5473 = vmatpush2.bf16.msra.mxu0 %v5282
        %5474 = vmatprep.subr.bf16.mxu0 %v5281
        %5475 = vmatpush2.bf16.msra.mxu0 %v5280
        %5476 = vmatprep.subr.bf16.mxu0 %v5279
        %5477 = vmatpush2.bf16.msra.mxu0 %v5278
        %5478 = vmatprep.subr.bf16.mxu0 %v5277
        %5479 = vmatpush2.bf16.msra.mxu0 %v5276
        %5480 = vmatprep.subr.bf16.mxu0 %v5275
        %5481 = vmatpush2.bf16.msra.mxu0 %v5274
        %5482 = vmatprep.mubr.bf16.mxu0 %v4266
        %5483 = vmatmul.mubr.bf16.gmra.mxu0 %v4265
        %v5484 = vpop.f32.mrf.mxu0
        %v5485 = vadd.f32 %v4956, %v5484
        %v5486 = vpop.f32.mrf.mxu0
        %v5487 = vadd.f32 %v4958, %v5486
        %v5488 = vpop.f32.mrf.mxu0
        %v5489 = vadd.f32 %v4960, %v5488
        %v5490 = vpop.f32.mrf.mxu0
        %v5491 = vadd.f32 %v4962, %v5490
        %5492 = vdwg.mxu0
        %5493 = vmatprep.subr.bf16.mxu0 %v5305
        %5494 = vmatpush1.bf16.msra.mxu0 %v5304
        %5495 = vmatprep.subr.bf16.mxu0 %v5303
        %5496 = vmatpush1.bf16.msra.mxu0 %v5302
        %5497 = vmatprep.subr.bf16.mxu0 %v5301
        %5498 = vmatpush1.bf16.msra.mxu0 %v5300
        %5499 = vmatprep.subr.bf16.mxu0 %v5299
        %5500 = vmatpush1.bf16.msra.mxu0 %v5298
        %5501 = vmatprep.subr.bf16.mxu0 %v5297
        %5502 = vmatpush1.bf16.msra.mxu0 %v5296
        %5503 = vmatprep.subr.bf16.mxu0 %v5295
        %5504 = vmatpush1.bf16.msra.mxu0 %v5294
        %5505 = vmatprep.subr.bf16.mxu0 %v5293
        %5506 = vmatpush1.bf16.msra.mxu0 %v5292
        %5507 = vmatprep.subr.bf16.mxu0 %v5291
        %5508 = vmatpush1.bf16.msra.mxu0 %v5290
        %5509 = vmatprep.subr.bf16.mxu0 %v5321
        %5510 = vmatpush2.bf16.msra.mxu0 %v5320
        %5511 = vmatprep.subr.bf16.mxu0 %v5319
        %5512 = vmatpush2.bf16.msra.mxu0 %v5318
        %5513 = vmatprep.subr.bf16.mxu0 %v5317
        %5514 = vmatpush2.bf16.msra.mxu0 %v5316
        %5515 = vmatprep.subr.bf16.mxu0 %v5315
        %5516 = vmatpush2.bf16.msra.mxu0 %v5314
        %5517 = vmatprep.subr.bf16.mxu0 %v5313
        %5518 = vmatpush2.bf16.msra.mxu0 %v5312
        %5519 = vmatprep.subr.bf16.mxu0 %v5311
        %5520 = vmatpush2.bf16.msra.mxu0 %v5310
        %5521 = vmatprep.subr.bf16.mxu0 %v5309
        %5522 = vmatpush2.bf16.msra.mxu0 %v5308
        %5523 = vmatprep.subr.bf16.mxu0 %v5307
        %5524 = vmatpush2.bf16.msra.mxu0 %v5306
        %5525 = vmatprep.mubr.bf16.mxu0 %v4268
        %5526 = vmatmul.mubr.bf16.gmra.mxu0 %v4267
        %v5527 = vpop.f32.mrf.mxu0
        %v5528 = vadd.f32 %v5485, %v5527
        %v5529 = vpop.f32.mrf.mxu0
        %v5530 = vadd.f32 %v5487, %v5529
        %v5531 = vpop.f32.mrf.mxu0
        %v5532 = vadd.f32 %v5489, %v5531
        %v5533 = vpop.f32.mrf.mxu0
        %v5534 = vadd.f32 %v5491, %v5533
        %5535 = vdwg.mxu0
        %5536 = vmatprep.subr.bf16.mxu0 %v5337
        %5537 = vmatpush1.bf16.msra.mxu0 %v5336
        %5538 = vmatprep.subr.bf16.mxu0 %v5335
        %5539 = vmatpush1.bf16.msra.mxu0 %v5334
        %5540 = vmatprep.subr.bf16.mxu0 %v5333
        %5541 = vmatpush1.bf16.msra.mxu0 %v5332
        %5542 = vmatprep.subr.bf16.mxu0 %v5331
        %5543 = vmatpush1.bf16.msra.mxu0 %v5330
        %5544 = vmatprep.subr.bf16.mxu0 %v5329
        %5545 = vmatpush1.bf16.msra.mxu0 %v5328
        %5546 = vmatprep.subr.bf16.mxu0 %v5327
        %5547 = vmatpush1.bf16.msra.mxu0 %v5326
        %5548 = vmatprep.subr.bf16.mxu0 %v5325
        %5549 = vmatpush1.bf16.msra.mxu0 %v5324
        %5550 = vmatprep.subr.bf16.mxu0 %v5323
        %5551 = vmatpush1.bf16.msra.mxu0 %v5322
        %5552 = vmatprep.subr.bf16.mxu0 %v5353
        %5553 = vmatpush2.bf16.msra.mxu0 %v5352
        %5554 = vmatprep.subr.bf16.mxu0 %v5351
        %5555 = vmatpush2.bf16.msra.mxu0 %v5350
        %5556 = vmatprep.subr.bf16.mxu0 %v5349
        %5557 = vmatpush2.bf16.msra.mxu0 %v5348
        %5558 = vmatprep.subr.bf16.mxu0 %v5347
        %5559 = vmatpush2.bf16.msra.mxu0 %v5346
        %5560 = vmatprep.subr.bf16.mxu0 %v5345
        %5561 = vmatpush2.bf16.msra.mxu0 %v5344
        %5562 = vmatprep.subr.bf16.mxu0 %v5343
        %5563 = vmatpush2.bf16.msra.mxu0 %v5342
        %5564 = vmatprep.subr.bf16.mxu0 %v5341
        %5565 = vmatpush2.bf16.msra.mxu0 %v5340
        %5566 = vmatprep.subr.bf16.mxu0 %v5339
        %5567 = vmatpush2.bf16.msra.mxu0 %v5338
        %5568 = vmatprep.mubr.bf16.mxu0 %v4270
        %5569 = vmatmul.mubr.bf16.gmra.mxu0 %v4269
        %v5570 = vpop.f32.mrf.mxu0
        %v5571 = vadd.f32 %v5528, %v5570
        %v5572 = vpop.f32.mrf.mxu0
        %v5573 = vadd.f32 %v5530, %v5572
        %v5574 = vpop.f32.mrf.mxu0
        %v5575 = vadd.f32 %v5532, %v5574
        %v5576 = vpop.f32.mrf.mxu0
        %v5577 = vadd.f32 %v5534, %v5576
        %5578 = vdwg.mxu0
        %v5579 = vld [vmem:[#allocation5] sm:$0xee]
        %v5580 = vld [vmem:[#allocation5 + $0x8] sm:$0xee]
        %v5581 = vld [vmem:[#allocation5 + $0x10] sm:$0xee]
        %s5582 = scalar_lea.vmem [#allocation27], 1536
        %v5583 = vld [vmem:[%s5582] sm:$0xff]
        %v5584 = vld [vmem:[%s5582 + $0x8] sm:$0xff]
        %v5585 = vld [vmem:[%s5582 + $0x10] sm:$0xff]
        %v5586 = vld [vmem:[%s5582 + $0x18] sm:$0xff]
        %v5587 = vld [vmem:[%s5582 + $0x20] sm:$0xff]
        %v5588 = vld [vmem:[%s5582 + $0x28] sm:$0xff]
        %v5589 = vld [vmem:[%s5582 + $0x30] sm:$0xff]
        %v5590 = vld [vmem:[%s5582 + $0x38] sm:$0xff]
        %v5591 = vld [vmem:[%s5582 + $0x40] sm:$0xff]
        %v5592 = vld [vmem:[%s5582 + $0x48] sm:$0xff]
        %v5593 = vld [vmem:[%s5582 + $0x50] sm:$0xff]
        %v5594 = vld [vmem:[%s5582 + $0x58] sm:$0xff]
        %v5595 = vld [vmem:[%s5582 + $0x60] sm:$0xff]
        %v5596 = vld [vmem:[%s5582 + $0x68] sm:$0xff]
        %v5597 = vld [vmem:[%s5582 + $0x70] sm:$0xff]
        %v5598 = vld [vmem:[%s5582 + $0x78] sm:$0xff]
        %v5599 = vld [vmem:[%s5582 + $0x80] sm:$0xff]
        %v5600 = vld [vmem:[%s5582 + $0x88] sm:$0xff]
        %v5601 = vld [vmem:[%s5582 + $0x90] sm:$0xff]
        %v5602 = vld [vmem:[%s5582 + $0x98] sm:$0xff]
        %v5603 = vld [vmem:[%s5582 + $0xa0] sm:$0xff]
        %v5604 = vld [vmem:[%s5582 + $0xa8] sm:$0xff]
        %v5605 = vld [vmem:[%s5582 + $0xb0] sm:$0xff]
        %v5606 = vld [vmem:[%s5582 + $0xb8] sm:$0xff]
        %v5607 = vld [vmem:[%s5582 + $0xc0] sm:$0xff]
        %v5608 = vld [vmem:[%s5582 + $0xc8] sm:$0xff]
        %v5609 = vld [vmem:[%s5582 + $0xd0] sm:$0xff]
        %v5610 = vld [vmem:[%s5582 + $0xd8] sm:$0xff]
        %v5611 = vld [vmem:[%s5582 + $0xe0] sm:$0xff]
        %v5612 = vld [vmem:[%s5582 + $0xe8] sm:$0xff]
        %v5613 = vld [vmem:[%s5582 + $0xf0] sm:$0xff]
        %v5614 = vld [vmem:[%s5582 + $0xf8] sm:$0xff]
        %v5615 = vld [vmem:[%s5582 + $0x100] sm:$0xff]
        %v5616 = vld [vmem:[%s5582 + $0x108] sm:$0xff]
        %v5617 = vld [vmem:[%s5582 + $0x110] sm:$0xff]
        %v5618 = vld [vmem:[%s5582 + $0x118] sm:$0xff]
        %v5619 = vld [vmem:[%s5582 + $0x120] sm:$0xff]
        %v5620 = vld [vmem:[%s5582 + $0x128] sm:$0xff]
        %v5621 = vld [vmem:[%s5582 + $0x130] sm:$0xff]
        %v5622 = vld [vmem:[%s5582 + $0x138] sm:$0xff]
        %v5623 = vld [vmem:[%s5582 + $0x140] sm:$0xff]
        %v5624 = vld [vmem:[%s5582 + $0x148] sm:$0xff]
        %v5625 = vld [vmem:[%s5582 + $0x150] sm:$0xff]
        %v5626 = vld [vmem:[%s5582 + $0x158] sm:$0xff]
        %v5627 = vld [vmem:[%s5582 + $0x160] sm:$0xff]
        %v5628 = vld [vmem:[%s5582 + $0x168] sm:$0xff]
        %v5629 = vld [vmem:[%s5582 + $0x170] sm:$0xff]
        %v5630 = vld [vmem:[%s5582 + $0x178] sm:$0xff]
        %v5631 = vld [vmem:[%s5582 + $0x180] sm:$0xff]
        %v5632 = vld [vmem:[%s5582 + $0x188] sm:$0xff]
        %v5633 = vld [vmem:[%s5582 + $0x190] sm:$0xff]
        %v5634 = vld [vmem:[%s5582 + $0x198] sm:$0xff]
        %v5635 = vld [vmem:[%s5582 + $0x1a0] sm:$0xff]
        %v5636 = vld [vmem:[%s5582 + $0x1a8] sm:$0xff]
        %v5637 = vld [vmem:[%s5582 + $0x1b0] sm:$0xff]
        %v5638 = vld [vmem:[%s5582 + $0x1b8] sm:$0xff]
        %v5639 = vld [vmem:[%s5582 + $0x1c0] sm:$0xff]
        %v5640 = vld [vmem:[%s5582 + $0x1c8] sm:$0xff]
        %v5641 = vld [vmem:[%s5582 + $0x1d0] sm:$0xff]
        %v5642 = vld [vmem:[%s5582 + $0x1d8] sm:$0xff]
        %v5643 = vld [vmem:[%s5582 + $0x1e0] sm:$0xff]
        %v5644 = vld [vmem:[%s5582 + $0x1e8] sm:$0xff]
        %v5645 = vld [vmem:[%s5582 + $0x1f0] sm:$0xff]
        %v5646 = vld [vmem:[%s5582 + $0x1f8] sm:$0xff]
        %v5647 = vld [vmem:[%s5582 + $0x200] sm:$0xff]
        %v5648 = vld [vmem:[%s5582 + $0x208] sm:$0xff]
        %v5649 = vld [vmem:[%s5582 + $0x210] sm:$0xff]
        %v5650 = vld [vmem:[%s5582 + $0x218] sm:$0xff]
        %v5651 = vld [vmem:[%s5582 + $0x220] sm:$0xff]
        %v5652 = vld [vmem:[%s5582 + $0x228] sm:$0xff]
        %v5653 = vld [vmem:[%s5582 + $0x230] sm:$0xff]
        %v5654 = vld [vmem:[%s5582 + $0x238] sm:$0xff]
        %v5655 = vld [vmem:[%s5582 + $0x240] sm:$0xff]
        %v5656 = vld [vmem:[%s5582 + $0x248] sm:$0xff]
        %v5657 = vld [vmem:[%s5582 + $0x250] sm:$0xff]
        %v5658 = vld [vmem:[%s5582 + $0x258] sm:$0xff]
        %v5659 = vld [vmem:[%s5582 + $0x260] sm:$0xff]
        %v5660 = vld [vmem:[%s5582 + $0x268] sm:$0xff]
        %v5661 = vld [vmem:[%s5582 + $0x270] sm:$0xff]
        %v5662 = vld [vmem:[%s5582 + $0x278] sm:$0xff]
        %v5663 = vld [vmem:[%s5582 + $0x280] sm:$0xff]
        %v5664 = vld [vmem:[%s5582 + $0x288] sm:$0xff]
        %v5665 = vld [vmem:[%s5582 + $0x290] sm:$0xff]
        %v5666 = vld [vmem:[%s5582 + $0x298] sm:$0xff]
        %v5667 = vld [vmem:[%s5582 + $0x2a0] sm:$0xff]
        %v5668 = vld [vmem:[%s5582 + $0x2a8] sm:$0xff]
        %v5669 = vld [vmem:[%s5582 + $0x2b0] sm:$0xff]
        %v5670 = vld [vmem:[%s5582 + $0x2b8] sm:$0xff]
        %v5671 = vld [vmem:[%s5582 + $0x2c0] sm:$0xff]
        %v5672 = vld [vmem:[%s5582 + $0x2c8] sm:$0xff]
        %v5673 = vld [vmem:[%s5582 + $0x2d0] sm:$0xff]
        %v5674 = vld [vmem:[%s5582 + $0x2d8] sm:$0xff]
        %v5675 = vld [vmem:[%s5582 + $0x2e0] sm:$0xff]
        %v5676 = vld [vmem:[%s5582 + $0x2e8] sm:$0xff]
        %v5677 = vld [vmem:[%s5582 + $0x2f0] sm:$0xff]
        %v5678 = vld [vmem:[%s5582 + $0x2f8] sm:$0xff]
        %v5682 = vunpack.c.l.b16 %v5579
        %v5683 = vunpack.c.h.b16 %v5579
        %v5684 = vunpack.c.l.b16 %v5580
        %v5685 = vunpack.c.h.b16 %v5580
        %v5686 = vunpack.c.l.b16 %v5581
        %v5687 = vunpack.c.h.b16 %v5581
        %v5688 = vpack.c.b16 %v4253, %v5682
        %v5689 = vpack.c.b16 %v4254, %v5683
        %v5690 = vpack.c.b16 %v4255, %v5684
        %v5691 = vpack.c.b16 %v4256, %v5685
        %v5692 = vpack.c.b16 %v4257, %v5686
        %v5693 = vpack.c.b16 %v4258, %v5687
        %v5694 = vrot.slane %v5688, 1
        %v5695 = vrot.slane %v4271, 1
        %v5696 = vsel %vm2020, %v5694, %v5695
        %v5697 = vrot.slane %v5689, 1
        %v5698 = vrot.slane %v4272, 1
        %v5699 = vsel %vm2020, %v5697, %v5698
        %v5700 = vrot.slane %v5690, 1
        %v5701 = vrot.slane %v4273, 1
        %v5702 = vsel %vm2020, %v5700, %v5701
        %v5703 = vrot.slane %v5691, 1
        %v5704 = vrot.slane %v4274, 1
        %v5705 = vsel %vm2020, %v5703, %v5704
        %v5706 = vrot.slane %v5692, 1
        %v5707 = vrot.slane %v4275, 1
        %v5708 = vsel %vm2020, %v5706, %v5707
        %v5709 = vrot.slane %v5693, 1
        %v5710 = vrot.slane %v4276, 1
        %v5711 = vsel %vm2020, %v5709, %v5710
        %v5814 = vunpack.c.l.b16 %v5583
        %v5815 = vunpack.c.h.b16 %v5583
        %v5816 = vunpack.c.l.b16 %v5584
        %v5817 = vunpack.c.h.b16 %v5584
        %v5818 = vunpack.c.l.b16 %v5585
        %v5819 = vunpack.c.h.b16 %v5585
        %v5820 = vunpack.c.l.b16 %v5586
        %v5821 = vunpack.c.h.b16 %v5586
        %v5822 = vunpack.c.l.b16 %v5587
        %v5823 = vunpack.c.h.b16 %v5587
        %v5824 = vunpack.c.l.b16 %v5588
        %v5825 = vunpack.c.h.b16 %v5588
        %v5826 = vunpack.c.l.b16 %v5589
        %v5827 = vunpack.c.h.b16 %v5589
        %v5828 = vunpack.c.l.b16 %v5590
        %v5829 = vunpack.c.h.b16 %v5590
        %v5830 = vunpack.c.l.b16 %v5591
        %v5831 = vunpack.c.h.b16 %v5591
        %v5832 = vunpack.c.l.b16 %v5592
        %v5833 = vunpack.c.h.b16 %v5592
        %v5834 = vunpack.c.l.b16 %v5593
        %v5835 = vunpack.c.h.b16 %v5593
        %v5836 = vunpack.c.l.b16 %v5594
        %v5837 = vunpack.c.h.b16 %v5594
        %v5838 = vunpack.c.l.b16 %v5595
        %v5839 = vunpack.c.h.b16 %v5595
        %v5840 = vunpack.c.l.b16 %v5596
        %v5841 = vunpack.c.h.b16 %v5596
        %v5842 = vunpack.c.l.b16 %v5597
        %v5843 = vunpack.c.h.b16 %v5597
        %v5844 = vunpack.c.l.b16 %v5598
        %v5845 = vunpack.c.h.b16 %v5598
        %v5846 = vunpack.c.l.b16 %v5599
        %v5847 = vunpack.c.h.b16 %v5599
        %v5848 = vunpack.c.l.b16 %v5600
        %v5849 = vunpack.c.h.b16 %v5600
        %v5850 = vunpack.c.l.b16 %v5601
        %v5851 = vunpack.c.h.b16 %v5601
        %v5852 = vunpack.c.l.b16 %v5602
        %v5853 = vunpack.c.h.b16 %v5602
        %v5854 = vunpack.c.l.b16 %v5603
        %v5855 = vunpack.c.h.b16 %v5603
        %v5856 = vunpack.c.l.b16 %v5604
        %v5857 = vunpack.c.h.b16 %v5604
        %v5858 = vunpack.c.l.b16 %v5605
        %v5859 = vunpack.c.h.b16 %v5605
        %v5860 = vunpack.c.l.b16 %v5606
        %v5861 = vunpack.c.h.b16 %v5606
        %v5862 = vunpack.c.l.b16 %v5607
        %v5863 = vunpack.c.h.b16 %v5607
        %v5864 = vunpack.c.l.b16 %v5608
        %v5865 = vunpack.c.h.b16 %v5608
        %v5866 = vunpack.c.l.b16 %v5609
        %v5867 = vunpack.c.h.b16 %v5609
        %v5868 = vunpack.c.l.b16 %v5610
        %v5869 = vunpack.c.h.b16 %v5610
        %v5870 = vunpack.c.l.b16 %v5611
        %v5871 = vunpack.c.h.b16 %v5611
        %v5872 = vunpack.c.l.b16 %v5612
        %v5873 = vunpack.c.h.b16 %v5612
        %v5874 = vunpack.c.l.b16 %v5613
        %v5875 = vunpack.c.h.b16 %v5613
        %v5876 = vunpack.c.l.b16 %v5614
        %v5877 = vunpack.c.h.b16 %v5614
        %v5878 = vunpack.c.l.b16 %v5615
        %v5879 = vunpack.c.h.b16 %v5615
        %v5880 = vunpack.c.l.b16 %v5616
        %v5881 = vunpack.c.h.b16 %v5616
        %v5882 = vunpack.c.l.b16 %v5617
        %v5883 = vunpack.c.h.b16 %v5617
        %v5884 = vunpack.c.l.b16 %v5618
        %v5885 = vunpack.c.h.b16 %v5618
        %v5886 = vunpack.c.l.b16 %v5619
        %v5887 = vunpack.c.h.b16 %v5619
        %v5888 = vunpack.c.l.b16 %v5620
        %v5889 = vunpack.c.h.b16 %v5620
        %v5890 = vunpack.c.l.b16 %v5621
        %v5891 = vunpack.c.h.b16 %v5621
        %v5892 = vunpack.c.l.b16 %v5622
        %v5893 = vunpack.c.h.b16 %v5622
        %v5894 = vunpack.c.l.b16 %v5623
        %v5895 = vunpack.c.h.b16 %v5623
        %v5896 = vunpack.c.l.b16 %v5624
        %v5897 = vunpack.c.h.b16 %v5624
        %v5898 = vunpack.c.l.b16 %v5625
        %v5899 = vunpack.c.h.b16 %v5625
        %v5900 = vunpack.c.l.b16 %v5626
        %v5901 = vunpack.c.h.b16 %v5626
        %v5902 = vunpack.c.l.b16 %v5627
        %v5903 = vunpack.c.h.b16 %v5627
        %v5904 = vunpack.c.l.b16 %v5628
        %v5905 = vunpack.c.h.b16 %v5628
        %v5906 = vunpack.c.l.b16 %v5629
        %v5907 = vunpack.c.h.b16 %v5629
        %v5908 = vunpack.c.l.b16 %v5630
        %v5909 = vunpack.c.h.b16 %v5630
        %v5910 = vunpack.c.l.b16 %v5631
        %v5911 = vunpack.c.h.b16 %v5631
        %v5912 = vunpack.c.l.b16 %v5632
        %v5913 = vunpack.c.h.b16 %v5632
        %v5914 = vunpack.c.l.b16 %v5633
        %v5915 = vunpack.c.h.b16 %v5633
        %v5916 = vunpack.c.l.b16 %v5634
        %v5917 = vunpack.c.h.b16 %v5634
        %v5918 = vunpack.c.l.b16 %v5635
        %v5919 = vunpack.c.h.b16 %v5635
        %v5920 = vunpack.c.l.b16 %v5636
        %v5921 = vunpack.c.h.b16 %v5636
        %v5922 = vunpack.c.l.b16 %v5637
        %v5923 = vunpack.c.h.b16 %v5637
        %v5924 = vunpack.c.l.b16 %v5638
        %v5925 = vunpack.c.h.b16 %v5638
        %v5926 = vunpack.c.l.b16 %v5639
        %v5927 = vunpack.c.h.b16 %v5639
        %v5928 = vunpack.c.l.b16 %v5640
        %v5929 = vunpack.c.h.b16 %v5640
        %v5930 = vunpack.c.l.b16 %v5641
        %v5931 = vunpack.c.h.b16 %v5641
        %v5932 = vunpack.c.l.b16 %v5642
        %v5933 = vunpack.c.h.b16 %v5642
        %v5934 = vunpack.c.l.b16 %v5643
        %v5935 = vunpack.c.h.b16 %v5643
        %v5936 = vunpack.c.l.b16 %v5644
        %v5937 = vunpack.c.h.b16 %v5644
        %v5938 = vunpack.c.l.b16 %v5645
        %v5939 = vunpack.c.h.b16 %v5645
        %v5940 = vunpack.c.l.b16 %v5646
        %v5941 = vunpack.c.h.b16 %v5646
        %v5942 = vunpack.c.l.b16 %v5647
        %v5943 = vunpack.c.h.b16 %v5647
        %v5944 = vunpack.c.l.b16 %v5648
        %v5945 = vunpack.c.h.b16 %v5648
        %v5946 = vunpack.c.l.b16 %v5649
        %v5947 = vunpack.c.h.b16 %v5649
        %v5948 = vunpack.c.l.b16 %v5650
        %v5949 = vunpack.c.h.b16 %v5650
        %v5950 = vunpack.c.l.b16 %v5651
        %v5951 = vunpack.c.h.b16 %v5651
        %v5952 = vunpack.c.l.b16 %v5652
        %v5953 = vunpack.c.h.b16 %v5652
        %v5954 = vunpack.c.l.b16 %v5653
        %v5955 = vunpack.c.h.b16 %v5653
        %v5956 = vunpack.c.l.b16 %v5654
        %v5957 = vunpack.c.h.b16 %v5654
        %v5958 = vunpack.c.l.b16 %v5655
        %v5959 = vunpack.c.h.b16 %v5655
        %v5960 = vunpack.c.l.b16 %v5656
        %v5961 = vunpack.c.h.b16 %v5656
        %v5962 = vunpack.c.l.b16 %v5657
        %v5963 = vunpack.c.h.b16 %v5657
        %v5964 = vunpack.c.l.b16 %v5658
        %v5965 = vunpack.c.h.b16 %v5658
        %v5966 = vunpack.c.l.b16 %v5659
        %v5967 = vunpack.c.h.b16 %v5659
        %v5968 = vunpack.c.l.b16 %v5660
        %v5969 = vunpack.c.h.b16 %v5660
        %v5970 = vunpack.c.l.b16 %v5661
        %v5971 = vunpack.c.h.b16 %v5661
        %v5972 = vunpack.c.l.b16 %v5662
        %v5973 = vunpack.c.h.b16 %v5662
        %v5974 = vunpack.c.l.b16 %v5663
        %v5975 = vunpack.c.h.b16 %v5663
        %v5976 = vunpack.c.l.b16 %v5664
        %v5977 = vunpack.c.h.b16 %v5664
        %v5978 = vunpack.c.l.b16 %v5665
        %v5979 = vunpack.c.h.b16 %v5665
        %v5980 = vunpack.c.l.b16 %v5666
        %v5981 = vunpack.c.h.b16 %v5666
        %v5982 = vunpack.c.l.b16 %v5667
        %v5983 = vunpack.c.h.b16 %v5667
        %v5984 = vunpack.c.l.b16 %v5668
        %v5985 = vunpack.c.h.b16 %v5668
        %v5986 = vunpack.c.l.b16 %v5669
        %v5987 = vunpack.c.h.b16 %v5669
        %v5988 = vunpack.c.l.b16 %v5670
        %v5989 = vunpack.c.h.b16 %v5670
        %v5990 = vunpack.c.l.b16 %v5671
        %v5991 = vunpack.c.h.b16 %v5671
        %v5992 = vunpack.c.l.b16 %v5672
        %v5993 = vunpack.c.h.b16 %v5672
        %v5994 = vunpack.c.l.b16 %v5673
        %v5995 = vunpack.c.h.b16 %v5673
        %v5996 = vunpack.c.l.b16 %v5674
        %v5997 = vunpack.c.h.b16 %v5674
        %v5998 = vunpack.c.l.b16 %v5675
        %v5999 = vunpack.c.h.b16 %v5675
        %v6000 = vunpack.c.l.b16 %v5676
        %v6001 = vunpack.c.h.b16 %v5676
        %v6002 = vunpack.c.l.b16 %v5677
        %v6003 = vunpack.c.h.b16 %v5677
        %v6004 = vunpack.c.l.b16 %v5678
        %v6005 = vunpack.c.h.b16 %v5678
        %v6006 = vpack.c.b16 %v5816, %v5814
        %v6007 = vpack.c.b16 %v5817, %v5815
        %v6008 = vpack.c.b16 %v5820, %v5818
        %v6009 = vpack.c.b16 %v5821, %v5819
        %v6010 = vpack.c.b16 %v5824, %v5822
        %v6011 = vpack.c.b16 %v5825, %v5823
        %v6012 = vpack.c.b16 %v5828, %v5826
        %v6013 = vpack.c.b16 %v5829, %v5827
        %v6014 = vpack.c.b16 %v5832, %v5830
        %v6015 = vpack.c.b16 %v5833, %v5831
        %v6016 = vpack.c.b16 %v5836, %v5834
        %v6017 = vpack.c.b16 %v5837, %v5835
        %v6018 = vpack.c.b16 %v5840, %v5838
        %v6019 = vpack.c.b16 %v5841, %v5839
        %v6020 = vpack.c.b16 %v5844, %v5842
        %v6021 = vpack.c.b16 %v5845, %v5843
        %v6022 = vpack.c.b16 %v5848, %v5846
        %v6023 = vpack.c.b16 %v5849, %v5847
        %v6024 = vpack.c.b16 %v5852, %v5850
        %v6025 = vpack.c.b16 %v5853, %v5851
        %v6026 = vpack.c.b16 %v5856, %v5854
        %v6027 = vpack.c.b16 %v5857, %v5855
        %v6028 = vpack.c.b16 %v5860, %v5858
        %v6029 = vpack.c.b16 %v5861, %v5859
        %v6030 = vpack.c.b16 %v5864, %v5862
        %v6031 = vpack.c.b16 %v5865, %v5863
        %v6032 = vpack.c.b16 %v5868, %v5866
        %v6033 = vpack.c.b16 %v5869, %v5867
        %v6034 = vpack.c.b16 %v5872, %v5870
        %v6035 = vpack.c.b16 %v5873, %v5871
        %v6036 = vpack.c.b16 %v5876, %v5874
        %v6037 = vpack.c.b16 %v5877, %v5875
        %v6038 = vpack.c.b16 %v5880, %v5878
        %v6039 = vpack.c.b16 %v5881, %v5879
        %v6040 = vpack.c.b16 %v5884, %v5882
        %v6041 = vpack.c.b16 %v5885, %v5883
        %v6042 = vpack.c.b16 %v5888, %v5886
        %v6043 = vpack.c.b16 %v5889, %v5887
        %v6044 = vpack.c.b16 %v5892, %v5890
        %v6045 = vpack.c.b16 %v5893, %v5891
        %v6046 = vpack.c.b16 %v5896, %v5894
        %v6047 = vpack.c.b16 %v5897, %v5895
        %v6048 = vpack.c.b16 %v5900, %v5898
        %v6049 = vpack.c.b16 %v5901, %v5899
        %v6050 = vpack.c.b16 %v5904, %v5902
        %v6051 = vpack.c.b16 %v5905, %v5903
        %v6052 = vpack.c.b16 %v5908, %v5906
        %v6053 = vpack.c.b16 %v5909, %v5907
        %v6054 = vpack.c.b16 %v5912, %v5910
        %v6055 = vpack.c.b16 %v5913, %v5911
        %v6056 = vpack.c.b16 %v5916, %v5914
        %v6057 = vpack.c.b16 %v5917, %v5915
        %v6058 = vpack.c.b16 %v5920, %v5918
        %v6059 = vpack.c.b16 %v5921, %v5919
        %v6060 = vpack.c.b16 %v5924, %v5922
        %v6061 = vpack.c.b16 %v5925, %v5923
        %v6062 = vpack.c.b16 %v5928, %v5926
        %v6063 = vpack.c.b16 %v5929, %v5927
        %v6064 = vpack.c.b16 %v5932, %v5930
        %v6065 = vpack.c.b16 %v5933, %v5931
        %v6066 = vpack.c.b16 %v5936, %v5934
        %v6067 = vpack.c.b16 %v5937, %v5935
        %v6068 = vpack.c.b16 %v5940, %v5938
        %v6069 = vpack.c.b16 %v5941, %v5939
        %v6070 = vpack.c.b16 %v5944, %v5942
        %v6071 = vpack.c.b16 %v5945, %v5943
        %v6072 = vpack.c.b16 %v5948, %v5946
        %v6073 = vpack.c.b16 %v5949, %v5947
        %v6074 = vpack.c.b16 %v5952, %v5950
        %v6075 = vpack.c.b16 %v5953, %v5951
        %v6076 = vpack.c.b16 %v5956, %v5954
        %v6077 = vpack.c.b16 %v5957, %v5955
        %v6078 = vpack.c.b16 %v5960, %v5958
        %v6079 = vpack.c.b16 %v5961, %v5959
        %v6080 = vpack.c.b16 %v5964, %v5962
        %v6081 = vpack.c.b16 %v5965, %v5963
        %v6082 = vpack.c.b16 %v5968, %v5966
        %v6083 = vpack.c.b16 %v5969, %v5967
        %v6084 = vpack.c.b16 %v5972, %v5970
        %v6085 = vpack.c.b16 %v5973, %v5971
        %v6086 = vpack.c.b16 %v5976, %v5974
        %v6087 = vpack.c.b16 %v5977, %v5975
        %v6088 = vpack.c.b16 %v5980, %v5978
        %v6089 = vpack.c.b16 %v5981, %v5979
        %v6090 = vpack.c.b16 %v5984, %v5982
        %v6091 = vpack.c.b16 %v5985, %v5983
        %v6092 = vpack.c.b16 %v5988, %v5986
        %v6093 = vpack.c.b16 %v5989, %v5987
        %v6094 = vpack.c.b16 %v5992, %v5990
        %v6095 = vpack.c.b16 %v5993, %v5991
        %v6096 = vpack.c.b16 %v5996, %v5994
        %v6097 = vpack.c.b16 %v5997, %v5995
        %v6098 = vpack.c.b16 %v6000, %v5998
        %v6099 = vpack.c.b16 %v6001, %v5999
        %v6100 = vpack.c.b16 %v6004, %v6002
        %v6101 = vpack.c.b16 %v6005, %v6003
        %6198 = vmatprep.subr.bf16.mxu0 %v6021
        %6199 = vmatpush1.bf16.msra.mxu0 %v6020
        %6200 = vmatprep.subr.bf16.mxu0 %v6019
        %6201 = vmatpush1.bf16.msra.mxu0 %v6018
        %6202 = vmatprep.subr.bf16.mxu0 %v6017
        %6203 = vmatpush1.bf16.msra.mxu0 %v6016
        %6204 = vmatprep.subr.bf16.mxu0 %v6015
        %6205 = vmatpush1.bf16.msra.mxu0 %v6014
        %6206 = vmatprep.subr.bf16.mxu0 %v6013
        %6207 = vmatpush1.bf16.msra.mxu0 %v6012
        %6208 = vmatprep.subr.bf16.mxu0 %v6011
        %6209 = vmatpush1.bf16.msra.mxu0 %v6010
        %6210 = vmatprep.subr.bf16.mxu0 %v6009
        %6211 = vmatpush1.bf16.msra.mxu0 %v6008
        %6212 = vmatprep.subr.bf16.mxu0 %v6007
        %6213 = vmatpush1.bf16.msra.mxu0 %v6006
        %6214 = vmatprep.subr.bf16.mxu0 %v6037
        %6215 = vmatpush2.bf16.msra.mxu0 %v6036
        %6216 = vmatprep.subr.bf16.mxu0 %v6035
        %6217 = vmatpush2.bf16.msra.mxu0 %v6034
        %6218 = vmatprep.subr.bf16.mxu0 %v6033
        %6219 = vmatpush2.bf16.msra.mxu0 %v6032
        %6220 = vmatprep.subr.bf16.mxu0 %v6031
        %6221 = vmatpush2.bf16.msra.mxu0 %v6030
        %6222 = vmatprep.subr.bf16.mxu0 %v6029
        %6223 = vmatpush2.bf16.msra.mxu0 %v6028
        %6224 = vmatprep.subr.bf16.mxu0 %v6027
        %6225 = vmatpush2.bf16.msra.mxu0 %v6026
        %6226 = vmatprep.subr.bf16.mxu0 %v6025
        %6227 = vmatpush2.bf16.msra.mxu0 %v6024
        %6228 = vmatprep.subr.bf16.mxu0 %v6023
        %6229 = vmatpush2.bf16.msra.mxu0 %v6022
        %6230 = vmatprep.mubr.bf16.mxu0 %v5699
        %6231 = vmatmul.mubr.bf16.gmra.mxu0 %v5696
        %v6232 = vpop.f32.mrf.mxu0
        %v6233 = vadd.f32 0.0, %v6232
        %v6234 = vpop.f32.mrf.mxu0
        %v6235 = vadd.f32 0.0, %v6234
        %v6236 = vpop.f32.mrf.mxu0
        %v6237 = vadd.f32 0.0, %v6236
        %v6238 = vpop.f32.mrf.mxu0
        %v6239 = vadd.f32 0.0, %v6238
        %6240 = vdwg.mxu0
        %6241 = vmatprep.subr.bf16.mxu0 %v6053
        %6242 = vmatpush1.bf16.msra.mxu0 %v6052
        %6243 = vmatprep.subr.bf16.mxu0 %v6051
        %6244 = vmatpush1.bf16.msra.mxu0 %v6050
        %6245 = vmatprep.subr.bf16.mxu0 %v6049
        %6246 = vmatpush1.bf16.msra.mxu0 %v6048
        %6247 = vmatprep.subr.bf16.mxu0 %v6047
        %6248 = vmatpush1.bf16.msra.mxu0 %v6046
        %6249 = vmatprep.subr.bf16.mxu0 %v6045
        %6250 = vmatpush1.bf16.msra.mxu0 %v6044
        %6251 = vmatprep.subr.bf16.mxu0 %v6043
        %6252 = vmatpush1.bf16.msra.mxu0 %v6042
        %6253 = vmatprep.subr.bf16.mxu0 %v6041
        %6254 = vmatpush1.bf16.msra.mxu0 %v6040
        %6255 = vmatprep.subr.bf16.mxu0 %v6039
        %6256 = vmatpush1.bf16.msra.mxu0 %v6038
        %6257 = vmatprep.subr.bf16.mxu0 %v6069
        %6258 = vmatpush2.bf16.msra.mxu0 %v6068
        %6259 = vmatprep.subr.bf16.mxu0 %v6067
        %6260 = vmatpush2.bf16.msra.mxu0 %v6066
        %6261 = vmatprep.subr.bf16.mxu0 %v6065
        %6262 = vmatpush2.bf16.msra.mxu0 %v6064
        %6263 = vmatprep.subr.bf16.mxu0 %v6063
        %6264 = vmatpush2.bf16.msra.mxu0 %v6062
        %6265 = vmatprep.subr.bf16.mxu0 %v6061
        %6266 = vmatpush2.bf16.msra.mxu0 %v6060
        %6267 = vmatprep.subr.bf16.mxu0 %v6059
        %6268 = vmatpush2.bf16.msra.mxu0 %v6058
        %6269 = vmatprep.subr.bf16.mxu0 %v6057
        %6270 = vmatpush2.bf16.msra.mxu0 %v6056
        %6271 = vmatprep.subr.bf16.mxu0 %v6055
        %6272 = vmatpush2.bf16.msra.mxu0 %v6054
        %6273 = vmatprep.mubr.bf16.mxu0 %v5705
        %6274 = vmatmul.mubr.bf16.gmra.mxu0 %v5702
        %v6275 = vpop.f32.mrf.mxu0
        %v6276 = vadd.f32 %v6233, %v6275
        %v6277 = vpop.f32.mrf.mxu0
        %v6278 = vadd.f32 %v6235, %v6277
        %v6279 = vpop.f32.mrf.mxu0
        %v6280 = vadd.f32 %v6237, %v6279
        %v6281 = vpop.f32.mrf.mxu0
        %v6282 = vadd.f32 %v6239, %v6281
        %6283 = vdwg.mxu0
        %6284 = vmatprep.subr.bf16.mxu0 %v6085
        %6285 = vmatpush1.bf16.msra.mxu0 %v6084
        %6286 = vmatprep.subr.bf16.mxu0 %v6083
        %6287 = vmatpush1.bf16.msra.mxu0 %v6082
        %6288 = vmatprep.subr.bf16.mxu0 %v6081
        %6289 = vmatpush1.bf16.msra.mxu0 %v6080
        %6290 = vmatprep.subr.bf16.mxu0 %v6079
        %6291 = vmatpush1.bf16.msra.mxu0 %v6078
        %6292 = vmatprep.subr.bf16.mxu0 %v6077
        %6293 = vmatpush1.bf16.msra.mxu0 %v6076
        %6294 = vmatprep.subr.bf16.mxu0 %v6075
        %6295 = vmatpush1.bf16.msra.mxu0 %v6074
        %6296 = vmatprep.subr.bf16.mxu0 %v6073
        %6297 = vmatpush1.bf16.msra.mxu0 %v6072
        %6298 = vmatprep.subr.bf16.mxu0 %v6071
        %6299 = vmatpush1.bf16.msra.mxu0 %v6070
        %6300 = vmatprep.subr.bf16.mxu0 %v6101
        %6301 = vmatpush2.bf16.msra.mxu0 %v6100
        %6302 = vmatprep.subr.bf16.mxu0 %v6099
        %6303 = vmatpush2.bf16.msra.mxu0 %v6098
        %6304 = vmatprep.subr.bf16.mxu0 %v6097
        %6305 = vmatpush2.bf16.msra.mxu0 %v6096
        %6306 = vmatprep.subr.bf16.mxu0 %v6095
        %6307 = vmatpush2.bf16.msra.mxu0 %v6094
        %6308 = vmatprep.subr.bf16.mxu0 %v6093
        %6309 = vmatpush2.bf16.msra.mxu0 %v6092
        %6310 = vmatprep.subr.bf16.mxu0 %v6091
        %6311 = vmatpush2.bf16.msra.mxu0 %v6090
        %6312 = vmatprep.subr.bf16.mxu0 %v6089
        %6313 = vmatpush2.bf16.msra.mxu0 %v6088
        %6314 = vmatprep.subr.bf16.mxu0 %v6087
        %6315 = vmatpush2.bf16.msra.mxu0 %v6086
        %6316 = vmatprep.mubr.bf16.mxu0 %v5711
        %6317 = vmatmul.mubr.bf16.gmra.mxu0 %v5708
        %v6318 = vpop.f32.mrf.mxu0
        %v6319 = vadd.f32 %v6276, %v6318
        %v6320 = vpop.f32.mrf.mxu0
        %v6321 = vadd.f32 %v6278, %v6320
        %v6322 = vpop.f32.mrf.mxu0
        %v6323 = vadd.f32 %v6280, %v6322
        %v6324 = vpop.f32.mrf.mxu0
        %v6325 = vadd.f32 %v6282, %v6324
        %6326 = vdwg.mxu0
        %v6327 = vadd.f32 %v5571, %v6319
        %v6328 = vadd.f32 %v5573, %v6321
        %v6329 = vadd.f32 %v5575, %v6323
        %v6330 = vadd.f32 %v5577, %v6325
        %v6331 = vld [vmem:[#allocation29] sm:$0x3]
        %v6333 = vlaneseq
        %v6334 = vshrl.u32 %v6333, 7
        %v6335 = vsub.s32 0, %v6334
        %v6336 = vrot.slane %v6331, %v6335
        %v6337 = vlaneseq
        %v6338 = vshrl.u32 %v6337, 7
        %v6339 = vsub.s32 1, %v6338
        %v6340 = vrot.slane %v6331, %v6339
        %v6343 = vmul.f32 %v6327, %v6336
        %v6344 = vmul.f32 %v6328, %v6340
        %v6345 = vmul.f32 %v6329, %v6336
        %v6346 = vmul.f32 %v6330, %v6340
        %v6347 = vld [vmem:[#allocation30] sm:$0x3]
        %v6349 = vlaneseq
        %v6350 = vshrl.u32 %v6349, 7
        %v6351 = vsub.s32 0, %v6350
        %v6352 = vrot.slane %v6347, %v6351
        %v6353 = vlaneseq
        %v6354 = vshrl.u32 %v6353, 7
        %v6355 = vsub.s32 1, %v6354
        %v6356 = vrot.slane %v6347, %v6355
        %v6359 = vadd.f32 %v6343, %v6352
        %v6360 = vadd.f32 %v6344, %v6356
        %v6361 = vadd.f32 %v6345, %v6352
        %v6362 = vadd.f32 %v6346, %v6356
        %v6363 = vmax.f32 %v6359, 0.0
        %v6364 = vmax.f32 %v6360, 0.0
        %v6365 = vmax.f32 %v6361, 0.0
        %v6366 = vmax.f32 %v6362, 0.0
        %v6367 = vld [vmem:[%s794] sm:$0xff]
        %v6368 = vld [vmem:[%s794 + $0x8] sm:$0xff]
        %v6369 = vunpack.c.l.bf16 %v6367
        %v6370 = vunpack.c.h.bf16 %v6367
        %v6371 = vunpack.c.l.bf16 %v6368
        %v6372 = vunpack.c.h.bf16 %v6368
        %v6373 = vadd.f32 %v6363, %v6369
        %v6374 = vadd.f32 %v6364, %v6370
        %v6375 = vadd.f32 %v6365, %v6371
        %v6376 = vadd.f32 %v6366, %v6372
        %v6377 = vpack.c.bf16 %v6375, %v6373
        %v6378 = vpack.c.bf16 %v6376, %v6374
        %v6379 = vld [vmem:[#allocation32] sm:$0xff]
        %v6380 = vld [vmem:[#allocation32 + $0x8] sm:$0xff]
        %v6381 = vld [vmem:[#allocation32 + $0x10] sm:$0xff]
        %v6382 = vld [vmem:[#allocation32 + $0x18] sm:$0xff]
        %v6383 = vld [vmem:[#allocation32 + $0x20] sm:$0xff]
        %v6384 = vld [vmem:[#allocation32 + $0x28] sm:$0xff]
        %v6385 = vld [vmem:[#allocation32 + $0x30] sm:$0xff]
        %v6386 = vld [vmem:[#allocation32 + $0x38] sm:$0xff]
        %v6387 = vld [vmem:[#allocation32 + $0x40] sm:$0xff]
        %v6388 = vld [vmem:[#allocation32 + $0x48] sm:$0xff]
        %v6389 = vld [vmem:[#allocation32 + $0x50] sm:$0xff]
        %v6390 = vld [vmem:[#allocation32 + $0x58] sm:$0xff]
        %v6391 = vld [vmem:[#allocation32 + $0x60] sm:$0xff]
        %v6392 = vld [vmem:[#allocation32 + $0x68] sm:$0xff]
        %v6393 = vld [vmem:[#allocation32 + $0x70] sm:$0xff]
        %v6394 = vld [vmem:[#allocation32 + $0x78] sm:$0xff]
        %v6395 = vld [vmem:[#allocation32 + $0x80] sm:$0xff]
        %v6396 = vld [vmem:[#allocation32 + $0x88] sm:$0xff]
        %v6397 = vld [vmem:[#allocation32 + $0x90] sm:$0xff]
        %v6398 = vld [vmem:[#allocation32 + $0x98] sm:$0xff]
        %v6399 = vld [vmem:[#allocation32 + $0xa0] sm:$0xff]
        %v6400 = vld [vmem:[#allocation32 + $0xa8] sm:$0xff]
        %v6401 = vld [vmem:[#allocation32 + $0xb0] sm:$0xff]
        %v6402 = vld [vmem:[#allocation32 + $0xb8] sm:$0xff]
        %v6403 = vld [vmem:[#allocation32 + $0xc0] sm:$0xff]
        %v6404 = vld [vmem:[#allocation32 + $0xc8] sm:$0xff]
        %v6405 = vld [vmem:[#allocation32 + $0xd0] sm:$0xff]
        %v6406 = vld [vmem:[#allocation32 + $0xd8] sm:$0xff]
        %v6407 = vld [vmem:[#allocation32 + $0xe0] sm:$0xff]
        %v6408 = vld [vmem:[#allocation32 + $0xe8] sm:$0xff]
        %v6409 = vld [vmem:[#allocation32 + $0xf0] sm:$0xff]
        %v6410 = vld [vmem:[#allocation32 + $0xf8] sm:$0xff]
        %v6443 = vunpack.c.l.b16 %v6379
        %v6444 = vunpack.c.h.b16 %v6379
        %v6445 = vunpack.c.l.b16 %v6380
        %v6446 = vunpack.c.h.b16 %v6380
        %v6447 = vunpack.c.l.b16 %v6381
        %v6448 = vunpack.c.h.b16 %v6381
        %v6449 = vunpack.c.l.b16 %v6382
        %v6450 = vunpack.c.h.b16 %v6382
        %v6451 = vunpack.c.l.b16 %v6383
        %v6452 = vunpack.c.h.b16 %v6383
        %v6453 = vunpack.c.l.b16 %v6384
        %v6454 = vunpack.c.h.b16 %v6384
        %v6455 = vunpack.c.l.b16 %v6385
        %v6456 = vunpack.c.h.b16 %v6385
        %v6457 = vunpack.c.l.b16 %v6386
        %v6458 = vunpack.c.h.b16 %v6386
        %v6459 = vunpack.c.l.b16 %v6387
        %v6460 = vunpack.c.h.b16 %v6387
        %v6461 = vunpack.c.l.b16 %v6388
        %v6462 = vunpack.c.h.b16 %v6388
        %v6463 = vunpack.c.l.b16 %v6389
        %v6464 = vunpack.c.h.b16 %v6389
        %v6465 = vunpack.c.l.b16 %v6390
        %v6466 = vunpack.c.h.b16 %v6390
        %v6467 = vunpack.c.l.b16 %v6391
        %v6468 = vunpack.c.h.b16 %v6391
        %v6469 = vunpack.c.l.b16 %v6392
        %v6470 = vunpack.c.h.b16 %v6392
        %v6471 = vunpack.c.l.b16 %v6393
        %v6472 = vunpack.c.h.b16 %v6393
        %v6473 = vunpack.c.l.b16 %v6394
        %v6474 = vunpack.c.h.b16 %v6394
        %v6475 = vunpack.c.l.b16 %v6395
        %v6476 = vunpack.c.h.b16 %v6395
        %v6477 = vunpack.c.l.b16 %v6396
        %v6478 = vunpack.c.h.b16 %v6396
        %v6479 = vunpack.c.l.b16 %v6397
        %v6480 = vunpack.c.h.b16 %v6397
        %v6481 = vunpack.c.l.b16 %v6398
        %v6482 = vunpack.c.h.b16 %v6398
        %v6483 = vunpack.c.l.b16 %v6399
        %v6484 = vunpack.c.h.b16 %v6399
        %v6485 = vunpack.c.l.b16 %v6400
        %v6486 = vunpack.c.h.b16 %v6400
        %v6487 = vunpack.c.l.b16 %v6401
        %v6488 = vunpack.c.h.b16 %v6401
        %v6489 = vunpack.c.l.b16 %v6402
        %v6490 = vunpack.c.h.b16 %v6402
        %v6491 = vunpack.c.l.b16 %v6403
        %v6492 = vunpack.c.h.b16 %v6403
        %v6493 = vunpack.c.l.b16 %v6404
        %v6494 = vunpack.c.h.b16 %v6404
        %v6495 = vunpack.c.l.b16 %v6405
        %v6496 = vunpack.c.h.b16 %v6405
        %v6497 = vunpack.c.l.b16 %v6406
        %v6498 = vunpack.c.h.b16 %v6406
        %v6499 = vunpack.c.l.b16 %v6407
        %v6500 = vunpack.c.h.b16 %v6407
        %v6501 = vunpack.c.l.b16 %v6408
        %v6502 = vunpack.c.h.b16 %v6408
        %v6503 = vunpack.c.l.b16 %v6409
        %v6504 = vunpack.c.h.b16 %v6409
        %v6505 = vunpack.c.l.b16 %v6410
        %v6506 = vunpack.c.h.b16 %v6410
        %v6507 = vpack.c.b16 %v6445, %v6443
        %v6508 = vpack.c.b16 %v6446, %v6444
        %v6509 = vpack.c.b16 %v6449, %v6447
        %v6510 = vpack.c.b16 %v6450, %v6448
        %v6511 = vpack.c.b16 %v6453, %v6451
        %v6512 = vpack.c.b16 %v6454, %v6452
        %v6513 = vpack.c.b16 %v6457, %v6455
        %v6514 = vpack.c.b16 %v6458, %v6456
        %v6515 = vpack.c.b16 %v6461, %v6459
        %v6516 = vpack.c.b16 %v6462, %v6460
        %v6517 = vpack.c.b16 %v6465, %v6463
        %v6518 = vpack.c.b16 %v6466, %v6464
        %v6519 = vpack.c.b16 %v6469, %v6467
        %v6520 = vpack.c.b16 %v6470, %v6468
        %v6521 = vpack.c.b16 %v6473, %v6471
        %v6522 = vpack.c.b16 %v6474, %v6472
        %v6523 = vpack.c.b16 %v6477, %v6475
        %v6524 = vpack.c.b16 %v6478, %v6476
        %v6525 = vpack.c.b16 %v6481, %v6479
        %v6526 = vpack.c.b16 %v6482, %v6480
        %v6527 = vpack.c.b16 %v6485, %v6483
        %v6528 = vpack.c.b16 %v6486, %v6484
        %v6529 = vpack.c.b16 %v6489, %v6487
        %v6530 = vpack.c.b16 %v6490, %v6488
        %v6531 = vpack.c.b16 %v6493, %v6491
        %v6532 = vpack.c.b16 %v6494, %v6492
        %v6533 = vpack.c.b16 %v6497, %v6495
        %v6534 = vpack.c.b16 %v6498, %v6496
        %v6535 = vpack.c.b16 %v6501, %v6499
        %v6536 = vpack.c.b16 %v6502, %v6500
        %v6537 = vpack.c.b16 %v6505, %v6503
        %v6538 = vpack.c.b16 %v6506, %v6504
        %6571 = vmatprep.subr.bf16.mxu0 %v6522
        %6572 = vmatpush1.bf16.msra.mxu0 %v6521
        %6573 = vmatprep.subr.bf16.mxu0 %v6520
        %6574 = vmatpush1.bf16.msra.mxu0 %v6519
        %6575 = vmatprep.subr.bf16.mxu0 %v6518
        %6576 = vmatpush1.bf16.msra.mxu0 %v6517
        %6577 = vmatprep.subr.bf16.mxu0 %v6516
        %6578 = vmatpush1.bf16.msra.mxu0 %v6515
        %6579 = vmatprep.subr.bf16.mxu0 %v6514
        %6580 = vmatpush1.bf16.msra.mxu0 %v6513
        %6581 = vmatprep.subr.bf16.mxu0 %v6512
        %6582 = vmatpush1.bf16.msra.mxu0 %v6511
        %6583 = vmatprep.subr.bf16.mxu0 %v6510
        %6584 = vmatpush1.bf16.msra.mxu0 %v6509
        %6585 = vmatprep.subr.bf16.mxu0 %v6508
        %6586 = vmatpush1.bf16.msra.mxu0 %v6507
        %6587 = vmatprep.subr.bf16.mxu0 %v6538
        %6588 = vmatpush2.bf16.msra.mxu0 %v6537
        %6589 = vmatprep.subr.bf16.mxu0 %v6536
        %6590 = vmatpush2.bf16.msra.mxu0 %v6535
        %6591 = vmatprep.subr.bf16.mxu0 %v6534
        %6592 = vmatpush2.bf16.msra.mxu0 %v6533
        %6593 = vmatprep.subr.bf16.mxu0 %v6532
        %6594 = vmatpush2.bf16.msra.mxu0 %v6531
        %6595 = vmatprep.subr.bf16.mxu0 %v6530
        %6596 = vmatpush2.bf16.msra.mxu0 %v6529
        %6597 = vmatprep.subr.bf16.mxu0 %v6528
        %6598 = vmatpush2.bf16.msra.mxu0 %v6527
        %6599 = vmatprep.subr.bf16.mxu0 %v6526
        %6600 = vmatpush2.bf16.msra.mxu0 %v6525
        %6601 = vmatprep.subr.bf16.mxu0 %v6524
        %6602 = vmatpush2.bf16.msra.mxu0 %v6523
        %6603 = vmatprep.mubr.bf16.mxu0 %v6378
        %6604 = vmatmul.mubr.bf16.gmra.mxu0 %v6377
        %v6605 = vpop.f32.mrf.mxu0
        %v6606 = vadd.f32 0.0, %v6605
        %v6607 = vpop.f32.mrf.mxu0
        %v6608 = vadd.f32 0.0, %v6607
        %v6609 = vpop.f32.mrf.mxu0
        %v6610 = vadd.f32 0.0, %v6609
        %v6611 = vpop.f32.mrf.mxu0
        %v6612 = vadd.f32 0.0, %v6611
        %6613 = vdwg.mxu0
        %v6614 = vld [vmem:[#allocation33] sm:$0x3]
        %v6616 = vlaneseq
        %v6617 = vshrl.u32 %v6616, 7
        %v6618 = vsub.s32 0, %v6617
        %v6619 = vrot.slane %v6614, %v6618
        %v6620 = vlaneseq
        %v6621 = vshrl.u32 %v6620, 7
        %v6622 = vsub.s32 1, %v6621
        %v6623 = vrot.slane %v6614, %v6622
        %v6626 = vmul.f32 %v6606, %v6619
        %v6627 = vmul.f32 %v6608, %v6623
        %v6628 = vmul.f32 %v6610, %v6619
        %v6629 = vmul.f32 %v6612, %v6623
        %v6630 = vld [vmem:[#allocation35] sm:$0x3]
        %v6632 = vlaneseq
        %v6633 = vshrl.u32 %v6632, 7
        %v6634 = vsub.s32 0, %v6633
        %v6635 = vrot.slane %v6630, %v6634
        %v6636 = vlaneseq
        %v6637 = vshrl.u32 %v6636, 7
        %v6638 = vsub.s32 1, %v6637
        %v6639 = vrot.slane %v6630, %v6638
        %v6642 = vadd.f32 %v6626, %v6635
        %v6643 = vadd.f32 %v6627, %v6639
        %v6644 = vadd.f32 %v6628, %v6635
        %v6645 = vadd.f32 %v6629, %v6639
        %v6646 = vmax.f32 %v6642, 0.0
        %v6647 = vmax.f32 %v6643, 0.0
        %v6648 = vmax.f32 %v6644, 0.0
        %v6649 = vmax.f32 %v6645, 0.0
        %6650 = vst [vmem:[%s933] sm:$0xff] %v6646
        %6651 = vst [vmem:[%s933 + $0x8] sm:$0xff] %v6647
        %6652 = vst [vmem:[%s933 + $0x10] sm:$0xff] %v6648
        %6653 = vst [vmem:[%s933 + $0x18] sm:$0xff] %v6649
        %s6654 = sand.u32 %s491, 1
        %s6655 = scalar_lea.sflag [#allocation8], %s6654
        %s6656 = sand.u32 %s491, 1
        %s6657 = smul.addr %s6656, 32
        %s6658 = scalar_lea.vmem [#allocation36], %s6657
        // Predicated region
        $region177: #{tpu_custom_call.1} parent=99 // pred_check
          %p6659 = pneg %p501
        $region178: #{tpu_custom_call.1} parent=99 // pred_check_branch
          %6661 = sbr.rel (%p6659) target = $region180
        $region179: #{tpu_custom_call.1} parent=99 // pred_region
          %s6663 = ssub.s32 512, 512
          %6664 = vsyncadd %s6655, %s6663
          %s6665 = smul.addr %s48, 4
          %s6666 = smul.addr %s6665, 128
          %s6667 = scalar_lea.hbm %s20, %s6666
          %s6668 = sshll.u32 %s6658, 4
          %s6669 = int_to_ptr.vmem [resolvable:$true] %s6668
          %6674 = dma.vmem_to_hbm [thread:$0]  %s6669, 512, %s6667, %s6655, 256, 256, 16
        $region180: #{tpu_custom_call.1} parent=99 // pred_fallthru
          _
      $region100: #{tpu_custom_call.1} parent=5 // pred_fallthru
        _
      %p6675 = scmp.le.s32.totalorder 2, %s43
      // Predicated region
      $region181: #{tpu_custom_call.1} parent=5 // pred_check
        %p6676 = pneg %p6675
      $region182: #{tpu_custom_call.1} parent=5 // pred_check_branch
        %6678 = sbr.rel (%p6676) target = $region184
      $region183: #{tpu_custom_call.1} parent=5 // pred_region
        %s6679 = ssub.s32 %s43, 2
        // Predicated region
        $region185: #{tpu_custom_call.1} parent=183 // pred_check
          %p6680 = pneg %p507
        $region186: #{tpu_custom_call.1} parent=183 // pred_check_branch
          %6682 = sbr.rel (%p6680) target = $region188
        $region187: #{tpu_custom_call.1} parent=183 // pred_region
          %s6683 = sand.u32 %s492, 1
          %s6684 = scalar_lea.sflag [#allocation8], %s6683
          %s6685 = sand.u32 %s492, 1
          %s6686 = smul.addr %s6685, 32
          %s6687 = scalar_lea.vmem [#allocation36], %s6686
          %6688 = dma.done %s6684, 512
        $region188: #{tpu_custom_call.1} parent=183 // pred_fallthru
          _
      $region184: #{tpu_custom_call.1} parent=5 // pred_fallthru
        _
    $region6: #{tpu_custom_call.1} parent=1 // loop_footer
      %s47 = sadd.s32 1, %s43
    $region7: #{tpu_custom_call.1} parent=1 // loop_footer_branch
      %42 = sbr.rel target = $region3
    $region8: #{tpu_custom_call.1} parent=1 // loop_exit
      _
    %6689 = vsyncpa [#allocation7], 1
    %s6690 = scalar_lea.sflag [#allocation7], 1
    %6691 = vsyncpa %s6690, 1
    %6692 = vsyncpa [#allocation10], 1
    %s6693 = scalar_lea.sflag [#allocation10], 1
    %6694 = vsyncpa %s6693, 1
    %6695 = vsyncpa [#allocation13], 1
    %6696 = vsyncpa [#allocation16], 1
    %6697 = vsyncpa [#allocation19], 1
    %6698 = vsyncpa [#allocation22], 1
    %6699 = vsyncpa [#allocation25], 1
    %6700 = vsyncpa [#allocation28], 1
    %6701 = vsyncpa [#allocation31], 1
    %6702 = vsyncpa [#allocation34], 1
    %6703 = vsyncpa [#allocation8], 1
    %s6704 = scalar_lea.sflag [#allocation8], 1
    %6705 = vsyncpa %s6704, 1

</llo_original>
